<compile_context>
chip_gen: v7x
topology: tpu7x:2x2x1
jax: 0.10.0
libtpu: 0.0.40
codegen_flags: <defaults>
</compile_context>

<pallas_src>
import jax
import jax.numpy as jnp
from jax.experimental import pallas as pl
from jax.experimental.pallas import tpu as pltpu

L_IN, L_HID, L_ATT = 1024, 768, 512          # size_dict['small'] = [1024, 768, 512]
N_CLASSES = 2
K_SAMPLE = 7


# ---------------------------------------------------------------- kernels ---

def _attn_pool_kernel(h_ref, w1_ref, b1_ref, wab_ref, bab_ref, wc_ref, bc_ref,
                      h1_out_ref, a_out_ref, m_out_ref,
                      m_scr, l_scr, acc_scr):
    """fc(1024->768)+ReLU, gated attention, attention head, and fused
    online-softmax attention pooling M = softmax(A) @ h over the whole bag."""
    i = pl.program_id(0)

    # fc: Linear(1024, 768) + ReLU   (bf16 inputs, f32 accumulation)
    h1 = jnp.dot(h_ref[...], w1_ref[...], preferred_element_type=jnp.float32)
    h1 = jnp.maximum(h1 + b1_ref[...], 0.0)                       # (TN, 768) f32

    # Attn_Net_Gated with fused [wa | wb] weight: one (TN,768)x(768,1024) matmul
    ab = jnp.dot(h1.astype(jnp.bfloat16), wab_ref[...],
                 preferred_element_type=jnp.float32) + bab_ref[...]   # (TN, 1024)
    a = jnp.tanh(ab[:, :L_ATT])
    b = jax.nn.sigmoid(ab[:, L_ATT:])
    g = a * b                                                      # (TN, 512)

    # attention_c: Linear(512, 1) as an MXU contraction -> lane-dense (1, TN)
    att = jax.lax.dot_general(wc_ref[...], g,
                              (((1,), (1,)), ((), ())),
                              preferred_element_type=jnp.float32) + bc_ref[...]

    h1_out_ref[...] = h1
    a_out_ref[...] = att

    # --- online softmax pooling across grid tiles (scratch persists) ---
    @pl.when(i == 0)
    def _():
        m_scr[...] = jnp.full_like(m_scr, -jnp.inf)
        l_scr[...] = jnp.zeros_like(l_scr)
        acc_scr[...] = jnp.zeros_like(acc_scr)

    tile_max = jnp.max(att, axis=1, keepdims=True)                 # (1, 1)
    m_prev = m_scr[...]
    m_new = jnp.maximum(m_prev, tile_max)
    corr = jnp.exp(m_prev - m_new)                                 # (1, 1)
    p = jnp.exp(att - m_new)                                       # (1, TN)
    l_scr[...] = corr * l_scr[...] + jnp.sum(p, axis=1, keepdims=True)
    acc_scr[...] = corr * acc_scr[...] + jnp.dot(
        p, h1, preferred_element_type=jnp.float32)                 # (1, 768) via MXU
    m_scr[...] = m_new

    @pl.when(i == pl.num_programs(0) - 1)
    def _():
        m_out_ref[...] = acc_scr[...] / l_scr[...]


def _inst_cls_kernel(x_ref, w_ref, b_ref, tgtw_ref, colm_ref, rw_ref,
                     logits_ref, loss_ref):
    """All instance classifiers in one matmul.

    x:    (n_classes*2k, 768)   gathered top-p/top-n instances (tiled per class)
    w:    (768, n_classes*2)    per-class classifier weights stacked column-wise
    tgtw: (rows, n_classes*2)   one-hot of the target inside each class's 2 cols
    colm: (rows, n_classes*2)   1.0 on the 2 columns belonging to the row's class
    rw:   (rows, 1)             per-row loss weight (mask / count / n_classes)
    """
    big = jnp.dot(x_ref[...], w_ref[...],
                  preferred_element_type=jnp.float32) + b_ref[...]     # (rows, 2C)
    logits_ref[...] = big
    masked = jnp.where(colm_ref[...] > 0.5, big, -jnp.inf)
    m = jnp.max(masked, axis=1, keepdims=True)
    lse = m + jnp.log(jnp.sum(jnp.exp(masked - m), axis=1, keepdims=True))  # (rows,1)
    picked = jnp.sum(big * tgtw_ref[...], axis=1, keepdims=True)            # (rows,1)
    loss_ref[...] = jnp.broadcast_to(
        jnp.sum(rw_ref[...] * (lse - picked)), (1, 1))


# ------------------------------------------------------------ call wrappers ---

def _pick_tile(n):
    for t in (512, 256, 128):
        if n % t == 0:
            return t
    return n        # whole-array fallback (block == full dims is always legal)


def attn_pool_call(h, p):
    n = h.shape[0]
    tn = _pick_tile(n)
    nt = n // tn
    const = lambda i: (0, 0)
    args = (h.astype(jnp.bfloat16), p["w1"], p["b1"], p["wab"], p["bab"],
            p["wc"], p["bc"])
    return pl.pallas_call(
        _attn_pool_kernel,
        grid=(nt,),
        in_specs=[
            pl.BlockSpec((tn, L_IN), lambda i: (i, 0)),        # h tile
            pl.BlockSpec((L_IN, L_HID), const),                # w1 (resident)
            pl.BlockSpec((1, L_HID), const),                   # b1
            pl.BlockSpec((L_HID, 2 * L_ATT), const),           # [wa|wb] (resident)
            pl.BlockSpec((1, 2 * L_ATT), const),               # [ba|bb]
            pl.BlockSpec((1, L_ATT), const),                   # wc
            pl.BlockSpec((1, 1), const),                       # bc
        ],
        out_specs=(
            pl.BlockSpec((tn, L_HID), lambda i: (i, 0)),       # h after fc+ReLU
            pl.BlockSpec((1, tn), lambda i: (0, i)),           # A raw, lane-dense
            pl.BlockSpec((1, L_HID), const),                   # pooled M
        ),
        out_shape=(
            jax.ShapeDtypeStruct((n, L_HID), jnp.float32),
            jax.ShapeDtypeStruct((1, n), jnp.float32),
            jax.ShapeDtypeStruct((1, L_HID), jnp.float32),
        ),
        scratch_shapes=[
            pltpu.VMEM((1, 1), jnp.float32),       # running max
            pltpu.VMEM((1, 1), jnp.float32),       # running sum-exp
            pltpu.VMEM((1, L_HID), jnp.float32),   # running weighted sum of h
        ],
        # reduction accumulator across the instance axis -> "arbitrary"
        compiler_params=pltpu.CompilerParams(
            dimension_semantics=("arbitrary",),
            vmem_limit_bytes=32 * 1024 * 1024,
        ),
    )(*args)


def inst_cls_call(inst_flat, w_flat, b_flat, tgt_wide, col_mask, row_w):
    rows = inst_flat.shape[0]
    width = w_flat.shape[1]
    const = lambda i: (0, 0)
    args = (inst_flat.astype(jnp.bfloat16), w_flat, b_flat,
            tgt_wide, col_mask, row_w)
    return pl.pallas_call(
        _inst_cls_kernel,
        grid=(1,),
        in_specs=[
            pl.BlockSpec((rows, L_HID), const),
            pl.BlockSpec((L_HID, width), const),
            pl.BlockSpec((1, width), const),
            pl.BlockSpec((rows, width), const),
            pl.BlockSpec((rows, width), const),
            pl.BlockSpec((rows, 1), const),
        ],
        out_specs=(
            pl.BlockSpec((rows, width), const),
            pl.BlockSpec((1, 1), const),
        ),
        out_shape=(
            jax.ShapeDtypeStruct((rows, width), jnp.float32),
            jax.ShapeDtypeStruct((1, 1), jnp.float32),
        ),
        compiler_params=pltpu.CompilerParams(dimension_semantics=("arbitrary",)),
    )(*args)


# ------------------------------------------------------------------ forward ---

def clam_mre_forward(h, params, label, instance_eval=True, subtyping=True,
                     attention_only=False, k_sample=K_SAMPLE, n_classes=N_CLASSES):
    """Mirrors CLAM_mre.forward. `label` is a traced int32 scalar (jit-able)."""
    h = h.reshape((-1, h.shape[-1]))                    # robust h.squeeze() (keeps N==1 bags)
    h1, a_raw, pooled = attn_pool_call(h, params)       # h1:(N,768) A_raw:(1,N) M:(1,768)
    if attention_only:
        return a_raw

    results = {}
    if instance_eval:
        a_vec = a_raw[0]                                # raw scores; softmax is monotone,
        top_p_ids = jax.lax.top_k(a_vec, k_sample)[1]   # so top-k indices are identical
        top_n_ids = jax.lax.top_k(-a_vec, k_sample)[1]
        base = jnp.concatenate([h1[top_p_ids], h1[top_n_ids]], axis=0)   # (2k, 768)
        inst_flat = jnp.tile(base, (n_classes, 1))                       # (C*2k, 768)

        label_arr = jnp.asarray(label, jnp.int32)
        cls_ids = jnp.arange(n_classes, dtype=jnp.int32)[:, None]        # (C,1)
        row_ids = jnp.arange(2 * k_sample, dtype=jnp.int32)[None, :]     # (1,2k)
        is_in = (cls_ids == label_arr)                                   # (C,1)
        # inst_eval: top_p -> 1, top_n -> 0 ; inst_eval_out: top_p -> 0
        targets = ((row_ids < k_sample) & is_in).astype(jnp.int32)       # (C,2k)
        if subtyping:
            valid = (row_ids < k_sample) | is_in                         # (C,2k)
            n_valid = k_sample * (n_classes + 1)
        else:
            valid = jnp.broadcast_to(is_in, (n_classes, 2 * k_sample))
            n_valid = 2 * k_sample
        counts = jnp.sum(valid, axis=1, keepdims=True).astype(jnp.float32)
        denom = jnp.maximum(counts, 1.0) * (n_classes if subtyping else 1)
        row_w = (valid.astype(jnp.float32) / denom).reshape(-1, 1)       # (C*2k,1)

        targets_flat = targets.reshape(-1)
        class_of_row = jnp.repeat(jnp.arange(n_classes, dtype=jnp.int32),
                                  2 * k_sample)                          # (C*2k,)
        tgt_wide = jax.nn.one_hot(2 * class_of_row + targets_flat,
                                  2 * n_classes, dtype=jnp.float32)
        col_mask = (jnp.arange(2 * n_classes, dtype=jnp.int32)[None, :] // 2
                    == class_of_row[:, None]).astype(jnp.float32)

        logits_big, loss = inst_cls_call(inst_flat, params["inst_w_flat"],
                                         params["inst_b_flat"],
                                         tgt_wide, col_mask, row_w)
        # pull out each class's own 2-column block: (C, 2k, 2)
        big4 = logits_big.reshape(n_classes, 2 * k_sample, n_classes, 2)
        cls = jnp.arange(n_classes)
        logits2 = big4[cls, :, cls, :]
        preds = jnp.argmax(logits2, axis=-1).reshape(-1).astype(jnp.int32)

        # keep only valid rows, in class-major order (matches torch concat order)
        idx = jnp.nonzero(valid.reshape(-1), size=n_valid)[0]
        results = {
            "instance_loss": loss[0, 0],
            "inst_labels": targets_flat[idx],
            "inst_preds": preds[idx],
        }
    return pooled, a_raw, results


# ------------------------------------------------------------------- params ---

def init_params(key):
    ks = jax.random.split(key, 4 + N_CLASSES)

    def lin(k, fan_in, shape):
        return jax.random.normal(k, shape, jnp.float32) / jnp.sqrt(jnp.float32(fan_in))

    w1 = lin(ks[0], L_IN, (L_IN, L_HID))
    wa = lin(ks[1], L_HID, (L_HID, L_ATT))
    wb = lin(ks[2], L_HID, (L_HID, L_ATT))
    wc = lin(ks[3], L_ATT, (1, L_ATT))                       # Linear(512,1).weight layout
    inst_w = [lin(ks[4 + i], L_HID, (L_HID, 2)) for i in range(N_CLASSES)]
    return {
        "w1": w1.astype(jnp.bfloat16),
        "b1": jnp.zeros((1, L_HID), jnp.float32),
        "wab": jnp.concatenate([wa, wb], axis=1).astype(jnp.bfloat16),  # [tanh | sigmoid]
        "bab": jnp.zeros((1, 2 * L_ATT), jnp.float32),
        "wc": wc,
        "bc": jnp.zeros((1, 1), jnp.float32),
        "inst_w_flat": jnp.concatenate(inst_w, axis=1).astype(jnp.bfloat16),  # (768, 2C)
        "inst_b_flat": jnp.zeros((1, 2 * N_CLASSES), jnp.float32),
    }


# --------------------------------------------------------------------- main ---

if __name__ == "__main__":
    key = jax.random.PRNGKey(0)
    k_h, k_p = jax.random.split(key)

    N = 256                                              # bag of instances (2 grid tiles)
    h = jax.random.normal(k_h, (N, L_IN), dtype=jnp.float32)
    params = init_params(k_p)
    label = jnp.int32(1)

    fwd = jax.jit(lambda hh, pp, ll: clam_mre_forward(
        hh, pp, ll, instance_eval=True, subtyping=True))
    M, A_raw, results = fwd(h, params, label)

    assert M.shape == (1, L_HID)
    assert A_raw.shape == (1, N)
    assert results["inst_preds"].shape == (K_SAMPLE * (N_CLASSES + 1),)
    assert results["inst_labels"].shape == (K_SAMPLE * (N_CLASSES + 1),)

    jax.block_until_ready((M, A_raw, results["instance_loss"],
                           results["inst_preds"], results["inst_labels"]))
    print("KERNEL_OK")
</pallas_src>

<mosaic_0001>
module attributes {stable_mosaic.version = 11 : i64} {
  func.func @_attn_pool_kernel(%arg0: i32, %arg1: memref<256x1024xbf16, #tpu.memory_space<vmem>>, %arg2: memref<1024x768xbf16, #tpu.memory_space<vmem>>, %arg3: memref<1x768xf32, #tpu.memory_space<vmem>>, %arg4: memref<768x1024xbf16, #tpu.memory_space<vmem>>, %arg5: memref<1x1024xf32, #tpu.memory_space<vmem>>, %arg6: memref<1x512xf32, #tpu.memory_space<vmem>>, %arg7: memref<1x1xf32, #tpu.memory_space<vmem>>, %arg8: memref<256x768xf32, #tpu.memory_space<vmem>>, %arg9: memref<1x256xf32, #tpu.memory_space<vmem>>, %arg10: memref<1x768xf32, #tpu.memory_space<vmem>>, %arg11: memref<1x1xf32, #tpu.memory_space<vmem>>, %arg12: memref<1x1xf32, #tpu.memory_space<vmem>>, %arg13: memref<1x768xf32, #tpu.memory_space<vmem>>) attributes {dimension_semantics = [#tpu.dimension_semantics<arbitrary>], iteration_bounds = array<i64: 1>, scalar_prefetch = 0 : i64, scratch_operands = 3 : i64, tpu.core_type = #tpu.core_type<tc>, window_params = [{transform_indices = @transform_0, window_bounds = array<i64: 256, 1024>}, {pipeline_mode = #tpu.pipeline_mode<synchronous>, transform_indices = @transform_1, window_bounds = array<i64: 1024, 768>}, {pipeline_mode = #tpu.pipeline_mode<synchronous>, transform_indices = @transform_2, window_bounds = array<i64: 1, 768>}, {pipeline_mode = #tpu.pipeline_mode<synchronous>, transform_indices = @transform_3, window_bounds = array<i64: 768, 1024>}, {pipeline_mode = #tpu.pipeline_mode<synchronous>, transform_indices = @transform_4, window_bounds = array<i64: 1, 1024>}, {pipeline_mode = #tpu.pipeline_mode<synchronous>, transform_indices = @transform_5, window_bounds = array<i64: 1, 512>}, {pipeline_mode = #tpu.pipeline_mode<synchronous>, transform_indices = @transform_6, window_bounds = array<i64: 1, 1>}, {transform_indices = @transform_7, window_bounds = array<i64: 256, 768>}, {transform_indices = @transform_8, window_bounds = array<i64: 1, 256>}, {pipeline_mode = #tpu.pipeline_mode<synchronous>, transform_indices = @transform_9, window_bounds = array<i64: 1, 768>}]} {
    %c0 = arith.constant 0 : index
    %c0_0 = arith.constant 0 : index
    %0 = vector.load %arg1[%c0, %c0_0] : memref<256x1024xbf16, #tpu.memory_space<vmem>>, vector<256x1024xbf16>
    %c0_1 = arith.constant 0 : index
    %c0_2 = arith.constant 0 : index
    %1 = vector.load %arg2[%c0_1, %c0_2] : memref<1024x768xbf16, #tpu.memory_space<vmem>>, vector<1024x768xbf16>
    %cst = arith.constant dense<0.000000e+00> : vector<256x768xf32>
    %2 = tpu.matmul %0, %1, %cst {dimension_numbers = #tpu.dot_dimension_numbers<[1], [0], [0], [1], [0, 0, 1, 1], [], []>} : vector<256x1024xbf16>, vector<1024x768xbf16>, vector<256x768xf32> -> vector<256x768xf32>
    %c0_3 = arith.constant 0 : index
    %c0_4 = arith.constant 0 : index
    %3 = vector.load %arg3[%c0_3, %c0_4] : memref<1x768xf32, #tpu.memory_space<vmem>>, vector<1x768xf32>
    %4 = vector.broadcast %3 : vector<1x768xf32> to vector<256x768xf32>
    %5 = arith.addf %2, %4 : vector<256x768xf32>
    %cst_5 = arith.constant 0.000000e+00 : f32
    %6 = vector.broadcast %cst_5 : f32 to vector<256x768xf32>
    %7 = arith.maximumf %5, %6 : vector<256x768xf32>
    %8 = arith.truncf %7 : vector<256x768xf32> to vector<256x768xbf16>
    %c0_6 = arith.constant 0 : index
    %c0_7 = arith.constant 0 : index
    %9 = vector.load %arg4[%c0_6, %c0_7] : memref<768x1024xbf16, #tpu.memory_space<vmem>>, vector<768x1024xbf16>
    %cst_8 = arith.constant dense<0.000000e+00> : vector<256x1024xf32>
    %10 = tpu.matmul %8, %9, %cst_8 {dimension_numbers = #tpu.dot_dimension_numbers<[1], [0], [0], [1], [0, 0, 1, 1], [], []>} : vector<256x768xbf16>, vector<768x1024xbf16>, vector<256x1024xf32> -> vector<256x1024xf32>
    %c0_9 = arith.constant 0 : index
    %c0_10 = arith.constant 0 : index
    %11 = vector.load %arg5[%c0_9, %c0_10] : memref<1x1024xf32, #tpu.memory_space<vmem>>, vector<1x1024xf32>
    %12 = vector.broadcast %11 : vector<1x1024xf32> to vector<256x1024xf32>
    %13 = arith.addf %10, %12 : vector<256x1024xf32>
    %14 = vector.extract_strided_slice %13 {offsets = [0, 0], sizes = [256, 512], strides = [1, 1]} : vector<256x1024xf32> to vector<256x512xf32>
    %15 = math.tanh %14 : vector<256x512xf32>
    %16 = vector.extract_strided_slice %13 {offsets = [0, 512], sizes = [256, 512], strides = [1, 1]} : vector<256x1024xf32> to vector<256x512xf32>
    %17 = arith.negf %16 : vector<256x512xf32>
    %18 = math.exp %17 : vector<256x512xf32>
    %cst_11 = arith.constant 1.000000e+00 : f32
    %19 = vector.broadcast %cst_11 : f32 to vector<256x512xf32>
    %20 = arith.addf %19, %18 : vector<256x512xf32>
    %21 = arith.divf %19, %20 : vector<256x512xf32>
    %22 = arith.mulf %15, %21 : vector<256x512xf32>
    %c0_12 = arith.constant 0 : index
    %c0_13 = arith.constant 0 : index
    %23 = vector.load %arg6[%c0_12, %c0_13] : memref<1x512xf32, #tpu.memory_space<vmem>>, vector<1x512xf32>
    %cst_14 = arith.constant dense<0.000000e+00> : vector<1x256xf32>
    %24 = tpu.matmul %23, %22, %cst_14 {dimension_numbers = #tpu.dot_dimension_numbers<[1], [1], [0], [0], [0, 0, 1, 0], [], []>} : vector<1x512xf32>, vector<256x512xf32>, vector<1x256xf32> -> vector<1x256xf32>
    %c0_15 = arith.constant 0 : index
    %c0_16 = arith.constant 0 : index
    %25 = vector.load %arg7[%c0_15, %c0_16] : memref<1x1xf32, #tpu.memory_space<vmem>>, vector<1x1xf32>
    %26 = vector.broadcast %25 : vector<1x1xf32> to vector<1x256xf32>
    %27 = arith.addf %24, %26 : vector<1x256xf32>
    %c0_17 = arith.constant 0 : index
    %c0_18 = arith.constant 0 : index
    %28 = vector.load %arg8[%c0_17, %c0_18] : memref<256x768xf32, #tpu.memory_space<vmem>>, vector<256x768xf32>
    tpu.vector_store %arg8[%c0_17, %c0_18], %7 {strides = array<i32>} : memref<256x768xf32, #tpu.memory_space<vmem>>, vector<256x768xf32>,
    %c0_19 = arith.constant 0 : index
    %c0_20 = arith.constant 0 : index
    %29 = vector.load %arg9[%c0_19, %c0_20] : memref<1x256xf32, #tpu.memory_space<vmem>>, vector<1x256xf32>
    tpu.vector_store %arg9[%c0_19, %c0_20], %27 {strides = array<i32>} : memref<1x256xf32, #tpu.memory_space<vmem>>, vector<1x256xf32>,
    %c0_i32 = arith.constant 0 : i32
    %30 = arith.cmpi eq, %arg0, %c0_i32 : i32
    %31 = arith.extui %30 : i1 to i32
    %c0_i32_21 = arith.constant 0 : i32
    %32 = arith.cmpi ne, %31, %c0_i32_21 : i32
    scf.if %32 {
      %cst_39 = arith.constant 0xFF800000 : f32
      %58 = vector.broadcast %cst_39 : f32 to vector<1x1xf32>
      %c0_40 = arith.constant 0 : index
      %c0_41 = arith.constant 0 : index
      %59 = vector.load %arg11[%c0_40, %c0_41] : memref<1x1xf32, #tpu.memory_space<vmem>>, vector<1x1xf32>
      tpu.vector_store %arg11[%c0_40, %c0_41], %58 {strides = array<i32>} : memref<1x1xf32, #tpu.memory_space<vmem>>, vector<1x1xf32>,
      %cst_42 = arith.constant 0.000000e+00 : f32
      %60 = vector.broadcast %cst_42 : f32 to vector<1x1xf32>
      %c0_43 = arith.constant 0 : index
      %c0_44 = arith.constant 0 : index
      %61 = vector.load %arg12[%c0_43, %c0_44] : memref<1x1xf32, #tpu.memory_space<vmem>>, vector<1x1xf32>
      tpu.vector_store %arg12[%c0_43, %c0_44], %60 {strides = array<i32>} : memref<1x1xf32, #tpu.memory_space<vmem>>, vector<1x1xf32>,
      %cst_45 = arith.constant 0.000000e+00 : f32
      %62 = vector.broadcast %cst_45 : f32 to vector<1x768xf32>
      %c0_46 = arith.constant 0 : index
      %c0_47 = arith.constant 0 : index
      %63 = vector.load %arg13[%c0_46, %c0_47] : memref<1x768xf32, #tpu.memory_space<vmem>>, vector<1x768xf32>
      tpu.vector_store %arg13[%c0_46, %c0_47], %62 {strides = array<i32>} : memref<1x768xf32, #tpu.memory_space<vmem>>, vector<1x768xf32>,
    } else {
    }
    %cst_22 = arith.constant dense<0xFF800000> : vector<1xf32>
    %33 = vector.multi_reduction <maximumf>, %27, %cst_22 [1] : vector<1x256xf32> to vector<1xf32>
    %34 = vector.shape_cast %33 : vector<1xf32> to vector<1x1xf32>
    %c0_23 = arith.constant 0 : index
    %c0_24 = arith.constant 0 : index
    %35 = vector.load %arg11[%c0_23, %c0_24] : memref<1x1xf32, #tpu.memory_space<vmem>>, vector<1x1xf32>
    %36 = arith.maximumf %35, %34 : vector<1x1xf32>
    %37 = arith.subf %35, %36 : vector<1x1xf32>
    %38 = math.exp %37 : vector<1x1xf32>
    %39 = vector.broadcast %36 : vector<1x1xf32> to vector<1x256xf32>
    %40 = arith.subf %27, %39 : vector<1x256xf32>
    %41 = math.exp %40 : vector<1x256xf32>
    %c0_25 = arith.constant 0 : index
    %c0_26 = arith.constant 0 : index
    %42 = vector.load %arg12[%c0_25, %c0_26] : memref<1x1xf32, #tpu.memory_space<vmem>>, vector<1x1xf32>
    %43 = arith.mulf %38, %42 : vector<1x1xf32>
    %cst_27 = arith.constant dense<0.000000e+00> : vector<1xf32>
    %44 = vector.multi_reduction <add>, %41, %cst_27 [1] : vector<1x256xf32> to vector<1xf32>
    %45 = vector.shape_cast %44 : vector<1xf32> to vector<1x1xf32>
    %46 = arith.addf %43, %45 : vector<1x1xf32>
    %c0_28 = arith.constant 0 : index
    %c0_29 = arith.constant 0 : index
    %47 = vector.load %arg12[%c0_28, %c0_29] : memref<1x1xf32, #tpu.memory_space<vmem>>, vector<1x1xf32>
    tpu.vector_store %arg12[%c0_28, %c0_29], %46 {strides = array<i32>} : memref<1x1xf32, #tpu.memory_space<vmem>>, vector<1x1xf32>,
    %c0_30 = arith.constant 0 : index
    %c0_31 = arith.constant 0 : index
    %48 = vector.load %arg13[%c0_30, %c0_31] : memref<1x768xf32, #tpu.memory_space<vmem>>, vector<1x768xf32>
    %49 = vector.broadcast %38 : vector<1x1xf32> to vector<1x768xf32>
    %50 = arith.mulf %49, %48 : vector<1x768xf32>
    %cst_32 = arith.constant dense<0.000000e+00> : vector<1x768xf32>
    %51 = tpu.matmul %41, %7, %cst_32 {dimension_numbers = #tpu.dot_dimension_numbers<[1], [0], [0], [1], [0, 0, 1, 1], [], []>} : vector<1x256xf32>, vector<256x768xf32>, vector<1x768xf32> -> vector<1x768xf32>
    %52 = arith.addf %50, %51 : vector<1x768xf32>
    %c0_33 = arith.constant 0 : index
    %c0_34 = arith.constant 0 : index
    %53 = vector.load %arg13[%c0_33, %c0_34] : memref<1x768xf32, #tpu.memory_space<vmem>>, vector<1x768xf32>
    tpu.vector_store %arg13[%c0_33, %c0_34], %52 {strides = array<i32>} : memref<1x768xf32, #tpu.memory_space<vmem>>, vector<1x768xf32>,
    %c0_35 = arith.constant 0 : index
    %c0_36 = arith.constant 0 : index
    %54 = vector.load %arg11[%c0_35, %c0_36] : memref<1x1xf32, #tpu.memory_space<vmem>>, vector<1x1xf32>
    tpu.vector_store %arg11[%c0_35, %c0_36], %36 {strides = array<i32>} : memref<1x1xf32, #tpu.memory_space<vmem>>, vector<1x1xf32>,
    %c0_i32_37 = arith.constant 0 : i32
    %55 = arith.cmpi eq, %arg0, %c0_i32_37 : i32
    %56 = arith.extui %55 : i1 to i32
    %c0_i32_38 = arith.constant 0 : i32
    %57 = arith.cmpi ne, %56, %c0_i32_38 : i32
    scf.if %57 {
      %c0_39 = arith.constant 0 : index
      %c0_40 = arith.constant 0 : index
      %58 = vector.load %arg13[%c0_39, %c0_40] : memref<1x768xf32, #tpu.memory_space<vmem>>, vector<1x768xf32>
      %c0_41 = arith.constant 0 : index
      %c0_42 = arith.constant 0 : index
      %59 = vector.load %arg12[%c0_41, %c0_42] : memref<1x1xf32, #tpu.memory_space<vmem>>, vector<1x1xf32>
      %60 = vector.broadcast %59 : vector<1x1xf32> to vector<1x768xf32>
      %61 = arith.divf %58, %60 : vector<1x768xf32>
      %c0_43 = arith.constant 0 : index
      %c0_44 = arith.constant 0 : index
      %62 = vector.load %arg10[%c0_43, %c0_44] : memref<1x768xf32, #tpu.memory_space<vmem>>, vector<1x768xf32>
      tpu.vector_store %arg10[%c0_43, %c0_44], %61 {strides = array<i32>} : memref<1x768xf32, #tpu.memory_space<vmem>>, vector<1x768xf32>,
    } else {
    }
    return
  }
  func.func @transform_0(%arg0: i32) -> (i32, i32) {
    %c0_i32 = arith.constant 0 : i32
    %c0_i32_0 = arith.constant 0 : i32
    return %arg0, %c0_i32 : i32, i32
  }
  func.func @transform_1(%arg0: i32) -> (i32, i32) {
    %c0_i32 = arith.constant 0 : i32
    %c0_i32_0 = arith.constant 0 : i32
    %c0_i32_1 = arith.constant 0 : i32
    return %c0_i32, %c0_i32_0 : i32, i32
  }
  func.func @transform_2(%arg0: i32) -> (i32, i32) {
    %c0_i32 = arith.constant 0 : i32
    %c0_i32_0 = arith.constant 0 : i32
    %c0_i32_1 = arith.constant 0 : i32
    return %c0_i32, %c0_i32_0 : i32, i32
  }
  func.func @transform_3(%arg0: i32) -> (i32, i32) {
    %c0_i32 = arith.constant 0 : i32
    %c0_i32_0 = arith.constant 0 : i32
    %c0_i32_1 = arith.constant 0 : i32
    return %c0_i32, %c0_i32_0 : i32, i32
  }
  func.func @transform_4(%arg0: i32) -> (i32, i32) {
    %c0_i32 = arith.constant 0 : i32
    %c0_i32_0 = arith.constant 0 : i32
    %c0_i32_1 = arith.constant 0 : i32
    return %c0_i32, %c0_i32_0 : i32, i32
  }
  func.func @transform_5(%arg0: i32) -> (i32, i32) {
    %c0_i32 = arith.constant 0 : i32
    %c0_i32_0 = arith.constant 0 : i32
    %c0_i32_1 = arith.constant 0 : i32
    return %c0_i32, %c0_i32_0 : i32, i32
  }
  func.func @transform_6(%arg0: i32) -> (i32, i32) {
    %c0_i32 = arith.constant 0 : i32
    %c0_i32_0 = arith.constant 0 : i32
    %c0_i32_1 = arith.constant 0 : i32
    return %c0_i32, %c0_i32_0 : i32, i32
  }
  func.func @transform_7(%arg0: i32) -> (i32, i32) {
    %c0_i32 = arith.constant 0 : i32
    %c0_i32_0 = arith.constant 0 : i32
    return %arg0, %c0_i32 : i32, i32
  }
  func.func @transform_8(%arg0: i32) -> (i32, i32) {
    %c0_i32 = arith.constant 0 : i32
    %c0_i32_0 = arith.constant 0 : i32
    return %c0_i32, %arg0 : i32, i32
  }
  func.func @transform_9(%arg0: i32) -> (i32, i32) {
    %c0_i32 = arith.constant 0 : i32
    %c0_i32_0 = arith.constant 0 : i32
    %c0_i32_1 = arith.constant 0 : i32
    return %c0_i32, %c0_i32_0 : i32, i32
  }
}

module attributes {stable_mosaic.version = 11 : i64} {
  func.func @_inst_cls_kernel(%arg0: i32, %arg1: memref<28x768xbf16, #tpu.memory_space<vmem>>, %arg2: memref<768x4xbf16, #tpu.memory_space<vmem>>, %arg3: memref<1x4xf32, #tpu.memory_space<vmem>>, %arg4: memref<28x4xf32, #tpu.memory_space<vmem>>, %arg5: memref<28x4xf32, #tpu.memory_space<vmem>>, %arg6: memref<28x1xf32, #tpu.memory_space<vmem>>, %arg7: memref<28x4xf32, #tpu.memory_space<vmem>>, %arg8: memref<1x1xf32, #tpu.memory_space<vmem>>) attributes {dimension_semantics = [#tpu.dimension_semantics<arbitrary>], iteration_bounds = array<i64: 1>, scalar_prefetch = 0 : i64, scratch_operands = 0 : i64, tpu.core_type = #tpu.core_type<tc>, window_params = [{pipeline_mode = #tpu.pipeline_mode<synchronous>, transform_indices = @transform_0, window_bounds = array<i64: 28, 768>}, {pipeline_mode = #tpu.pipeline_mode<synchronous>, transform_indices = @transform_1, window_bounds = array<i64: 768, 4>}, {pipeline_mode = #tpu.pipeline_mode<synchronous>, transform_indices = @transform_2, window_bounds = array<i64: 1, 4>}, {pipeline_mode = #tpu.pipeline_mode<synchronous>, transform_indices = @transform_3, window_bounds = array<i64: 28, 4>}, {pipeline_mode = #tpu.pipeline_mode<synchronous>, transform_indices = @transform_4, window_bounds = array<i64: 28, 4>}, {pipeline_mode = #tpu.pipeline_mode<synchronous>, transform_indices = @transform_5, window_bounds = array<i64: 28, 1>}, {pipeline_mode = #tpu.pipeline_mode<synchronous>, transform_indices = @transform_6, window_bounds = array<i64: 28, 4>}, {pipeline_mode = #tpu.pipeline_mode<synchronous>, transform_indices = @transform_7, window_bounds = array<i64: 1, 1>}]} {
    %c0 = arith.constant 0 : index
    %c0_0 = arith.constant 0 : index
    %0 = vector.load %arg1[%c0, %c0_0] : memref<28x768xbf16, #tpu.memory_space<vmem>>, vector<28x768xbf16>
    %c0_1 = arith.constant 0 : index
    %c0_2 = arith.constant 0 : index
    %1 = vector.load %arg2[%c0_1, %c0_2] : memref<768x4xbf16, #tpu.memory_space<vmem>>, vector<768x4xbf16>
    %cst = arith.constant dense<0.000000e+00> : vector<28x4xf32>
    %2 = tpu.matmul %0, %1, %cst {dimension_numbers = #tpu.dot_dimension_numbers<[1], [0], [0], [1], [0, 0, 1, 1], [], []>} : vector<28x768xbf16>, vector<768x4xbf16>, vector<28x4xf32> -> vector<28x4xf32>
    %c0_3 = arith.constant 0 : index
    %c0_4 = arith.constant 0 : index
    %3 = vector.load %arg3[%c0_3, %c0_4] : memref<1x4xf32, #tpu.memory_space<vmem>>, vector<1x4xf32>
    %4 = vector.broadcast %3 : vector<1x4xf32> to vector<28x4xf32>
    %5 = arith.addf %2, %4 : vector<28x4xf32>
    %c0_5 = arith.constant 0 : index
    %c0_6 = arith.constant 0 : index
    %6 = vector.load %arg7[%c0_5, %c0_6] : memref<28x4xf32, #tpu.memory_space<vmem>>, vector<28x4xf32>
    tpu.vector_store %arg7[%c0_5, %c0_6], %5 {strides = array<i32>} : memref<28x4xf32, #tpu.memory_space<vmem>>, vector<28x4xf32>,
    %c0_7 = arith.constant 0 : index
    %c0_8 = arith.constant 0 : index
    %7 = vector.load %arg5[%c0_7, %c0_8] : memref<28x4xf32, #tpu.memory_space<vmem>>, vector<28x4xf32>
    %cst_9 = arith.constant 5.000000e-01 : f32
    %8 = vector.broadcast %cst_9 : f32 to vector<28x4xf32>
    %9 = arith.cmpf ogt, %7, %8 : vector<28x4xf32>
    %cst_10 = arith.constant 0xFF800000 : f32
    %10 = vector.broadcast %cst_10 : f32 to vector<28x4xf32>
    %11 = arith.select %9, %5, %10 : vector<28x4xi1>, vector<28x4xf32>
    %cst_11 = arith.constant dense<0xFF800000> : vector<28xf32>
    %12 = vector.multi_reduction <maximumf>, %11, %cst_11 [1] : vector<28x4xf32> to vector<28xf32>
    %13 = vector.shape_cast %12 : vector<28xf32> to vector<28x1xf32>
    %14 = vector.broadcast %13 : vector<28x1xf32> to vector<28x4xf32>
    %15 = arith.subf %11, %14 : vector<28x4xf32>
    %16 = math.exp %15 : vector<28x4xf32>
    %cst_12 = arith.constant dense<0.000000e+00> : vector<28xf32>
    %17 = vector.multi_reduction <add>, %16, %cst_12 [1] : vector<28x4xf32> to vector<28xf32>
    %18 = vector.shape_cast %17 : vector<28xf32> to vector<28x1xf32>
    %19 = math.log %18 : vector<28x1xf32>
    %20 = arith.addf %13, %19 : vector<28x1xf32>
    %c0_13 = arith.constant 0 : index
    %c0_14 = arith.constant 0 : index
    %21 = vector.load %arg4[%c0_13, %c0_14] : memref<28x4xf32, #tpu.memory_space<vmem>>, vector<28x4xf32>
    %22 = arith.mulf %5, %21 : vector<28x4xf32>
    %cst_15 = arith.constant dense<0.000000e+00> : vector<28xf32>
    %23 = vector.multi_reduction <add>, %22, %cst_15 [1] : vector<28x4xf32> to vector<28xf32>
    %24 = vector.shape_cast %23 : vector<28xf32> to vector<28x1xf32>
    %c0_16 = arith.constant 0 : index
    %c0_17 = arith.constant 0 : index
    %25 = vector.load %arg6[%c0_16, %c0_17] : memref<28x1xf32, #tpu.memory_space<vmem>>, vector<28x1xf32>
    %26 = arith.subf %20, %24 : vector<28x1xf32>
    %27 = arith.mulf %25, %26 : vector<28x1xf32>
    %28 = vector.shape_cast %27 : vector<28x1xf32> to vector<1x28x1xf32>
    %cst_18 = arith.constant dense<0.000000e+00> : vector<1xf32>
    %29 = vector.multi_reduction <add>, %28, %cst_18 [1, 2] : vector<1x28x1xf32> to vector<1xf32>
    %30 = vector.shape_cast %29 : vector<1xf32> to vector<1x1x1xf32>
    %31 = vector.extract %30[0, 0, 0] : f32 from vector<1x1x1xf32>
    %32 = vector.broadcast %31 : f32 to vector<1x1xf32>
    %c0_19 = arith.constant 0 : index
    %c0_20 = arith.constant 0 : index
    %33 = vector.load %arg8[%c0_19, %c0_20] : memref<1x1xf32, #tpu.memory_space<vmem>>, vector<1x1xf32>
    tpu.vector_store %arg8[%c0_19, %c0_20], %32 {strides = array<i32>} : memref<1x1xf32, #tpu.memory_space<vmem>>, vector<1x1xf32>,
    return
  }
  func.func @transform_0(%arg0: i32) -> (i32, i32) {
    %c0_i32 = arith.constant 0 : i32
    %c0_i32_0 = arith.constant 0 : i32
    %c0_i32_1 = arith.constant 0 : i32
    return %c0_i32, %c0_i32_0 : i32, i32
  }
  func.func @transform_1(%arg0: i32) -> (i32, i32) {
    %c0_i32 = arith.constant 0 : i32
    %c0_i32_0 = arith.constant 0 : i32
    %c0_i32_1 = arith.constant 0 : i32
    return %c0_i32, %c0_i32_0 : i32, i32
  }
  func.func @transform_2(%arg0: i32) -> (i32, i32) {
    %c0_i32 = arith.constant 0 : i32
    %c0_i32_0 = arith.constant 0 : i32
    %c0_i32_1 = arith.constant 0 : i32
    return %c0_i32, %c0_i32_0 : i32, i32
  }
  func.func @transform_3(%arg0: i32) -> (i32, i32) {
    %c0_i32 = arith.constant 0 : i32
    %c0_i32_0 = arith.constant 0 : i32
    %c0_i32_1 = arith.constant 0 : i32
    return %c0_i32, %c0_i32_0 : i32, i32
  }
  func.func @transform_4(%arg0: i32) -> (i32, i32) {
    %c0_i32 = arith.constant 0 : i32
    %c0_i32_0 = arith.constant 0 : i32
    %c0_i32_1 = arith.constant 0 : i32
    return %c0_i32, %c0_i32_0 : i32, i32
  }
  func.func @transform_5(%arg0: i32) -> (i32, i32) {
    %c0_i32 = arith.constant 0 : i32
    %c0_i32_0 = arith.constant 0 : i32
    %c0_i32_1 = arith.constant 0 : i32
    return %c0_i32, %c0_i32_0 : i32, i32
  }
  func.func @transform_6(%arg0: i32) -> (i32, i32) {
    %c0_i32 = arith.constant 0 : i32
    %c0_i32_0 = arith.constant 0 : i32
    %c0_i32_1 = arith.constant 0 : i32
    return %c0_i32, %c0_i32_0 : i32, i32
  }
  func.func @transform_7(%arg0: i32) -> (i32, i32) {
    %c0_i32 = arith.constant 0 : i32
    %c0_i32_0 = arith.constant 0 : i32
    %c0_i32_1 = arith.constant 0 : i32
    return %c0_i32, %c0_i32_0 : i32, i32
  }
}

</mosaic_0001>

<llo_original>
// kernel: neg.1
$region0: #{neg.1}
  #allocation0 [shape = 's32[1]{0}', space=sflag, size = 0x4, scoped, tag = 'scoped memory for neg.1']
  %s0 = inlined_call_operand.vmem [shape: f32[256], index: 0, kind: input, shape index: {}]
  %s1 = inlined_call_operand.vmem [shape: f32[256], index: 1, kind: output, shape index: {}]
  %v2 = vld [vmem:[%s0] sm:$0x3]
  %3 = xla_tuple %v2
  %4 = xla_tuple %3
  %v5 = vxor.u32 %v2, 2147483648
  %6 = xla_tuple %v5
  %7 = vst [vmem:[%s1] sm:$0x3] %v5

// kernel: _lambda_.3
$region0: #{_lambda_.3}
  #allocation0 [shape = 'u32[]', space=smem, size = 0x4, offset = 0x4, fixed_abs, tag = 'smem constant byte address 0x4 - core index']
  #allocation1 [shape = 'u32[144,128]{1,0:T(1,128)}', space=vmem, size = 0x12000, scoped, tag = 'internal scratch']
  %s0 = inlined_call_operand.vmem [shape: bf16[28,768], index: 0, kind: input, shape index: {}]
  %s1 = inlined_call_operand.vmem [shape: bf16[768,4], index: 1, kind: input, shape index: {}]
  %s2 = inlined_call_operand.vmem [shape: f32[1,4], index: 2, kind: input, shape index: {}]
  %s3 = inlined_call_operand.vmem [shape: f32[28,4], index: 3, kind: input, shape index: {}]
  %s4 = inlined_call_operand.vmem [shape: f32[28,4], index: 4, kind: input, shape index: {}]
  %s5 = inlined_call_operand.vmem [shape: f32[28,1], index: 5, kind: input, shape index: {}]
  %s6 = inlined_call_operand.vmem [shape: f32[28,4], index: 6, kind: output, shape index: {0}]
  %s7 = inlined_call_operand.hbm [shape: f32[1,1], index: 7, kind: output, shape index: {1}]
  %8 = xla_tuple %s6, %s7
  %s9 = sld [smem:[#allocation0]]
  $region42: #{_lambda_.3} parent=0
    _
  %s11 = ssub.s32 1, %s9
  %s12 = scalar_select 0, %s11, %s9
  $region1: #{_lambda_.3} parent=0
    #allocation2 [shape = 'u8[512]{0}', space=vmem, size = 0x400, scoped, tag = 'output window, operand 1, single buffered']
    #allocation3 [shape = 's32[1]{0}', space=sflag, size = 0x4, scoped, tag = 'scoped memory for _lambda_.3']
    %13 = vsyncpa [#allocation3], 0
    // Predicated region
    $region2: #{_lambda_.3} parent=1 // pred_check
      _
    $region3: #{_lambda_.3} parent=1 // pred_check_branch
      %15 = sbr.rel (0) target = $region5
    $region4: #{_lambda_.3} parent=1 // pred_region
      _
    $region5: #{_lambda_.3} parent=1 // pred_fallthru
      _
    // Predicated region
    $region6: #{_lambda_.3} parent=1 // pred_check
      _
    $region7: #{_lambda_.3} parent=1 // pred_check_branch
      %17 = sbr.rel (0) target = $region9
    $region8: #{_lambda_.3} parent=1 // pred_region
      _
    $region9: #{_lambda_.3} parent=1 // pred_fallthru
      _
    // Predicated region
    $region10: #{_lambda_.3} parent=1 // pred_check
      _
    $region11: #{_lambda_.3} parent=1 // pred_check_branch
      %19 = sbr.rel (0) target = $region13
    $region12: #{_lambda_.3} parent=1 // pred_region
      _
    $region13: #{_lambda_.3} parent=1 // pred_fallthru
      _
    // Predicated region
    $region14: #{_lambda_.3} parent=1 // pred_check
      _
    $region15: #{_lambda_.3} parent=1 // pred_check_branch
      %21 = sbr.rel (0) target = $region17
    $region16: #{_lambda_.3} parent=1 // pred_region
      _
    $region17: #{_lambda_.3} parent=1 // pred_fallthru
      _
    // Predicated region
    $region18: #{_lambda_.3} parent=1 // pred_check
      _
    $region19: #{_lambda_.3} parent=1 // pred_check_branch
      %23 = sbr.rel (0) target = $region21
    $region20: #{_lambda_.3} parent=1 // pred_region
      _
    $region21: #{_lambda_.3} parent=1 // pred_fallthru
      _
    // Predicated region
    $region22: #{_lambda_.3} parent=1 // pred_check
      _
    $region23: #{_lambda_.3} parent=1 // pred_check_branch
      %25 = sbr.rel (0) target = $region25
    $region24: #{_lambda_.3} parent=1 // pred_region
      _
    $region25: #{_lambda_.3} parent=1 // pred_fallthru
      _
    %v27 = vld [vmem:[%s0] sm:$0xff]
    %v28 = vld [vmem:[%s0 + $0x8] sm:$0xff]
    %v29 = vld [vmem:[%s0 + $0x10] sm:$0xff]
    %v30 = vld [vmem:[%s0 + $0x18] sm:$0xff]
    %v31 = vld [vmem:[%s0 + $0x20] sm:$0xff]
    %v32 = vld [vmem:[%s0 + $0x28] sm:$0xff]
    %v33 = vld [vmem:[%s0 + $0x30] sm:$0xff]
    %v34 = vld [vmem:[%s0 + $0x38] sm:$0xff]
    %v35 = vld [vmem:[%s0 + $0x40] sm:$0xff]
    %v36 = vld [vmem:[%s0 + $0x48] sm:$0x33]
    %v37 = vld [vmem:[%s0 + $0x50] sm:$0x33]
    %v38 = vld [vmem:[%s0 + $0x58] sm:$0x33]
    %v39 = vld [vmem:[%s1] sm:$0xf]
    %v40 = vld [vmem:[%s1 + $0x4] sm:$0xf]
    %v41 = vld [vmem:[%s1 + $0x8] sm:$0xf]
    %v42 = vld [vmem:[%s1 + $0xc] sm:$0xf]
    %v43 = vld [vmem:[%s1 + $0x10] sm:$0xf]
    %v44 = vld [vmem:[%s1 + $0x14] sm:$0xf]
    %v45 = vld [vmem:[%s1 + $0x18] sm:$0xf]
    %v46 = vld [vmem:[%s1 + $0x1c] sm:$0xf]
    %v47 = vld [vmem:[%s1 + $0x20] sm:$0xf]
    %v48 = vld [vmem:[%s1 + $0x24] sm:$0xf]
    %v49 = vld [vmem:[%s1 + $0x28] sm:$0xf]
    %v50 = vld [vmem:[%s1 + $0x2c] sm:$0xf]
    %v51 = vld [vmem:[%s1 + $0x30] sm:$0xf]
    %v52 = vld [vmem:[%s1 + $0x34] sm:$0xf]
    %v53 = vld [vmem:[%s1 + $0x38] sm:$0xf]
    %v54 = vld [vmem:[%s1 + $0x3c] sm:$0xf]
    %v55 = vld [vmem:[%s1 + $0x40] sm:$0xf]
    %v56 = vld [vmem:[%s1 + $0x44] sm:$0xf]
    %v57 = vld [vmem:[%s1 + $0x48] sm:$0xf]
    %v58 = vld [vmem:[%s1 + $0x4c] sm:$0xf]
    %v59 = vld [vmem:[%s1 + $0x50] sm:$0xf]
    %v60 = vld [vmem:[%s1 + $0x54] sm:$0xf]
    %v61 = vld [vmem:[%s1 + $0x58] sm:$0xf]
    %v62 = vld [vmem:[%s1 + $0x5c] sm:$0xf]
    %v63 = vld [vmem:[%s1 + $0x60] sm:$0xf]
    %v64 = vld [vmem:[%s1 + $0x64] sm:$0xf]
    %v65 = vld [vmem:[%s1 + $0x68] sm:$0xf]
    %v66 = vld [vmem:[%s1 + $0x6c] sm:$0xf]
    %v67 = vld [vmem:[%s1 + $0x70] sm:$0xf]
    %v68 = vld [vmem:[%s1 + $0x74] sm:$0xf]
    %v69 = vld [vmem:[%s1 + $0x78] sm:$0xf]
    %v70 = vld [vmem:[%s1 + $0x7c] sm:$0xf]
    %v71 = vld [vmem:[%s1 + $0x80] sm:$0xf]
    %v72 = vld [vmem:[%s1 + $0x84] sm:$0xf]
    %v73 = vld [vmem:[%s1 + $0x88] sm:$0xf]
    %v74 = vld [vmem:[%s1 + $0x8c] sm:$0xf]
    %v75 = vld [vmem:[%s1 + $0x90] sm:$0xf]
    %v76 = vld [vmem:[%s1 + $0x94] sm:$0xf]
    %v77 = vld [vmem:[%s1 + $0x98] sm:$0xf]
    %v78 = vld [vmem:[%s1 + $0x9c] sm:$0xf]
    %v79 = vld [vmem:[%s1 + $0xa0] sm:$0xf]
    %v80 = vld [vmem:[%s1 + $0xa4] sm:$0xf]
    %v81 = vld [vmem:[%s1 + $0xa8] sm:$0xf]
    %v82 = vld [vmem:[%s1 + $0xac] sm:$0xf]
    %v83 = vld [vmem:[%s1 + $0xb0] sm:$0xf]
    %v84 = vld [vmem:[%s1 + $0xb4] sm:$0xf]
    %v85 = vld [vmem:[%s1 + $0xb8] sm:$0xf]
    %v86 = vld [vmem:[%s1 + $0xbc] sm:$0xf]
    %v87 = vld [vmem:[%s1 + $0xc0] sm:$0xf]
    %v88 = vld [vmem:[%s1 + $0xc4] sm:$0xf]
    %v89 = vld [vmem:[%s1 + $0xc8] sm:$0xf]
    %v90 = vld [vmem:[%s1 + $0xcc] sm:$0xf]
    %v91 = vld [vmem:[%s1 + $0xd0] sm:$0xf]
    %v92 = vld [vmem:[%s1 + $0xd4] sm:$0xf]
    %v93 = vld [vmem:[%s1 + $0xd8] sm:$0xf]
    %v94 = vld [vmem:[%s1 + $0xdc] sm:$0xf]
    %v95 = vld [vmem:[%s1 + $0xe0] sm:$0xf]
    %v96 = vld [vmem:[%s1 + $0xe4] sm:$0xf]
    %v97 = vld [vmem:[%s1 + $0xe8] sm:$0xf]
    %v98 = vld [vmem:[%s1 + $0xec] sm:$0xf]
    %v99 = vld [vmem:[%s1 + $0xf0] sm:$0xf]
    %v100 = vld [vmem:[%s1 + $0xf4] sm:$0xf]
    %v101 = vld [vmem:[%s1 + $0xf8] sm:$0xf]
    %v102 = vld [vmem:[%s1 + $0xfc] sm:$0xf]
    %v103 = vld [vmem:[%s1 + $0x100] sm:$0xf]
    %v104 = vld [vmem:[%s1 + $0x104] sm:$0xf]
    %v105 = vld [vmem:[%s1 + $0x108] sm:$0xf]
    %v106 = vld [vmem:[%s1 + $0x10c] sm:$0xf]
    %v107 = vld [vmem:[%s1 + $0x110] sm:$0xf]
    %v108 = vld [vmem:[%s1 + $0x114] sm:$0xf]
    %v109 = vld [vmem:[%s1 + $0x118] sm:$0xf]
    %v110 = vld [vmem:[%s1 + $0x11c] sm:$0xf]
    %v111 = vld [vmem:[%s1 + $0x120] sm:$0xf]
    %v112 = vld [vmem:[%s1 + $0x124] sm:$0xf]
    %v113 = vld [vmem:[%s1 + $0x128] sm:$0xf]
    %v114 = vld [vmem:[%s1 + $0x12c] sm:$0xf]
    %v115 = vld [vmem:[%s1 + $0x130] sm:$0xf]
    %v116 = vld [vmem:[%s1 + $0x134] sm:$0xf]
    %v117 = vld [vmem:[%s1 + $0x138] sm:$0xf]
    %v118 = vld [vmem:[%s1 + $0x13c] sm:$0xf]
    %v119 = vld [vmem:[%s1 + $0x140] sm:$0xf]
    %v120 = vld [vmem:[%s1 + $0x144] sm:$0xf]
    %v121 = vld [vmem:[%s1 + $0x148] sm:$0xf]
    %v122 = vld [vmem:[%s1 + $0x14c] sm:$0xf]
    %v123 = vld [vmem:[%s1 + $0x150] sm:$0xf]
    %v124 = vld [vmem:[%s1 + $0x154] sm:$0xf]
    %v125 = vld [vmem:[%s1 + $0x158] sm:$0xf]
    %v126 = vld [vmem:[%s1 + $0x15c] sm:$0xf]
    %v127 = vld [vmem:[%s1 + $0x160] sm:$0xf]
    %v128 = vld [vmem:[%s1 + $0x164] sm:$0xf]
    %v129 = vld [vmem:[%s1 + $0x168] sm:$0xf]
    %v130 = vld [vmem:[%s1 + $0x16c] sm:$0xf]
    %v131 = vld [vmem:[%s1 + $0x170] sm:$0xf]
    %v132 = vld [vmem:[%s1 + $0x174] sm:$0xf]
    %v133 = vld [vmem:[%s1 + $0x178] sm:$0xf]
    %v134 = vld [vmem:[%s1 + $0x17c] sm:$0xf]
    %v135 = vld [vmem:[%s2] sm:$0x1]
    %v137 = vlaneseq
    %v138 = vshrl.u32 %v137, 7
    %v139 = vsub.s32 0, %v138
    %v140 = vrot.slane %v135, %v139
    %v154 = vunpack.c.l.b16 %v27
    %v155 = vunpack.c.h.b16 %v27
    %v156 = vunpack.c.l.b16 %v28
    %v157 = vunpack.c.h.b16 %v28
    %v158 = vunpack.c.l.b16 %v29
    %v159 = vunpack.c.h.b16 %v29
    %v160 = vunpack.c.l.b16 %v30
    %v161 = vunpack.c.h.b16 %v30
    %v162 = vunpack.c.l.b16 %v31
    %v163 = vunpack.c.h.b16 %v31
    %v164 = vunpack.c.l.b16 %v32
    %v165 = vunpack.c.h.b16 %v32
    %v166 = vunpack.c.l.b16 %v33
    %v167 = vunpack.c.h.b16 %v33
    %v168 = vunpack.c.l.b16 %v34
    %v169 = vunpack.c.h.b16 %v34
    %v170 = vunpack.c.l.b16 %v35
    %v171 = vunpack.c.h.b16 %v35
    %v172 = vunpack.c.l.b16 %v36
    %v173 = vunpack.c.h.b16 %v36
    %v174 = vunpack.c.l.b16 %v37
    %v175 = vunpack.c.h.b16 %v37
    %v176 = vunpack.c.l.b16 %v38
    %v177 = vunpack.c.h.b16 %v38
    %v178 = vpack.c.b16 %v160, %v154
    %v179 = vpack.c.b16 %v161, %v155
    %v180 = vpack.c.b16 %v162, %v156
    %v181 = vpack.c.b16 %v163, %v157
    %v182 = vpack.c.b16 %v164, %v158
    %v183 = vpack.c.b16 %v165, %v159
    %v184 = vpack.c.b16 %v172, %v166
    %v185 = vpack.c.b16 %v173, %v167
    %v186 = vpack.c.b16 %v174, %v168
    %v187 = vpack.c.b16 %v175, %v169
    %v188 = vpack.c.b16 %v176, %v170
    %v189 = vpack.c.b16 %v177, %v171
    %v298 = vunpack.c.l.b16 %v39
    %v299 = vunpack.c.l.b16 %v40
    %v300 = vunpack.c.l.b16 %v41
    %v301 = vunpack.c.l.b16 %v42
    %v302 = vunpack.c.l.b16 %v43
    %v303 = vunpack.c.l.b16 %v44
    %v304 = vunpack.c.l.b16 %v45
    %v305 = vunpack.c.l.b16 %v46
    %v306 = vunpack.c.l.b16 %v47
    %v307 = vunpack.c.l.b16 %v48
    %v308 = vunpack.c.l.b16 %v49
    %v309 = vunpack.c.l.b16 %v50
    %v310 = vunpack.c.l.b16 %v51
    %v311 = vunpack.c.l.b16 %v52
    %v312 = vunpack.c.l.b16 %v53
    %v313 = vunpack.c.l.b16 %v54
    %v314 = vunpack.c.l.b16 %v55
    %v315 = vunpack.c.l.b16 %v56
    %v316 = vunpack.c.l.b16 %v57
    %v317 = vunpack.c.l.b16 %v58
    %v318 = vunpack.c.l.b16 %v59
    %v319 = vunpack.c.l.b16 %v60
    %v320 = vunpack.c.l.b16 %v61
    %v321 = vunpack.c.l.b16 %v62
    %v322 = vunpack.c.l.b16 %v63
    %v323 = vunpack.c.l.b16 %v64
    %v324 = vunpack.c.l.b16 %v65
    %v325 = vunpack.c.l.b16 %v66
    %v326 = vunpack.c.l.b16 %v67
    %v327 = vunpack.c.l.b16 %v68
    %v328 = vunpack.c.l.b16 %v69
    %v329 = vunpack.c.l.b16 %v70
    %v330 = vunpack.c.l.b16 %v71
    %v331 = vunpack.c.l.b16 %v72
    %v332 = vunpack.c.l.b16 %v73
    %v333 = vunpack.c.l.b16 %v74
    %v334 = vunpack.c.l.b16 %v75
    %v335 = vunpack.c.l.b16 %v76
    %v336 = vunpack.c.l.b16 %v77
    %v337 = vunpack.c.l.b16 %v78
    %v338 = vunpack.c.l.b16 %v79
    %v339 = vunpack.c.l.b16 %v80
    %v340 = vunpack.c.l.b16 %v81
    %v341 = vunpack.c.l.b16 %v82
    %v342 = vunpack.c.l.b16 %v83
    %v343 = vunpack.c.l.b16 %v84
    %v344 = vunpack.c.l.b16 %v85
    %v345 = vunpack.c.l.b16 %v86
    %v346 = vunpack.c.l.b16 %v87
    %v347 = vunpack.c.l.b16 %v88
    %v348 = vunpack.c.l.b16 %v89
    %v349 = vunpack.c.l.b16 %v90
    %v350 = vunpack.c.l.b16 %v91
    %v351 = vunpack.c.l.b16 %v92
    %v352 = vunpack.c.l.b16 %v93
    %v353 = vunpack.c.l.b16 %v94
    %v354 = vunpack.c.l.b16 %v95
    %v355 = vunpack.c.l.b16 %v96
    %v356 = vunpack.c.l.b16 %v97
    %v357 = vunpack.c.l.b16 %v98
    %v358 = vunpack.c.l.b16 %v99
    %v359 = vunpack.c.l.b16 %v100
    %v360 = vunpack.c.l.b16 %v101
    %v361 = vunpack.c.l.b16 %v102
    %v362 = vunpack.c.l.b16 %v103
    %v363 = vunpack.c.l.b16 %v104
    %v364 = vunpack.c.l.b16 %v105
    %v365 = vunpack.c.l.b16 %v106
    %v366 = vunpack.c.l.b16 %v107
    %v367 = vunpack.c.l.b16 %v108
    %v368 = vunpack.c.l.b16 %v109
    %v369 = vunpack.c.l.b16 %v110
    %v370 = vunpack.c.l.b16 %v111
    %v371 = vunpack.c.l.b16 %v112
    %v372 = vunpack.c.l.b16 %v113
    %v373 = vunpack.c.l.b16 %v114
    %v374 = vunpack.c.l.b16 %v115
    %v375 = vunpack.c.l.b16 %v116
    %v376 = vunpack.c.l.b16 %v117
    %v377 = vunpack.c.l.b16 %v118
    %v378 = vunpack.c.l.b16 %v119
    %v379 = vunpack.c.l.b16 %v120
    %v380 = vunpack.c.l.b16 %v121
    %v381 = vunpack.c.l.b16 %v122
    %v382 = vunpack.c.l.b16 %v123
    %v383 = vunpack.c.l.b16 %v124
    %v384 = vunpack.c.l.b16 %v125
    %v385 = vunpack.c.l.b16 %v126
    %v386 = vunpack.c.l.b16 %v127
    %v387 = vunpack.c.l.b16 %v128
    %v388 = vunpack.c.l.b16 %v129
    %v389 = vunpack.c.l.b16 %v130
    %v390 = vunpack.c.l.b16 %v131
    %v391 = vunpack.c.l.b16 %v132
    %v392 = vunpack.c.l.b16 %v133
    %v393 = vunpack.c.l.b16 %v134
    %v394 = vpack.c.b16 %v299, %v298
    %v395 = vpack.c.b16 %v301, %v300
    %v396 = vpack.c.b16 %v303, %v302
    %v397 = vpack.c.b16 %v305, %v304
    %v398 = vpack.c.b16 %v307, %v306
    %v399 = vpack.c.b16 %v309, %v308
    %v400 = vpack.c.b16 %v311, %v310
    %v401 = vpack.c.b16 %v313, %v312
    %v402 = vpack.c.b16 %v315, %v314
    %v403 = vpack.c.b16 %v317, %v316
    %v404 = vpack.c.b16 %v319, %v318
    %v405 = vpack.c.b16 %v321, %v320
    %v406 = vpack.c.b16 %v323, %v322
    %v407 = vpack.c.b16 %v325, %v324
    %v408 = vpack.c.b16 %v327, %v326
    %v409 = vpack.c.b16 %v329, %v328
    %v410 = vpack.c.b16 %v331, %v330
    %v411 = vpack.c.b16 %v333, %v332
    %v412 = vpack.c.b16 %v335, %v334
    %v413 = vpack.c.b16 %v337, %v336
    %v414 = vpack.c.b16 %v339, %v338
    %v415 = vpack.c.b16 %v341, %v340
    %v416 = vpack.c.b16 %v343, %v342
    %v417 = vpack.c.b16 %v345, %v344
    %v418 = vpack.c.b16 %v347, %v346
    %v419 = vpack.c.b16 %v349, %v348
    %v420 = vpack.c.b16 %v351, %v350
    %v421 = vpack.c.b16 %v353, %v352
    %v422 = vpack.c.b16 %v355, %v354
    %v423 = vpack.c.b16 %v357, %v356
    %v424 = vpack.c.b16 %v359, %v358
    %v425 = vpack.c.b16 %v361, %v360
    %v426 = vpack.c.b16 %v363, %v362
    %v427 = vpack.c.b16 %v365, %v364
    %v428 = vpack.c.b16 %v367, %v366
    %v429 = vpack.c.b16 %v369, %v368
    %v430 = vpack.c.b16 %v371, %v370
    %v431 = vpack.c.b16 %v373, %v372
    %v432 = vpack.c.b16 %v375, %v374
    %v433 = vpack.c.b16 %v377, %v376
    %v434 = vpack.c.b16 %v379, %v378
    %v435 = vpack.c.b16 %v381, %v380
    %v436 = vpack.c.b16 %v383, %v382
    %v437 = vpack.c.b16 %v385, %v384
    %v438 = vpack.c.b16 %v387, %v386
    %v439 = vpack.c.b16 %v389, %v388
    %v440 = vpack.c.b16 %v391, %v390
    %v441 = vpack.c.b16 %v393, %v392
    %490 = vmatprep.subr.bf16.mxu0 0
    %491 = vmatpush1.bf16.msra.mxu0 %v394
    %492 = vmatprep.subr.bf16.mxu0 0
    %493 = vmatpush1.bf16.msra.mxu0 %v395
    %494 = vmatprep.subr.bf16.mxu0 0
    %495 = vmatpush1.bf16.msra.mxu0 %v396
    %496 = vmatprep.subr.bf16.mxu0 0
    %497 = vmatpush1.bf16.msra.mxu0 %v397
    %498 = vmatprep.subr.bf16.mxu0 0
    %499 = vmatpush1.bf16.msra.mxu0 %v398
    %500 = vmatprep.subr.bf16.mxu0 0
    %501 = vmatpush1.bf16.msra.mxu0 %v399
    %502 = vmatprep.subr.bf16.mxu0 0
    %503 = vmatpush1.bf16.msra.mxu0 %v400
    %504 = vmatprep.subr.bf16.mxu0 0
    %505 = vmatpush1.bf16.msra.mxu0 %v401
    %506 = vmatprep.subr.bf16.mxu0 0
    %507 = vmatpush1.bf16.msra.mxu0 %v402
    %508 = vmatprep.subr.bf16.mxu0 0
    %509 = vmatpush1.bf16.msra.mxu0 %v403
    %510 = vmatprep.subr.bf16.mxu0 0
    %511 = vmatpush1.bf16.msra.mxu0 %v404
    %512 = vmatprep.subr.bf16.mxu0 0
    %513 = vmatpush1.bf16.msra.mxu0 %v405
    %514 = vmatprep.subr.bf16.mxu0 0
    %515 = vmatpush1.bf16.msra.mxu0 %v406
    %516 = vmatprep.subr.bf16.mxu0 0
    %517 = vmatpush1.bf16.msra.mxu0 %v407
    %518 = vmatprep.subr.bf16.mxu0 0
    %519 = vmatpush1.bf16.msra.mxu0 %v408
    %520 = vmatprep.subr.bf16.mxu0 0
    %521 = vmatpush1.bf16.msra.mxu0 %v409
    %522 = vmatprep.mubr.bf16.mxu0 %v179
    %523 = vmatmul.mubr.bf16.gmra.mrb[0].mxu0 %v178
    %v524 = vpop.f32.mrb[0].mxu0
    %v525 = vadd.f32 %v140, %v524
    %v526 = vpop.f32.mrb[0].mxu0
    %v527 = vpop.f32.mrb[0].mxu0
    %v528 = vadd.f32 %v140, %v527
    %v529 = vpop.f32.mrb[0].mxu0
    %530 = vmatprep.mubr.bf16.mxu0 %v185
    %531 = vmatmul.mubr.bf16.gmra.mrb[0].mxu0 %v184
    %v532 = vpop.f32.mrb[0].mxu0
    %v533 = vadd.f32 %v140, %v532
    %v534 = vpop.f32.mrb[0].mxu0
    %v535 = vpop.f32.mrb[0].mxu0
    %v536 = vadd.f32 %v140, %v535
    %v537 = vpop.f32.mrb[0].mxu0
    %538 = vdwg.mxu0
    %539 = vmatprep.subr.bf16.mxu0 0
    %540 = vmatpush1.bf16.msra.mxu0 %v410
    %541 = vmatprep.subr.bf16.mxu0 0
    %542 = vmatpush1.bf16.msra.mxu0 %v411
    %543 = vmatprep.subr.bf16.mxu0 0
    %544 = vmatpush1.bf16.msra.mxu0 %v412
    %545 = vmatprep.subr.bf16.mxu0 0
    %546 = vmatpush1.bf16.msra.mxu0 %v413
    %547 = vmatprep.subr.bf16.mxu0 0
    %548 = vmatpush1.bf16.msra.mxu0 %v414
    %549 = vmatprep.subr.bf16.mxu0 0
    %550 = vmatpush1.bf16.msra.mxu0 %v415
    %551 = vmatprep.subr.bf16.mxu0 0
    %552 = vmatpush1.bf16.msra.mxu0 %v416
    %553 = vmatprep.subr.bf16.mxu0 0
    %554 = vmatpush1.bf16.msra.mxu0 %v417
    %555 = vmatprep.subr.bf16.mxu0 0
    %556 = vmatpush1.bf16.msra.mxu0 %v418
    %557 = vmatprep.subr.bf16.mxu0 0
    %558 = vmatpush1.bf16.msra.mxu0 %v419
    %559 = vmatprep.subr.bf16.mxu0 0
    %560 = vmatpush1.bf16.msra.mxu0 %v420
    %561 = vmatprep.subr.bf16.mxu0 0
    %562 = vmatpush1.bf16.msra.mxu0 %v421
    %563 = vmatprep.subr.bf16.mxu0 0
    %564 = vmatpush1.bf16.msra.mxu0 %v422
    %565 = vmatprep.subr.bf16.mxu0 0
    %566 = vmatpush1.bf16.msra.mxu0 %v423
    %567 = vmatprep.subr.bf16.mxu0 0
    %568 = vmatpush1.bf16.msra.mxu0 %v424
    %569 = vmatprep.subr.bf16.mxu0 0
    %570 = vmatpush1.bf16.msra.mxu0 %v425
    %571 = vmatprep.mubr.bf16.mxu0 %v181
    %572 = vmatmul.mubr.bf16.gmra.mrb[0].mxu0 %v180
    %v573 = vpop.f32.mrb[0].mxu0
    %v574 = vadd.f32 %v525, %v573
    %v575 = vpop.f32.mrb[0].mxu0
    %v576 = vpop.f32.mrb[0].mxu0
    %v577 = vadd.f32 %v528, %v576
    %v578 = vpop.f32.mrb[0].mxu0
    %579 = vmatprep.mubr.bf16.mxu0 %v187
    %580 = vmatmul.mubr.bf16.gmra.mrb[0].mxu0 %v186
    %v581 = vpop.f32.mrb[0].mxu0
    %v582 = vadd.f32 %v533, %v581
    %v583 = vpop.f32.mrb[0].mxu0
    %v584 = vpop.f32.mrb[0].mxu0
    %v585 = vadd.f32 %v536, %v584
    %v586 = vpop.f32.mrb[0].mxu0
    %587 = vdwg.mxu0
    %588 = vmatprep.subr.bf16.mxu0 0
    %589 = vmatpush1.bf16.msra.mxu0 %v426
    %590 = vmatprep.subr.bf16.mxu0 0
    %591 = vmatpush1.bf16.msra.mxu0 %v427
    %592 = vmatprep.subr.bf16.mxu0 0
    %593 = vmatpush1.bf16.msra.mxu0 %v428
    %594 = vmatprep.subr.bf16.mxu0 0
    %595 = vmatpush1.bf16.msra.mxu0 %v429
    %596 = vmatprep.subr.bf16.mxu0 0
    %597 = vmatpush1.bf16.msra.mxu0 %v430
    %598 = vmatprep.subr.bf16.mxu0 0
    %599 = vmatpush1.bf16.msra.mxu0 %v431
    %600 = vmatprep.subr.bf16.mxu0 0
    %601 = vmatpush1.bf16.msra.mxu0 %v432
    %602 = vmatprep.subr.bf16.mxu0 0
    %603 = vmatpush1.bf16.msra.mxu0 %v433
    %604 = vmatprep.subr.bf16.mxu0 0
    %605 = vmatpush1.bf16.msra.mxu0 %v434
    %606 = vmatprep.subr.bf16.mxu0 0
    %607 = vmatpush1.bf16.msra.mxu0 %v435
    %608 = vmatprep.subr.bf16.mxu0 0
    %609 = vmatpush1.bf16.msra.mxu0 %v436
    %610 = vmatprep.subr.bf16.mxu0 0
    %611 = vmatpush1.bf16.msra.mxu0 %v437
    %612 = vmatprep.subr.bf16.mxu0 0
    %613 = vmatpush1.bf16.msra.mxu0 %v438
    %614 = vmatprep.subr.bf16.mxu0 0
    %615 = vmatpush1.bf16.msra.mxu0 %v439
    %616 = vmatprep.subr.bf16.mxu0 0
    %617 = vmatpush1.bf16.msra.mxu0 %v440
    %618 = vmatprep.subr.bf16.mxu0 0
    %619 = vmatpush1.bf16.msra.mxu0 %v441
    %620 = vmatprep.mubr.bf16.mxu0 %v183
    %621 = vmatmul.mubr.bf16.gmra.mrb[0].mxu0 %v182
    %v622 = vpop.f32.mrb[0].mxu0
    %v623 = vadd.f32 %v574, %v622
    %v624 = vpop.f32.mrb[0].mxu0
    %v625 = vpop.f32.mrb[0].mxu0
    %v626 = vadd.f32 %v577, %v625
    %v627 = vpop.f32.mrb[0].mxu0
    %628 = vmatprep.mubr.bf16.mxu0 %v189
    %629 = vmatmul.mubr.bf16.gmra.mrb[0].mxu0 %v188
    %v630 = vpop.f32.mrb[0].mxu0
    %v631 = vadd.f32 %v582, %v630
    %v632 = vpop.f32.mrb[0].mxu0
    %v633 = vpop.f32.mrb[0].mxu0
    %v634 = vadd.f32 %v585, %v633
    %v635 = vpop.f32.mrb[0].mxu0
    %636 = vdwg.mxu0
    %vm637 = vcmask 31744
    %638 = vst.msk [vmem:[%s6] sm:$0xff] %vm637, %v623
    %639 = vst.msk [vmem:[%s6 + $0x8] sm:$0xff] %vm637, %v626
    %640 = vst.msk [vmem:[%s6 + $0x10] sm:$0xff] %vm637, %v631
    %vm641 = vcmask 27648
    %642 = vst.msk [vmem:[%s6 + $0x18] sm:$0xf] %vm641, %v634
    %v643 = vld [vmem:[%s4] sm:$0xff]
    %v644 = vld [vmem:[%s4 + $0x8] sm:$0xff]
    %v645 = vld [vmem:[%s4 + $0x10] sm:$0xff]
    %v646 = vld [vmem:[%s4 + $0x18] sm:$0xf]
    %vm647 = vcmp.gt.f32.partialorder %v643, 0.5
    %vm648 = vcmp.gt.f32.partialorder %v644, 0.5
    %vm649 = vcmp.gt.f32.partialorder %v645, 0.5
    %vm650 = vcmp.gt.f32.partialorder %v646, 0.5
    %v651 = vsel %vm647, %v623, -inf
    %v652 = vsel %vm648, %v626, -inf
    %v653 = vsel %vm649, %v631, -inf
    %v654 = vsel %vm650, %v634, -inf
    %v655 = vsel %vm637, %v651, -inf
    %656 = vmax.xlane.f32.xlu0 %v655
    %v657 = vpop.xlane.xlu0 %656
    %v658 = vsel %vm637, %v652, -inf
    %659 = vmax.xlane.f32.xlu0 %v658
    %v660 = vpop.xlane.xlu0 %659
    %v661 = vsel %vm637, %v653, -inf
    %662 = vmax.xlane.f32.xlu0 %v661
    %v663 = vpop.xlane.xlu0 %662
    %v664 = vsel %vm641, %v654, -inf
    %665 = vmax.xlane.f32.xlu0 %v664
    %v666 = vpop.xlane.xlu0 %665
    %v667 = vsub.f32 %v651, %v657
    %v668 = vsub.f32 %v652, %v660
    %v669 = vsub.f32 %v653, %v663
    %v670 = vsub.f32 %v654, %v666
    %v671 = vmul.f32 %v667, 1.442695
    %v672 = vpow.pop %v671
    %v673 = vmul.f32 %v668, 1.442695
    %v674 = vpow.pop %v673
    %v675 = vmul.f32 %v669, 1.442695
    %v676 = vpow.pop %v675
    %v677 = vmul.f32 %v670, 1.442695
    %v678 = vpow.pop %v677
    %v679 = vsel %vm637, %v672, 0.0
    %680 = vadd.xlane.f32.xlu0 %v679
    %v681 = vpop.xlane.xlu0 %680
    %v682 = vsel %vm637, %v674, 0.0
    %683 = vadd.xlane.f32.xlu0 %v682
    %v684 = vpop.xlane.xlu0 %683
    %v685 = vsel %vm637, %v676, 0.0
    %686 = vadd.xlane.f32.xlu0 %v685
    %v687 = vpop.xlane.xlu0 %686
    %v688 = vsel %vm641, %v678, 0.0
    %689 = vadd.xlane.f32.xlu0 %v688
    %v690 = vpop.xlane.xlu0 %689
    %v691 = vlog2.pop %v681
    %v692 = vmul.f32 %v691, 0.6931472
    %v693 = vlog2.pop %v684
    %v694 = vmul.f32 %v693, 0.6931472
    %v695 = vlog2.pop %v687
    %v696 = vmul.f32 %v695, 0.6931472
    %v697 = vlog2.pop %v690
    %v698 = vmul.f32 %v697, 0.6931472
    %v699 = vadd.f32 %v657, %v692
    %v700 = vadd.f32 %v660, %v694
    %v701 = vadd.f32 %v663, %v696
    %v702 = vadd.f32 %v666, %v698
    %v703 = vld [vmem:[%s3] sm:$0xff]
    %v704 = vld [vmem:[%s3 + $0x8] sm:$0xff]
    %v705 = vld [vmem:[%s3 + $0x10] sm:$0xff]
    %v706 = vld [vmem:[%s3 + $0x18] sm:$0xf]
    %v707 = vmul.f32 %v623, %v703
    %v708 = vmul.f32 %v626, %v704
    %v709 = vmul.f32 %v631, %v705
    %v710 = vmul.f32 %v634, %v706
    %v711 = vsel %vm637, %v707, 0.0
    %712 = vadd.xlane.f32.xlu0 %v711
    %v713 = vpop.xlane.xlu0 %712
    %v714 = vsel %vm637, %v708, 0.0
    %715 = vadd.xlane.f32.xlu0 %v714
    %v716 = vpop.xlane.xlu0 %715
    %v717 = vsel %vm637, %v709, 0.0
    %718 = vadd.xlane.f32.xlu0 %v717
    %v719 = vpop.xlane.xlu0 %718
    %v720 = vsel %vm641, %v710, 0.0
    %721 = vadd.xlane.f32.xlu0 %v720
    %v722 = vpop.xlane.xlu0 %721
    %v723 = vld [vmem:[%s5] sm:$0xff]
    %v724 = vld [vmem:[%s5 + $0x8] sm:$0xff]
    %v725 = vld [vmem:[%s5 + $0x10] sm:$0xff]
    %v726 = vld [vmem:[%s5 + $0x18] sm:$0xf]
    %v727 = vsub.f32 %v699, %v713
    %v728 = vsub.f32 %v700, %v716
    %v729 = vsub.f32 %v701, %v719
    %v730 = vsub.f32 %v702, %v722
    %v731 = vmul.f32 %v723, %v727
    %v732 = vmul.f32 %v724, %v728
    %v733 = vmul.f32 %v725, %v729
    %v734 = vmul.f32 %v726, %v730
    %vm735 = vcmask 7168
    %v736 = vsel %vm735, %v731, 0.0
    %v737 = vsel %vm735, %v732, 0.0
    %v738 = vadd.f32 %v736, %v737
    %v739 = vsel %vm735, %v733, 0.0
    %v740 = vadd.f32 %v738, %v739
    %vm741 = vcmask 3072
    %v742 = vsel %vm741, %v734, 0.0
    %v743 = vadd.f32 %v740, %v742
    %744 = vadd.xlane.f32.xlu0 %v743
    %v745 = vpop.xlane.xlu0 %744
    %v746 = vrot.slane %v745, 4
    %v747 = vadd.f32 %v745, %v746
    %v748 = vrot.slane %v747, 2
    %v749 = vadd.f32 %v747, %v748
    %v750 = vrot.slane %v749, 1
    %v751 = vadd.f32 %v749, %v750
    %s752 = vtos %v751
    %v753 = vstv %s752
    %vm754 = vcmask 0
    %755 = vst.msk [vmem:[#allocation2] sm:$0x1] %vm754, %v753
    // Predicated region
    $region26: #{_lambda_.3} parent=1 // pred_check
      _
    $region27: #{_lambda_.3} parent=1 // pred_check_branch
      %757 = sbr.rel (0) target = $region29
    $region28: #{_lambda_.3} parent=1 // pred_region
      _
    $region29: #{_lambda_.3} parent=1 // pred_fallthru
      _
    // Predicated region
    $region30: #{_lambda_.3} parent=1 // pred_check
      _
    $region31: #{_lambda_.3} parent=1 // pred_check_branch
      %759 = sbr.rel (0) target = $region33
    $region32: #{_lambda_.3} parent=1 // pred_region
      %s761 = ssub.s32 16, 16
      %762 = vsyncadd [#allocation3], %s761
      %s764 = sshll.u32 [#allocation2], 4
      %s765 = int_to_ptr.vmem [resolvable:$true] %s764
      %767 = dma.vmem_to_hbm [thread:$0]  %s765, 16, %s7, [#allocation3]
    $region33: #{_lambda_.3} parent=1 // pred_fallthru
      _
    // Predicated region
    $region34: #{_lambda_.3} parent=1 // pred_check
      _
    $region35: #{_lambda_.3} parent=1 // pred_check_branch
      %769 = sbr.rel (0) target = $region37
    $region36: #{_lambda_.3} parent=1 // pred_region
      _
    $region37: #{_lambda_.3} parent=1 // pred_fallthru
      _
    // Predicated region
    $region38: #{_lambda_.3} parent=1 // pred_check
      _
    $region39: #{_lambda_.3} parent=1 // pred_check_branch
      %771 = sbr.rel (0) target = $region41
    $region40: #{_lambda_.3} parent=1 // pred_region
      %772 = dma.done [#allocation3], 16
    $region41: #{_lambda_.3} parent=1 // pred_fallthru
      _
    %773 = vsyncpa [#allocation3], 1

// kernel: _lambda_.2
$region0: #{_lambda_.2}
  #allocation0 [shape = 'u32[]', space=smem, size = 0x4, offset = 0x4, fixed_abs, tag = 'smem constant byte address 0x4 - core index']
  #allocation1 [shape = 'u32[144,128]{1,0:T(1,128)}', space=vmem, size = 0x12000, scoped, tag = 'internal scratch']
  #allocation2 [shape = 'f32[1,1]{1,0:T(1,128)}', space=vmem, size = 0x200, scoped, tag = 'scratch operand']
  #allocation3 [shape = 'f32[1,1]{1,0:T(1,128)}', space=vmem, size = 0x200, scoped, tag = 'scratch operand']
  #allocation4 [shape = 'f32[1,768]{1,0:T(1,128)}', space=vmem, size = 0xc00, scoped, tag = 'scratch operand']
  #allocation5 [shape = 'f32[1,1]{1,0:T(1,128)S(1)}', space=vmem, size = 0x200, scoped, tag = 'scoped memory for _lambda_.2']
  %s0 = inlined_call_operand.vmem [shape: bf16[256,1024], index: 0, kind: input, shape index: {}]
  %s1 = inlined_call_operand.vmem [shape: bf16[1024,768], index: 1, kind: input, shape index: {}]
  %s2 = inlined_call_operand.vmem [shape: f32[1,768], index: 2, kind: input, shape index: {}]
  %s3 = inlined_call_operand.hbm [shape: bf16[768,1024], index: 3, kind: input, shape index: {}]
  %s4 = inlined_call_operand.vmem [shape: f32[1,1024], index: 4, kind: input, shape index: {}]
  %s5 = inlined_call_operand.vmem [shape: f32[1,512], index: 5, kind: input, shape index: {}]
  %s6 = inlined_call_operand.<no memory space> [shape: f32[1,1], index: 6, kind: input, shape index: {}]
  %s7 = inlined_call_operand.vmem [shape: f32[256,768], index: 7, kind: output, shape index: {0}]
  %s8 = inlined_call_operand.vmem [shape: f32[1,256], index: 8, kind: output, shape index: {1}]
  %s9 = inlined_call_operand.hbm [shape: f32[1,768], index: 9, kind: output, shape index: {2}]
  %10 = xla_tuple %s7, %s8, %s9
  %s11 = sld [smem:[#allocation0]]
  $region66: #{_lambda_.2} parent=0
    _
  %s13 = ssub.s32 1, %s11
  %s14 = scalar_select 0, %s13, %s11
  %v15 = vstv %s6
  %16 = vst [vmem:[#allocation5] sm:$0x1] %v15
  $region1: #{_lambda_.2} parent=0
    #allocation6 [shape = 'u8[1572864]{0}', space=vmem, size = 0x180000, scoped, tag = 'input window, operand 3, single buffered']
    #allocation7 [shape = 's32[1]{0}', space=sflag, size = 0x4, scoped, tag = 'scoped memory for _lambda_.2']
    #allocation8 [shape = 's32[1]{0}', space=sflag, size = 0x4, scoped, tag = 'scoped memory for _lambda_.2']
    #allocation9 [shape = 'u8[3072]{0}', space=vmem, size = 0xc00, scoped, tag = 'output window, operand 2, single buffered']
    %17 = vsyncpa [#allocation7], 0
    %18 = vsyncpa [#allocation8], 0
    // Predicated region
    $region2: #{_lambda_.2} parent=1 // pred_check
      _
    $region3: #{_lambda_.2} parent=1 // pred_check_branch
      %20 = sbr.rel (0) target = $region5
    $region4: #{_lambda_.2} parent=1 // pred_region
      _
    $region5: #{_lambda_.2} parent=1 // pred_fallthru
      _
    // Predicated region
    $region6: #{_lambda_.2} parent=1 // pred_check
      _
    $region7: #{_lambda_.2} parent=1 // pred_check_branch
      %22 = sbr.rel (0) target = $region9
    $region8: #{_lambda_.2} parent=1 // pred_region
      _
    $region9: #{_lambda_.2} parent=1 // pred_fallthru
      _
    // Predicated region
    $region10: #{_lambda_.2} parent=1 // pred_check
      _
    $region11: #{_lambda_.2} parent=1 // pred_check_branch
      %24 = sbr.rel (0) target = $region13
    $region12: #{_lambda_.2} parent=1 // pred_region
      _
    $region13: #{_lambda_.2} parent=1 // pred_fallthru
      _
    // Predicated region
    $region14: #{_lambda_.2} parent=1 // pred_check
      _
    $region15: #{_lambda_.2} parent=1 // pred_check_branch
      %26 = sbr.rel (0) target = $region17
    $region16: #{_lambda_.2} parent=1 // pred_region
      %s28 = ssub.s32 49152, 49152
      %29 = vsyncadd [#allocation7], %s28
      %s30 = sshll.u32 [#allocation6], 4
      %s31 = int_to_ptr.vmem [resolvable:$true] %s30
      %36 = dma.hbm_to_vmem [thread:$0]  %s3, 49152, %s31, [#allocation7], 512, 512, 32
    $region17: #{_lambda_.2} parent=1 // pred_fallthru
      _
    // Predicated region
    $region18: #{_lambda_.2} parent=1 // pred_check
      _
    $region19: #{_lambda_.2} parent=1 // pred_check_branch
      %38 = sbr.rel (0) target = $region21
    $region20: #{_lambda_.2} parent=1 // pred_region
      _
    $region21: #{_lambda_.2} parent=1 // pred_fallthru
      _
    // Predicated region
    $region22: #{_lambda_.2} parent=1 // pred_check
      _
    $region23: #{_lambda_.2} parent=1 // pred_check_branch
      %40 = sbr.rel (0) target = $region25
    $region24: #{_lambda_.2} parent=1 // pred_region
      _
    $region25: #{_lambda_.2} parent=1 // pred_fallthru
      _
    // Predicated region
    $region26: #{_lambda_.2} parent=1 // pred_check
      _
    $region27: #{_lambda_.2} parent=1 // pred_check_branch
      %42 = sbr.rel (0) target = $region29
    $region28: #{_lambda_.2} parent=1 // pred_region
      _
    $region29: #{_lambda_.2} parent=1 // pred_fallthru
      _
    // Predicated region
    $region30: #{_lambda_.2} parent=1 // pred_check
      _
    $region31: #{_lambda_.2} parent=1 // pred_check_branch
      %44 = sbr.rel (0) target = $region33
    $region32: #{_lambda_.2} parent=1 // pred_region
      %45 = dma.done [#allocation7], 49152
    $region33: #{_lambda_.2} parent=1 // pred_fallthru
      _
    %v46 = vld [vmem:[%s0] sm:$0xff]
    %v47 = vld [vmem:[%s0 + $0x8] sm:$0xff]
    %v48 = vld [vmem:[%s0 + $0x10] sm:$0xff]
    %v49 = vld [vmem:[%s0 + $0x18] sm:$0xff]
    %v50 = vld [vmem:[%s0 + $0x20] sm:$0xff]
    %v51 = vld [vmem:[%s0 + $0x28] sm:$0xff]
    %v52 = vld [vmem:[%s0 + $0x30] sm:$0xff]
    %v53 = vld [vmem:[%s0 + $0x38] sm:$0xff]
    %v54 = vld [vmem:[%s0 + $0x40] sm:$0xff]
    %v55 = vld [vmem:[%s0 + $0x48] sm:$0xff]
    %v56 = vld [vmem:[%s0 + $0x50] sm:$0xff]
    %v57 = vld [vmem:[%s0 + $0x58] sm:$0xff]
    %v58 = vld [vmem:[%s0 + $0x60] sm:$0xff]
    %v59 = vld [vmem:[%s0 + $0x68] sm:$0xff]
    %v60 = vld [vmem:[%s0 + $0x70] sm:$0xff]
    %v61 = vld [vmem:[%s0 + $0x78] sm:$0xff]
    %v62 = vld [vmem:[%s0 + $0x80] sm:$0xff]
    %v63 = vld [vmem:[%s0 + $0x88] sm:$0xff]
    %v64 = vld [vmem:[%s0 + $0x90] sm:$0xff]
    %v65 = vld [vmem:[%s0 + $0x98] sm:$0xff]
    %v66 = vld [vmem:[%s0 + $0xa0] sm:$0xff]
    %v67 = vld [vmem:[%s0 + $0xa8] sm:$0xff]
    %v68 = vld [vmem:[%s0 + $0xb0] sm:$0xff]
    %v69 = vld [vmem:[%s0 + $0xb8] sm:$0xff]
    %v70 = vld [vmem:[%s0 + $0xc0] sm:$0xff]
    %v71 = vld [vmem:[%s0 + $0xc8] sm:$0xff]
    %v72 = vld [vmem:[%s0 + $0xd0] sm:$0xff]
    %v73 = vld [vmem:[%s0 + $0xd8] sm:$0xff]
    %v74 = vld [vmem:[%s0 + $0xe0] sm:$0xff]
    %v75 = vld [vmem:[%s0 + $0xe8] sm:$0xff]
    %v76 = vld [vmem:[%s0 + $0xf0] sm:$0xff]
    %v77 = vld [vmem:[%s0 + $0xf8] sm:$0xff]
    %v78 = vld [vmem:[%s0 + $0x100] sm:$0xff]
    %v79 = vld [vmem:[%s0 + $0x108] sm:$0xff]
    %v80 = vld [vmem:[%s0 + $0x110] sm:$0xff]
    %v81 = vld [vmem:[%s0 + $0x118] sm:$0xff]
    %v82 = vld [vmem:[%s0 + $0x120] sm:$0xff]
    %v83 = vld [vmem:[%s0 + $0x128] sm:$0xff]
    %v84 = vld [vmem:[%s0 + $0x130] sm:$0xff]
    %v85 = vld [vmem:[%s0 + $0x138] sm:$0xff]
    %v86 = vld [vmem:[%s0 + $0x140] sm:$0xff]
    %v87 = vld [vmem:[%s0 + $0x148] sm:$0xff]
    %v88 = vld [vmem:[%s0 + $0x150] sm:$0xff]
    %v89 = vld [vmem:[%s0 + $0x158] sm:$0xff]
    %v90 = vld [vmem:[%s0 + $0x160] sm:$0xff]
    %v91 = vld [vmem:[%s0 + $0x168] sm:$0xff]
    %v92 = vld [vmem:[%s0 + $0x170] sm:$0xff]
    %v93 = vld [vmem:[%s0 + $0x178] sm:$0xff]
    %v94 = vld [vmem:[%s0 + $0x180] sm:$0xff]
    %v95 = vld [vmem:[%s0 + $0x188] sm:$0xff]
    %v96 = vld [vmem:[%s0 + $0x190] sm:$0xff]
    %v97 = vld [vmem:[%s0 + $0x198] sm:$0xff]
    %v98 = vld [vmem:[%s0 + $0x1a0] sm:$0xff]
    %v99 = vld [vmem:[%s0 + $0x1a8] sm:$0xff]
    %v100 = vld [vmem:[%s0 + $0x1b0] sm:$0xff]
    %v101 = vld [vmem:[%s0 + $0x1b8] sm:$0xff]
    %v102 = vld [vmem:[%s0 + $0x1c0] sm:$0xff]
    %v103 = vld [vmem:[%s0 + $0x1c8] sm:$0xff]
    %v104 = vld [vmem:[%s0 + $0x1d0] sm:$0xff]
    %v105 = vld [vmem:[%s0 + $0x1d8] sm:$0xff]
    %v106 = vld [vmem:[%s0 + $0x1e0] sm:$0xff]
    %v107 = vld [vmem:[%s0 + $0x1e8] sm:$0xff]
    %v108 = vld [vmem:[%s0 + $0x1f0] sm:$0xff]
    %v109 = vld [vmem:[%s0 + $0x1f8] sm:$0xff]
    %v110 = vld [vmem:[%s0 + $0x200] sm:$0xff]
    %v111 = vld [vmem:[%s0 + $0x208] sm:$0xff]
    %v112 = vld [vmem:[%s0 + $0x210] sm:$0xff]
    %v113 = vld [vmem:[%s0 + $0x218] sm:$0xff]
    %v114 = vld [vmem:[%s0 + $0x220] sm:$0xff]
    %v115 = vld [vmem:[%s0 + $0x228] sm:$0xff]
    %v116 = vld [vmem:[%s0 + $0x230] sm:$0xff]
    %v117 = vld [vmem:[%s0 + $0x238] sm:$0xff]
    %v118 = vld [vmem:[%s0 + $0x240] sm:$0xff]
    %v119 = vld [vmem:[%s0 + $0x248] sm:$0xff]
    %v120 = vld [vmem:[%s0 + $0x250] sm:$0xff]
    %v121 = vld [vmem:[%s0 + $0x258] sm:$0xff]
    %v122 = vld [vmem:[%s0 + $0x260] sm:$0xff]
    %v123 = vld [vmem:[%s0 + $0x268] sm:$0xff]
    %v124 = vld [vmem:[%s0 + $0x270] sm:$0xff]
    %v125 = vld [vmem:[%s0 + $0x278] sm:$0xff]
    %v126 = vld [vmem:[%s0 + $0x280] sm:$0xff]
    %v127 = vld [vmem:[%s0 + $0x288] sm:$0xff]
    %v128 = vld [vmem:[%s0 + $0x290] sm:$0xff]
    %v129 = vld [vmem:[%s0 + $0x298] sm:$0xff]
    %v130 = vld [vmem:[%s0 + $0x2a0] sm:$0xff]
    %v131 = vld [vmem:[%s0 + $0x2a8] sm:$0xff]
    %v132 = vld [vmem:[%s0 + $0x2b0] sm:$0xff]
    %v133 = vld [vmem:[%s0 + $0x2b8] sm:$0xff]
    %v134 = vld [vmem:[%s0 + $0x2c0] sm:$0xff]
    %v135 = vld [vmem:[%s0 + $0x2c8] sm:$0xff]
    %v136 = vld [vmem:[%s0 + $0x2d0] sm:$0xff]
    %v137 = vld [vmem:[%s0 + $0x2d8] sm:$0xff]
    %v138 = vld [vmem:[%s0 + $0x2e0] sm:$0xff]
    %v139 = vld [vmem:[%s0 + $0x2e8] sm:$0xff]
    %v140 = vld [vmem:[%s0 + $0x2f0] sm:$0xff]
    %v141 = vld [vmem:[%s0 + $0x2f8] sm:$0xff]
    %v142 = vld [vmem:[%s0 + $0x300] sm:$0xff]
    %v143 = vld [vmem:[%s0 + $0x308] sm:$0xff]
    %v144 = vld [vmem:[%s0 + $0x310] sm:$0xff]
    %v145 = vld [vmem:[%s0 + $0x318] sm:$0xff]
    %v146 = vld [vmem:[%s0 + $0x320] sm:$0xff]
    %v147 = vld [vmem:[%s0 + $0x328] sm:$0xff]
    %v148 = vld [vmem:[%s0 + $0x330] sm:$0xff]
    %v149 = vld [vmem:[%s0 + $0x338] sm:$0xff]
    %v150 = vld [vmem:[%s0 + $0x340] sm:$0xff]
    %v151 = vld [vmem:[%s0 + $0x348] sm:$0xff]
    %v152 = vld [vmem:[%s0 + $0x350] sm:$0xff]
    %v153 = vld [vmem:[%s0 + $0x358] sm:$0xff]
    %v154 = vld [vmem:[%s0 + $0x360] sm:$0xff]
    %v155 = vld [vmem:[%s0 + $0x368] sm:$0xff]
    %v156 = vld [vmem:[%s0 + $0x370] sm:$0xff]
    %v157 = vld [vmem:[%s0 + $0x378] sm:$0xff]
    %v158 = vld [vmem:[%s0 + $0x380] sm:$0xff]
    %v159 = vld [vmem:[%s0 + $0x388] sm:$0xff]
    %v160 = vld [vmem:[%s0 + $0x390] sm:$0xff]
    %v161 = vld [vmem:[%s0 + $0x398] sm:$0xff]
    %v162 = vld [vmem:[%s0 + $0x3a0] sm:$0xff]
    %v163 = vld [vmem:[%s0 + $0x3a8] sm:$0xff]
    %v164 = vld [vmem:[%s0 + $0x3b0] sm:$0xff]
    %v165 = vld [vmem:[%s0 + $0x3b8] sm:$0xff]
    %v166 = vld [vmem:[%s0 + $0x3c0] sm:$0xff]
    %v167 = vld [vmem:[%s0 + $0x3c8] sm:$0xff]
    %v168 = vld [vmem:[%s0 + $0x3d0] sm:$0xff]
    %v169 = vld [vmem:[%s0 + $0x3d8] sm:$0xff]
    %v170 = vld [vmem:[%s0 + $0x3e0] sm:$0xff]
    %v171 = vld [vmem:[%s0 + $0x3e8] sm:$0xff]
    %v172 = vld [vmem:[%s0 + $0x3f0] sm:$0xff]
    %v173 = vld [vmem:[%s0 + $0x3f8] sm:$0xff]
    %v174 = vld [vmem:[%s1] sm:$0xff]
    %v175 = vld [vmem:[%s1 + $0x8] sm:$0xff]
    %v176 = vld [vmem:[%s1 + $0x10] sm:$0xff]
    %v177 = vld [vmem:[%s1 + $0x18] sm:$0xff]
    %v178 = vld [vmem:[%s1 + $0x20] sm:$0xff]
    %v179 = vld [vmem:[%s1 + $0x28] sm:$0xff]
    %v180 = vld [vmem:[%s1 + $0x30] sm:$0xff]
    %v181 = vld [vmem:[%s1 + $0x38] sm:$0xff]
    %v182 = vld [vmem:[%s1 + $0x40] sm:$0xff]
    %v183 = vld [vmem:[%s1 + $0x48] sm:$0xff]
    %v184 = vld [vmem:[%s1 + $0x50] sm:$0xff]
    %v185 = vld [vmem:[%s1 + $0x58] sm:$0xff]
    %v186 = vld [vmem:[%s1 + $0x60] sm:$0xff]
    %v187 = vld [vmem:[%s1 + $0x68] sm:$0xff]
    %v188 = vld [vmem:[%s1 + $0x70] sm:$0xff]
    %v189 = vld [vmem:[%s1 + $0x78] sm:$0xff]
    %v190 = vld [vmem:[%s1 + $0x80] sm:$0xff]
    %v191 = vld [vmem:[%s1 + $0x88] sm:$0xff]
    %v192 = vld [vmem:[%s1 + $0x90] sm:$0xff]
    %v193 = vld [vmem:[%s1 + $0x98] sm:$0xff]
    %v194 = vld [vmem:[%s1 + $0xa0] sm:$0xff]
    %v195 = vld [vmem:[%s1 + $0xa8] sm:$0xff]
    %v196 = vld [vmem:[%s1 + $0xb0] sm:$0xff]
    %v197 = vld [vmem:[%s1 + $0xb8] sm:$0xff]
    %v198 = vld [vmem:[%s1 + $0xc0] sm:$0xff]
    %v199 = vld [vmem:[%s1 + $0xc8] sm:$0xff]
    %v200 = vld [vmem:[%s1 + $0xd0] sm:$0xff]
    %v201 = vld [vmem:[%s1 + $0xd8] sm:$0xff]
    %v202 = vld [vmem:[%s1 + $0xe0] sm:$0xff]
    %v203 = vld [vmem:[%s1 + $0xe8] sm:$0xff]
    %v204 = vld [vmem:[%s1 + $0xf0] sm:$0xff]
    %v205 = vld [vmem:[%s1 + $0xf8] sm:$0xff]
    %v206 = vld [vmem:[%s1 + $0x100] sm:$0xff]
    %v207 = vld [vmem:[%s1 + $0x108] sm:$0xff]
    %v208 = vld [vmem:[%s1 + $0x110] sm:$0xff]
    %v209 = vld [vmem:[%s1 + $0x118] sm:$0xff]
    %v210 = vld [vmem:[%s1 + $0x120] sm:$0xff]
    %v211 = vld [vmem:[%s1 + $0x128] sm:$0xff]
    %v212 = vld [vmem:[%s1 + $0x130] sm:$0xff]
    %v213 = vld [vmem:[%s1 + $0x138] sm:$0xff]
    %v214 = vld [vmem:[%s1 + $0x140] sm:$0xff]
    %v215 = vld [vmem:[%s1 + $0x148] sm:$0xff]
    %v216 = vld [vmem:[%s1 + $0x150] sm:$0xff]
    %v217 = vld [vmem:[%s1 + $0x158] sm:$0xff]
    %v218 = vld [vmem:[%s1 + $0x160] sm:$0xff]
    %v219 = vld [vmem:[%s1 + $0x168] sm:$0xff]
    %v220 = vld [vmem:[%s1 + $0x170] sm:$0xff]
    %v221 = vld [vmem:[%s1 + $0x178] sm:$0xff]
    %v222 = vld [vmem:[%s1 + $0x180] sm:$0xff]
    %v223 = vld [vmem:[%s1 + $0x188] sm:$0xff]
    %v224 = vld [vmem:[%s1 + $0x190] sm:$0xff]
    %v225 = vld [vmem:[%s1 + $0x198] sm:$0xff]
    %v226 = vld [vmem:[%s1 + $0x1a0] sm:$0xff]
    %v227 = vld [vmem:[%s1 + $0x1a8] sm:$0xff]
    %v228 = vld [vmem:[%s1 + $0x1b0] sm:$0xff]
    %v229 = vld [vmem:[%s1 + $0x1b8] sm:$0xff]
    %v230 = vld [vmem:[%s1 + $0x1c0] sm:$0xff]
    %v231 = vld [vmem:[%s1 + $0x1c8] sm:$0xff]
    %v232 = vld [vmem:[%s1 + $0x1d0] sm:$0xff]
    %v233 = vld [vmem:[%s1 + $0x1d8] sm:$0xff]
    %v234 = vld [vmem:[%s1 + $0x1e0] sm:$0xff]
    %v235 = vld [vmem:[%s1 + $0x1e8] sm:$0xff]
    %v236 = vld [vmem:[%s1 + $0x1f0] sm:$0xff]
    %v237 = vld [vmem:[%s1 + $0x1f8] sm:$0xff]
    %v238 = vld [vmem:[%s1 + $0x200] sm:$0xff]
    %v239 = vld [vmem:[%s1 + $0x208] sm:$0xff]
    %v240 = vld [vmem:[%s1 + $0x210] sm:$0xff]
    %v241 = vld [vmem:[%s1 + $0x218] sm:$0xff]
    %v242 = vld [vmem:[%s1 + $0x220] sm:$0xff]
    %v243 = vld [vmem:[%s1 + $0x228] sm:$0xff]
    %v244 = vld [vmem:[%s1 + $0x230] sm:$0xff]
    %v245 = vld [vmem:[%s1 + $0x238] sm:$0xff]
    %v246 = vld [vmem:[%s1 + $0x240] sm:$0xff]
    %v247 = vld [vmem:[%s1 + $0x248] sm:$0xff]
    %v248 = vld [vmem:[%s1 + $0x250] sm:$0xff]
    %v249 = vld [vmem:[%s1 + $0x258] sm:$0xff]
    %v250 = vld [vmem:[%s1 + $0x260] sm:$0xff]
    %v251 = vld [vmem:[%s1 + $0x268] sm:$0xff]
    %v252 = vld [vmem:[%s1 + $0x270] sm:$0xff]
    %v253 = vld [vmem:[%s1 + $0x278] sm:$0xff]
    %v254 = vld [vmem:[%s1 + $0x280] sm:$0xff]
    %v255 = vld [vmem:[%s1 + $0x288] sm:$0xff]
    %v256 = vld [vmem:[%s1 + $0x290] sm:$0xff]
    %v257 = vld [vmem:[%s1 + $0x298] sm:$0xff]
    %v258 = vld [vmem:[%s1 + $0x2a0] sm:$0xff]
    %v259 = vld [vmem:[%s1 + $0x2a8] sm:$0xff]
    %v260 = vld [vmem:[%s1 + $0x2b0] sm:$0xff]
    %v261 = vld [vmem:[%s1 + $0x2b8] sm:$0xff]
    %v262 = vld [vmem:[%s1 + $0x2c0] sm:$0xff]
    %v263 = vld [vmem:[%s1 + $0x2c8] sm:$0xff]
    %v264 = vld [vmem:[%s1 + $0x2d0] sm:$0xff]
    %v265 = vld [vmem:[%s1 + $0x2d8] sm:$0xff]
    %v266 = vld [vmem:[%s1 + $0x2e0] sm:$0xff]
    %v267 = vld [vmem:[%s1 + $0x2e8] sm:$0xff]
    %v268 = vld [vmem:[%s1 + $0x2f0] sm:$0xff]
    %v269 = vld [vmem:[%s1 + $0x2f8] sm:$0xff]
    %v270 = vld [vmem:[%s1 + $0x300] sm:$0xff]
    %v271 = vld [vmem:[%s1 + $0x308] sm:$0xff]
    %v272 = vld [vmem:[%s1 + $0x310] sm:$0xff]
    %v273 = vld [vmem:[%s1 + $0x318] sm:$0xff]
    %v274 = vld [vmem:[%s1 + $0x320] sm:$0xff]
    %v275 = vld [vmem:[%s1 + $0x328] sm:$0xff]
    %v276 = vld [vmem:[%s1 + $0x330] sm:$0xff]
    %v277 = vld [vmem:[%s1 + $0x338] sm:$0xff]
    %v278 = vld [vmem:[%s1 + $0x340] sm:$0xff]
    %v279 = vld [vmem:[%s1 + $0x348] sm:$0xff]
    %v280 = vld [vmem:[%s1 + $0x350] sm:$0xff]
    %v281 = vld [vmem:[%s1 + $0x358] sm:$0xff]
    %v282 = vld [vmem:[%s1 + $0x360] sm:$0xff]
    %v283 = vld [vmem:[%s1 + $0x368] sm:$0xff]
    %v284 = vld [vmem:[%s1 + $0x370] sm:$0xff]
    %v285 = vld [vmem:[%s1 + $0x378] sm:$0xff]
    %v286 = vld [vmem:[%s1 + $0x380] sm:$0xff]
    %v287 = vld [vmem:[%s1 + $0x388] sm:$0xff]
    %v288 = vld [vmem:[%s1 + $0x390] sm:$0xff]
    %v289 = vld [vmem:[%s1 + $0x398] sm:$0xff]
    %v290 = vld [vmem:[%s1 + $0x3a0] sm:$0xff]
    %v291 = vld [vmem:[%s1 + $0x3a8] sm:$0xff]
    %v292 = vld [vmem:[%s1 + $0x3b0] sm:$0xff]
    %v293 = vld [vmem:[%s1 + $0x3b8] sm:$0xff]
    %v294 = vld [vmem:[%s1 + $0x3c0] sm:$0xff]
    %v295 = vld [vmem:[%s1 + $0x3c8] sm:$0xff]
    %v296 = vld [vmem:[%s1 + $0x3d0] sm:$0xff]
    %v297 = vld [vmem:[%s1 + $0x3d8] sm:$0xff]
    %v298 = vld [vmem:[%s1 + $0x3e0] sm:$0xff]
    %v299 = vld [vmem:[%s1 + $0x3e8] sm:$0xff]
    %v300 = vld [vmem:[%s1 + $0x3f0] sm:$0xff]
    %v301 = vld [vmem:[%s1 + $0x3f8] sm:$0xff]
    %v302 = vld [vmem:[%s1 + $0x400] sm:$0xff]
    %v303 = vld [vmem:[%s1 + $0x408] sm:$0xff]
    %v304 = vld [vmem:[%s1 + $0x410] sm:$0xff]
    %v305 = vld [vmem:[%s1 + $0x418] sm:$0xff]
    %v306 = vld [vmem:[%s1 + $0x420] sm:$0xff]
    %v307 = vld [vmem:[%s1 + $0x428] sm:$0xff]
    %v308 = vld [vmem:[%s1 + $0x430] sm:$0xff]
    %v309 = vld [vmem:[%s1 + $0x438] sm:$0xff]
    %v310 = vld [vmem:[%s1 + $0x440] sm:$0xff]
    %v311 = vld [vmem:[%s1 + $0x448] sm:$0xff]
    %v312 = vld [vmem:[%s1 + $0x450] sm:$0xff]
    %v313 = vld [vmem:[%s1 + $0x458] sm:$0xff]
    %v314 = vld [vmem:[%s1 + $0x460] sm:$0xff]
    %v315 = vld [vmem:[%s1 + $0x468] sm:$0xff]
    %v316 = vld [vmem:[%s1 + $0x470] sm:$0xff]
    %v317 = vld [vmem:[%s1 + $0x478] sm:$0xff]
    %v318 = vld [vmem:[%s1 + $0x480] sm:$0xff]
    %v319 = vld [vmem:[%s1 + $0x488] sm:$0xff]
    %v320 = vld [vmem:[%s1 + $0x490] sm:$0xff]
    %v321 = vld [vmem:[%s1 + $0x498] sm:$0xff]
    %v322 = vld [vmem:[%s1 + $0x4a0] sm:$0xff]
    %v323 = vld [vmem:[%s1 + $0x4a8] sm:$0xff]
    %v324 = vld [vmem:[%s1 + $0x4b0] sm:$0xff]
    %v325 = vld [vmem:[%s1 + $0x4b8] sm:$0xff]
    %v326 = vld [vmem:[%s1 + $0x4c0] sm:$0xff]
    %v327 = vld [vmem:[%s1 + $0x4c8] sm:$0xff]
    %v328 = vld [vmem:[%s1 + $0x4d0] sm:$0xff]
    %v329 = vld [vmem:[%s1 + $0x4d8] sm:$0xff]
    %v330 = vld [vmem:[%s1 + $0x4e0] sm:$0xff]
    %v331 = vld [vmem:[%s1 + $0x4e8] sm:$0xff]
    %v332 = vld [vmem:[%s1 + $0x4f0] sm:$0xff]
    %v333 = vld [vmem:[%s1 + $0x4f8] sm:$0xff]
    %v334 = vld [vmem:[%s1 + $0x500] sm:$0xff]
    %v335 = vld [vmem:[%s1 + $0x508] sm:$0xff]
    %v336 = vld [vmem:[%s1 + $0x510] sm:$0xff]
    %v337 = vld [vmem:[%s1 + $0x518] sm:$0xff]
    %v338 = vld [vmem:[%s1 + $0x520] sm:$0xff]
    %v339 = vld [vmem:[%s1 + $0x528] sm:$0xff]
    %v340 = vld [vmem:[%s1 + $0x530] sm:$0xff]
    %v341 = vld [vmem:[%s1 + $0x538] sm:$0xff]
    %v342 = vld [vmem:[%s1 + $0x540] sm:$0xff]
    %v343 = vld [vmem:[%s1 + $0x548] sm:$0xff]
    %v344 = vld [vmem:[%s1 + $0x550] sm:$0xff]
    %v345 = vld [vmem:[%s1 + $0x558] sm:$0xff]
    %v346 = vld [vmem:[%s1 + $0x560] sm:$0xff]
    %v347 = vld [vmem:[%s1 + $0x568] sm:$0xff]
    %v348 = vld [vmem:[%s1 + $0x570] sm:$0xff]
    %v349 = vld [vmem:[%s1 + $0x578] sm:$0xff]
    %v350 = vld [vmem:[%s1 + $0x580] sm:$0xff]
    %v351 = vld [vmem:[%s1 + $0x588] sm:$0xff]
    %v352 = vld [vmem:[%s1 + $0x590] sm:$0xff]
    %v353 = vld [vmem:[%s1 + $0x598] sm:$0xff]
    %v354 = vld [vmem:[%s1 + $0x5a0] sm:$0xff]
    %v355 = vld [vmem:[%s1 + $0x5a8] sm:$0xff]
    %v356 = vld [vmem:[%s1 + $0x5b0] sm:$0xff]
    %v357 = vld [vmem:[%s1 + $0x5b8] sm:$0xff]
    %v358 = vld [vmem:[%s1 + $0x5c0] sm:$0xff]
    %v359 = vld [vmem:[%s1 + $0x5c8] sm:$0xff]
    %v360 = vld [vmem:[%s1 + $0x5d0] sm:$0xff]
    %v361 = vld [vmem:[%s1 + $0x5d8] sm:$0xff]
    %v362 = vld [vmem:[%s1 + $0x5e0] sm:$0xff]
    %v363 = vld [vmem:[%s1 + $0x5e8] sm:$0xff]
    %v364 = vld [vmem:[%s1 + $0x5f0] sm:$0xff]
    %v365 = vld [vmem:[%s1 + $0x5f8] sm:$0xff]
    %v366 = vld [vmem:[%s1 + $0x600] sm:$0xff]
    %v367 = vld [vmem:[%s1 + $0x608] sm:$0xff]
    %v368 = vld [vmem:[%s1 + $0x610] sm:$0xff]
    %v369 = vld [vmem:[%s1 + $0x618] sm:$0xff]
    %v370 = vld [vmem:[%s1 + $0x620] sm:$0xff]
    %v371 = vld [vmem:[%s1 + $0x628] sm:$0xff]
    %v372 = vld [vmem:[%s1 + $0x630] sm:$0xff]
    %v373 = vld [vmem:[%s1 + $0x638] sm:$0xff]
    %v374 = vld [vmem:[%s1 + $0x640] sm:$0xff]
    %v375 = vld [vmem:[%s1 + $0x648] sm:$0xff]
    %v376 = vld [vmem:[%s1 + $0x650] sm:$0xff]
    %v377 = vld [vmem:[%s1 + $0x658] sm:$0xff]
    %v378 = vld [vmem:[%s1 + $0x660] sm:$0xff]
    %v379 = vld [vmem:[%s1 + $0x668] sm:$0xff]
    %v380 = vld [vmem:[%s1 + $0x670] sm:$0xff]
    %v381 = vld [vmem:[%s1 + $0x678] sm:$0xff]
    %v382 = vld [vmem:[%s1 + $0x680] sm:$0xff]
    %v383 = vld [vmem:[%s1 + $0x688] sm:$0xff]
    %v384 = vld [vmem:[%s1 + $0x690] sm:$0xff]
    %v385 = vld [vmem:[%s1 + $0x698] sm:$0xff]
    %v386 = vld [vmem:[%s1 + $0x6a0] sm:$0xff]
    %v387 = vld [vmem:[%s1 + $0x6a8] sm:$0xff]
    %v388 = vld [vmem:[%s1 + $0x6b0] sm:$0xff]
    %v389 = vld [vmem:[%s1 + $0x6b8] sm:$0xff]
    %v390 = vld [vmem:[%s1 + $0x6c0] sm:$0xff]
    %v391 = vld [vmem:[%s1 + $0x6c8] sm:$0xff]
    %v392 = vld [vmem:[%s1 + $0x6d0] sm:$0xff]
    %v393 = vld [vmem:[%s1 + $0x6d8] sm:$0xff]
    %v394 = vld [vmem:[%s1 + $0x6e0] sm:$0xff]
    %v395 = vld [vmem:[%s1 + $0x6e8] sm:$0xff]
    %v396 = vld [vmem:[%s1 + $0x6f0] sm:$0xff]
    %v397 = vld [vmem:[%s1 + $0x6f8] sm:$0xff]
    %v398 = vld [vmem:[%s1 + $0x700] sm:$0xff]
    %v399 = vld [vmem:[%s1 + $0x708] sm:$0xff]
    %v400 = vld [vmem:[%s1 + $0x710] sm:$0xff]
    %v401 = vld [vmem:[%s1 + $0x718] sm:$0xff]
    %v402 = vld [vmem:[%s1 + $0x720] sm:$0xff]
    %v403 = vld [vmem:[%s1 + $0x728] sm:$0xff]
    %v404 = vld [vmem:[%s1 + $0x730] sm:$0xff]
    %v405 = vld [vmem:[%s1 + $0x738] sm:$0xff]
    %v406 = vld [vmem:[%s1 + $0x740] sm:$0xff]
    %v407 = vld [vmem:[%s1 + $0x748] sm:$0xff]
    %v408 = vld [vmem:[%s1 + $0x750] sm:$0xff]
    %v409 = vld [vmem:[%s1 + $0x758] sm:$0xff]
    %v410 = vld [vmem:[%s1 + $0x760] sm:$0xff]
    %v411 = vld [vmem:[%s1 + $0x768] sm:$0xff]
    %v412 = vld [vmem:[%s1 + $0x770] sm:$0xff]
    %v413 = vld [vmem:[%s1 + $0x778] sm:$0xff]
    %v414 = vld [vmem:[%s1 + $0x780] sm:$0xff]
    %v415 = vld [vmem:[%s1 + $0x788] sm:$0xff]
    %v416 = vld [vmem:[%s1 + $0x790] sm:$0xff]
    %v417 = vld [vmem:[%s1 + $0x798] sm:$0xff]
    %v418 = vld [vmem:[%s1 + $0x7a0] sm:$0xff]
    %v419 = vld [vmem:[%s1 + $0x7a8] sm:$0xff]
    %v420 = vld [vmem:[%s1 + $0x7b0] sm:$0xff]
    %v421 = vld [vmem:[%s1 + $0x7b8] sm:$0xff]
    %v422 = vld [vmem:[%s1 + $0x7c0] sm:$0xff]
    %v423 = vld [vmem:[%s1 + $0x7c8] sm:$0xff]
    %v424 = vld [vmem:[%s1 + $0x7d0] sm:$0xff]
    %v425 = vld [vmem:[%s1 + $0x7d8] sm:$0xff]
    %v426 = vld [vmem:[%s1 + $0x7e0] sm:$0xff]
    %v427 = vld [vmem:[%s1 + $0x7e8] sm:$0xff]
    %v428 = vld [vmem:[%s1 + $0x7f0] sm:$0xff]
    %v429 = vld [vmem:[%s1 + $0x7f8] sm:$0xff]
    %v430 = vld [vmem:[%s1 + $0x800] sm:$0xff]
    %v431 = vld [vmem:[%s1 + $0x808] sm:$0xff]
    %v432 = vld [vmem:[%s1 + $0x810] sm:$0xff]
    %v433 = vld [vmem:[%s1 + $0x818] sm:$0xff]
    %v434 = vld [vmem:[%s1 + $0x820] sm:$0xff]
    %v435 = vld [vmem:[%s1 + $0x828] sm:$0xff]
    %v436 = vld [vmem:[%s1 + $0x830] sm:$0xff]
    %v437 = vld [vmem:[%s1 + $0x838] sm:$0xff]
    %v438 = vld [vmem:[%s1 + $0x840] sm:$0xff]
    %v439 = vld [vmem:[%s1 + $0x848] sm:$0xff]
    %v440 = vld [vmem:[%s1 + $0x850] sm:$0xff]
    %v441 = vld [vmem:[%s1 + $0x858] sm:$0xff]
    %v442 = vld [vmem:[%s1 + $0x860] sm:$0xff]
    %v443 = vld [vmem:[%s1 + $0x868] sm:$0xff]
    %v444 = vld [vmem:[%s1 + $0x870] sm:$0xff]
    %v445 = vld [vmem:[%s1 + $0x878] sm:$0xff]
    %v446 = vld [vmem:[%s1 + $0x880] sm:$0xff]
    %v447 = vld [vmem:[%s1 + $0x888] sm:$0xff]
    %v448 = vld [vmem:[%s1 + $0x890] sm:$0xff]
    %v449 = vld [vmem:[%s1 + $0x898] sm:$0xff]
    %v450 = vld [vmem:[%s1 + $0x8a0] sm:$0xff]
    %v451 = vld [vmem:[%s1 + $0x8a8] sm:$0xff]
    %v452 = vld [vmem:[%s1 + $0x8b0] sm:$0xff]
    %v453 = vld [vmem:[%s1 + $0x8b8] sm:$0xff]
    %v454 = vld [vmem:[%s1 + $0x8c0] sm:$0xff]
    %v455 = vld [vmem:[%s1 + $0x8c8] sm:$0xff]
    %v456 = vld [vmem:[%s1 + $0x8d0] sm:$0xff]
    %v457 = vld [vmem:[%s1 + $0x8d8] sm:$0xff]
    %v458 = vld [vmem:[%s1 + $0x8e0] sm:$0xff]
    %v459 = vld [vmem:[%s1 + $0x8e8] sm:$0xff]
    %v460 = vld [vmem:[%s1 + $0x8f0] sm:$0xff]
    %v461 = vld [vmem:[%s1 + $0x8f8] sm:$0xff]
    %v462 = vld [vmem:[%s1 + $0x900] sm:$0xff]
    %v463 = vld [vmem:[%s1 + $0x908] sm:$0xff]
    %v464 = vld [vmem:[%s1 + $0x910] sm:$0xff]
    %v465 = vld [vmem:[%s1 + $0x918] sm:$0xff]
    %v466 = vld [vmem:[%s1 + $0x920] sm:$0xff]
    %v467 = vld [vmem:[%s1 + $0x928] sm:$0xff]
    %v468 = vld [vmem:[%s1 + $0x930] sm:$0xff]
    %v469 = vld [vmem:[%s1 + $0x938] sm:$0xff]
    %v470 = vld [vmem:[%s1 + $0x940] sm:$0xff]
    %v471 = vld [vmem:[%s1 + $0x948] sm:$0xff]
    %v472 = vld [vmem:[%s1 + $0x950] sm:$0xff]
    %v473 = vld [vmem:[%s1 + $0x958] sm:$0xff]
    %v474 = vld [vmem:[%s1 + $0x960] sm:$0xff]
    %v475 = vld [vmem:[%s1 + $0x968] sm:$0xff]
    %v476 = vld [vmem:[%s1 + $0x970] sm:$0xff]
    %v477 = vld [vmem:[%s1 + $0x978] sm:$0xff]
    %v478 = vld [vmem:[%s1 + $0x980] sm:$0xff]
    %v479 = vld [vmem:[%s1 + $0x988] sm:$0xff]
    %v480 = vld [vmem:[%s1 + $0x990] sm:$0xff]
    %v481 = vld [vmem:[%s1 + $0x998] sm:$0xff]
    %v482 = vld [vmem:[%s1 + $0x9a0] sm:$0xff]
    %v483 = vld [vmem:[%s1 + $0x9a8] sm:$0xff]
    %v484 = vld [vmem:[%s1 + $0x9b0] sm:$0xff]
    %v485 = vld [vmem:[%s1 + $0x9b8] sm:$0xff]
    %v486 = vld [vmem:[%s1 + $0x9c0] sm:$0xff]
    %v487 = vld [vmem:[%s1 + $0x9c8] sm:$0xff]
    %v488 = vld [vmem:[%s1 + $0x9d0] sm:$0xff]
    %v489 = vld [vmem:[%s1 + $0x9d8] sm:$0xff]
    %v490 = vld [vmem:[%s1 + $0x9e0] sm:$0xff]
    %v491 = vld [vmem:[%s1 + $0x9e8] sm:$0xff]
    %v492 = vld [vmem:[%s1 + $0x9f0] sm:$0xff]
    %v493 = vld [vmem:[%s1 + $0x9f8] sm:$0xff]
    %v494 = vld [vmem:[%s1 + $0xa00] sm:$0xff]
    %v495 = vld [vmem:[%s1 + $0xa08] sm:$0xff]
    %v496 = vld [vmem:[%s1 + $0xa10] sm:$0xff]
    %v497 = vld [vmem:[%s1 + $0xa18] sm:$0xff]
    %v498 = vld [vmem:[%s1 + $0xa20] sm:$0xff]
    %v499 = vld [vmem:[%s1 + $0xa28] sm:$0xff]
    %v500 = vld [vmem:[%s1 + $0xa30] sm:$0xff]
    %v501 = vld [vmem:[%s1 + $0xa38] sm:$0xff]
    %v502 = vld [vmem:[%s1 + $0xa40] sm:$0xff]
    %v503 = vld [vmem:[%s1 + $0xa48] sm:$0xff]
    %v504 = vld [vmem:[%s1 + $0xa50] sm:$0xff]
    %v505 = vld [vmem:[%s1 + $0xa58] sm:$0xff]
    %v506 = vld [vmem:[%s1 + $0xa60] sm:$0xff]
    %v507 = vld [vmem:[%s1 + $0xa68] sm:$0xff]
    %v508 = vld [vmem:[%s1 + $0xa70] sm:$0xff]
    %v509 = vld [vmem:[%s1 + $0xa78] sm:$0xff]
    %v510 = vld [vmem:[%s1 + $0xa80] sm:$0xff]
    %v511 = vld [vmem:[%s1 + $0xa88] sm:$0xff]
    %v512 = vld [vmem:[%s1 + $0xa90] sm:$0xff]
    %v513 = vld [vmem:[%s1 + $0xa98] sm:$0xff]
    %v514 = vld [vmem:[%s1 + $0xaa0] sm:$0xff]
    %v515 = vld [vmem:[%s1 + $0xaa8] sm:$0xff]
    %v516 = vld [vmem:[%s1 + $0xab0] sm:$0xff]
    %v517 = vld [vmem:[%s1 + $0xab8] sm:$0xff]
    %v518 = vld [vmem:[%s1 + $0xac0] sm:$0xff]
    %v519 = vld [vmem:[%s1 + $0xac8] sm:$0xff]
    %v520 = vld [vmem:[%s1 + $0xad0] sm:$0xff]
    %v521 = vld [vmem:[%s1 + $0xad8] sm:$0xff]
    %v522 = vld [vmem:[%s1 + $0xae0] sm:$0xff]
    %v523 = vld [vmem:[%s1 + $0xae8] sm:$0xff]
    %v524 = vld [vmem:[%s1 + $0xaf0] sm:$0xff]
    %v525 = vld [vmem:[%s1 + $0xaf8] sm:$0xff]
    %v526 = vld [vmem:[%s1 + $0xb00] sm:$0xff]
    %v527 = vld [vmem:[%s1 + $0xb08] sm:$0xff]
    %v528 = vld [vmem:[%s1 + $0xb10] sm:$0xff]
    %v529 = vld [vmem:[%s1 + $0xb18] sm:$0xff]
    %v530 = vld [vmem:[%s1 + $0xb20] sm:$0xff]
    %v531 = vld [vmem:[%s1 + $0xb28] sm:$0xff]
    %v532 = vld [vmem:[%s1 + $0xb30] sm:$0xff]
    %v533 = vld [vmem:[%s1 + $0xb38] sm:$0xff]
    %v534 = vld [vmem:[%s1 + $0xb40] sm:$0xff]
    %v535 = vld [vmem:[%s1 + $0xb48] sm:$0xff]
    %v536 = vld [vmem:[%s1 + $0xb50] sm:$0xff]
    %v537 = vld [vmem:[%s1 + $0xb58] sm:$0xff]
    %v538 = vld [vmem:[%s1 + $0xb60] sm:$0xff]
    %v539 = vld [vmem:[%s1 + $0xb68] sm:$0xff]
    %v540 = vld [vmem:[%s1 + $0xb70] sm:$0xff]
    %v541 = vld [vmem:[%s1 + $0xb78] sm:$0xff]
    %v542 = vld [vmem:[%s1 + $0xb80] sm:$0xff]
    %v543 = vld [vmem:[%s1 + $0xb88] sm:$0xff]
    %v544 = vld [vmem:[%s1 + $0xb90] sm:$0xff]
    %v545 = vld [vmem:[%s1 + $0xb98] sm:$0xff]
    %v546 = vld [vmem:[%s1 + $0xba0] sm:$0xff]
    %v547 = vld [vmem:[%s1 + $0xba8] sm:$0xff]
    %v548 = vld [vmem:[%s1 + $0xbb0] sm:$0xff]
    %v549 = vld [vmem:[%s1 + $0xbb8] sm:$0xff]
    %v550 = vld [vmem:[%s1 + $0xbc0] sm:$0xff]
    %v551 = vld [vmem:[%s1 + $0xbc8] sm:$0xff]
    %v552 = vld [vmem:[%s1 + $0xbd0] sm:$0xff]
    %v553 = vld [vmem:[%s1 + $0xbd8] sm:$0xff]
    %v554 = vld [vmem:[%s1 + $0xbe0] sm:$0xff]
    %v555 = vld [vmem:[%s1 + $0xbe8] sm:$0xff]
    %v556 = vld [vmem:[%s1 + $0xbf0] sm:$0xff]
    %v557 = vld [vmem:[%s1 + $0xbf8] sm:$0xff]
    %v558 = vld [vmem:[%s2] sm:$0x3f]
    %v560 = vlaneseq
    %v561 = vshrl.u32 %v560, 7
    %v562 = vsub.s32 0, %v561
    %v563 = vrot.slane %v558, %v562
    %v564 = vlaneseq
    %v565 = vshrl.u32 %v564, 7
    %v566 = vsub.s32 1, %v565
    %v567 = vrot.slane %v558, %v566
    %v568 = vlaneseq
    %v569 = vshrl.u32 %v568, 7
    %v570 = vsub.s32 2, %v569
    %v571 = vrot.slane %v558, %v570
    %v572 = vlaneseq
    %v573 = vshrl.u32 %v572, 7
    %v574 = vsub.s32 3, %v573
    %v575 = vrot.slane %v558, %v574
    %v576 = vlaneseq
    %v577 = vshrl.u32 %v576, 7
    %v578 = vsub.s32 4, %v577
    %v579 = vrot.slane %v558, %v578
    %v580 = vlaneseq
    %v581 = vshrl.u32 %v580, 7
    %v582 = vsub.s32 5, %v581
    %v583 = vrot.slane %v558, %v582
    %v718 = vunpack.c.l.b16 %v46
    %v719 = vunpack.c.h.b16 %v46
    %v720 = vunpack.c.l.b16 %v47
    %v721 = vunpack.c.h.b16 %v47
    %v722 = vunpack.c.l.b16 %v48
    %v723 = vunpack.c.h.b16 %v48
    %v724 = vunpack.c.l.b16 %v49
    %v725 = vunpack.c.h.b16 %v49
    %v726 = vunpack.c.l.b16 %v50
    %v727 = vunpack.c.h.b16 %v50
    %v728 = vunpack.c.l.b16 %v51
    %v729 = vunpack.c.h.b16 %v51
    %v730 = vunpack.c.l.b16 %v52
    %v731 = vunpack.c.h.b16 %v52
    %v732 = vunpack.c.l.b16 %v53
    %v733 = vunpack.c.h.b16 %v53
    %v734 = vunpack.c.l.b16 %v54
    %v735 = vunpack.c.h.b16 %v54
    %v736 = vunpack.c.l.b16 %v55
    %v737 = vunpack.c.h.b16 %v55
    %v738 = vunpack.c.l.b16 %v56
    %v739 = vunpack.c.h.b16 %v56
    %v740 = vunpack.c.l.b16 %v57
    %v741 = vunpack.c.h.b16 %v57
    %v742 = vunpack.c.l.b16 %v58
    %v743 = vunpack.c.h.b16 %v58
    %v744 = vunpack.c.l.b16 %v59
    %v745 = vunpack.c.h.b16 %v59
    %v746 = vunpack.c.l.b16 %v60
    %v747 = vunpack.c.h.b16 %v60
    %v748 = vunpack.c.l.b16 %v61
    %v749 = vunpack.c.h.b16 %v61
    %v750 = vunpack.c.l.b16 %v62
    %v751 = vunpack.c.h.b16 %v62
    %v752 = vunpack.c.l.b16 %v63
    %v753 = vunpack.c.h.b16 %v63
    %v754 = vunpack.c.l.b16 %v64
    %v755 = vunpack.c.h.b16 %v64
    %v756 = vunpack.c.l.b16 %v65
    %v757 = vunpack.c.h.b16 %v65
    %v758 = vunpack.c.l.b16 %v66
    %v759 = vunpack.c.h.b16 %v66
    %v760 = vunpack.c.l.b16 %v67
    %v761 = vunpack.c.h.b16 %v67
    %v762 = vunpack.c.l.b16 %v68
    %v763 = vunpack.c.h.b16 %v68
    %v764 = vunpack.c.l.b16 %v69
    %v765 = vunpack.c.h.b16 %v69
    %v766 = vunpack.c.l.b16 %v70
    %v767 = vunpack.c.h.b16 %v70
    %v768 = vunpack.c.l.b16 %v71
    %v769 = vunpack.c.h.b16 %v71
    %v770 = vunpack.c.l.b16 %v72
    %v771 = vunpack.c.h.b16 %v72
    %v772 = vunpack.c.l.b16 %v73
    %v773 = vunpack.c.h.b16 %v73
    %v774 = vunpack.c.l.b16 %v74
    %v775 = vunpack.c.h.b16 %v74
    %v776 = vunpack.c.l.b16 %v75
    %v777 = vunpack.c.h.b16 %v75
    %v778 = vunpack.c.l.b16 %v76
    %v779 = vunpack.c.h.b16 %v76
    %v780 = vunpack.c.l.b16 %v77
    %v781 = vunpack.c.h.b16 %v77
    %v782 = vunpack.c.l.b16 %v78
    %v783 = vunpack.c.h.b16 %v78
    %v784 = vunpack.c.l.b16 %v79
    %v785 = vunpack.c.h.b16 %v79
    %v786 = vunpack.c.l.b16 %v80
    %v787 = vunpack.c.h.b16 %v80
    %v788 = vunpack.c.l.b16 %v81
    %v789 = vunpack.c.h.b16 %v81
    %v790 = vunpack.c.l.b16 %v82
    %v791 = vunpack.c.h.b16 %v82
    %v792 = vunpack.c.l.b16 %v83
    %v793 = vunpack.c.h.b16 %v83
    %v794 = vunpack.c.l.b16 %v84
    %v795 = vunpack.c.h.b16 %v84
    %v796 = vunpack.c.l.b16 %v85
    %v797 = vunpack.c.h.b16 %v85
    %v798 = vunpack.c.l.b16 %v86
    %v799 = vunpack.c.h.b16 %v86
    %v800 = vunpack.c.l.b16 %v87
    %v801 = vunpack.c.h.b16 %v87
    %v802 = vunpack.c.l.b16 %v88
    %v803 = vunpack.c.h.b16 %v88
    %v804 = vunpack.c.l.b16 %v89
    %v805 = vunpack.c.h.b16 %v89
    %v806 = vunpack.c.l.b16 %v90
    %v807 = vunpack.c.h.b16 %v90
    %v808 = vunpack.c.l.b16 %v91
    %v809 = vunpack.c.h.b16 %v91
    %v810 = vunpack.c.l.b16 %v92
    %v811 = vunpack.c.h.b16 %v92
    %v812 = vunpack.c.l.b16 %v93
    %v813 = vunpack.c.h.b16 %v93
    %v814 = vunpack.c.l.b16 %v94
    %v815 = vunpack.c.h.b16 %v94
    %v816 = vunpack.c.l.b16 %v95
    %v817 = vunpack.c.h.b16 %v95
    %v818 = vunpack.c.l.b16 %v96
    %v819 = vunpack.c.h.b16 %v96
    %v820 = vunpack.c.l.b16 %v97
    %v821 = vunpack.c.h.b16 %v97
    %v822 = vunpack.c.l.b16 %v98
    %v823 = vunpack.c.h.b16 %v98
    %v824 = vunpack.c.l.b16 %v99
    %v825 = vunpack.c.h.b16 %v99
    %v826 = vunpack.c.l.b16 %v100
    %v827 = vunpack.c.h.b16 %v100
    %v828 = vunpack.c.l.b16 %v101
    %v829 = vunpack.c.h.b16 %v101
    %v830 = vunpack.c.l.b16 %v102
    %v831 = vunpack.c.h.b16 %v102
    %v832 = vunpack.c.l.b16 %v103
    %v833 = vunpack.c.h.b16 %v103
    %v834 = vunpack.c.l.b16 %v104
    %v835 = vunpack.c.h.b16 %v104
    %v836 = vunpack.c.l.b16 %v105
    %v837 = vunpack.c.h.b16 %v105
    %v838 = vunpack.c.l.b16 %v106
    %v839 = vunpack.c.h.b16 %v106
    %v840 = vunpack.c.l.b16 %v107
    %v841 = vunpack.c.h.b16 %v107
    %v842 = vunpack.c.l.b16 %v108
    %v843 = vunpack.c.h.b16 %v108
    %v844 = vunpack.c.l.b16 %v109
    %v845 = vunpack.c.h.b16 %v109
    %v846 = vunpack.c.l.b16 %v110
    %v847 = vunpack.c.h.b16 %v110
    %v848 = vunpack.c.l.b16 %v111
    %v849 = vunpack.c.h.b16 %v111
    %v850 = vunpack.c.l.b16 %v112
    %v851 = vunpack.c.h.b16 %v112
    %v852 = vunpack.c.l.b16 %v113
    %v853 = vunpack.c.h.b16 %v113
    %v854 = vunpack.c.l.b16 %v114
    %v855 = vunpack.c.h.b16 %v114
    %v856 = vunpack.c.l.b16 %v115
    %v857 = vunpack.c.h.b16 %v115
    %v858 = vunpack.c.l.b16 %v116
    %v859 = vunpack.c.h.b16 %v116
    %v860 = vunpack.c.l.b16 %v117
    %v861 = vunpack.c.h.b16 %v117
    %v862 = vunpack.c.l.b16 %v118
    %v863 = vunpack.c.h.b16 %v118
    %v864 = vunpack.c.l.b16 %v119
    %v865 = vunpack.c.h.b16 %v119
    %v866 = vunpack.c.l.b16 %v120
    %v867 = vunpack.c.h.b16 %v120
    %v868 = vunpack.c.l.b16 %v121
    %v869 = vunpack.c.h.b16 %v121
    %v870 = vunpack.c.l.b16 %v122
    %v871 = vunpack.c.h.b16 %v122
    %v872 = vunpack.c.l.b16 %v123
    %v873 = vunpack.c.h.b16 %v123
    %v874 = vunpack.c.l.b16 %v124
    %v875 = vunpack.c.h.b16 %v124
    %v876 = vunpack.c.l.b16 %v125
    %v877 = vunpack.c.h.b16 %v125
    %v878 = vunpack.c.l.b16 %v126
    %v879 = vunpack.c.h.b16 %v126
    %v880 = vunpack.c.l.b16 %v127
    %v881 = vunpack.c.h.b16 %v127
    %v882 = vunpack.c.l.b16 %v128
    %v883 = vunpack.c.h.b16 %v128
    %v884 = vunpack.c.l.b16 %v129
    %v885 = vunpack.c.h.b16 %v129
    %v886 = vunpack.c.l.b16 %v130
    %v887 = vunpack.c.h.b16 %v130
    %v888 = vunpack.c.l.b16 %v131
    %v889 = vunpack.c.h.b16 %v131
    %v890 = vunpack.c.l.b16 %v132
    %v891 = vunpack.c.h.b16 %v132
    %v892 = vunpack.c.l.b16 %v133
    %v893 = vunpack.c.h.b16 %v133
    %v894 = vunpack.c.l.b16 %v134
    %v895 = vunpack.c.h.b16 %v134
    %v896 = vunpack.c.l.b16 %v135
    %v897 = vunpack.c.h.b16 %v135
    %v898 = vunpack.c.l.b16 %v136
    %v899 = vunpack.c.h.b16 %v136
    %v900 = vunpack.c.l.b16 %v137
    %v901 = vunpack.c.h.b16 %v137
    %v902 = vunpack.c.l.b16 %v138
    %v903 = vunpack.c.h.b16 %v138
    %v904 = vunpack.c.l.b16 %v139
    %v905 = vunpack.c.h.b16 %v139
    %v906 = vunpack.c.l.b16 %v140
    %v907 = vunpack.c.h.b16 %v140
    %v908 = vunpack.c.l.b16 %v141
    %v909 = vunpack.c.h.b16 %v141
    %v910 = vunpack.c.l.b16 %v142
    %v911 = vunpack.c.h.b16 %v142
    %v912 = vunpack.c.l.b16 %v143
    %v913 = vunpack.c.h.b16 %v143
    %v914 = vunpack.c.l.b16 %v144
    %v915 = vunpack.c.h.b16 %v144
    %v916 = vunpack.c.l.b16 %v145
    %v917 = vunpack.c.h.b16 %v145
    %v918 = vunpack.c.l.b16 %v146
    %v919 = vunpack.c.h.b16 %v146
    %v920 = vunpack.c.l.b16 %v147
    %v921 = vunpack.c.h.b16 %v147
    %v922 = vunpack.c.l.b16 %v148
    %v923 = vunpack.c.h.b16 %v148
    %v924 = vunpack.c.l.b16 %v149
    %v925 = vunpack.c.h.b16 %v149
    %v926 = vunpack.c.l.b16 %v150
    %v927 = vunpack.c.h.b16 %v150
    %v928 = vunpack.c.l.b16 %v151
    %v929 = vunpack.c.h.b16 %v151
    %v930 = vunpack.c.l.b16 %v152
    %v931 = vunpack.c.h.b16 %v152
    %v932 = vunpack.c.l.b16 %v153
    %v933 = vunpack.c.h.b16 %v153
    %v934 = vunpack.c.l.b16 %v154
    %v935 = vunpack.c.h.b16 %v154
    %v936 = vunpack.c.l.b16 %v155
    %v937 = vunpack.c.h.b16 %v155
    %v938 = vunpack.c.l.b16 %v156
    %v939 = vunpack.c.h.b16 %v156
    %v940 = vunpack.c.l.b16 %v157
    %v941 = vunpack.c.h.b16 %v157
    %v942 = vunpack.c.l.b16 %v158
    %v943 = vunpack.c.h.b16 %v158
    %v944 = vunpack.c.l.b16 %v159
    %v945 = vunpack.c.h.b16 %v159
    %v946 = vunpack.c.l.b16 %v160
    %v947 = vunpack.c.h.b16 %v160
    %v948 = vunpack.c.l.b16 %v161
    %v949 = vunpack.c.h.b16 %v161
    %v950 = vunpack.c.l.b16 %v162
    %v951 = vunpack.c.h.b16 %v162
    %v952 = vunpack.c.l.b16 %v163
    %v953 = vunpack.c.h.b16 %v163
    %v954 = vunpack.c.l.b16 %v164
    %v955 = vunpack.c.h.b16 %v164
    %v956 = vunpack.c.l.b16 %v165
    %v957 = vunpack.c.h.b16 %v165
    %v958 = vunpack.c.l.b16 %v166
    %v959 = vunpack.c.h.b16 %v166
    %v960 = vunpack.c.l.b16 %v167
    %v961 = vunpack.c.h.b16 %v167
    %v962 = vunpack.c.l.b16 %v168
    %v963 = vunpack.c.h.b16 %v168
    %v964 = vunpack.c.l.b16 %v169
    %v965 = vunpack.c.h.b16 %v169
    %v966 = vunpack.c.l.b16 %v170
    %v967 = vunpack.c.h.b16 %v170
    %v968 = vunpack.c.l.b16 %v171
    %v969 = vunpack.c.h.b16 %v171
    %v970 = vunpack.c.l.b16 %v172
    %v971 = vunpack.c.h.b16 %v172
    %v972 = vunpack.c.l.b16 %v173
    %v973 = vunpack.c.h.b16 %v173
    %v974 = vpack.c.b16 %v726, %v718
    %v975 = vpack.c.b16 %v727, %v719
    %v976 = vpack.c.b16 %v728, %v720
    %v977 = vpack.c.b16 %v729, %v721
    %v978 = vpack.c.b16 %v730, %v722
    %v979 = vpack.c.b16 %v731, %v723
    %v980 = vpack.c.b16 %v732, %v724
    %v981 = vpack.c.b16 %v733, %v725
    %v982 = vpack.c.b16 %v742, %v734
    %v983 = vpack.c.b16 %v743, %v735
    %v984 = vpack.c.b16 %v744, %v736
    %v985 = vpack.c.b16 %v745, %v737
    %v986 = vpack.c.b16 %v746, %v738
    %v987 = vpack.c.b16 %v747, %v739
    %v988 = vpack.c.b16 %v748, %v740
    %v989 = vpack.c.b16 %v749, %v741
    %v990 = vpack.c.b16 %v758, %v750
    %v991 = vpack.c.b16 %v759, %v751
    %v992 = vpack.c.b16 %v760, %v752
    %v993 = vpack.c.b16 %v761, %v753
    %v994 = vpack.c.b16 %v762, %v754
    %v995 = vpack.c.b16 %v763, %v755
    %v996 = vpack.c.b16 %v764, %v756
    %v997 = vpack.c.b16 %v765, %v757
    %v998 = vpack.c.b16 %v774, %v766
    %v999 = vpack.c.b16 %v775, %v767
    %v1000 = vpack.c.b16 %v776, %v768
    %v1001 = vpack.c.b16 %v777, %v769
    %v1002 = vpack.c.b16 %v778, %v770
    %v1003 = vpack.c.b16 %v779, %v771
    %v1004 = vpack.c.b16 %v780, %v772
    %v1005 = vpack.c.b16 %v781, %v773
    %v1006 = vpack.c.b16 %v790, %v782
    %v1007 = vpack.c.b16 %v791, %v783
    %v1008 = vpack.c.b16 %v792, %v784
    %v1009 = vpack.c.b16 %v793, %v785
    %v1010 = vpack.c.b16 %v794, %v786
    %v1011 = vpack.c.b16 %v795, %v787
    %v1012 = vpack.c.b16 %v796, %v788
    %v1013 = vpack.c.b16 %v797, %v789
    %v1014 = vpack.c.b16 %v806, %v798
    %v1015 = vpack.c.b16 %v807, %v799
    %v1016 = vpack.c.b16 %v808, %v800
    %v1017 = vpack.c.b16 %v809, %v801
    %v1018 = vpack.c.b16 %v810, %v802
    %v1019 = vpack.c.b16 %v811, %v803
    %v1020 = vpack.c.b16 %v812, %v804
    %v1021 = vpack.c.b16 %v813, %v805
    %v1022 = vpack.c.b16 %v822, %v814
    %v1023 = vpack.c.b16 %v823, %v815
    %v1024 = vpack.c.b16 %v824, %v816
    %v1025 = vpack.c.b16 %v825, %v817
    %v1026 = vpack.c.b16 %v826, %v818
    %v1027 = vpack.c.b16 %v827, %v819
    %v1028 = vpack.c.b16 %v828, %v820
    %v1029 = vpack.c.b16 %v829, %v821
    %v1030 = vpack.c.b16 %v838, %v830
    %v1031 = vpack.c.b16 %v839, %v831
    %v1032 = vpack.c.b16 %v840, %v832
    %v1033 = vpack.c.b16 %v841, %v833
    %v1034 = vpack.c.b16 %v842, %v834
    %v1035 = vpack.c.b16 %v843, %v835
    %v1036 = vpack.c.b16 %v844, %v836
    %v1037 = vpack.c.b16 %v845, %v837
    %v1038 = vpack.c.b16 %v854, %v846
    %v1039 = vpack.c.b16 %v855, %v847
    %v1040 = vpack.c.b16 %v856, %v848
    %v1041 = vpack.c.b16 %v857, %v849
    %v1042 = vpack.c.b16 %v858, %v850
    %v1043 = vpack.c.b16 %v859, %v851
    %v1044 = vpack.c.b16 %v860, %v852
    %v1045 = vpack.c.b16 %v861, %v853
    %v1046 = vpack.c.b16 %v870, %v862
    %v1047 = vpack.c.b16 %v871, %v863
    %v1048 = vpack.c.b16 %v872, %v864
    %v1049 = vpack.c.b16 %v873, %v865
    %v1050 = vpack.c.b16 %v874, %v866
    %v1051 = vpack.c.b16 %v875, %v867
    %v1052 = vpack.c.b16 %v876, %v868
    %v1053 = vpack.c.b16 %v877, %v869
    %v1054 = vpack.c.b16 %v886, %v878
    %v1055 = vpack.c.b16 %v887, %v879
    %v1056 = vpack.c.b16 %v888, %v880
    %v1057 = vpack.c.b16 %v889, %v881
    %v1058 = vpack.c.b16 %v890, %v882
    %v1059 = vpack.c.b16 %v891, %v883
    %v1060 = vpack.c.b16 %v892, %v884
    %v1061 = vpack.c.b16 %v893, %v885
    %v1062 = vpack.c.b16 %v902, %v894
    %v1063 = vpack.c.b16 %v903, %v895
    %v1064 = vpack.c.b16 %v904, %v896
    %v1065 = vpack.c.b16 %v905, %v897
    %v1066 = vpack.c.b16 %v906, %v898
    %v1067 = vpack.c.b16 %v907, %v899
    %v1068 = vpack.c.b16 %v908, %v900
    %v1069 = vpack.c.b16 %v909, %v901
    %v1070 = vpack.c.b16 %v918, %v910
    %v1071 = vpack.c.b16 %v919, %v911
    %v1072 = vpack.c.b16 %v920, %v912
    %v1073 = vpack.c.b16 %v921, %v913
    %v1074 = vpack.c.b16 %v922, %v914
    %v1075 = vpack.c.b16 %v923, %v915
    %v1076 = vpack.c.b16 %v924, %v916
    %v1077 = vpack.c.b16 %v925, %v917
    %v1078 = vpack.c.b16 %v934, %v926
    %v1079 = vpack.c.b16 %v935, %v927
    %v1080 = vpack.c.b16 %v936, %v928
    %v1081 = vpack.c.b16 %v937, %v929
    %v1082 = vpack.c.b16 %v938, %v930
    %v1083 = vpack.c.b16 %v939, %v931
    %v1084 = vpack.c.b16 %v940, %v932
    %v1085 = vpack.c.b16 %v941, %v933
    %v1086 = vpack.c.b16 %v950, %v942
    %v1087 = vpack.c.b16 %v951, %v943
    %v1088 = vpack.c.b16 %v952, %v944
    %v1089 = vpack.c.b16 %v953, %v945
    %v1090 = vpack.c.b16 %v954, %v946
    %v1091 = vpack.c.b16 %v955, %v947
    %v1092 = vpack.c.b16 %v956, %v948
    %v1093 = vpack.c.b16 %v957, %v949
    %v1094 = vpack.c.b16 %v966, %v958
    %v1095 = vpack.c.b16 %v967, %v959
    %v1096 = vpack.c.b16 %v968, %v960
    %v1097 = vpack.c.b16 %v969, %v961
    %v1098 = vpack.c.b16 %v970, %v962
    %v1099 = vpack.c.b16 %v971, %v963
    %v1100 = vpack.c.b16 %v972, %v964
    %v1101 = vpack.c.b16 %v973, %v965
    %v1614 = vunpack.c.l.b16 %v174
    %v1615 = vunpack.c.h.b16 %v174
    %v1616 = vunpack.c.l.b16 %v175
    %v1617 = vunpack.c.h.b16 %v175
    %v1618 = vunpack.c.l.b16 %v176
    %v1619 = vunpack.c.h.b16 %v176
    %v1620 = vunpack.c.l.b16 %v177
    %v1621 = vunpack.c.h.b16 %v177
    %v1622 = vunpack.c.l.b16 %v178
    %v1623 = vunpack.c.h.b16 %v178
    %v1624 = vunpack.c.l.b16 %v179
    %v1625 = vunpack.c.h.b16 %v179
    %v1626 = vunpack.c.l.b16 %v180
    %v1627 = vunpack.c.h.b16 %v180
    %v1628 = vunpack.c.l.b16 %v181
    %v1629 = vunpack.c.h.b16 %v181
    %v1630 = vunpack.c.l.b16 %v182
    %v1631 = vunpack.c.h.b16 %v182
    %v1632 = vunpack.c.l.b16 %v183
    %v1633 = vunpack.c.h.b16 %v183
    %v1634 = vunpack.c.l.b16 %v184
    %v1635 = vunpack.c.h.b16 %v184
    %v1636 = vunpack.c.l.b16 %v185
    %v1637 = vunpack.c.h.b16 %v185
    %v1638 = vunpack.c.l.b16 %v186
    %v1639 = vunpack.c.h.b16 %v186
    %v1640 = vunpack.c.l.b16 %v187
    %v1641 = vunpack.c.h.b16 %v187
    %v1642 = vunpack.c.l.b16 %v188
    %v1643 = vunpack.c.h.b16 %v188
    %v1644 = vunpack.c.l.b16 %v189
    %v1645 = vunpack.c.h.b16 %v189
    %v1646 = vunpack.c.l.b16 %v190
    %v1647 = vunpack.c.h.b16 %v190
    %v1648 = vunpack.c.l.b16 %v191
    %v1649 = vunpack.c.h.b16 %v191
    %v1650 = vunpack.c.l.b16 %v192
    %v1651 = vunpack.c.h.b16 %v192
    %v1652 = vunpack.c.l.b16 %v193
    %v1653 = vunpack.c.h.b16 %v193
    %v1654 = vunpack.c.l.b16 %v194
    %v1655 = vunpack.c.h.b16 %v194
    %v1656 = vunpack.c.l.b16 %v195
    %v1657 = vunpack.c.h.b16 %v195
    %v1658 = vunpack.c.l.b16 %v196
    %v1659 = vunpack.c.h.b16 %v196
    %v1660 = vunpack.c.l.b16 %v197
    %v1661 = vunpack.c.h.b16 %v197
    %v1662 = vunpack.c.l.b16 %v198
    %v1663 = vunpack.c.h.b16 %v198
    %v1664 = vunpack.c.l.b16 %v199
    %v1665 = vunpack.c.h.b16 %v199
    %v1666 = vunpack.c.l.b16 %v200
    %v1667 = vunpack.c.h.b16 %v200
    %v1668 = vunpack.c.l.b16 %v201
    %v1669 = vunpack.c.h.b16 %v201
    %v1670 = vunpack.c.l.b16 %v202
    %v1671 = vunpack.c.h.b16 %v202
    %v1672 = vunpack.c.l.b16 %v203
    %v1673 = vunpack.c.h.b16 %v203
    %v1674 = vunpack.c.l.b16 %v204
    %v1675 = vunpack.c.h.b16 %v204
    %v1676 = vunpack.c.l.b16 %v205
    %v1677 = vunpack.c.h.b16 %v205
    %v1678 = vunpack.c.l.b16 %v206
    %v1679 = vunpack.c.h.b16 %v206
    %v1680 = vunpack.c.l.b16 %v207
    %v1681 = vunpack.c.h.b16 %v207
    %v1682 = vunpack.c.l.b16 %v208
    %v1683 = vunpack.c.h.b16 %v208
    %v1684 = vunpack.c.l.b16 %v209
    %v1685 = vunpack.c.h.b16 %v209
    %v1686 = vunpack.c.l.b16 %v210
    %v1687 = vunpack.c.h.b16 %v210
    %v1688 = vunpack.c.l.b16 %v211
    %v1689 = vunpack.c.h.b16 %v211
    %v1690 = vunpack.c.l.b16 %v212
    %v1691 = vunpack.c.h.b16 %v212
    %v1692 = vunpack.c.l.b16 %v213
    %v1693 = vunpack.c.h.b16 %v213
    %v1694 = vunpack.c.l.b16 %v214
    %v1695 = vunpack.c.h.b16 %v214
    %v1696 = vunpack.c.l.b16 %v215
    %v1697 = vunpack.c.h.b16 %v215
    %v1698 = vunpack.c.l.b16 %v216
    %v1699 = vunpack.c.h.b16 %v216
    %v1700 = vunpack.c.l.b16 %v217
    %v1701 = vunpack.c.h.b16 %v217
    %v1702 = vunpack.c.l.b16 %v218
    %v1703 = vunpack.c.h.b16 %v218
    %v1704 = vunpack.c.l.b16 %v219
    %v1705 = vunpack.c.h.b16 %v219
    %v1706 = vunpack.c.l.b16 %v220
    %v1707 = vunpack.c.h.b16 %v220
    %v1708 = vunpack.c.l.b16 %v221
    %v1709 = vunpack.c.h.b16 %v221
    %v1710 = vunpack.c.l.b16 %v222
    %v1711 = vunpack.c.h.b16 %v222
    %v1712 = vunpack.c.l.b16 %v223
    %v1713 = vunpack.c.h.b16 %v223
    %v1714 = vunpack.c.l.b16 %v224
    %v1715 = vunpack.c.h.b16 %v224
    %v1716 = vunpack.c.l.b16 %v225
    %v1717 = vunpack.c.h.b16 %v225
    %v1718 = vunpack.c.l.b16 %v226
    %v1719 = vunpack.c.h.b16 %v226
    %v1720 = vunpack.c.l.b16 %v227
    %v1721 = vunpack.c.h.b16 %v227
    %v1722 = vunpack.c.l.b16 %v228
    %v1723 = vunpack.c.h.b16 %v228
    %v1724 = vunpack.c.l.b16 %v229
    %v1725 = vunpack.c.h.b16 %v229
    %v1726 = vunpack.c.l.b16 %v230
    %v1727 = vunpack.c.h.b16 %v230
    %v1728 = vunpack.c.l.b16 %v231
    %v1729 = vunpack.c.h.b16 %v231
    %v1730 = vunpack.c.l.b16 %v232
    %v1731 = vunpack.c.h.b16 %v232
    %v1732 = vunpack.c.l.b16 %v233
    %v1733 = vunpack.c.h.b16 %v233
    %v1734 = vunpack.c.l.b16 %v234
    %v1735 = vunpack.c.h.b16 %v234
    %v1736 = vunpack.c.l.b16 %v235
    %v1737 = vunpack.c.h.b16 %v235
    %v1738 = vunpack.c.l.b16 %v236
    %v1739 = vunpack.c.h.b16 %v236
    %v1740 = vunpack.c.l.b16 %v237
    %v1741 = vunpack.c.h.b16 %v237
    %v1742 = vunpack.c.l.b16 %v238
    %v1743 = vunpack.c.h.b16 %v238
    %v1744 = vunpack.c.l.b16 %v239
    %v1745 = vunpack.c.h.b16 %v239
    %v1746 = vunpack.c.l.b16 %v240
    %v1747 = vunpack.c.h.b16 %v240
    %v1748 = vunpack.c.l.b16 %v241
    %v1749 = vunpack.c.h.b16 %v241
    %v1750 = vunpack.c.l.b16 %v242
    %v1751 = vunpack.c.h.b16 %v242
    %v1752 = vunpack.c.l.b16 %v243
    %v1753 = vunpack.c.h.b16 %v243
    %v1754 = vunpack.c.l.b16 %v244
    %v1755 = vunpack.c.h.b16 %v244
    %v1756 = vunpack.c.l.b16 %v245
    %v1757 = vunpack.c.h.b16 %v245
    %v1758 = vunpack.c.l.b16 %v246
    %v1759 = vunpack.c.h.b16 %v246
    %v1760 = vunpack.c.l.b16 %v247
    %v1761 = vunpack.c.h.b16 %v247
    %v1762 = vunpack.c.l.b16 %v248
    %v1763 = vunpack.c.h.b16 %v248
    %v1764 = vunpack.c.l.b16 %v249
    %v1765 = vunpack.c.h.b16 %v249
    %v1766 = vunpack.c.l.b16 %v250
    %v1767 = vunpack.c.h.b16 %v250
    %v1768 = vunpack.c.l.b16 %v251
    %v1769 = vunpack.c.h.b16 %v251
    %v1770 = vunpack.c.l.b16 %v252
    %v1771 = vunpack.c.h.b16 %v252
    %v1772 = vunpack.c.l.b16 %v253
    %v1773 = vunpack.c.h.b16 %v253
    %v1774 = vunpack.c.l.b16 %v254
    %v1775 = vunpack.c.h.b16 %v254
    %v1776 = vunpack.c.l.b16 %v255
    %v1777 = vunpack.c.h.b16 %v255
    %v1778 = vunpack.c.l.b16 %v256
    %v1779 = vunpack.c.h.b16 %v256
    %v1780 = vunpack.c.l.b16 %v257
    %v1781 = vunpack.c.h.b16 %v257
    %v1782 = vunpack.c.l.b16 %v258
    %v1783 = vunpack.c.h.b16 %v258
    %v1784 = vunpack.c.l.b16 %v259
    %v1785 = vunpack.c.h.b16 %v259
    %v1786 = vunpack.c.l.b16 %v260
    %v1787 = vunpack.c.h.b16 %v260
    %v1788 = vunpack.c.l.b16 %v261
    %v1789 = vunpack.c.h.b16 %v261
    %v1790 = vunpack.c.l.b16 %v262
    %v1791 = vunpack.c.h.b16 %v262
    %v1792 = vunpack.c.l.b16 %v263
    %v1793 = vunpack.c.h.b16 %v263
    %v1794 = vunpack.c.l.b16 %v264
    %v1795 = vunpack.c.h.b16 %v264
    %v1796 = vunpack.c.l.b16 %v265
    %v1797 = vunpack.c.h.b16 %v265
    %v1798 = vunpack.c.l.b16 %v266
    %v1799 = vunpack.c.h.b16 %v266
    %v1800 = vunpack.c.l.b16 %v267
    %v1801 = vunpack.c.h.b16 %v267
    %v1802 = vunpack.c.l.b16 %v268
    %v1803 = vunpack.c.h.b16 %v268
    %v1804 = vunpack.c.l.b16 %v269
    %v1805 = vunpack.c.h.b16 %v269
    %v1806 = vunpack.c.l.b16 %v270
    %v1807 = vunpack.c.h.b16 %v270
    %v1808 = vunpack.c.l.b16 %v271
    %v1809 = vunpack.c.h.b16 %v271
    %v1810 = vunpack.c.l.b16 %v272
    %v1811 = vunpack.c.h.b16 %v272
    %v1812 = vunpack.c.l.b16 %v273
    %v1813 = vunpack.c.h.b16 %v273
    %v1814 = vunpack.c.l.b16 %v274
    %v1815 = vunpack.c.h.b16 %v274
    %v1816 = vunpack.c.l.b16 %v275
    %v1817 = vunpack.c.h.b16 %v275
    %v1818 = vunpack.c.l.b16 %v276
    %v1819 = vunpack.c.h.b16 %v276
    %v1820 = vunpack.c.l.b16 %v277
    %v1821 = vunpack.c.h.b16 %v277
    %v1822 = vunpack.c.l.b16 %v278
    %v1823 = vunpack.c.h.b16 %v278
    %v1824 = vunpack.c.l.b16 %v279
    %v1825 = vunpack.c.h.b16 %v279
    %v1826 = vunpack.c.l.b16 %v280
    %v1827 = vunpack.c.h.b16 %v280
    %v1828 = vunpack.c.l.b16 %v281
    %v1829 = vunpack.c.h.b16 %v281
    %v1830 = vunpack.c.l.b16 %v282
    %v1831 = vunpack.c.h.b16 %v282
    %v1832 = vunpack.c.l.b16 %v283
    %v1833 = vunpack.c.h.b16 %v283
    %v1834 = vunpack.c.l.b16 %v284
    %v1835 = vunpack.c.h.b16 %v284
    %v1836 = vunpack.c.l.b16 %v285
    %v1837 = vunpack.c.h.b16 %v285
    %v1838 = vunpack.c.l.b16 %v286
    %v1839 = vunpack.c.h.b16 %v286
    %v1840 = vunpack.c.l.b16 %v287
    %v1841 = vunpack.c.h.b16 %v287
    %v1842 = vunpack.c.l.b16 %v288
    %v1843 = vunpack.c.h.b16 %v288
    %v1844 = vunpack.c.l.b16 %v289
    %v1845 = vunpack.c.h.b16 %v289
    %v1846 = vunpack.c.l.b16 %v290
    %v1847 = vunpack.c.h.b16 %v290
    %v1848 = vunpack.c.l.b16 %v291
    %v1849 = vunpack.c.h.b16 %v291
    %v1850 = vunpack.c.l.b16 %v292
    %v1851 = vunpack.c.h.b16 %v292
    %v1852 = vunpack.c.l.b16 %v293
    %v1853 = vunpack.c.h.b16 %v293
    %v1854 = vunpack.c.l.b16 %v294
    %v1855 = vunpack.c.h.b16 %v294
    %v1856 = vunpack.c.l.b16 %v295
    %v1857 = vunpack.c.h.b16 %v295
    %v1858 = vunpack.c.l.b16 %v296
    %v1859 = vunpack.c.h.b16 %v296
    %v1860 = vunpack.c.l.b16 %v297
    %v1861 = vunpack.c.h.b16 %v297
    %v1862 = vunpack.c.l.b16 %v298
    %v1863 = vunpack.c.h.b16 %v298
    %v1864 = vunpack.c.l.b16 %v299
    %v1865 = vunpack.c.h.b16 %v299
    %v1866 = vunpack.c.l.b16 %v300
    %v1867 = vunpack.c.h.b16 %v300
    %v1868 = vunpack.c.l.b16 %v301
    %v1869 = vunpack.c.h.b16 %v301
    %v1870 = vunpack.c.l.b16 %v302
    %v1871 = vunpack.c.h.b16 %v302
    %v1872 = vunpack.c.l.b16 %v303
    %v1873 = vunpack.c.h.b16 %v303
    %v1874 = vunpack.c.l.b16 %v304
    %v1875 = vunpack.c.h.b16 %v304
    %v1876 = vunpack.c.l.b16 %v305
    %v1877 = vunpack.c.h.b16 %v305
    %v1878 = vunpack.c.l.b16 %v306
    %v1879 = vunpack.c.h.b16 %v306
    %v1880 = vunpack.c.l.b16 %v307
    %v1881 = vunpack.c.h.b16 %v307
    %v1882 = vunpack.c.l.b16 %v308
    %v1883 = vunpack.c.h.b16 %v308
    %v1884 = vunpack.c.l.b16 %v309
    %v1885 = vunpack.c.h.b16 %v309
    %v1886 = vunpack.c.l.b16 %v310
    %v1887 = vunpack.c.h.b16 %v310
    %v1888 = vunpack.c.l.b16 %v311
    %v1889 = vunpack.c.h.b16 %v311
    %v1890 = vunpack.c.l.b16 %v312
    %v1891 = vunpack.c.h.b16 %v312
    %v1892 = vunpack.c.l.b16 %v313
    %v1893 = vunpack.c.h.b16 %v313
    %v1894 = vunpack.c.l.b16 %v314
    %v1895 = vunpack.c.h.b16 %v314
    %v1896 = vunpack.c.l.b16 %v315
    %v1897 = vunpack.c.h.b16 %v315
    %v1898 = vunpack.c.l.b16 %v316
    %v1899 = vunpack.c.h.b16 %v316
    %v1900 = vunpack.c.l.b16 %v317
    %v1901 = vunpack.c.h.b16 %v317
    %v1902 = vunpack.c.l.b16 %v318
    %v1903 = vunpack.c.h.b16 %v318
    %v1904 = vunpack.c.l.b16 %v319
    %v1905 = vunpack.c.h.b16 %v319
    %v1906 = vunpack.c.l.b16 %v320
    %v1907 = vunpack.c.h.b16 %v320
    %v1908 = vunpack.c.l.b16 %v321
    %v1909 = vunpack.c.h.b16 %v321
    %v1910 = vunpack.c.l.b16 %v322
    %v1911 = vunpack.c.h.b16 %v322
    %v1912 = vunpack.c.l.b16 %v323
    %v1913 = vunpack.c.h.b16 %v323
    %v1914 = vunpack.c.l.b16 %v324
    %v1915 = vunpack.c.h.b16 %v324
    %v1916 = vunpack.c.l.b16 %v325
    %v1917 = vunpack.c.h.b16 %v325
    %v1918 = vunpack.c.l.b16 %v326
    %v1919 = vunpack.c.h.b16 %v326
    %v1920 = vunpack.c.l.b16 %v327
    %v1921 = vunpack.c.h.b16 %v327
    %v1922 = vunpack.c.l.b16 %v328
    %v1923 = vunpack.c.h.b16 %v328
    %v1924 = vunpack.c.l.b16 %v329
    %v1925 = vunpack.c.h.b16 %v329
    %v1926 = vunpack.c.l.b16 %v330
    %v1927 = vunpack.c.h.b16 %v330
    %v1928 = vunpack.c.l.b16 %v331
    %v1929 = vunpack.c.h.b16 %v331
    %v1930 = vunpack.c.l.b16 %v332
    %v1931 = vunpack.c.h.b16 %v332
    %v1932 = vunpack.c.l.b16 %v333
    %v1933 = vunpack.c.h.b16 %v333
    %v1934 = vunpack.c.l.b16 %v334
    %v1935 = vunpack.c.h.b16 %v334
    %v1936 = vunpack.c.l.b16 %v335
    %v1937 = vunpack.c.h.b16 %v335
    %v1938 = vunpack.c.l.b16 %v336
    %v1939 = vunpack.c.h.b16 %v336
    %v1940 = vunpack.c.l.b16 %v337
    %v1941 = vunpack.c.h.b16 %v337
    %v1942 = vunpack.c.l.b16 %v338
    %v1943 = vunpack.c.h.b16 %v338
    %v1944 = vunpack.c.l.b16 %v339
    %v1945 = vunpack.c.h.b16 %v339
    %v1946 = vunpack.c.l.b16 %v340
    %v1947 = vunpack.c.h.b16 %v340
    %v1948 = vunpack.c.l.b16 %v341
    %v1949 = vunpack.c.h.b16 %v341
    %v1950 = vunpack.c.l.b16 %v342
    %v1951 = vunpack.c.h.b16 %v342
    %v1952 = vunpack.c.l.b16 %v343
    %v1953 = vunpack.c.h.b16 %v343
    %v1954 = vunpack.c.l.b16 %v344
    %v1955 = vunpack.c.h.b16 %v344
    %v1956 = vunpack.c.l.b16 %v345
    %v1957 = vunpack.c.h.b16 %v345
    %v1958 = vunpack.c.l.b16 %v346
    %v1959 = vunpack.c.h.b16 %v346
    %v1960 = vunpack.c.l.b16 %v347
    %v1961 = vunpack.c.h.b16 %v347
    %v1962 = vunpack.c.l.b16 %v348
    %v1963 = vunpack.c.h.b16 %v348
    %v1964 = vunpack.c.l.b16 %v349
    %v1965 = vunpack.c.h.b16 %v349
    %v1966 = vunpack.c.l.b16 %v350
    %v1967 = vunpack.c.h.b16 %v350
    %v1968 = vunpack.c.l.b16 %v351
    %v1969 = vunpack.c.h.b16 %v351
    %v1970 = vunpack.c.l.b16 %v352
    %v1971 = vunpack.c.h.b16 %v352
    %v1972 = vunpack.c.l.b16 %v353
    %v1973 = vunpack.c.h.b16 %v353
    %v1974 = vunpack.c.l.b16 %v354
    %v1975 = vunpack.c.h.b16 %v354
    %v1976 = vunpack.c.l.b16 %v355
    %v1977 = vunpack.c.h.b16 %v355
    %v1978 = vunpack.c.l.b16 %v356
    %v1979 = vunpack.c.h.b16 %v356
    %v1980 = vunpack.c.l.b16 %v357
    %v1981 = vunpack.c.h.b16 %v357
    %v1982 = vunpack.c.l.b16 %v358
    %v1983 = vunpack.c.h.b16 %v358
    %v1984 = vunpack.c.l.b16 %v359
    %v1985 = vunpack.c.h.b16 %v359
    %v1986 = vunpack.c.l.b16 %v360
    %v1987 = vunpack.c.h.b16 %v360
    %v1988 = vunpack.c.l.b16 %v361
    %v1989 = vunpack.c.h.b16 %v361
    %v1990 = vunpack.c.l.b16 %v362
    %v1991 = vunpack.c.h.b16 %v362
    %v1992 = vunpack.c.l.b16 %v363
    %v1993 = vunpack.c.h.b16 %v363
    %v1994 = vunpack.c.l.b16 %v364
    %v1995 = vunpack.c.h.b16 %v364
    %v1996 = vunpack.c.l.b16 %v365
    %v1997 = vunpack.c.h.b16 %v365
    %v1998 = vunpack.c.l.b16 %v366
    %v1999 = vunpack.c.h.b16 %v366
    %v2000 = vunpack.c.l.b16 %v367
    %v2001 = vunpack.c.h.b16 %v367
    %v2002 = vunpack.c.l.b16 %v368
    %v2003 = vunpack.c.h.b16 %v368
    %v2004 = vunpack.c.l.b16 %v369
    %v2005 = vunpack.c.h.b16 %v369
    %v2006 = vunpack.c.l.b16 %v370
    %v2007 = vunpack.c.h.b16 %v370
    %v2008 = vunpack.c.l.b16 %v371
    %v2009 = vunpack.c.h.b16 %v371
    %v2010 = vunpack.c.l.b16 %v372
    %v2011 = vunpack.c.h.b16 %v372
    %v2012 = vunpack.c.l.b16 %v373
    %v2013 = vunpack.c.h.b16 %v373
    %v2014 = vunpack.c.l.b16 %v374
    %v2015 = vunpack.c.h.b16 %v374
    %v2016 = vunpack.c.l.b16 %v375
    %v2017 = vunpack.c.h.b16 %v375
    %v2018 = vunpack.c.l.b16 %v376
    %v2019 = vunpack.c.h.b16 %v376
    %v2020 = vunpack.c.l.b16 %v377
    %v2021 = vunpack.c.h.b16 %v377
    %v2022 = vunpack.c.l.b16 %v378
    %v2023 = vunpack.c.h.b16 %v378
    %v2024 = vunpack.c.l.b16 %v379
    %v2025 = vunpack.c.h.b16 %v379
    %v2026 = vunpack.c.l.b16 %v380
    %v2027 = vunpack.c.h.b16 %v380
    %v2028 = vunpack.c.l.b16 %v381
    %v2029 = vunpack.c.h.b16 %v381
    %v2030 = vunpack.c.l.b16 %v382
    %v2031 = vunpack.c.h.b16 %v382
    %v2032 = vunpack.c.l.b16 %v383
    %v2033 = vunpack.c.h.b16 %v383
    %v2034 = vunpack.c.l.b16 %v384
    %v2035 = vunpack.c.h.b16 %v384
    %v2036 = vunpack.c.l.b16 %v385
    %v2037 = vunpack.c.h.b16 %v385
    %v2038 = vunpack.c.l.b16 %v386
    %v2039 = vunpack.c.h.b16 %v386
    %v2040 = vunpack.c.l.b16 %v387
    %v2041 = vunpack.c.h.b16 %v387
    %v2042 = vunpack.c.l.b16 %v388
    %v2043 = vunpack.c.h.b16 %v388
    %v2044 = vunpack.c.l.b16 %v389
    %v2045 = vunpack.c.h.b16 %v389
    %v2046 = vunpack.c.l.b16 %v390
    %v2047 = vunpack.c.h.b16 %v390
    %v2048 = vunpack.c.l.b16 %v391
    %v2049 = vunpack.c.h.b16 %v391
    %v2050 = vunpack.c.l.b16 %v392
    %v2051 = vunpack.c.h.b16 %v392
    %v2052 = vunpack.c.l.b16 %v393
    %v2053 = vunpack.c.h.b16 %v393
    %v2054 = vunpack.c.l.b16 %v394
    %v2055 = vunpack.c.h.b16 %v394
    %v2056 = vunpack.c.l.b16 %v395
    %v2057 = vunpack.c.h.b16 %v395
    %v2058 = vunpack.c.l.b16 %v396
    %v2059 = vunpack.c.h.b16 %v396
    %v2060 = vunpack.c.l.b16 %v397
    %v2061 = vunpack.c.h.b16 %v397
    %v2062 = vunpack.c.l.b16 %v398
    %v2063 = vunpack.c.h.b16 %v398
    %v2064 = vunpack.c.l.b16 %v399
    %v2065 = vunpack.c.h.b16 %v399
    %v2066 = vunpack.c.l.b16 %v400
    %v2067 = vunpack.c.h.b16 %v400
    %v2068 = vunpack.c.l.b16 %v401
    %v2069 = vunpack.c.h.b16 %v401
    %v2070 = vunpack.c.l.b16 %v402
    %v2071 = vunpack.c.h.b16 %v402
    %v2072 = vunpack.c.l.b16 %v403
    %v2073 = vunpack.c.h.b16 %v403
    %v2074 = vunpack.c.l.b16 %v404
    %v2075 = vunpack.c.h.b16 %v404
    %v2076 = vunpack.c.l.b16 %v405
    %v2077 = vunpack.c.h.b16 %v405
    %v2078 = vunpack.c.l.b16 %v406
    %v2079 = vunpack.c.h.b16 %v406
    %v2080 = vunpack.c.l.b16 %v407
    %v2081 = vunpack.c.h.b16 %v407
    %v2082 = vunpack.c.l.b16 %v408
    %v2083 = vunpack.c.h.b16 %v408
    %v2084 = vunpack.c.l.b16 %v409
    %v2085 = vunpack.c.h.b16 %v409
    %v2086 = vunpack.c.l.b16 %v410
    %v2087 = vunpack.c.h.b16 %v410
    %v2088 = vunpack.c.l.b16 %v411
    %v2089 = vunpack.c.h.b16 %v411
    %v2090 = vunpack.c.l.b16 %v412
    %v2091 = vunpack.c.h.b16 %v412
    %v2092 = vunpack.c.l.b16 %v413
    %v2093 = vunpack.c.h.b16 %v413
    %v2094 = vunpack.c.l.b16 %v414
    %v2095 = vunpack.c.h.b16 %v414
    %v2096 = vunpack.c.l.b16 %v415
    %v2097 = vunpack.c.h.b16 %v415
    %v2098 = vunpack.c.l.b16 %v416
    %v2099 = vunpack.c.h.b16 %v416
    %v2100 = vunpack.c.l.b16 %v417
    %v2101 = vunpack.c.h.b16 %v417
    %v2102 = vunpack.c.l.b16 %v418
    %v2103 = vunpack.c.h.b16 %v418
    %v2104 = vunpack.c.l.b16 %v419
    %v2105 = vunpack.c.h.b16 %v419
    %v2106 = vunpack.c.l.b16 %v420
    %v2107 = vunpack.c.h.b16 %v420
    %v2108 = vunpack.c.l.b16 %v421
    %v2109 = vunpack.c.h.b16 %v421
    %v2110 = vunpack.c.l.b16 %v422
    %v2111 = vunpack.c.h.b16 %v422
    %v2112 = vunpack.c.l.b16 %v423
    %v2113 = vunpack.c.h.b16 %v423
    %v2114 = vunpack.c.l.b16 %v424
    %v2115 = vunpack.c.h.b16 %v424
    %v2116 = vunpack.c.l.b16 %v425
    %v2117 = vunpack.c.h.b16 %v425
    %v2118 = vunpack.c.l.b16 %v426
    %v2119 = vunpack.c.h.b16 %v426
    %v2120 = vunpack.c.l.b16 %v427
    %v2121 = vunpack.c.h.b16 %v427
    %v2122 = vunpack.c.l.b16 %v428
    %v2123 = vunpack.c.h.b16 %v428
    %v2124 = vunpack.c.l.b16 %v429
    %v2125 = vunpack.c.h.b16 %v429
    %v2126 = vunpack.c.l.b16 %v430
    %v2127 = vunpack.c.h.b16 %v430
    %v2128 = vunpack.c.l.b16 %v431
    %v2129 = vunpack.c.h.b16 %v431
    %v2130 = vunpack.c.l.b16 %v432
    %v2131 = vunpack.c.h.b16 %v432
    %v2132 = vunpack.c.l.b16 %v433
    %v2133 = vunpack.c.h.b16 %v433
    %v2134 = vunpack.c.l.b16 %v434
    %v2135 = vunpack.c.h.b16 %v434
    %v2136 = vunpack.c.l.b16 %v435
    %v2137 = vunpack.c.h.b16 %v435
    %v2138 = vunpack.c.l.b16 %v436
    %v2139 = vunpack.c.h.b16 %v436
    %v2140 = vunpack.c.l.b16 %v437
    %v2141 = vunpack.c.h.b16 %v437
    %v2142 = vunpack.c.l.b16 %v438
    %v2143 = vunpack.c.h.b16 %v438
    %v2144 = vunpack.c.l.b16 %v439
    %v2145 = vunpack.c.h.b16 %v439
    %v2146 = vunpack.c.l.b16 %v440
    %v2147 = vunpack.c.h.b16 %v440
    %v2148 = vunpack.c.l.b16 %v441
    %v2149 = vunpack.c.h.b16 %v441
    %v2150 = vunpack.c.l.b16 %v442
    %v2151 = vunpack.c.h.b16 %v442
    %v2152 = vunpack.c.l.b16 %v443
    %v2153 = vunpack.c.h.b16 %v443
    %v2154 = vunpack.c.l.b16 %v444
    %v2155 = vunpack.c.h.b16 %v444
    %v2156 = vunpack.c.l.b16 %v445
    %v2157 = vunpack.c.h.b16 %v445
    %v2158 = vunpack.c.l.b16 %v446
    %v2159 = vunpack.c.h.b16 %v446
    %v2160 = vunpack.c.l.b16 %v447
    %v2161 = vunpack.c.h.b16 %v447
    %v2162 = vunpack.c.l.b16 %v448
    %v2163 = vunpack.c.h.b16 %v448
    %v2164 = vunpack.c.l.b16 %v449
    %v2165 = vunpack.c.h.b16 %v449
    %v2166 = vunpack.c.l.b16 %v450
    %v2167 = vunpack.c.h.b16 %v450
    %v2168 = vunpack.c.l.b16 %v451
    %v2169 = vunpack.c.h.b16 %v451
    %v2170 = vunpack.c.l.b16 %v452
    %v2171 = vunpack.c.h.b16 %v452
    %v2172 = vunpack.c.l.b16 %v453
    %v2173 = vunpack.c.h.b16 %v453
    %v2174 = vunpack.c.l.b16 %v454
    %v2175 = vunpack.c.h.b16 %v454
    %v2176 = vunpack.c.l.b16 %v455
    %v2177 = vunpack.c.h.b16 %v455
    %v2178 = vunpack.c.l.b16 %v456
    %v2179 = vunpack.c.h.b16 %v456
    %v2180 = vunpack.c.l.b16 %v457
    %v2181 = vunpack.c.h.b16 %v457
    %v2182 = vunpack.c.l.b16 %v458
    %v2183 = vunpack.c.h.b16 %v458
    %v2184 = vunpack.c.l.b16 %v459
    %v2185 = vunpack.c.h.b16 %v459
    %v2186 = vunpack.c.l.b16 %v460
    %v2187 = vunpack.c.h.b16 %v460
    %v2188 = vunpack.c.l.b16 %v461
    %v2189 = vunpack.c.h.b16 %v461
    %v2190 = vunpack.c.l.b16 %v462
    %v2191 = vunpack.c.h.b16 %v462
    %v2192 = vunpack.c.l.b16 %v463
    %v2193 = vunpack.c.h.b16 %v463
    %v2194 = vunpack.c.l.b16 %v464
    %v2195 = vunpack.c.h.b16 %v464
    %v2196 = vunpack.c.l.b16 %v465
    %v2197 = vunpack.c.h.b16 %v465
    %v2198 = vunpack.c.l.b16 %v466
    %v2199 = vunpack.c.h.b16 %v466
    %v2200 = vunpack.c.l.b16 %v467
    %v2201 = vunpack.c.h.b16 %v467
    %v2202 = vunpack.c.l.b16 %v468
    %v2203 = vunpack.c.h.b16 %v468
    %v2204 = vunpack.c.l.b16 %v469
    %v2205 = vunpack.c.h.b16 %v469
    %v2206 = vunpack.c.l.b16 %v470
    %v2207 = vunpack.c.h.b16 %v470
    %v2208 = vunpack.c.l.b16 %v471
    %v2209 = vunpack.c.h.b16 %v471
    %v2210 = vunpack.c.l.b16 %v472
    %v2211 = vunpack.c.h.b16 %v472
    %v2212 = vunpack.c.l.b16 %v473
    %v2213 = vunpack.c.h.b16 %v473
    %v2214 = vunpack.c.l.b16 %v474
    %v2215 = vunpack.c.h.b16 %v474
    %v2216 = vunpack.c.l.b16 %v475
    %v2217 = vunpack.c.h.b16 %v475
    %v2218 = vunpack.c.l.b16 %v476
    %v2219 = vunpack.c.h.b16 %v476
    %v2220 = vunpack.c.l.b16 %v477
    %v2221 = vunpack.c.h.b16 %v477
    %v2222 = vunpack.c.l.b16 %v478
    %v2223 = vunpack.c.h.b16 %v478
    %v2224 = vunpack.c.l.b16 %v479
    %v2225 = vunpack.c.h.b16 %v479
    %v2226 = vunpack.c.l.b16 %v480
    %v2227 = vunpack.c.h.b16 %v480
    %v2228 = vunpack.c.l.b16 %v481
    %v2229 = vunpack.c.h.b16 %v481
    %v2230 = vunpack.c.l.b16 %v482
    %v2231 = vunpack.c.h.b16 %v482
    %v2232 = vunpack.c.l.b16 %v483
    %v2233 = vunpack.c.h.b16 %v483
    %v2234 = vunpack.c.l.b16 %v484
    %v2235 = vunpack.c.h.b16 %v484
    %v2236 = vunpack.c.l.b16 %v485
    %v2237 = vunpack.c.h.b16 %v485
    %v2238 = vunpack.c.l.b16 %v486
    %v2239 = vunpack.c.h.b16 %v486
    %v2240 = vunpack.c.l.b16 %v487
    %v2241 = vunpack.c.h.b16 %v487
    %v2242 = vunpack.c.l.b16 %v488
    %v2243 = vunpack.c.h.b16 %v488
    %v2244 = vunpack.c.l.b16 %v489
    %v2245 = vunpack.c.h.b16 %v489
    %v2246 = vunpack.c.l.b16 %v490
    %v2247 = vunpack.c.h.b16 %v490
    %v2248 = vunpack.c.l.b16 %v491
    %v2249 = vunpack.c.h.b16 %v491
    %v2250 = vunpack.c.l.b16 %v492
    %v2251 = vunpack.c.h.b16 %v492
    %v2252 = vunpack.c.l.b16 %v493
    %v2253 = vunpack.c.h.b16 %v493
    %v2254 = vunpack.c.l.b16 %v494
    %v2255 = vunpack.c.h.b16 %v494
    %v2256 = vunpack.c.l.b16 %v495
    %v2257 = vunpack.c.h.b16 %v495
    %v2258 = vunpack.c.l.b16 %v496
    %v2259 = vunpack.c.h.b16 %v496
    %v2260 = vunpack.c.l.b16 %v497
    %v2261 = vunpack.c.h.b16 %v497
    %v2262 = vunpack.c.l.b16 %v498
    %v2263 = vunpack.c.h.b16 %v498
    %v2264 = vunpack.c.l.b16 %v499
    %v2265 = vunpack.c.h.b16 %v499
    %v2266 = vunpack.c.l.b16 %v500
    %v2267 = vunpack.c.h.b16 %v500
    %v2268 = vunpack.c.l.b16 %v501
    %v2269 = vunpack.c.h.b16 %v501
    %v2270 = vunpack.c.l.b16 %v502
    %v2271 = vunpack.c.h.b16 %v502
    %v2272 = vunpack.c.l.b16 %v503
    %v2273 = vunpack.c.h.b16 %v503
    %v2274 = vunpack.c.l.b16 %v504
    %v2275 = vunpack.c.h.b16 %v504
    %v2276 = vunpack.c.l.b16 %v505
    %v2277 = vunpack.c.h.b16 %v505
    %v2278 = vunpack.c.l.b16 %v506
    %v2279 = vunpack.c.h.b16 %v506
    %v2280 = vunpack.c.l.b16 %v507
    %v2281 = vunpack.c.h.b16 %v507
    %v2282 = vunpack.c.l.b16 %v508
    %v2283 = vunpack.c.h.b16 %v508
    %v2284 = vunpack.c.l.b16 %v509
    %v2285 = vunpack.c.h.b16 %v509
    %v2286 = vunpack.c.l.b16 %v510
    %v2287 = vunpack.c.h.b16 %v510
    %v2288 = vunpack.c.l.b16 %v511
    %v2289 = vunpack.c.h.b16 %v511
    %v2290 = vunpack.c.l.b16 %v512
    %v2291 = vunpack.c.h.b16 %v512
    %v2292 = vunpack.c.l.b16 %v513
    %v2293 = vunpack.c.h.b16 %v513
    %v2294 = vunpack.c.l.b16 %v514
    %v2295 = vunpack.c.h.b16 %v514
    %v2296 = vunpack.c.l.b16 %v515
    %v2297 = vunpack.c.h.b16 %v515
    %v2298 = vunpack.c.l.b16 %v516
    %v2299 = vunpack.c.h.b16 %v516
    %v2300 = vunpack.c.l.b16 %v517
    %v2301 = vunpack.c.h.b16 %v517
    %v2302 = vunpack.c.l.b16 %v518
    %v2303 = vunpack.c.h.b16 %v518
    %v2304 = vunpack.c.l.b16 %v519
    %v2305 = vunpack.c.h.b16 %v519
    %v2306 = vunpack.c.l.b16 %v520
    %v2307 = vunpack.c.h.b16 %v520
    %v2308 = vunpack.c.l.b16 %v521
    %v2309 = vunpack.c.h.b16 %v521
    %v2310 = vunpack.c.l.b16 %v522
    %v2311 = vunpack.c.h.b16 %v522
    %v2312 = vunpack.c.l.b16 %v523
    %v2313 = vunpack.c.h.b16 %v523
    %v2314 = vunpack.c.l.b16 %v524
    %v2315 = vunpack.c.h.b16 %v524
    %v2316 = vunpack.c.l.b16 %v525
    %v2317 = vunpack.c.h.b16 %v525
    %v2318 = vunpack.c.l.b16 %v526
    %v2319 = vunpack.c.h.b16 %v526
    %v2320 = vunpack.c.l.b16 %v527
    %v2321 = vunpack.c.h.b16 %v527
    %v2322 = vunpack.c.l.b16 %v528
    %v2323 = vunpack.c.h.b16 %v528
    %v2324 = vunpack.c.l.b16 %v529
    %v2325 = vunpack.c.h.b16 %v529
    %v2326 = vunpack.c.l.b16 %v530
    %v2327 = vunpack.c.h.b16 %v530
    %v2328 = vunpack.c.l.b16 %v531
    %v2329 = vunpack.c.h.b16 %v531
    %v2330 = vunpack.c.l.b16 %v532
    %v2331 = vunpack.c.h.b16 %v532
    %v2332 = vunpack.c.l.b16 %v533
    %v2333 = vunpack.c.h.b16 %v533
    %v2334 = vunpack.c.l.b16 %v534
    %v2335 = vunpack.c.h.b16 %v534
    %v2336 = vunpack.c.l.b16 %v535
    %v2337 = vunpack.c.h.b16 %v535
    %v2338 = vunpack.c.l.b16 %v536
    %v2339 = vunpack.c.h.b16 %v536
    %v2340 = vunpack.c.l.b16 %v537
    %v2341 = vunpack.c.h.b16 %v537
    %v2342 = vunpack.c.l.b16 %v538
    %v2343 = vunpack.c.h.b16 %v538
    %v2344 = vunpack.c.l.b16 %v539
    %v2345 = vunpack.c.h.b16 %v539
    %v2346 = vunpack.c.l.b16 %v540
    %v2347 = vunpack.c.h.b16 %v540
    %v2348 = vunpack.c.l.b16 %v541
    %v2349 = vunpack.c.h.b16 %v541
    %v2350 = vunpack.c.l.b16 %v542
    %v2351 = vunpack.c.h.b16 %v542
    %v2352 = vunpack.c.l.b16 %v543
    %v2353 = vunpack.c.h.b16 %v543
    %v2354 = vunpack.c.l.b16 %v544
    %v2355 = vunpack.c.h.b16 %v544
    %v2356 = vunpack.c.l.b16 %v545
    %v2357 = vunpack.c.h.b16 %v545
    %v2358 = vunpack.c.l.b16 %v546
    %v2359 = vunpack.c.h.b16 %v546
    %v2360 = vunpack.c.l.b16 %v547
    %v2361 = vunpack.c.h.b16 %v547
    %v2362 = vunpack.c.l.b16 %v548
    %v2363 = vunpack.c.h.b16 %v548
    %v2364 = vunpack.c.l.b16 %v549
    %v2365 = vunpack.c.h.b16 %v549
    %v2366 = vunpack.c.l.b16 %v550
    %v2367 = vunpack.c.h.b16 %v550
    %v2368 = vunpack.c.l.b16 %v551
    %v2369 = vunpack.c.h.b16 %v551
    %v2370 = vunpack.c.l.b16 %v552
    %v2371 = vunpack.c.h.b16 %v552
    %v2372 = vunpack.c.l.b16 %v553
    %v2373 = vunpack.c.h.b16 %v553
    %v2374 = vunpack.c.l.b16 %v554
    %v2375 = vunpack.c.h.b16 %v554
    %v2376 = vunpack.c.l.b16 %v555
    %v2377 = vunpack.c.h.b16 %v555
    %v2378 = vunpack.c.l.b16 %v556
    %v2379 = vunpack.c.h.b16 %v556
    %v2380 = vunpack.c.l.b16 %v557
    %v2381 = vunpack.c.h.b16 %v557
    %v2382 = vpack.c.b16 %v1620, %v1614
    %v2383 = vpack.c.b16 %v1621, %v1615
    %v2384 = vpack.c.b16 %v1622, %v1616
    %v2385 = vpack.c.b16 %v1623, %v1617
    %v2386 = vpack.c.b16 %v1624, %v1618
    %v2387 = vpack.c.b16 %v1625, %v1619
    %v2388 = vpack.c.b16 %v1632, %v1626
    %v2389 = vpack.c.b16 %v1633, %v1627
    %v2390 = vpack.c.b16 %v1634, %v1628
    %v2391 = vpack.c.b16 %v1635, %v1629
    %v2392 = vpack.c.b16 %v1636, %v1630
    %v2393 = vpack.c.b16 %v1637, %v1631
    %v2394 = vpack.c.b16 %v1644, %v1638
    %v2395 = vpack.c.b16 %v1645, %v1639
    %v2396 = vpack.c.b16 %v1646, %v1640
    %v2397 = vpack.c.b16 %v1647, %v1641
    %v2398 = vpack.c.b16 %v1648, %v1642
    %v2399 = vpack.c.b16 %v1649, %v1643
    %v2400 = vpack.c.b16 %v1656, %v1650
    %v2401 = vpack.c.b16 %v1657, %v1651
    %v2402 = vpack.c.b16 %v1658, %v1652
    %v2403 = vpack.c.b16 %v1659, %v1653
    %v2404 = vpack.c.b16 %v1660, %v1654
    %v2405 = vpack.c.b16 %v1661, %v1655
    %v2406 = vpack.c.b16 %v1668, %v1662
    %v2407 = vpack.c.b16 %v1669, %v1663
    %v2408 = vpack.c.b16 %v1670, %v1664
    %v2409 = vpack.c.b16 %v1671, %v1665
    %v2410 = vpack.c.b16 %v1672, %v1666
    %v2411 = vpack.c.b16 %v1673, %v1667
    %v2412 = vpack.c.b16 %v1680, %v1674
    %v2413 = vpack.c.b16 %v1681, %v1675
    %v2414 = vpack.c.b16 %v1682, %v1676
    %v2415 = vpack.c.b16 %v1683, %v1677
    %v2416 = vpack.c.b16 %v1684, %v1678
    %v2417 = vpack.c.b16 %v1685, %v1679
    %v2418 = vpack.c.b16 %v1692, %v1686
    %v2419 = vpack.c.b16 %v1693, %v1687
    %v2420 = vpack.c.b16 %v1694, %v1688
    %v2421 = vpack.c.b16 %v1695, %v1689
    %v2422 = vpack.c.b16 %v1696, %v1690
    %v2423 = vpack.c.b16 %v1697, %v1691
    %v2424 = vpack.c.b16 %v1704, %v1698
    %v2425 = vpack.c.b16 %v1705, %v1699
    %v2426 = vpack.c.b16 %v1706, %v1700
    %v2427 = vpack.c.b16 %v1707, %v1701
    %v2428 = vpack.c.b16 %v1708, %v1702
    %v2429 = vpack.c.b16 %v1709, %v1703
    %v2430 = vpack.c.b16 %v1716, %v1710
    %v2431 = vpack.c.b16 %v1717, %v1711
    %v2432 = vpack.c.b16 %v1718, %v1712
    %v2433 = vpack.c.b16 %v1719, %v1713
    %v2434 = vpack.c.b16 %v1720, %v1714
    %v2435 = vpack.c.b16 %v1721, %v1715
    %v2436 = vpack.c.b16 %v1728, %v1722
    %v2437 = vpack.c.b16 %v1729, %v1723
    %v2438 = vpack.c.b16 %v1730, %v1724
    %v2439 = vpack.c.b16 %v1731, %v1725
    %v2440 = vpack.c.b16 %v1732, %v1726
    %v2441 = vpack.c.b16 %v1733, %v1727
    %v2442 = vpack.c.b16 %v1740, %v1734
    %v2443 = vpack.c.b16 %v1741, %v1735
    %v2444 = vpack.c.b16 %v1742, %v1736
    %v2445 = vpack.c.b16 %v1743, %v1737
    %v2446 = vpack.c.b16 %v1744, %v1738
    %v2447 = vpack.c.b16 %v1745, %v1739
    %v2448 = vpack.c.b16 %v1752, %v1746
    %v2449 = vpack.c.b16 %v1753, %v1747
    %v2450 = vpack.c.b16 %v1754, %v1748
    %v2451 = vpack.c.b16 %v1755, %v1749
    %v2452 = vpack.c.b16 %v1756, %v1750
    %v2453 = vpack.c.b16 %v1757, %v1751
    %v2454 = vpack.c.b16 %v1764, %v1758
    %v2455 = vpack.c.b16 %v1765, %v1759
    %v2456 = vpack.c.b16 %v1766, %v1760
    %v2457 = vpack.c.b16 %v1767, %v1761
    %v2458 = vpack.c.b16 %v1768, %v1762
    %v2459 = vpack.c.b16 %v1769, %v1763
    %v2460 = vpack.c.b16 %v1776, %v1770
    %v2461 = vpack.c.b16 %v1777, %v1771
    %v2462 = vpack.c.b16 %v1778, %v1772
    %v2463 = vpack.c.b16 %v1779, %v1773
    %v2464 = vpack.c.b16 %v1780, %v1774
    %v2465 = vpack.c.b16 %v1781, %v1775
    %v2466 = vpack.c.b16 %v1788, %v1782
    %v2467 = vpack.c.b16 %v1789, %v1783
    %v2468 = vpack.c.b16 %v1790, %v1784
    %v2469 = vpack.c.b16 %v1791, %v1785
    %v2470 = vpack.c.b16 %v1792, %v1786
    %v2471 = vpack.c.b16 %v1793, %v1787
    %v2472 = vpack.c.b16 %v1800, %v1794
    %v2473 = vpack.c.b16 %v1801, %v1795
    %v2474 = vpack.c.b16 %v1802, %v1796
    %v2475 = vpack.c.b16 %v1803, %v1797
    %v2476 = vpack.c.b16 %v1804, %v1798
    %v2477 = vpack.c.b16 %v1805, %v1799
    %v2478 = vpack.c.b16 %v1812, %v1806
    %v2479 = vpack.c.b16 %v1813, %v1807
    %v2480 = vpack.c.b16 %v1814, %v1808
    %v2481 = vpack.c.b16 %v1815, %v1809
    %v2482 = vpack.c.b16 %v1816, %v1810
    %v2483 = vpack.c.b16 %v1817, %v1811
    %v2484 = vpack.c.b16 %v1824, %v1818
    %v2485 = vpack.c.b16 %v1825, %v1819
    %v2486 = vpack.c.b16 %v1826, %v1820
    %v2487 = vpack.c.b16 %v1827, %v1821
    %v2488 = vpack.c.b16 %v1828, %v1822
    %v2489 = vpack.c.b16 %v1829, %v1823
    %v2490 = vpack.c.b16 %v1836, %v1830
    %v2491 = vpack.c.b16 %v1837, %v1831
    %v2492 = vpack.c.b16 %v1838, %v1832
    %v2493 = vpack.c.b16 %v1839, %v1833
    %v2494 = vpack.c.b16 %v1840, %v1834
    %v2495 = vpack.c.b16 %v1841, %v1835
    %v2496 = vpack.c.b16 %v1848, %v1842
    %v2497 = vpack.c.b16 %v1849, %v1843
    %v2498 = vpack.c.b16 %v1850, %v1844
    %v2499 = vpack.c.b16 %v1851, %v1845
    %v2500 = vpack.c.b16 %v1852, %v1846
    %v2501 = vpack.c.b16 %v1853, %v1847
    %v2502 = vpack.c.b16 %v1860, %v1854
    %v2503 = vpack.c.b16 %v1861, %v1855
    %v2504 = vpack.c.b16 %v1862, %v1856
    %v2505 = vpack.c.b16 %v1863, %v1857
    %v2506 = vpack.c.b16 %v1864, %v1858
    %v2507 = vpack.c.b16 %v1865, %v1859
    %v2508 = vpack.c.b16 %v1872, %v1866
    %v2509 = vpack.c.b16 %v1873, %v1867
    %v2510 = vpack.c.b16 %v1874, %v1868
    %v2511 = vpack.c.b16 %v1875, %v1869
    %v2512 = vpack.c.b16 %v1876, %v1870
    %v2513 = vpack.c.b16 %v1877, %v1871
    %v2514 = vpack.c.b16 %v1884, %v1878
    %v2515 = vpack.c.b16 %v1885, %v1879
    %v2516 = vpack.c.b16 %v1886, %v1880
    %v2517 = vpack.c.b16 %v1887, %v1881
    %v2518 = vpack.c.b16 %v1888, %v1882
    %v2519 = vpack.c.b16 %v1889, %v1883
    %v2520 = vpack.c.b16 %v1896, %v1890
    %v2521 = vpack.c.b16 %v1897, %v1891
    %v2522 = vpack.c.b16 %v1898, %v1892
    %v2523 = vpack.c.b16 %v1899, %v1893
    %v2524 = vpack.c.b16 %v1900, %v1894
    %v2525 = vpack.c.b16 %v1901, %v1895
    %v2526 = vpack.c.b16 %v1908, %v1902
    %v2527 = vpack.c.b16 %v1909, %v1903
    %v2528 = vpack.c.b16 %v1910, %v1904
    %v2529 = vpack.c.b16 %v1911, %v1905
    %v2530 = vpack.c.b16 %v1912, %v1906
    %v2531 = vpack.c.b16 %v1913, %v1907
    %v2532 = vpack.c.b16 %v1920, %v1914
    %v2533 = vpack.c.b16 %v1921, %v1915
    %v2534 = vpack.c.b16 %v1922, %v1916
    %v2535 = vpack.c.b16 %v1923, %v1917
    %v2536 = vpack.c.b16 %v1924, %v1918
    %v2537 = vpack.c.b16 %v1925, %v1919
    %v2538 = vpack.c.b16 %v1932, %v1926
    %v2539 = vpack.c.b16 %v1933, %v1927
    %v2540 = vpack.c.b16 %v1934, %v1928
    %v2541 = vpack.c.b16 %v1935, %v1929
    %v2542 = vpack.c.b16 %v1936, %v1930
    %v2543 = vpack.c.b16 %v1937, %v1931
    %v2544 = vpack.c.b16 %v1944, %v1938
    %v2545 = vpack.c.b16 %v1945, %v1939
    %v2546 = vpack.c.b16 %v1946, %v1940
    %v2547 = vpack.c.b16 %v1947, %v1941
    %v2548 = vpack.c.b16 %v1948, %v1942
    %v2549 = vpack.c.b16 %v1949, %v1943
    %v2550 = vpack.c.b16 %v1956, %v1950
    %v2551 = vpack.c.b16 %v1957, %v1951
    %v2552 = vpack.c.b16 %v1958, %v1952
    %v2553 = vpack.c.b16 %v1959, %v1953
    %v2554 = vpack.c.b16 %v1960, %v1954
    %v2555 = vpack.c.b16 %v1961, %v1955
    %v2556 = vpack.c.b16 %v1968, %v1962
    %v2557 = vpack.c.b16 %v1969, %v1963
    %v2558 = vpack.c.b16 %v1970, %v1964
    %v2559 = vpack.c.b16 %v1971, %v1965
    %v2560 = vpack.c.b16 %v1972, %v1966
    %v2561 = vpack.c.b16 %v1973, %v1967
    %v2562 = vpack.c.b16 %v1980, %v1974
    %v2563 = vpack.c.b16 %v1981, %v1975
    %v2564 = vpack.c.b16 %v1982, %v1976
    %v2565 = vpack.c.b16 %v1983, %v1977
    %v2566 = vpack.c.b16 %v1984, %v1978
    %v2567 = vpack.c.b16 %v1985, %v1979
    %v2568 = vpack.c.b16 %v1992, %v1986
    %v2569 = vpack.c.b16 %v1993, %v1987
    %v2570 = vpack.c.b16 %v1994, %v1988
    %v2571 = vpack.c.b16 %v1995, %v1989
    %v2572 = vpack.c.b16 %v1996, %v1990
    %v2573 = vpack.c.b16 %v1997, %v1991
    %v2574 = vpack.c.b16 %v2004, %v1998
    %v2575 = vpack.c.b16 %v2005, %v1999
    %v2576 = vpack.c.b16 %v2006, %v2000
    %v2577 = vpack.c.b16 %v2007, %v2001
    %v2578 = vpack.c.b16 %v2008, %v2002
    %v2579 = vpack.c.b16 %v2009, %v2003
    %v2580 = vpack.c.b16 %v2016, %v2010
    %v2581 = vpack.c.b16 %v2017, %v2011
    %v2582 = vpack.c.b16 %v2018, %v2012
    %v2583 = vpack.c.b16 %v2019, %v2013
    %v2584 = vpack.c.b16 %v2020, %v2014
    %v2585 = vpack.c.b16 %v2021, %v2015
    %v2586 = vpack.c.b16 %v2028, %v2022
    %v2587 = vpack.c.b16 %v2029, %v2023
    %v2588 = vpack.c.b16 %v2030, %v2024
    %v2589 = vpack.c.b16 %v2031, %v2025
    %v2590 = vpack.c.b16 %v2032, %v2026
    %v2591 = vpack.c.b16 %v2033, %v2027
    %v2592 = vpack.c.b16 %v2040, %v2034
    %v2593 = vpack.c.b16 %v2041, %v2035
    %v2594 = vpack.c.b16 %v2042, %v2036
    %v2595 = vpack.c.b16 %v2043, %v2037
    %v2596 = vpack.c.b16 %v2044, %v2038
    %v2597 = vpack.c.b16 %v2045, %v2039
    %v2598 = vpack.c.b16 %v2052, %v2046
    %v2599 = vpack.c.b16 %v2053, %v2047
    %v2600 = vpack.c.b16 %v2054, %v2048
    %v2601 = vpack.c.b16 %v2055, %v2049
    %v2602 = vpack.c.b16 %v2056, %v2050
    %v2603 = vpack.c.b16 %v2057, %v2051
    %v2604 = vpack.c.b16 %v2064, %v2058
    %v2605 = vpack.c.b16 %v2065, %v2059
    %v2606 = vpack.c.b16 %v2066, %v2060
    %v2607 = vpack.c.b16 %v2067, %v2061
    %v2608 = vpack.c.b16 %v2068, %v2062
    %v2609 = vpack.c.b16 %v2069, %v2063
    %v2610 = vpack.c.b16 %v2076, %v2070
    %v2611 = vpack.c.b16 %v2077, %v2071
    %v2612 = vpack.c.b16 %v2078, %v2072
    %v2613 = vpack.c.b16 %v2079, %v2073
    %v2614 = vpack.c.b16 %v2080, %v2074
    %v2615 = vpack.c.b16 %v2081, %v2075
    %v2616 = vpack.c.b16 %v2088, %v2082
    %v2617 = vpack.c.b16 %v2089, %v2083
    %v2618 = vpack.c.b16 %v2090, %v2084
    %v2619 = vpack.c.b16 %v2091, %v2085
    %v2620 = vpack.c.b16 %v2092, %v2086
    %v2621 = vpack.c.b16 %v2093, %v2087
    %v2622 = vpack.c.b16 %v2100, %v2094
    %v2623 = vpack.c.b16 %v2101, %v2095
    %v2624 = vpack.c.b16 %v2102, %v2096
    %v2625 = vpack.c.b16 %v2103, %v2097
    %v2626 = vpack.c.b16 %v2104, %v2098
    %v2627 = vpack.c.b16 %v2105, %v2099
    %v2628 = vpack.c.b16 %v2112, %v2106
    %v2629 = vpack.c.b16 %v2113, %v2107
    %v2630 = vpack.c.b16 %v2114, %v2108
    %v2631 = vpack.c.b16 %v2115, %v2109
    %v2632 = vpack.c.b16 %v2116, %v2110
    %v2633 = vpack.c.b16 %v2117, %v2111
    %v2634 = vpack.c.b16 %v2124, %v2118
    %v2635 = vpack.c.b16 %v2125, %v2119
    %v2636 = vpack.c.b16 %v2126, %v2120
    %v2637 = vpack.c.b16 %v2127, %v2121
    %v2638 = vpack.c.b16 %v2128, %v2122
    %v2639 = vpack.c.b16 %v2129, %v2123
    %v2640 = vpack.c.b16 %v2136, %v2130
    %v2641 = vpack.c.b16 %v2137, %v2131
    %v2642 = vpack.c.b16 %v2138, %v2132
    %v2643 = vpack.c.b16 %v2139, %v2133
    %v2644 = vpack.c.b16 %v2140, %v2134
    %v2645 = vpack.c.b16 %v2141, %v2135
    %v2646 = vpack.c.b16 %v2148, %v2142
    %v2647 = vpack.c.b16 %v2149, %v2143
    %v2648 = vpack.c.b16 %v2150, %v2144
    %v2649 = vpack.c.b16 %v2151, %v2145
    %v2650 = vpack.c.b16 %v2152, %v2146
    %v2651 = vpack.c.b16 %v2153, %v2147
    %v2652 = vpack.c.b16 %v2160, %v2154
    %v2653 = vpack.c.b16 %v2161, %v2155
    %v2654 = vpack.c.b16 %v2162, %v2156
    %v2655 = vpack.c.b16 %v2163, %v2157
    %v2656 = vpack.c.b16 %v2164, %v2158
    %v2657 = vpack.c.b16 %v2165, %v2159
    %v2658 = vpack.c.b16 %v2172, %v2166
    %v2659 = vpack.c.b16 %v2173, %v2167
    %v2660 = vpack.c.b16 %v2174, %v2168
    %v2661 = vpack.c.b16 %v2175, %v2169
    %v2662 = vpack.c.b16 %v2176, %v2170
    %v2663 = vpack.c.b16 %v2177, %v2171
    %v2664 = vpack.c.b16 %v2184, %v2178
    %v2665 = vpack.c.b16 %v2185, %v2179
    %v2666 = vpack.c.b16 %v2186, %v2180
    %v2667 = vpack.c.b16 %v2187, %v2181
    %v2668 = vpack.c.b16 %v2188, %v2182
    %v2669 = vpack.c.b16 %v2189, %v2183
    %v2670 = vpack.c.b16 %v2196, %v2190
    %v2671 = vpack.c.b16 %v2197, %v2191
    %v2672 = vpack.c.b16 %v2198, %v2192
    %v2673 = vpack.c.b16 %v2199, %v2193
    %v2674 = vpack.c.b16 %v2200, %v2194
    %v2675 = vpack.c.b16 %v2201, %v2195
    %v2676 = vpack.c.b16 %v2208, %v2202
    %v2677 = vpack.c.b16 %v2209, %v2203
    %v2678 = vpack.c.b16 %v2210, %v2204
    %v2679 = vpack.c.b16 %v2211, %v2205
    %v2680 = vpack.c.b16 %v2212, %v2206
    %v2681 = vpack.c.b16 %v2213, %v2207
    %v2682 = vpack.c.b16 %v2220, %v2214
    %v2683 = vpack.c.b16 %v2221, %v2215
    %v2684 = vpack.c.b16 %v2222, %v2216
    %v2685 = vpack.c.b16 %v2223, %v2217
    %v2686 = vpack.c.b16 %v2224, %v2218
    %v2687 = vpack.c.b16 %v2225, %v2219
    %v2688 = vpack.c.b16 %v2232, %v2226
    %v2689 = vpack.c.b16 %v2233, %v2227
    %v2690 = vpack.c.b16 %v2234, %v2228
    %v2691 = vpack.c.b16 %v2235, %v2229
    %v2692 = vpack.c.b16 %v2236, %v2230
    %v2693 = vpack.c.b16 %v2237, %v2231
    %v2694 = vpack.c.b16 %v2244, %v2238
    %v2695 = vpack.c.b16 %v2245, %v2239
    %v2696 = vpack.c.b16 %v2246, %v2240
    %v2697 = vpack.c.b16 %v2247, %v2241
    %v2698 = vpack.c.b16 %v2248, %v2242
    %v2699 = vpack.c.b16 %v2249, %v2243
    %v2700 = vpack.c.b16 %v2256, %v2250
    %v2701 = vpack.c.b16 %v2257, %v2251
    %v2702 = vpack.c.b16 %v2258, %v2252
    %v2703 = vpack.c.b16 %v2259, %v2253
    %v2704 = vpack.c.b16 %v2260, %v2254
    %v2705 = vpack.c.b16 %v2261, %v2255
    %v2706 = vpack.c.b16 %v2268, %v2262
    %v2707 = vpack.c.b16 %v2269, %v2263
    %v2708 = vpack.c.b16 %v2270, %v2264
    %v2709 = vpack.c.b16 %v2271, %v2265
    %v2710 = vpack.c.b16 %v2272, %v2266
    %v2711 = vpack.c.b16 %v2273, %v2267
    %v2712 = vpack.c.b16 %v2280, %v2274
    %v2713 = vpack.c.b16 %v2281, %v2275
    %v2714 = vpack.c.b16 %v2282, %v2276
    %v2715 = vpack.c.b16 %v2283, %v2277
    %v2716 = vpack.c.b16 %v2284, %v2278
    %v2717 = vpack.c.b16 %v2285, %v2279
    %v2718 = vpack.c.b16 %v2292, %v2286
    %v2719 = vpack.c.b16 %v2293, %v2287
    %v2720 = vpack.c.b16 %v2294, %v2288
    %v2721 = vpack.c.b16 %v2295, %v2289
    %v2722 = vpack.c.b16 %v2296, %v2290
    %v2723 = vpack.c.b16 %v2297, %v2291
    %v2724 = vpack.c.b16 %v2304, %v2298
    %v2725 = vpack.c.b16 %v2305, %v2299
    %v2726 = vpack.c.b16 %v2306, %v2300
    %v2727 = vpack.c.b16 %v2307, %v2301
    %v2728 = vpack.c.b16 %v2308, %v2302
    %v2729 = vpack.c.b16 %v2309, %v2303
    %v2730 = vpack.c.b16 %v2316, %v2310
    %v2731 = vpack.c.b16 %v2317, %v2311
    %v2732 = vpack.c.b16 %v2318, %v2312
    %v2733 = vpack.c.b16 %v2319, %v2313
    %v2734 = vpack.c.b16 %v2320, %v2314
    %v2735 = vpack.c.b16 %v2321, %v2315
    %v2736 = vpack.c.b16 %v2328, %v2322
    %v2737 = vpack.c.b16 %v2329, %v2323
    %v2738 = vpack.c.b16 %v2330, %v2324
    %v2739 = vpack.c.b16 %v2331, %v2325
    %v2740 = vpack.c.b16 %v2332, %v2326
    %v2741 = vpack.c.b16 %v2333, %v2327
    %v2742 = vpack.c.b16 %v2340, %v2334
    %v2743 = vpack.c.b16 %v2341, %v2335
    %v2744 = vpack.c.b16 %v2342, %v2336
    %v2745 = vpack.c.b16 %v2343, %v2337
    %v2746 = vpack.c.b16 %v2344, %v2338
    %v2747 = vpack.c.b16 %v2345, %v2339
    %v2748 = vpack.c.b16 %v2352, %v2346
    %v2749 = vpack.c.b16 %v2353, %v2347
    %v2750 = vpack.c.b16 %v2354, %v2348
    %v2751 = vpack.c.b16 %v2355, %v2349
    %v2752 = vpack.c.b16 %v2356, %v2350
    %v2753 = vpack.c.b16 %v2357, %v2351
    %v2754 = vpack.c.b16 %v2364, %v2358
    %v2755 = vpack.c.b16 %v2365, %v2359
    %v2756 = vpack.c.b16 %v2366, %v2360
    %v2757 = vpack.c.b16 %v2367, %v2361
    %v2758 = vpack.c.b16 %v2368, %v2362
    %v2759 = vpack.c.b16 %v2369, %v2363
    %v2760 = vpack.c.b16 %v2376, %v2370
    %v2761 = vpack.c.b16 %v2377, %v2371
    %v2762 = vpack.c.b16 %v2378, %v2372
    %v2763 = vpack.c.b16 %v2379, %v2373
    %v2764 = vpack.c.b16 %v2380, %v2374
    %v2765 = vpack.c.b16 %v2381, %v2375
    %3150 = vmatprep.subr.bf16.mxu0 %v2383
    %3151 = vmatpush1.bf16.msra.mxu0 %v2382
    %3152 = vmatprep.subr.bf16.mxu0 %v2389
    %3153 = vmatpush1.bf16.msra.mxu0 %v2388
    %3154 = vmatprep.subr.bf16.mxu0 %v2395
    %3155 = vmatpush1.bf16.msra.mxu0 %v2394
    %3156 = vmatprep.subr.bf16.mxu0 %v2401
    %3157 = vmatpush1.bf16.msra.mxu0 %v2400
    %3158 = vmatprep.subr.bf16.mxu0 %v2407
    %3159 = vmatpush1.bf16.msra.mxu0 %v2406
    %3160 = vmatprep.subr.bf16.mxu0 %v2413
    %3161 = vmatpush1.bf16.msra.mxu0 %v2412
    %3162 = vmatprep.subr.bf16.mxu0 %v2419
    %3163 = vmatpush1.bf16.msra.mxu0 %v2418
    %3164 = vmatprep.subr.bf16.mxu0 %v2425
    %3165 = vmatpush1.bf16.msra.mxu0 %v2424
    %3166 = vmatprep.subr.bf16.mxu0 %v2431
    %3167 = vmatpush1.bf16.msra.mxu0 %v2430
    %3168 = vmatprep.subr.bf16.mxu0 %v2437
    %3169 = vmatpush1.bf16.msra.mxu0 %v2436
    %3170 = vmatprep.subr.bf16.mxu0 %v2443
    %3171 = vmatpush1.bf16.msra.mxu0 %v2442
    %3172 = vmatprep.subr.bf16.mxu0 %v2449
    %3173 = vmatpush1.bf16.msra.mxu0 %v2448
    %3174 = vmatprep.subr.bf16.mxu0 %v2455
    %3175 = vmatpush1.bf16.msra.mxu0 %v2454
    %3176 = vmatprep.subr.bf16.mxu0 %v2461
    %3177 = vmatpush1.bf16.msra.mxu0 %v2460
    %3178 = vmatprep.subr.bf16.mxu0 %v2467
    %3179 = vmatpush1.bf16.msra.mxu0 %v2466
    %3180 = vmatprep.subr.bf16.mxu0 %v2473
    %3181 = vmatpush1.bf16.msra.mxu0 %v2472
    %3182 = vmatprep.mubr.bf16.mxu0 %v975
    %3183 = vmatmul.mubr.bf16.gmra.mrb[0].mxu0 %v974
    %v3184 = vpop.f32.mrb[0].mxu0
    %v3185 = vadd.f32 %v563, %v3184
    %v3186 = vpop.f32.mrb[0].mxu0
    %v3187 = vadd.f32 %v567, %v3186
    %v3188 = vpop.f32.mrb[0].mxu0
    %v3189 = vadd.f32 %v563, %v3188
    %v3190 = vpop.f32.mrb[0].mxu0
    %v3191 = vadd.f32 %v567, %v3190
    %3192 = vmatprep.mubr.bf16.mxu0 %v983
    %3193 = vmatmul.mubr.bf16.gmra.mrb[0].mxu0 %v982
    %v3194 = vpop.f32.mrb[0].mxu0
    %v3195 = vadd.f32 %v563, %v3194
    %v3196 = vpop.f32.mrb[0].mxu0
    %v3197 = vadd.f32 %v567, %v3196
    %v3198 = vpop.f32.mrb[0].mxu0
    %v3199 = vadd.f32 %v563, %v3198
    %v3200 = vpop.f32.mrb[0].mxu0
    %v3201 = vadd.f32 %v567, %v3200
    %3202 = vmatprep.mubr.bf16.mxu0 %v991
    %3203 = vmatmul.mubr.bf16.gmra.mrb[0].mxu0 %v990
    %v3204 = vpop.f32.mrb[0].mxu0
    %v3205 = vadd.f32 %v563, %v3204
    %v3206 = vpop.f32.mrb[0].mxu0
    %v3207 = vadd.f32 %v567, %v3206
    %v3208 = vpop.f32.mrb[0].mxu0
    %v3209 = vadd.f32 %v563, %v3208
    %v3210 = vpop.f32.mrb[0].mxu0
    %v3211 = vadd.f32 %v567, %v3210
    %3212 = vmatprep.mubr.bf16.mxu0 %v999
    %3213 = vmatmul.mubr.bf16.gmra.mrb[0].mxu0 %v998
    %v3214 = vpop.f32.mrb[0].mxu0
    %v3215 = vadd.f32 %v563, %v3214
    %v3216 = vpop.f32.mrb[0].mxu0
    %v3217 = vadd.f32 %v567, %v3216
    %v3218 = vpop.f32.mrb[0].mxu0
    %v3219 = vadd.f32 %v563, %v3218
    %v3220 = vpop.f32.mrb[0].mxu0
    %v3221 = vadd.f32 %v567, %v3220
    %3222 = vmatprep.mubr.bf16.mxu0 %v1007
    %3223 = vmatmul.mubr.bf16.gmra.mrb[0].mxu0 %v1006
    %v3224 = vpop.f32.mrb[0].mxu0
    %v3225 = vadd.f32 %v563, %v3224
    %v3226 = vpop.f32.mrb[0].mxu0
    %v3227 = vadd.f32 %v567, %v3226
    %v3228 = vpop.f32.mrb[0].mxu0
    %v3229 = vadd.f32 %v563, %v3228
    %v3230 = vpop.f32.mrb[0].mxu0
    %v3231 = vadd.f32 %v567, %v3230
    %3232 = vmatprep.mubr.bf16.mxu0 %v1015
    %3233 = vmatmul.mubr.bf16.gmra.mrb[0].mxu0 %v1014
    %v3234 = vpop.f32.mrb[0].mxu0
    %v3235 = vadd.f32 %v563, %v3234
    %v3236 = vpop.f32.mrb[0].mxu0
    %v3237 = vadd.f32 %v567, %v3236
    %v3238 = vpop.f32.mrb[0].mxu0
    %v3239 = vadd.f32 %v563, %v3238
    %v3240 = vpop.f32.mrb[0].mxu0
    %v3241 = vadd.f32 %v567, %v3240
    %3242 = vmatprep.mubr.bf16.mxu0 %v1023
    %3243 = vmatmul.mubr.bf16.gmra.mrb[0].mxu0 %v1022
    %v3244 = vpop.f32.mrb[0].mxu0
    %v3245 = vadd.f32 %v563, %v3244
    %v3246 = vpop.f32.mrb[0].mxu0
    %v3247 = vadd.f32 %v567, %v3246
    %v3248 = vpop.f32.mrb[0].mxu0
    %v3249 = vadd.f32 %v563, %v3248
    %v3250 = vpop.f32.mrb[0].mxu0
    %v3251 = vadd.f32 %v567, %v3250
    %3252 = vmatprep.mubr.bf16.mxu0 %v1031
    %3253 = vmatmul.mubr.bf16.gmra.mrb[0].mxu0 %v1030
    %v3254 = vpop.f32.mrb[0].mxu0
    %v3255 = vadd.f32 %v563, %v3254
    %v3256 = vpop.f32.mrb[0].mxu0
    %v3257 = vadd.f32 %v567, %v3256
    %v3258 = vpop.f32.mrb[0].mxu0
    %v3259 = vadd.f32 %v563, %v3258
    %v3260 = vpop.f32.mrb[0].mxu0
    %v3261 = vadd.f32 %v567, %v3260
    %3262 = vmatprep.mubr.bf16.mxu0 %v1039
    %3263 = vmatmul.mubr.bf16.gmra.mrb[0].mxu0 %v1038
    %v3264 = vpop.f32.mrb[0].mxu0
    %v3265 = vadd.f32 %v563, %v3264
    %v3266 = vpop.f32.mrb[0].mxu0
    %v3267 = vadd.f32 %v567, %v3266
    %v3268 = vpop.f32.mrb[0].mxu0
    %v3269 = vadd.f32 %v563, %v3268
    %v3270 = vpop.f32.mrb[0].mxu0
    %v3271 = vadd.f32 %v567, %v3270
    %3272 = vmatprep.mubr.bf16.mxu0 %v1047
    %3273 = vmatmul.mubr.bf16.gmra.mrb[0].mxu0 %v1046
    %v3274 = vpop.f32.mrb[0].mxu0
    %v3275 = vadd.f32 %v563, %v3274
    %v3276 = vpop.f32.mrb[0].mxu0
    %v3277 = vadd.f32 %v567, %v3276
    %v3278 = vpop.f32.mrb[0].mxu0
    %v3279 = vadd.f32 %v563, %v3278
    %v3280 = vpop.f32.mrb[0].mxu0
    %v3281 = vadd.f32 %v567, %v3280
    %3282 = vmatprep.mubr.bf16.mxu0 %v1055
    %3283 = vmatmul.mubr.bf16.gmra.mrb[0].mxu0 %v1054
    %v3284 = vpop.f32.mrb[0].mxu0
    %v3285 = vadd.f32 %v563, %v3284
    %v3286 = vpop.f32.mrb[0].mxu0
    %v3287 = vadd.f32 %v567, %v3286
    %v3288 = vpop.f32.mrb[0].mxu0
    %v3289 = vadd.f32 %v563, %v3288
    %v3290 = vpop.f32.mrb[0].mxu0
    %v3291 = vadd.f32 %v567, %v3290
    %3292 = vmatprep.mubr.bf16.mxu0 %v1063
    %3293 = vmatmul.mubr.bf16.gmra.mrb[0].mxu0 %v1062
    %v3294 = vpop.f32.mrb[0].mxu0
    %v3295 = vadd.f32 %v563, %v3294
    %v3296 = vpop.f32.mrb[0].mxu0
    %v3297 = vadd.f32 %v567, %v3296
    %v3298 = vpop.f32.mrb[0].mxu0
    %v3299 = vadd.f32 %v563, %v3298
    %v3300 = vpop.f32.mrb[0].mxu0
    %v3301 = vadd.f32 %v567, %v3300
    %3302 = vmatprep.mubr.bf16.mxu0 %v1071
    %3303 = vmatmul.mubr.bf16.gmra.mrb[0].mxu0 %v1070
    %v3304 = vpop.f32.mrb[0].mxu0
    %v3305 = vadd.f32 %v563, %v3304
    %v3306 = vpop.f32.mrb[0].mxu0
    %v3307 = vadd.f32 %v567, %v3306
    %v3308 = vpop.f32.mrb[0].mxu0
    %v3309 = vadd.f32 %v563, %v3308
    %v3310 = vpop.f32.mrb[0].mxu0
    %v3311 = vadd.f32 %v567, %v3310
    %3312 = vmatprep.mubr.bf16.mxu0 %v1079
    %3313 = vmatmul.mubr.bf16.gmra.mrb[0].mxu0 %v1078
    %v3314 = vpop.f32.mrb[0].mxu0
    %v3315 = vadd.f32 %v563, %v3314
    %v3316 = vpop.f32.mrb[0].mxu0
    %v3317 = vadd.f32 %v567, %v3316
    %v3318 = vpop.f32.mrb[0].mxu0
    %v3319 = vadd.f32 %v563, %v3318
    %v3320 = vpop.f32.mrb[0].mxu0
    %v3321 = vadd.f32 %v567, %v3320
    %3322 = vmatprep.mubr.bf16.mxu0 %v1087
    %3323 = vmatmul.mubr.bf16.gmra.mrb[0].mxu0 %v1086
    %v3324 = vpop.f32.mrb[0].mxu0
    %v3325 = vadd.f32 %v563, %v3324
    %v3326 = vpop.f32.mrb[0].mxu0
    %v3327 = vadd.f32 %v567, %v3326
    %v3328 = vpop.f32.mrb[0].mxu0
    %v3329 = vadd.f32 %v563, %v3328
    %v3330 = vpop.f32.mrb[0].mxu0
    %v3331 = vadd.f32 %v567, %v3330
    %3332 = vmatprep.mubr.bf16.mxu0 %v1095
    %3333 = vmatmul.mubr.bf16.gmra.mrb[0].mxu0 %v1094
    %v3334 = vpop.f32.mrb[0].mxu0
    %v3335 = vadd.f32 %v563, %v3334
    %v3336 = vpop.f32.mrb[0].mxu0
    %v3337 = vadd.f32 %v567, %v3336
    %v3338 = vpop.f32.mrb[0].mxu0
    %v3339 = vadd.f32 %v563, %v3338
    %v3340 = vpop.f32.mrb[0].mxu0
    %v3341 = vadd.f32 %v567, %v3340
    %3342 = vdwg.mxu0
    %3343 = vmatprep.subr.bf16.mxu0 %v2479
    %3344 = vmatpush1.bf16.msra.mxu0 %v2478
    %3345 = vmatprep.subr.bf16.mxu0 %v2485
    %3346 = vmatpush1.bf16.msra.mxu0 %v2484
    %3347 = vmatprep.subr.bf16.mxu0 %v2491
    %3348 = vmatpush1.bf16.msra.mxu0 %v2490
    %3349 = vmatprep.subr.bf16.mxu0 %v2497
    %3350 = vmatpush1.bf16.msra.mxu0 %v2496
    %3351 = vmatprep.subr.bf16.mxu0 %v2503
    %3352 = vmatpush1.bf16.msra.mxu0 %v2502
    %3353 = vmatprep.subr.bf16.mxu0 %v2509
    %3354 = vmatpush1.bf16.msra.mxu0 %v2508
    %3355 = vmatprep.subr.bf16.mxu0 %v2515
    %3356 = vmatpush1.bf16.msra.mxu0 %v2514
    %3357 = vmatprep.subr.bf16.mxu0 %v2521
    %3358 = vmatpush1.bf16.msra.mxu0 %v2520
    %3359 = vmatprep.subr.bf16.mxu0 %v2527
    %3360 = vmatpush1.bf16.msra.mxu0 %v2526
    %3361 = vmatprep.subr.bf16.mxu0 %v2533
    %3362 = vmatpush1.bf16.msra.mxu0 %v2532
    %3363 = vmatprep.subr.bf16.mxu0 %v2539
    %3364 = vmatpush1.bf16.msra.mxu0 %v2538
    %3365 = vmatprep.subr.bf16.mxu0 %v2545
    %3366 = vmatpush1.bf16.msra.mxu0 %v2544
    %3367 = vmatprep.subr.bf16.mxu0 %v2551
    %3368 = vmatpush1.bf16.msra.mxu0 %v2550
    %3369 = vmatprep.subr.bf16.mxu0 %v2557
    %3370 = vmatpush1.bf16.msra.mxu0 %v2556
    %3371 = vmatprep.subr.bf16.mxu0 %v2563
    %3372 = vmatpush1.bf16.msra.mxu0 %v2562
    %3373 = vmatprep.subr.bf16.mxu0 %v2569
    %3374 = vmatpush1.bf16.msra.mxu0 %v2568
    %3375 = vmatprep.mubr.bf16.mxu0 %v977
    %3376 = vmatmul.mubr.bf16.gmra.mrb[0].mxu0 %v976
    %v3377 = vpop.f32.mrb[0].mxu0
    %v3378 = vadd.f32 %v3185, %v3377
    %v3379 = vpop.f32.mrb[0].mxu0
    %v3380 = vadd.f32 %v3187, %v3379
    %v3381 = vpop.f32.mrb[0].mxu0
    %v3382 = vadd.f32 %v3189, %v3381
    %v3383 = vpop.f32.mrb[0].mxu0
    %v3384 = vadd.f32 %v3191, %v3383
    %3385 = vmatprep.mubr.bf16.mxu0 %v985
    %3386 = vmatmul.mubr.bf16.gmra.mrb[0].mxu0 %v984
    %v3387 = vpop.f32.mrb[0].mxu0
    %v3388 = vadd.f32 %v3195, %v3387
    %v3389 = vpop.f32.mrb[0].mxu0
    %v3390 = vadd.f32 %v3197, %v3389
    %v3391 = vpop.f32.mrb[0].mxu0
    %v3392 = vadd.f32 %v3199, %v3391
    %v3393 = vpop.f32.mrb[0].mxu0
    %v3394 = vadd.f32 %v3201, %v3393
    %3395 = vmatprep.mubr.bf16.mxu0 %v993
    %3396 = vmatmul.mubr.bf16.gmra.mrb[0].mxu0 %v992
    %v3397 = vpop.f32.mrb[0].mxu0
    %v3398 = vadd.f32 %v3205, %v3397
    %v3399 = vpop.f32.mrb[0].mxu0
    %v3400 = vadd.f32 %v3207, %v3399
    %v3401 = vpop.f32.mrb[0].mxu0
    %v3402 = vadd.f32 %v3209, %v3401
    %v3403 = vpop.f32.mrb[0].mxu0
    %v3404 = vadd.f32 %v3211, %v3403
    %3405 = vmatprep.mubr.bf16.mxu0 %v1001
    %3406 = vmatmul.mubr.bf16.gmra.mrb[0].mxu0 %v1000
    %v3407 = vpop.f32.mrb[0].mxu0
    %v3408 = vadd.f32 %v3215, %v3407
    %v3409 = vpop.f32.mrb[0].mxu0
    %v3410 = vadd.f32 %v3217, %v3409
    %v3411 = vpop.f32.mrb[0].mxu0
    %v3412 = vadd.f32 %v3219, %v3411
    %v3413 = vpop.f32.mrb[0].mxu0
    %v3414 = vadd.f32 %v3221, %v3413
    %3415 = vmatprep.mubr.bf16.mxu0 %v1009
    %3416 = vmatmul.mubr.bf16.gmra.mrb[0].mxu0 %v1008
    %v3417 = vpop.f32.mrb[0].mxu0
    %v3418 = vadd.f32 %v3225, %v3417
    %v3419 = vpop.f32.mrb[0].mxu0
    %v3420 = vadd.f32 %v3227, %v3419
    %v3421 = vpop.f32.mrb[0].mxu0
    %v3422 = vadd.f32 %v3229, %v3421
    %v3423 = vpop.f32.mrb[0].mxu0
    %v3424 = vadd.f32 %v3231, %v3423
    %3425 = vmatprep.mubr.bf16.mxu0 %v1017
    %3426 = vmatmul.mubr.bf16.gmra.mrb[0].mxu0 %v1016
    %v3427 = vpop.f32.mrb[0].mxu0
    %v3428 = vadd.f32 %v3235, %v3427
    %v3429 = vpop.f32.mrb[0].mxu0
    %v3430 = vadd.f32 %v3237, %v3429
    %v3431 = vpop.f32.mrb[0].mxu0
    %v3432 = vadd.f32 %v3239, %v3431
    %v3433 = vpop.f32.mrb[0].mxu0
    %v3434 = vadd.f32 %v3241, %v3433
    %3435 = vmatprep.mubr.bf16.mxu0 %v1025
    %3436 = vmatmul.mubr.bf16.gmra.mrb[0].mxu0 %v1024
    %v3437 = vpop.f32.mrb[0].mxu0
    %v3438 = vadd.f32 %v3245, %v3437
    %v3439 = vpop.f32.mrb[0].mxu0
    %v3440 = vadd.f32 %v3247, %v3439
    %v3441 = vpop.f32.mrb[0].mxu0
    %v3442 = vadd.f32 %v3249, %v3441
    %v3443 = vpop.f32.mrb[0].mxu0
    %v3444 = vadd.f32 %v3251, %v3443
    %3445 = vmatprep.mubr.bf16.mxu0 %v1033
    %3446 = vmatmul.mubr.bf16.gmra.mrb[0].mxu0 %v1032
    %v3447 = vpop.f32.mrb[0].mxu0
    %v3448 = vadd.f32 %v3255, %v3447
    %v3449 = vpop.f32.mrb[0].mxu0
    %v3450 = vadd.f32 %v3257, %v3449
    %v3451 = vpop.f32.mrb[0].mxu0
    %v3452 = vadd.f32 %v3259, %v3451
    %v3453 = vpop.f32.mrb[0].mxu0
    %v3454 = vadd.f32 %v3261, %v3453
    %3455 = vmatprep.mubr.bf16.mxu0 %v1041
    %3456 = vmatmul.mubr.bf16.gmra.mrb[0].mxu0 %v1040
    %v3457 = vpop.f32.mrb[0].mxu0
    %v3458 = vadd.f32 %v3265, %v3457
    %v3459 = vpop.f32.mrb[0].mxu0
    %v3460 = vadd.f32 %v3267, %v3459
    %v3461 = vpop.f32.mrb[0].mxu0
    %v3462 = vadd.f32 %v3269, %v3461
    %v3463 = vpop.f32.mrb[0].mxu0
    %v3464 = vadd.f32 %v3271, %v3463
    %3465 = vmatprep.mubr.bf16.mxu0 %v1049
    %3466 = vmatmul.mubr.bf16.gmra.mrb[0].mxu0 %v1048
    %v3467 = vpop.f32.mrb[0].mxu0
    %v3468 = vadd.f32 %v3275, %v3467
    %v3469 = vpop.f32.mrb[0].mxu0
    %v3470 = vadd.f32 %v3277, %v3469
    %v3471 = vpop.f32.mrb[0].mxu0
    %v3472 = vadd.f32 %v3279, %v3471
    %v3473 = vpop.f32.mrb[0].mxu0
    %v3474 = vadd.f32 %v3281, %v3473
    %3475 = vmatprep.mubr.bf16.mxu0 %v1057
    %3476 = vmatmul.mubr.bf16.gmra.mrb[0].mxu0 %v1056
    %v3477 = vpop.f32.mrb[0].mxu0
    %v3478 = vadd.f32 %v3285, %v3477
    %v3479 = vpop.f32.mrb[0].mxu0
    %v3480 = vadd.f32 %v3287, %v3479
    %v3481 = vpop.f32.mrb[0].mxu0
    %v3482 = vadd.f32 %v3289, %v3481
    %v3483 = vpop.f32.mrb[0].mxu0
    %v3484 = vadd.f32 %v3291, %v3483
    %3485 = vmatprep.mubr.bf16.mxu0 %v1065
    %3486 = vmatmul.mubr.bf16.gmra.mrb[0].mxu0 %v1064
    %v3487 = vpop.f32.mrb[0].mxu0
    %v3488 = vadd.f32 %v3295, %v3487
    %v3489 = vpop.f32.mrb[0].mxu0
    %v3490 = vadd.f32 %v3297, %v3489
    %v3491 = vpop.f32.mrb[0].mxu0
    %v3492 = vadd.f32 %v3299, %v3491
    %v3493 = vpop.f32.mrb[0].mxu0
    %v3494 = vadd.f32 %v3301, %v3493
    %3495 = vmatprep.mubr.bf16.mxu0 %v1073
    %3496 = vmatmul.mubr.bf16.gmra.mrb[0].mxu0 %v1072
    %v3497 = vpop.f32.mrb[0].mxu0
    %v3498 = vadd.f32 %v3305, %v3497
    %v3499 = vpop.f32.mrb[0].mxu0
    %v3500 = vadd.f32 %v3307, %v3499
    %v3501 = vpop.f32.mrb[0].mxu0
    %v3502 = vadd.f32 %v3309, %v3501
    %v3503 = vpop.f32.mrb[0].mxu0
    %v3504 = vadd.f32 %v3311, %v3503
    %3505 = vmatprep.mubr.bf16.mxu0 %v1081
    %3506 = vmatmul.mubr.bf16.gmra.mrb[0].mxu0 %v1080
    %v3507 = vpop.f32.mrb[0].mxu0
    %v3508 = vadd.f32 %v3315, %v3507
    %v3509 = vpop.f32.mrb[0].mxu0
    %v3510 = vadd.f32 %v3317, %v3509
    %v3511 = vpop.f32.mrb[0].mxu0
    %v3512 = vadd.f32 %v3319, %v3511
    %v3513 = vpop.f32.mrb[0].mxu0
    %v3514 = vadd.f32 %v3321, %v3513
    %3515 = vmatprep.mubr.bf16.mxu0 %v1089
    %3516 = vmatmul.mubr.bf16.gmra.mrb[0].mxu0 %v1088
    %v3517 = vpop.f32.mrb[0].mxu0
    %v3518 = vadd.f32 %v3325, %v3517
    %v3519 = vpop.f32.mrb[0].mxu0
    %v3520 = vadd.f32 %v3327, %v3519
    %v3521 = vpop.f32.mrb[0].mxu0
    %v3522 = vadd.f32 %v3329, %v3521
    %v3523 = vpop.f32.mrb[0].mxu0
    %v3524 = vadd.f32 %v3331, %v3523
    %3525 = vmatprep.mubr.bf16.mxu0 %v1097
    %3526 = vmatmul.mubr.bf16.gmra.mrb[0].mxu0 %v1096
    %v3527 = vpop.f32.mrb[0].mxu0
    %v3528 = vadd.f32 %v3335, %v3527
    %v3529 = vpop.f32.mrb[0].mxu0
    %v3530 = vadd.f32 %v3337, %v3529
    %v3531 = vpop.f32.mrb[0].mxu0
    %v3532 = vadd.f32 %v3339, %v3531
    %v3533 = vpop.f32.mrb[0].mxu0
    %v3534 = vadd.f32 %v3341, %v3533
    %3535 = vdwg.mxu0
    %3536 = vmatprep.subr.bf16.mxu0 %v2575
    %3537 = vmatpush1.bf16.msra.mxu0 %v2574
    %3538 = vmatprep.subr.bf16.mxu0 %v2581
    %3539 = vmatpush1.bf16.msra.mxu0 %v2580
    %3540 = vmatprep.subr.bf16.mxu0 %v2587
    %3541 = vmatpush1.bf16.msra.mxu0 %v2586
    %3542 = vmatprep.subr.bf16.mxu0 %v2593
    %3543 = vmatpush1.bf16.msra.mxu0 %v2592
    %3544 = vmatprep.subr.bf16.mxu0 %v2599
    %3545 = vmatpush1.bf16.msra.mxu0 %v2598
    %3546 = vmatprep.subr.bf16.mxu0 %v2605
    %3547 = vmatpush1.bf16.msra.mxu0 %v2604
    %3548 = vmatprep.subr.bf16.mxu0 %v2611
    %3549 = vmatpush1.bf16.msra.mxu0 %v2610
    %3550 = vmatprep.subr.bf16.mxu0 %v2617
    %3551 = vmatpush1.bf16.msra.mxu0 %v2616
    %3552 = vmatprep.subr.bf16.mxu0 %v2623
    %3553 = vmatpush1.bf16.msra.mxu0 %v2622
    %3554 = vmatprep.subr.bf16.mxu0 %v2629
    %3555 = vmatpush1.bf16.msra.mxu0 %v2628
    %3556 = vmatprep.subr.bf16.mxu0 %v2635
    %3557 = vmatpush1.bf16.msra.mxu0 %v2634
    %3558 = vmatprep.subr.bf16.mxu0 %v2641
    %3559 = vmatpush1.bf16.msra.mxu0 %v2640
    %3560 = vmatprep.subr.bf16.mxu0 %v2647
    %3561 = vmatpush1.bf16.msra.mxu0 %v2646
    %3562 = vmatprep.subr.bf16.mxu0 %v2653
    %3563 = vmatpush1.bf16.msra.mxu0 %v2652
    %3564 = vmatprep.subr.bf16.mxu0 %v2659
    %3565 = vmatpush1.bf16.msra.mxu0 %v2658
    %3566 = vmatprep.subr.bf16.mxu0 %v2665
    %3567 = vmatpush1.bf16.msra.mxu0 %v2664
    %3568 = vmatprep.mubr.bf16.mxu0 %v979
    %3569 = vmatmul.mubr.bf16.gmra.mrb[0].mxu0 %v978
    %v3570 = vpop.f32.mrb[0].mxu0
    %v3571 = vadd.f32 %v3378, %v3570
    %v3572 = vpop.f32.mrb[0].mxu0
    %v3573 = vadd.f32 %v3380, %v3572
    %v3574 = vpop.f32.mrb[0].mxu0
    %v3575 = vadd.f32 %v3382, %v3574
    %v3576 = vpop.f32.mrb[0].mxu0
    %v3577 = vadd.f32 %v3384, %v3576
    %3578 = vmatprep.mubr.bf16.mxu0 %v987
    %3579 = vmatmul.mubr.bf16.gmra.mrb[0].mxu0 %v986
    %v3580 = vpop.f32.mrb[0].mxu0
    %v3581 = vadd.f32 %v3388, %v3580
    %v3582 = vpop.f32.mrb[0].mxu0
    %v3583 = vadd.f32 %v3390, %v3582
    %v3584 = vpop.f32.mrb[0].mxu0
    %v3585 = vadd.f32 %v3392, %v3584
    %v3586 = vpop.f32.mrb[0].mxu0
    %v3587 = vadd.f32 %v3394, %v3586
    %3588 = vmatprep.mubr.bf16.mxu0 %v995
    %3589 = vmatmul.mubr.bf16.gmra.mrb[0].mxu0 %v994
    %v3590 = vpop.f32.mrb[0].mxu0
    %v3591 = vadd.f32 %v3398, %v3590
    %v3592 = vpop.f32.mrb[0].mxu0
    %v3593 = vadd.f32 %v3400, %v3592
    %v3594 = vpop.f32.mrb[0].mxu0
    %v3595 = vadd.f32 %v3402, %v3594
    %v3596 = vpop.f32.mrb[0].mxu0
    %v3597 = vadd.f32 %v3404, %v3596
    %3598 = vmatprep.mubr.bf16.mxu0 %v1003
    %3599 = vmatmul.mubr.bf16.gmra.mrb[0].mxu0 %v1002
    %v3600 = vpop.f32.mrb[0].mxu0
    %v3601 = vadd.f32 %v3408, %v3600
    %v3602 = vpop.f32.mrb[0].mxu0
    %v3603 = vadd.f32 %v3410, %v3602
    %v3604 = vpop.f32.mrb[0].mxu0
    %v3605 = vadd.f32 %v3412, %v3604
    %v3606 = vpop.f32.mrb[0].mxu0
    %v3607 = vadd.f32 %v3414, %v3606
    %3608 = vmatprep.mubr.bf16.mxu0 %v1011
    %3609 = vmatmul.mubr.bf16.gmra.mrb[0].mxu0 %v1010
    %v3610 = vpop.f32.mrb[0].mxu0
    %v3611 = vadd.f32 %v3418, %v3610
    %v3612 = vpop.f32.mrb[0].mxu0
    %v3613 = vadd.f32 %v3420, %v3612
    %v3614 = vpop.f32.mrb[0].mxu0
    %v3615 = vadd.f32 %v3422, %v3614
    %v3616 = vpop.f32.mrb[0].mxu0
    %v3617 = vadd.f32 %v3424, %v3616
    %3618 = vmatprep.mubr.bf16.mxu0 %v1019
    %3619 = vmatmul.mubr.bf16.gmra.mrb[0].mxu0 %v1018
    %v3620 = vpop.f32.mrb[0].mxu0
    %v3621 = vadd.f32 %v3428, %v3620
    %v3622 = vpop.f32.mrb[0].mxu0
    %v3623 = vadd.f32 %v3430, %v3622
    %v3624 = vpop.f32.mrb[0].mxu0
    %v3625 = vadd.f32 %v3432, %v3624
    %v3626 = vpop.f32.mrb[0].mxu0
    %v3627 = vadd.f32 %v3434, %v3626
    %3628 = vmatprep.mubr.bf16.mxu0 %v1027
    %3629 = vmatmul.mubr.bf16.gmra.mrb[0].mxu0 %v1026
    %v3630 = vpop.f32.mrb[0].mxu0
    %v3631 = vadd.f32 %v3438, %v3630
    %v3632 = vpop.f32.mrb[0].mxu0
    %v3633 = vadd.f32 %v3440, %v3632
    %v3634 = vpop.f32.mrb[0].mxu0
    %v3635 = vadd.f32 %v3442, %v3634
    %v3636 = vpop.f32.mrb[0].mxu0
    %v3637 = vadd.f32 %v3444, %v3636
    %3638 = vmatprep.mubr.bf16.mxu0 %v1035
    %3639 = vmatmul.mubr.bf16.gmra.mrb[0].mxu0 %v1034
    %v3640 = vpop.f32.mrb[0].mxu0
    %v3641 = vadd.f32 %v3448, %v3640
    %v3642 = vpop.f32.mrb[0].mxu0
    %v3643 = vadd.f32 %v3450, %v3642
    %v3644 = vpop.f32.mrb[0].mxu0
    %v3645 = vadd.f32 %v3452, %v3644
    %v3646 = vpop.f32.mrb[0].mxu0
    %v3647 = vadd.f32 %v3454, %v3646
    %3648 = vmatprep.mubr.bf16.mxu0 %v1043
    %3649 = vmatmul.mubr.bf16.gmra.mrb[0].mxu0 %v1042
    %v3650 = vpop.f32.mrb[0].mxu0
    %v3651 = vadd.f32 %v3458, %v3650
    %v3652 = vpop.f32.mrb[0].mxu0
    %v3653 = vadd.f32 %v3460, %v3652
    %v3654 = vpop.f32.mrb[0].mxu0
    %v3655 = vadd.f32 %v3462, %v3654
    %v3656 = vpop.f32.mrb[0].mxu0
    %v3657 = vadd.f32 %v3464, %v3656
    %3658 = vmatprep.mubr.bf16.mxu0 %v1051
    %3659 = vmatmul.mubr.bf16.gmra.mrb[0].mxu0 %v1050
    %v3660 = vpop.f32.mrb[0].mxu0
    %v3661 = vadd.f32 %v3468, %v3660
    %v3662 = vpop.f32.mrb[0].mxu0
    %v3663 = vadd.f32 %v3470, %v3662
    %v3664 = vpop.f32.mrb[0].mxu0
    %v3665 = vadd.f32 %v3472, %v3664
    %v3666 = vpop.f32.mrb[0].mxu0
    %v3667 = vadd.f32 %v3474, %v3666
    %3668 = vmatprep.mubr.bf16.mxu0 %v1059
    %3669 = vmatmul.mubr.bf16.gmra.mrb[0].mxu0 %v1058
    %v3670 = vpop.f32.mrb[0].mxu0
    %v3671 = vadd.f32 %v3478, %v3670
    %v3672 = vpop.f32.mrb[0].mxu0
    %v3673 = vadd.f32 %v3480, %v3672
    %v3674 = vpop.f32.mrb[0].mxu0
    %v3675 = vadd.f32 %v3482, %v3674
    %v3676 = vpop.f32.mrb[0].mxu0
    %v3677 = vadd.f32 %v3484, %v3676
    %3678 = vmatprep.mubr.bf16.mxu0 %v1067
    %3679 = vmatmul.mubr.bf16.gmra.mrb[0].mxu0 %v1066
    %v3680 = vpop.f32.mrb[0].mxu0
    %v3681 = vadd.f32 %v3488, %v3680
    %v3682 = vpop.f32.mrb[0].mxu0
    %v3683 = vadd.f32 %v3490, %v3682
    %v3684 = vpop.f32.mrb[0].mxu0
    %v3685 = vadd.f32 %v3492, %v3684
    %v3686 = vpop.f32.mrb[0].mxu0
    %v3687 = vadd.f32 %v3494, %v3686
    %3688 = vmatprep.mubr.bf16.mxu0 %v1075
    %3689 = vmatmul.mubr.bf16.gmra.mrb[0].mxu0 %v1074
    %v3690 = vpop.f32.mrb[0].mxu0
    %v3691 = vadd.f32 %v3498, %v3690
    %v3692 = vpop.f32.mrb[0].mxu0
    %v3693 = vadd.f32 %v3500, %v3692
    %v3694 = vpop.f32.mrb[0].mxu0
    %v3695 = vadd.f32 %v3502, %v3694
    %v3696 = vpop.f32.mrb[0].mxu0
    %v3697 = vadd.f32 %v3504, %v3696
    %3698 = vmatprep.mubr.bf16.mxu0 %v1083
    %3699 = vmatmul.mubr.bf16.gmra.mrb[0].mxu0 %v1082
    %v3700 = vpop.f32.mrb[0].mxu0
    %v3701 = vadd.f32 %v3508, %v3700
    %v3702 = vpop.f32.mrb[0].mxu0
    %v3703 = vadd.f32 %v3510, %v3702
    %v3704 = vpop.f32.mrb[0].mxu0
    %v3705 = vadd.f32 %v3512, %v3704
    %v3706 = vpop.f32.mrb[0].mxu0
    %v3707 = vadd.f32 %v3514, %v3706
    %3708 = vmatprep.mubr.bf16.mxu0 %v1091
    %3709 = vmatmul.mubr.bf16.gmra.mrb[0].mxu0 %v1090
    %v3710 = vpop.f32.mrb[0].mxu0
    %v3711 = vadd.f32 %v3518, %v3710
    %v3712 = vpop.f32.mrb[0].mxu0
    %v3713 = vadd.f32 %v3520, %v3712
    %v3714 = vpop.f32.mrb[0].mxu0
    %v3715 = vadd.f32 %v3522, %v3714
    %v3716 = vpop.f32.mrb[0].mxu0
    %v3717 = vadd.f32 %v3524, %v3716
    %3718 = vmatprep.mubr.bf16.mxu0 %v1099
    %3719 = vmatmul.mubr.bf16.gmra.mrb[0].mxu0 %v1098
    %v3720 = vpop.f32.mrb[0].mxu0
    %v3721 = vadd.f32 %v3528, %v3720
    %v3722 = vpop.f32.mrb[0].mxu0
    %v3723 = vadd.f32 %v3530, %v3722
    %v3724 = vpop.f32.mrb[0].mxu0
    %v3725 = vadd.f32 %v3532, %v3724
    %v3726 = vpop.f32.mrb[0].mxu0
    %v3727 = vadd.f32 %v3534, %v3726
    %3728 = vdwg.mxu0
    %3729 = vmatprep.subr.bf16.mxu0 %v2671
    %3730 = vmatpush1.bf16.msra.mxu0 %v2670
    %3731 = vmatprep.subr.bf16.mxu0 %v2677
    %3732 = vmatpush1.bf16.msra.mxu0 %v2676
    %3733 = vmatprep.subr.bf16.mxu0 %v2683
    %3734 = vmatpush1.bf16.msra.mxu0 %v2682
    %3735 = vmatprep.subr.bf16.mxu0 %v2689
    %3736 = vmatpush1.bf16.msra.mxu0 %v2688
    %3737 = vmatprep.subr.bf16.mxu0 %v2695
    %3738 = vmatpush1.bf16.msra.mxu0 %v2694
    %3739 = vmatprep.subr.bf16.mxu0 %v2701
    %3740 = vmatpush1.bf16.msra.mxu0 %v2700
    %3741 = vmatprep.subr.bf16.mxu0 %v2707
    %3742 = vmatpush1.bf16.msra.mxu0 %v2706
    %3743 = vmatprep.subr.bf16.mxu0 %v2713
    %3744 = vmatpush1.bf16.msra.mxu0 %v2712
    %3745 = vmatprep.subr.bf16.mxu0 %v2719
    %3746 = vmatpush1.bf16.msra.mxu0 %v2718
    %3747 = vmatprep.subr.bf16.mxu0 %v2725
    %3748 = vmatpush1.bf16.msra.mxu0 %v2724
    %3749 = vmatprep.subr.bf16.mxu0 %v2731
    %3750 = vmatpush1.bf16.msra.mxu0 %v2730
    %3751 = vmatprep.subr.bf16.mxu0 %v2737
    %3752 = vmatpush1.bf16.msra.mxu0 %v2736
    %3753 = vmatprep.subr.bf16.mxu0 %v2743
    %3754 = vmatpush1.bf16.msra.mxu0 %v2742
    %3755 = vmatprep.subr.bf16.mxu0 %v2749
    %3756 = vmatpush1.bf16.msra.mxu0 %v2748
    %3757 = vmatprep.subr.bf16.mxu0 %v2755
    %3758 = vmatpush1.bf16.msra.mxu0 %v2754
    %3759 = vmatprep.subr.bf16.mxu0 %v2761
    %3760 = vmatpush1.bf16.msra.mxu0 %v2760
    %3761 = vmatprep.mubr.bf16.mxu0 %v981
    %3762 = vmatmul.mubr.bf16.gmra.mrb[0].mxu0 %v980
    %v3763 = vpop.f32.mrb[0].mxu0
    %v3764 = vadd.f32 %v3571, %v3763
    %v3765 = vpop.f32.mrb[0].mxu0
    %v3766 = vadd.f32 %v3573, %v3765
    %v3767 = vpop.f32.mrb[0].mxu0
    %v3768 = vadd.f32 %v3575, %v3767
    %v3769 = vpop.f32.mrb[0].mxu0
    %v3770 = vadd.f32 %v3577, %v3769
    %3771 = vmatprep.mubr.bf16.mxu0 %v989
    %3772 = vmatmul.mubr.bf16.gmra.mrb[0].mxu0 %v988
    %v3773 = vpop.f32.mrb[0].mxu0
    %v3774 = vadd.f32 %v3581, %v3773
    %v3775 = vpop.f32.mrb[0].mxu0
    %v3776 = vadd.f32 %v3583, %v3775
    %v3777 = vpop.f32.mrb[0].mxu0
    %v3778 = vadd.f32 %v3585, %v3777
    %v3779 = vpop.f32.mrb[0].mxu0
    %v3780 = vadd.f32 %v3587, %v3779
    %3781 = vmatprep.mubr.bf16.mxu0 %v997
    %3782 = vmatmul.mubr.bf16.gmra.mrb[0].mxu0 %v996
    %v3783 = vpop.f32.mrb[0].mxu0
    %v3784 = vadd.f32 %v3591, %v3783
    %v3785 = vpop.f32.mrb[0].mxu0
    %v3786 = vadd.f32 %v3593, %v3785
    %v3787 = vpop.f32.mrb[0].mxu0
    %v3788 = vadd.f32 %v3595, %v3787
    %v3789 = vpop.f32.mrb[0].mxu0
    %v3790 = vadd.f32 %v3597, %v3789
    %3791 = vmatprep.mubr.bf16.mxu0 %v1005
    %3792 = vmatmul.mubr.bf16.gmra.mrb[0].mxu0 %v1004
    %v3793 = vpop.f32.mrb[0].mxu0
    %v3794 = vadd.f32 %v3601, %v3793
    %v3795 = vpop.f32.mrb[0].mxu0
    %v3796 = vadd.f32 %v3603, %v3795
    %v3797 = vpop.f32.mrb[0].mxu0
    %v3798 = vadd.f32 %v3605, %v3797
    %v3799 = vpop.f32.mrb[0].mxu0
    %v3800 = vadd.f32 %v3607, %v3799
    %3801 = vmatprep.mubr.bf16.mxu0 %v1013
    %3802 = vmatmul.mubr.bf16.gmra.mrb[0].mxu0 %v1012
    %v3803 = vpop.f32.mrb[0].mxu0
    %v3804 = vadd.f32 %v3611, %v3803
    %v3805 = vpop.f32.mrb[0].mxu0
    %v3806 = vadd.f32 %v3613, %v3805
    %v3807 = vpop.f32.mrb[0].mxu0
    %v3808 = vadd.f32 %v3615, %v3807
    %v3809 = vpop.f32.mrb[0].mxu0
    %v3810 = vadd.f32 %v3617, %v3809
    %3811 = vmatprep.mubr.bf16.mxu0 %v1021
    %3812 = vmatmul.mubr.bf16.gmra.mrb[0].mxu0 %v1020
    %v3813 = vpop.f32.mrb[0].mxu0
    %v3814 = vadd.f32 %v3621, %v3813
    %v3815 = vpop.f32.mrb[0].mxu0
    %v3816 = vadd.f32 %v3623, %v3815
    %v3817 = vpop.f32.mrb[0].mxu0
    %v3818 = vadd.f32 %v3625, %v3817
    %v3819 = vpop.f32.mrb[0].mxu0
    %v3820 = vadd.f32 %v3627, %v3819
    %3821 = vmatprep.mubr.bf16.mxu0 %v1029
    %3822 = vmatmul.mubr.bf16.gmra.mrb[0].mxu0 %v1028
    %v3823 = vpop.f32.mrb[0].mxu0
    %v3824 = vadd.f32 %v3631, %v3823
    %v3825 = vpop.f32.mrb[0].mxu0
    %v3826 = vadd.f32 %v3633, %v3825
    %v3827 = vpop.f32.mrb[0].mxu0
    %v3828 = vadd.f32 %v3635, %v3827
    %v3829 = vpop.f32.mrb[0].mxu0
    %v3830 = vadd.f32 %v3637, %v3829
    %3831 = vmatprep.mubr.bf16.mxu0 %v1037
    %3832 = vmatmul.mubr.bf16.gmra.mrb[0].mxu0 %v1036
    %v3833 = vpop.f32.mrb[0].mxu0
    %v3834 = vadd.f32 %v3641, %v3833
    %v3835 = vpop.f32.mrb[0].mxu0
    %v3836 = vadd.f32 %v3643, %v3835
    %v3837 = vpop.f32.mrb[0].mxu0
    %v3838 = vadd.f32 %v3645, %v3837
    %v3839 = vpop.f32.mrb[0].mxu0
    %v3840 = vadd.f32 %v3647, %v3839
    %3841 = vmatprep.mubr.bf16.mxu0 %v1045
    %3842 = vmatmul.mubr.bf16.gmra.mrb[0].mxu0 %v1044
    %v3843 = vpop.f32.mrb[0].mxu0
    %v3844 = vadd.f32 %v3651, %v3843
    %v3845 = vpop.f32.mrb[0].mxu0
    %v3846 = vadd.f32 %v3653, %v3845
    %v3847 = vpop.f32.mrb[0].mxu0
    %v3848 = vadd.f32 %v3655, %v3847
    %v3849 = vpop.f32.mrb[0].mxu0
    %v3850 = vadd.f32 %v3657, %v3849
    %3851 = vmatprep.mubr.bf16.mxu0 %v1053
    %3852 = vmatmul.mubr.bf16.gmra.mrb[0].mxu0 %v1052
    %v3853 = vpop.f32.mrb[0].mxu0
    %v3854 = vadd.f32 %v3661, %v3853
    %v3855 = vpop.f32.mrb[0].mxu0
    %v3856 = vadd.f32 %v3663, %v3855
    %v3857 = vpop.f32.mrb[0].mxu0
    %v3858 = vadd.f32 %v3665, %v3857
    %v3859 = vpop.f32.mrb[0].mxu0
    %v3860 = vadd.f32 %v3667, %v3859
    %3861 = vmatprep.mubr.bf16.mxu0 %v1061
    %3862 = vmatmul.mubr.bf16.gmra.mrb[0].mxu0 %v1060
    %v3863 = vpop.f32.mrb[0].mxu0
    %v3864 = vadd.f32 %v3671, %v3863
    %v3865 = vpop.f32.mrb[0].mxu0
    %v3866 = vadd.f32 %v3673, %v3865
    %v3867 = vpop.f32.mrb[0].mxu0
    %v3868 = vadd.f32 %v3675, %v3867
    %v3869 = vpop.f32.mrb[0].mxu0
    %v3870 = vadd.f32 %v3677, %v3869
    %3871 = vmatprep.mubr.bf16.mxu0 %v1069
    %3872 = vmatmul.mubr.bf16.gmra.mrb[0].mxu0 %v1068
    %v3873 = vpop.f32.mrb[0].mxu0
    %v3874 = vadd.f32 %v3681, %v3873
    %v3875 = vpop.f32.mrb[0].mxu0
    %v3876 = vadd.f32 %v3683, %v3875
    %v3877 = vpop.f32.mrb[0].mxu0
    %v3878 = vadd.f32 %v3685, %v3877
    %v3879 = vpop.f32.mrb[0].mxu0
    %v3880 = vadd.f32 %v3687, %v3879
    %3881 = vmatprep.mubr.bf16.mxu0 %v1077
    %3882 = vmatmul.mubr.bf16.gmra.mrb[0].mxu0 %v1076
    %v3883 = vpop.f32.mrb[0].mxu0
    %v3884 = vadd.f32 %v3691, %v3883
    %v3885 = vpop.f32.mrb[0].mxu0
    %v3886 = vadd.f32 %v3693, %v3885
    %v3887 = vpop.f32.mrb[0].mxu0
    %v3888 = vadd.f32 %v3695, %v3887
    %v3889 = vpop.f32.mrb[0].mxu0
    %v3890 = vadd.f32 %v3697, %v3889
    %3891 = vmatprep.mubr.bf16.mxu0 %v1085
    %3892 = vmatmul.mubr.bf16.gmra.mrb[0].mxu0 %v1084
    %v3893 = vpop.f32.mrb[0].mxu0
    %v3894 = vadd.f32 %v3701, %v3893
    %v3895 = vpop.f32.mrb[0].mxu0
    %v3896 = vadd.f32 %v3703, %v3895
    %v3897 = vpop.f32.mrb[0].mxu0
    %v3898 = vadd.f32 %v3705, %v3897
    %v3899 = vpop.f32.mrb[0].mxu0
    %v3900 = vadd.f32 %v3707, %v3899
    %3901 = vmatprep.mubr.bf16.mxu0 %v1093
    %3902 = vmatmul.mubr.bf16.gmra.mrb[0].mxu0 %v1092
    %v3903 = vpop.f32.mrb[0].mxu0
    %v3904 = vadd.f32 %v3711, %v3903
    %v3905 = vpop.f32.mrb[0].mxu0
    %v3906 = vadd.f32 %v3713, %v3905
    %v3907 = vpop.f32.mrb[0].mxu0
    %v3908 = vadd.f32 %v3715, %v3907
    %v3909 = vpop.f32.mrb[0].mxu0
    %v3910 = vadd.f32 %v3717, %v3909
    %3911 = vmatprep.mubr.bf16.mxu0 %v1101
    %3912 = vmatmul.mubr.bf16.gmra.mrb[0].mxu0 %v1100
    %v3913 = vpop.f32.mrb[0].mxu0
    %v3914 = vadd.f32 %v3721, %v3913
    %v3915 = vpop.f32.mrb[0].mxu0
    %v3916 = vadd.f32 %v3723, %v3915
    %v3917 = vpop.f32.mrb[0].mxu0
    %v3918 = vadd.f32 %v3725, %v3917
    %v3919 = vpop.f32.mrb[0].mxu0
    %v3920 = vadd.f32 %v3727, %v3919
    %3921 = vdwg.mxu0
    %3922 = vmatprep.subr.bf16.mxu0 %v2385
    %3923 = vmatpush1.bf16.msra.mxu0 %v2384
    %3924 = vmatprep.subr.bf16.mxu0 %v2391
    %3925 = vmatpush1.bf16.msra.mxu0 %v2390
    %3926 = vmatprep.subr.bf16.mxu0 %v2397
    %3927 = vmatpush1.bf16.msra.mxu0 %v2396
    %3928 = vmatprep.subr.bf16.mxu0 %v2403
    %3929 = vmatpush1.bf16.msra.mxu0 %v2402
    %3930 = vmatprep.subr.bf16.mxu0 %v2409
    %3931 = vmatpush1.bf16.msra.mxu0 %v2408
    %3932 = vmatprep.subr.bf16.mxu0 %v2415
    %3933 = vmatpush1.bf16.msra.mxu0 %v2414
    %3934 = vmatprep.subr.bf16.mxu0 %v2421
    %3935 = vmatpush1.bf16.msra.mxu0 %v2420
    %3936 = vmatprep.subr.bf16.mxu0 %v2427
    %3937 = vmatpush1.bf16.msra.mxu0 %v2426
    %3938 = vmatprep.subr.bf16.mxu0 %v2433
    %3939 = vmatpush1.bf16.msra.mxu0 %v2432
    %3940 = vmatprep.subr.bf16.mxu0 %v2439
    %3941 = vmatpush1.bf16.msra.mxu0 %v2438
    %3942 = vmatprep.subr.bf16.mxu0 %v2445
    %3943 = vmatpush1.bf16.msra.mxu0 %v2444
    %3944 = vmatprep.subr.bf16.mxu0 %v2451
    %3945 = vmatpush1.bf16.msra.mxu0 %v2450
    %3946 = vmatprep.subr.bf16.mxu0 %v2457
    %3947 = vmatpush1.bf16.msra.mxu0 %v2456
    %3948 = vmatprep.subr.bf16.mxu0 %v2463
    %3949 = vmatpush1.bf16.msra.mxu0 %v2462
    %3950 = vmatprep.subr.bf16.mxu0 %v2469
    %3951 = vmatpush1.bf16.msra.mxu0 %v2468
    %3952 = vmatprep.subr.bf16.mxu0 %v2475
    %3953 = vmatpush1.bf16.msra.mxu0 %v2474
    %3954 = vmatprep.mubr.bf16.mxu0 %v975
    %3955 = vmatmul.mubr.bf16.gmra.mrb[0].mxu0 %v974
    %v3956 = vpop.f32.mrb[0].mxu0
    %v3957 = vadd.f32 %v571, %v3956
    %v3958 = vpop.f32.mrb[0].mxu0
    %v3959 = vadd.f32 %v575, %v3958
    %v3960 = vpop.f32.mrb[0].mxu0
    %v3961 = vadd.f32 %v571, %v3960
    %v3962 = vpop.f32.mrb[0].mxu0
    %v3963 = vadd.f32 %v575, %v3962
    %3964 = vmatprep.mubr.bf16.mxu0 %v983
    %3965 = vmatmul.mubr.bf16.gmra.mrb[0].mxu0 %v982
    %v3966 = vpop.f32.mrb[0].mxu0
    %v3967 = vadd.f32 %v571, %v3966
    %v3968 = vpop.f32.mrb[0].mxu0
    %v3969 = vadd.f32 %v575, %v3968
    %v3970 = vpop.f32.mrb[0].mxu0
    %v3971 = vadd.f32 %v571, %v3970
    %v3972 = vpop.f32.mrb[0].mxu0
    %v3973 = vadd.f32 %v575, %v3972
    %3974 = vmatprep.mubr.bf16.mxu0 %v991
    %3975 = vmatmul.mubr.bf16.gmra.mrb[0].mxu0 %v990
    %v3976 = vpop.f32.mrb[0].mxu0
    %v3977 = vadd.f32 %v571, %v3976
    %v3978 = vpop.f32.mrb[0].mxu0
    %v3979 = vadd.f32 %v575, %v3978
    %v3980 = vpop.f32.mrb[0].mxu0
    %v3981 = vadd.f32 %v571, %v3980
    %v3982 = vpop.f32.mrb[0].mxu0
    %v3983 = vadd.f32 %v575, %v3982
    %3984 = vmatprep.mubr.bf16.mxu0 %v999
    %3985 = vmatmul.mubr.bf16.gmra.mrb[0].mxu0 %v998
    %v3986 = vpop.f32.mrb[0].mxu0
    %v3987 = vadd.f32 %v571, %v3986
    %v3988 = vpop.f32.mrb[0].mxu0
    %v3989 = vadd.f32 %v575, %v3988
    %v3990 = vpop.f32.mrb[0].mxu0
    %v3991 = vadd.f32 %v571, %v3990
    %v3992 = vpop.f32.mrb[0].mxu0
    %v3993 = vadd.f32 %v575, %v3992
    %3994 = vmatprep.mubr.bf16.mxu0 %v1007
    %3995 = vmatmul.mubr.bf16.gmra.mrb[0].mxu0 %v1006
    %v3996 = vpop.f32.mrb[0].mxu0
    %v3997 = vadd.f32 %v571, %v3996
    %v3998 = vpop.f32.mrb[0].mxu0
    %v3999 = vadd.f32 %v575, %v3998
    %v4000 = vpop.f32.mrb[0].mxu0
    %v4001 = vadd.f32 %v571, %v4000
    %v4002 = vpop.f32.mrb[0].mxu0
    %v4003 = vadd.f32 %v575, %v4002
    %4004 = vmatprep.mubr.bf16.mxu0 %v1015
    %4005 = vmatmul.mubr.bf16.gmra.mrb[0].mxu0 %v1014
    %v4006 = vpop.f32.mrb[0].mxu0
    %v4007 = vadd.f32 %v571, %v4006
    %v4008 = vpop.f32.mrb[0].mxu0
    %v4009 = vadd.f32 %v575, %v4008
    %v4010 = vpop.f32.mrb[0].mxu0
    %v4011 = vadd.f32 %v571, %v4010
    %v4012 = vpop.f32.mrb[0].mxu0
    %v4013 = vadd.f32 %v575, %v4012
    %4014 = vmatprep.mubr.bf16.mxu0 %v1023
    %4015 = vmatmul.mubr.bf16.gmra.mrb[0].mxu0 %v1022
    %v4016 = vpop.f32.mrb[0].mxu0
    %v4017 = vadd.f32 %v571, %v4016
    %v4018 = vpop.f32.mrb[0].mxu0
    %v4019 = vadd.f32 %v575, %v4018
    %v4020 = vpop.f32.mrb[0].mxu0
    %v4021 = vadd.f32 %v571, %v4020
    %v4022 = vpop.f32.mrb[0].mxu0
    %v4023 = vadd.f32 %v575, %v4022
    %4024 = vmatprep.mubr.bf16.mxu0 %v1031
    %4025 = vmatmul.mubr.bf16.gmra.mrb[0].mxu0 %v1030
    %v4026 = vpop.f32.mrb[0].mxu0
    %v4027 = vadd.f32 %v571, %v4026
    %v4028 = vpop.f32.mrb[0].mxu0
    %v4029 = vadd.f32 %v575, %v4028
    %v4030 = vpop.f32.mrb[0].mxu0
    %v4031 = vadd.f32 %v571, %v4030
    %v4032 = vpop.f32.mrb[0].mxu0
    %v4033 = vadd.f32 %v575, %v4032
    %4034 = vmatprep.mubr.bf16.mxu0 %v1039
    %4035 = vmatmul.mubr.bf16.gmra.mrb[0].mxu0 %v1038
    %v4036 = vpop.f32.mrb[0].mxu0
    %v4037 = vadd.f32 %v571, %v4036
    %v4038 = vpop.f32.mrb[0].mxu0
    %v4039 = vadd.f32 %v575, %v4038
    %v4040 = vpop.f32.mrb[0].mxu0
    %v4041 = vadd.f32 %v571, %v4040
    %v4042 = vpop.f32.mrb[0].mxu0
    %v4043 = vadd.f32 %v575, %v4042
    %4044 = vmatprep.mubr.bf16.mxu0 %v1047
    %4045 = vmatmul.mubr.bf16.gmra.mrb[0].mxu0 %v1046
    %v4046 = vpop.f32.mrb[0].mxu0
    %v4047 = vadd.f32 %v571, %v4046
    %v4048 = vpop.f32.mrb[0].mxu0
    %v4049 = vadd.f32 %v575, %v4048
    %v4050 = vpop.f32.mrb[0].mxu0
    %v4051 = vadd.f32 %v571, %v4050
    %v4052 = vpop.f32.mrb[0].mxu0
    %v4053 = vadd.f32 %v575, %v4052
    %4054 = vmatprep.mubr.bf16.mxu0 %v1055
    %4055 = vmatmul.mubr.bf16.gmra.mrb[0].mxu0 %v1054
    %v4056 = vpop.f32.mrb[0].mxu0
    %v4057 = vadd.f32 %v571, %v4056
    %v4058 = vpop.f32.mrb[0].mxu0
    %v4059 = vadd.f32 %v575, %v4058
    %v4060 = vpop.f32.mrb[0].mxu0
    %v4061 = vadd.f32 %v571, %v4060
    %v4062 = vpop.f32.mrb[0].mxu0
    %v4063 = vadd.f32 %v575, %v4062
    %4064 = vmatprep.mubr.bf16.mxu0 %v1063
    %4065 = vmatmul.mubr.bf16.gmra.mrb[0].mxu0 %v1062
    %v4066 = vpop.f32.mrb[0].mxu0
    %v4067 = vadd.f32 %v571, %v4066
    %v4068 = vpop.f32.mrb[0].mxu0
    %v4069 = vadd.f32 %v575, %v4068
    %v4070 = vpop.f32.mrb[0].mxu0
    %v4071 = vadd.f32 %v571, %v4070
    %v4072 = vpop.f32.mrb[0].mxu0
    %v4073 = vadd.f32 %v575, %v4072
    %4074 = vmatprep.mubr.bf16.mxu0 %v1071
    %4075 = vmatmul.mubr.bf16.gmra.mrb[0].mxu0 %v1070
    %v4076 = vpop.f32.mrb[0].mxu0
    %v4077 = vadd.f32 %v571, %v4076
    %v4078 = vpop.f32.mrb[0].mxu0
    %v4079 = vadd.f32 %v575, %v4078
    %v4080 = vpop.f32.mrb[0].mxu0
    %v4081 = vadd.f32 %v571, %v4080
    %v4082 = vpop.f32.mrb[0].mxu0
    %v4083 = vadd.f32 %v575, %v4082
    %4084 = vmatprep.mubr.bf16.mxu0 %v1079
    %4085 = vmatmul.mubr.bf16.gmra.mrb[0].mxu0 %v1078
    %v4086 = vpop.f32.mrb[0].mxu0
    %v4087 = vadd.f32 %v571, %v4086
    %v4088 = vpop.f32.mrb[0].mxu0
    %v4089 = vadd.f32 %v575, %v4088
    %v4090 = vpop.f32.mrb[0].mxu0
    %v4091 = vadd.f32 %v571, %v4090
    %v4092 = vpop.f32.mrb[0].mxu0
    %v4093 = vadd.f32 %v575, %v4092
    %4094 = vmatprep.mubr.bf16.mxu0 %v1087
    %4095 = vmatmul.mubr.bf16.gmra.mrb[0].mxu0 %v1086
    %v4096 = vpop.f32.mrb[0].mxu0
    %v4097 = vadd.f32 %v571, %v4096
    %v4098 = vpop.f32.mrb[0].mxu0
    %v4099 = vadd.f32 %v575, %v4098
    %v4100 = vpop.f32.mrb[0].mxu0
    %v4101 = vadd.f32 %v571, %v4100
    %v4102 = vpop.f32.mrb[0].mxu0
    %v4103 = vadd.f32 %v575, %v4102
    %4104 = vmatprep.mubr.bf16.mxu0 %v1095
    %4105 = vmatmul.mubr.bf16.gmra.mrb[0].mxu0 %v1094
    %v4106 = vpop.f32.mrb[0].mxu0
    %v4107 = vadd.f32 %v571, %v4106
    %v4108 = vpop.f32.mrb[0].mxu0
    %v4109 = vadd.f32 %v575, %v4108
    %v4110 = vpop.f32.mrb[0].mxu0
    %v4111 = vadd.f32 %v571, %v4110
    %v4112 = vpop.f32.mrb[0].mxu0
    %v4113 = vadd.f32 %v575, %v4112
    %4114 = vdwg.mxu0
    %4115 = vmatprep.subr.bf16.mxu0 %v2481
    %4116 = vmatpush1.bf16.msra.mxu0 %v2480
    %4117 = vmatprep.subr.bf16.mxu0 %v2487
    %4118 = vmatpush1.bf16.msra.mxu0 %v2486
    %4119 = vmatprep.subr.bf16.mxu0 %v2493
    %4120 = vmatpush1.bf16.msra.mxu0 %v2492
    %4121 = vmatprep.subr.bf16.mxu0 %v2499
    %4122 = vmatpush1.bf16.msra.mxu0 %v2498
    %4123 = vmatprep.subr.bf16.mxu0 %v2505
    %4124 = vmatpush1.bf16.msra.mxu0 %v2504
    %4125 = vmatprep.subr.bf16.mxu0 %v2511
    %4126 = vmatpush1.bf16.msra.mxu0 %v2510
    %4127 = vmatprep.subr.bf16.mxu0 %v2517
    %4128 = vmatpush1.bf16.msra.mxu0 %v2516
    %4129 = vmatprep.subr.bf16.mxu0 %v2523
    %4130 = vmatpush1.bf16.msra.mxu0 %v2522
    %4131 = vmatprep.subr.bf16.mxu0 %v2529
    %4132 = vmatpush1.bf16.msra.mxu0 %v2528
    %4133 = vmatprep.subr.bf16.mxu0 %v2535
    %4134 = vmatpush1.bf16.msra.mxu0 %v2534
    %4135 = vmatprep.subr.bf16.mxu0 %v2541
    %4136 = vmatpush1.bf16.msra.mxu0 %v2540
    %4137 = vmatprep.subr.bf16.mxu0 %v2547
    %4138 = vmatpush1.bf16.msra.mxu0 %v2546
    %4139 = vmatprep.subr.bf16.mxu0 %v2553
    %4140 = vmatpush1.bf16.msra.mxu0 %v2552
    %4141 = vmatprep.subr.bf16.mxu0 %v2559
    %4142 = vmatpush1.bf16.msra.mxu0 %v2558
    %4143 = vmatprep.subr.bf16.mxu0 %v2565
    %4144 = vmatpush1.bf16.msra.mxu0 %v2564
    %4145 = vmatprep.subr.bf16.mxu0 %v2571
    %4146 = vmatpush1.bf16.msra.mxu0 %v2570
    %4147 = vmatprep.mubr.bf16.mxu0 %v977
    %4148 = vmatmul.mubr.bf16.gmra.mrb[0].mxu0 %v976
    %v4149 = vpop.f32.mrb[0].mxu0
    %v4150 = vadd.f32 %v3957, %v4149
    %v4151 = vpop.f32.mrb[0].mxu0
    %v4152 = vadd.f32 %v3959, %v4151
    %v4153 = vpop.f32.mrb[0].mxu0
    %v4154 = vadd.f32 %v3961, %v4153
    %v4155 = vpop.f32.mrb[0].mxu0
    %v4156 = vadd.f32 %v3963, %v4155
    %4157 = vmatprep.mubr.bf16.mxu0 %v985
    %4158 = vmatmul.mubr.bf16.gmra.mrb[0].mxu0 %v984
    %v4159 = vpop.f32.mrb[0].mxu0
    %v4160 = vadd.f32 %v3967, %v4159
    %v4161 = vpop.f32.mrb[0].mxu0
    %v4162 = vadd.f32 %v3969, %v4161
    %v4163 = vpop.f32.mrb[0].mxu0
    %v4164 = vadd.f32 %v3971, %v4163
    %v4165 = vpop.f32.mrb[0].mxu0
    %v4166 = vadd.f32 %v3973, %v4165
    %4167 = vmatprep.mubr.bf16.mxu0 %v993
    %4168 = vmatmul.mubr.bf16.gmra.mrb[0].mxu0 %v992
    %v4169 = vpop.f32.mrb[0].mxu0
    %v4170 = vadd.f32 %v3977, %v4169
    %v4171 = vpop.f32.mrb[0].mxu0
    %v4172 = vadd.f32 %v3979, %v4171
    %v4173 = vpop.f32.mrb[0].mxu0
    %v4174 = vadd.f32 %v3981, %v4173
    %v4175 = vpop.f32.mrb[0].mxu0
    %v4176 = vadd.f32 %v3983, %v4175
    %4177 = vmatprep.mubr.bf16.mxu0 %v1001
    %4178 = vmatmul.mubr.bf16.gmra.mrb[0].mxu0 %v1000
    %v4179 = vpop.f32.mrb[0].mxu0
    %v4180 = vadd.f32 %v3987, %v4179
    %v4181 = vpop.f32.mrb[0].mxu0
    %v4182 = vadd.f32 %v3989, %v4181
    %v4183 = vpop.f32.mrb[0].mxu0
    %v4184 = vadd.f32 %v3991, %v4183
    %v4185 = vpop.f32.mrb[0].mxu0
    %v4186 = vadd.f32 %v3993, %v4185
    %4187 = vmatprep.mubr.bf16.mxu0 %v1009
    %4188 = vmatmul.mubr.bf16.gmra.mrb[0].mxu0 %v1008
    %v4189 = vpop.f32.mrb[0].mxu0
    %v4190 = vadd.f32 %v3997, %v4189
    %v4191 = vpop.f32.mrb[0].mxu0
    %v4192 = vadd.f32 %v3999, %v4191
    %v4193 = vpop.f32.mrb[0].mxu0
    %v4194 = vadd.f32 %v4001, %v4193
    %v4195 = vpop.f32.mrb[0].mxu0
    %v4196 = vadd.f32 %v4003, %v4195
    %4197 = vmatprep.mubr.bf16.mxu0 %v1017
    %4198 = vmatmul.mubr.bf16.gmra.mrb[0].mxu0 %v1016
    %v4199 = vpop.f32.mrb[0].mxu0
    %v4200 = vadd.f32 %v4007, %v4199
    %v4201 = vpop.f32.mrb[0].mxu0
    %v4202 = vadd.f32 %v4009, %v4201
    %v4203 = vpop.f32.mrb[0].mxu0
    %v4204 = vadd.f32 %v4011, %v4203
    %v4205 = vpop.f32.mrb[0].mxu0
    %v4206 = vadd.f32 %v4013, %v4205
    %4207 = vmatprep.mubr.bf16.mxu0 %v1025
    %4208 = vmatmul.mubr.bf16.gmra.mrb[0].mxu0 %v1024
    %v4209 = vpop.f32.mrb[0].mxu0
    %v4210 = vadd.f32 %v4017, %v4209
    %v4211 = vpop.f32.mrb[0].mxu0
    %v4212 = vadd.f32 %v4019, %v4211
    %v4213 = vpop.f32.mrb[0].mxu0
    %v4214 = vadd.f32 %v4021, %v4213
    %v4215 = vpop.f32.mrb[0].mxu0
    %v4216 = vadd.f32 %v4023, %v4215
    %4217 = vmatprep.mubr.bf16.mxu0 %v1033
    %4218 = vmatmul.mubr.bf16.gmra.mrb[0].mxu0 %v1032
    %v4219 = vpop.f32.mrb[0].mxu0
    %v4220 = vadd.f32 %v4027, %v4219
    %v4221 = vpop.f32.mrb[0].mxu0
    %v4222 = vadd.f32 %v4029, %v4221
    %v4223 = vpop.f32.mrb[0].mxu0
    %v4224 = vadd.f32 %v4031, %v4223
    %v4225 = vpop.f32.mrb[0].mxu0
    %v4226 = vadd.f32 %v4033, %v4225
    %4227 = vmatprep.mubr.bf16.mxu0 %v1041
    %4228 = vmatmul.mubr.bf16.gmra.mrb[0].mxu0 %v1040
    %v4229 = vpop.f32.mrb[0].mxu0
    %v4230 = vadd.f32 %v4037, %v4229
    %v4231 = vpop.f32.mrb[0].mxu0
    %v4232 = vadd.f32 %v4039, %v4231
    %v4233 = vpop.f32.mrb[0].mxu0
    %v4234 = vadd.f32 %v4041, %v4233
    %v4235 = vpop.f32.mrb[0].mxu0
    %v4236 = vadd.f32 %v4043, %v4235
    %4237 = vmatprep.mubr.bf16.mxu0 %v1049
    %4238 = vmatmul.mubr.bf16.gmra.mrb[0].mxu0 %v1048
    %v4239 = vpop.f32.mrb[0].mxu0
    %v4240 = vadd.f32 %v4047, %v4239
    %v4241 = vpop.f32.mrb[0].mxu0
    %v4242 = vadd.f32 %v4049, %v4241
    %v4243 = vpop.f32.mrb[0].mxu0
    %v4244 = vadd.f32 %v4051, %v4243
    %v4245 = vpop.f32.mrb[0].mxu0
    %v4246 = vadd.f32 %v4053, %v4245
    %4247 = vmatprep.mubr.bf16.mxu0 %v1057
    %4248 = vmatmul.mubr.bf16.gmra.mrb[0].mxu0 %v1056
    %v4249 = vpop.f32.mrb[0].mxu0
    %v4250 = vadd.f32 %v4057, %v4249
    %v4251 = vpop.f32.mrb[0].mxu0
    %v4252 = vadd.f32 %v4059, %v4251
    %v4253 = vpop.f32.mrb[0].mxu0
    %v4254 = vadd.f32 %v4061, %v4253
    %v4255 = vpop.f32.mrb[0].mxu0
    %v4256 = vadd.f32 %v4063, %v4255
    %4257 = vmatprep.mubr.bf16.mxu0 %v1065
    %4258 = vmatmul.mubr.bf16.gmra.mrb[0].mxu0 %v1064
    %v4259 = vpop.f32.mrb[0].mxu0
    %v4260 = vadd.f32 %v4067, %v4259
    %v4261 = vpop.f32.mrb[0].mxu0
    %v4262 = vadd.f32 %v4069, %v4261
    %v4263 = vpop.f32.mrb[0].mxu0
    %v4264 = vadd.f32 %v4071, %v4263
    %v4265 = vpop.f32.mrb[0].mxu0
    %v4266 = vadd.f32 %v4073, %v4265
    %4267 = vmatprep.mubr.bf16.mxu0 %v1073
    %4268 = vmatmul.mubr.bf16.gmra.mrb[0].mxu0 %v1072
    %v4269 = vpop.f32.mrb[0].mxu0
    %v4270 = vadd.f32 %v4077, %v4269
    %v4271 = vpop.f32.mrb[0].mxu0
    %v4272 = vadd.f32 %v4079, %v4271
    %v4273 = vpop.f32.mrb[0].mxu0
    %v4274 = vadd.f32 %v4081, %v4273
    %v4275 = vpop.f32.mrb[0].mxu0
    %v4276 = vadd.f32 %v4083, %v4275
    %4277 = vmatprep.mubr.bf16.mxu0 %v1081
    %4278 = vmatmul.mubr.bf16.gmra.mrb[0].mxu0 %v1080
    %v4279 = vpop.f32.mrb[0].mxu0
    %v4280 = vadd.f32 %v4087, %v4279
    %v4281 = vpop.f32.mrb[0].mxu0
    %v4282 = vadd.f32 %v4089, %v4281
    %v4283 = vpop.f32.mrb[0].mxu0
    %v4284 = vadd.f32 %v4091, %v4283
    %v4285 = vpop.f32.mrb[0].mxu0
    %v4286 = vadd.f32 %v4093, %v4285
    %4287 = vmatprep.mubr.bf16.mxu0 %v1089
    %4288 = vmatmul.mubr.bf16.gmra.mrb[0].mxu0 %v1088
    %v4289 = vpop.f32.mrb[0].mxu0
    %v4290 = vadd.f32 %v4097, %v4289
    %v4291 = vpop.f32.mrb[0].mxu0
    %v4292 = vadd.f32 %v4099, %v4291
    %v4293 = vpop.f32.mrb[0].mxu0
    %v4294 = vadd.f32 %v4101, %v4293
    %v4295 = vpop.f32.mrb[0].mxu0
    %v4296 = vadd.f32 %v4103, %v4295
    %4297 = vmatprep.mubr.bf16.mxu0 %v1097
    %4298 = vmatmul.mubr.bf16.gmra.mrb[0].mxu0 %v1096
    %v4299 = vpop.f32.mrb[0].mxu0
    %v4300 = vadd.f32 %v4107, %v4299
    %v4301 = vpop.f32.mrb[0].mxu0
    %v4302 = vadd.f32 %v4109, %v4301
    %v4303 = vpop.f32.mrb[0].mxu0
    %v4304 = vadd.f32 %v4111, %v4303
    %v4305 = vpop.f32.mrb[0].mxu0
    %v4306 = vadd.f32 %v4113, %v4305
    %4307 = vdwg.mxu0
    %4308 = vmatprep.subr.bf16.mxu0 %v2577
    %4309 = vmatpush1.bf16.msra.mxu0 %v2576
    %4310 = vmatprep.subr.bf16.mxu0 %v2583
    %4311 = vmatpush1.bf16.msra.mxu0 %v2582
    %4312 = vmatprep.subr.bf16.mxu0 %v2589
    %4313 = vmatpush1.bf16.msra.mxu0 %v2588
    %4314 = vmatprep.subr.bf16.mxu0 %v2595
    %4315 = vmatpush1.bf16.msra.mxu0 %v2594
    %4316 = vmatprep.subr.bf16.mxu0 %v2601
    %4317 = vmatpush1.bf16.msra.mxu0 %v2600
    %4318 = vmatprep.subr.bf16.mxu0 %v2607
    %4319 = vmatpush1.bf16.msra.mxu0 %v2606
    %4320 = vmatprep.subr.bf16.mxu0 %v2613
    %4321 = vmatpush1.bf16.msra.mxu0 %v2612
    %4322 = vmatprep.subr.bf16.mxu0 %v2619
    %4323 = vmatpush1.bf16.msra.mxu0 %v2618
    %4324 = vmatprep.subr.bf16.mxu0 %v2625
    %4325 = vmatpush1.bf16.msra.mxu0 %v2624
    %4326 = vmatprep.subr.bf16.mxu0 %v2631
    %4327 = vmatpush1.bf16.msra.mxu0 %v2630
    %4328 = vmatprep.subr.bf16.mxu0 %v2637
    %4329 = vmatpush1.bf16.msra.mxu0 %v2636
    %4330 = vmatprep.subr.bf16.mxu0 %v2643
    %4331 = vmatpush1.bf16.msra.mxu0 %v2642
    %4332 = vmatprep.subr.bf16.mxu0 %v2649
    %4333 = vmatpush1.bf16.msra.mxu0 %v2648
    %4334 = vmatprep.subr.bf16.mxu0 %v2655
    %4335 = vmatpush1.bf16.msra.mxu0 %v2654
    %4336 = vmatprep.subr.bf16.mxu0 %v2661
    %4337 = vmatpush1.bf16.msra.mxu0 %v2660
    %4338 = vmatprep.subr.bf16.mxu0 %v2667
    %4339 = vmatpush1.bf16.msra.mxu0 %v2666
    %4340 = vmatprep.mubr.bf16.mxu0 %v979
    %4341 = vmatmul.mubr.bf16.gmra.mrb[0].mxu0 %v978
    %v4342 = vpop.f32.mrb[0].mxu0
    %v4343 = vadd.f32 %v4150, %v4342
    %v4344 = vpop.f32.mrb[0].mxu0
    %v4345 = vadd.f32 %v4152, %v4344
    %v4346 = vpop.f32.mrb[0].mxu0
    %v4347 = vadd.f32 %v4154, %v4346
    %v4348 = vpop.f32.mrb[0].mxu0
    %v4349 = vadd.f32 %v4156, %v4348
    %4350 = vmatprep.mubr.bf16.mxu0 %v987
    %4351 = vmatmul.mubr.bf16.gmra.mrb[0].mxu0 %v986
    %v4352 = vpop.f32.mrb[0].mxu0
    %v4353 = vadd.f32 %v4160, %v4352
    %v4354 = vpop.f32.mrb[0].mxu0
    %v4355 = vadd.f32 %v4162, %v4354
    %v4356 = vpop.f32.mrb[0].mxu0
    %v4357 = vadd.f32 %v4164, %v4356
    %v4358 = vpop.f32.mrb[0].mxu0
    %v4359 = vadd.f32 %v4166, %v4358
    %4360 = vmatprep.mubr.bf16.mxu0 %v995
    %4361 = vmatmul.mubr.bf16.gmra.mrb[0].mxu0 %v994
    %v4362 = vpop.f32.mrb[0].mxu0
    %v4363 = vadd.f32 %v4170, %v4362
    %v4364 = vpop.f32.mrb[0].mxu0
    %v4365 = vadd.f32 %v4172, %v4364
    %v4366 = vpop.f32.mrb[0].mxu0
    %v4367 = vadd.f32 %v4174, %v4366
    %v4368 = vpop.f32.mrb[0].mxu0
    %v4369 = vadd.f32 %v4176, %v4368
    %4370 = vmatprep.mubr.bf16.mxu0 %v1003
    %4371 = vmatmul.mubr.bf16.gmra.mrb[0].mxu0 %v1002
    %v4372 = vpop.f32.mrb[0].mxu0
    %v4373 = vadd.f32 %v4180, %v4372
    %v4374 = vpop.f32.mrb[0].mxu0
    %v4375 = vadd.f32 %v4182, %v4374
    %v4376 = vpop.f32.mrb[0].mxu0
    %v4377 = vadd.f32 %v4184, %v4376
    %v4378 = vpop.f32.mrb[0].mxu0
    %v4379 = vadd.f32 %v4186, %v4378
    %4380 = vmatprep.mubr.bf16.mxu0 %v1011
    %4381 = vmatmul.mubr.bf16.gmra.mrb[0].mxu0 %v1010
    %v4382 = vpop.f32.mrb[0].mxu0
    %v4383 = vadd.f32 %v4190, %v4382
    %v4384 = vpop.f32.mrb[0].mxu0
    %v4385 = vadd.f32 %v4192, %v4384
    %v4386 = vpop.f32.mrb[0].mxu0
    %v4387 = vadd.f32 %v4194, %v4386
    %v4388 = vpop.f32.mrb[0].mxu0
    %v4389 = vadd.f32 %v4196, %v4388
    %4390 = vmatprep.mubr.bf16.mxu0 %v1019
    %4391 = vmatmul.mubr.bf16.gmra.mrb[0].mxu0 %v1018
    %v4392 = vpop.f32.mrb[0].mxu0
    %v4393 = vadd.f32 %v4200, %v4392
    %v4394 = vpop.f32.mrb[0].mxu0
    %v4395 = vadd.f32 %v4202, %v4394
    %v4396 = vpop.f32.mrb[0].mxu0
    %v4397 = vadd.f32 %v4204, %v4396
    %v4398 = vpop.f32.mrb[0].mxu0
    %v4399 = vadd.f32 %v4206, %v4398
    %4400 = vmatprep.mubr.bf16.mxu0 %v1027
    %4401 = vmatmul.mubr.bf16.gmra.mrb[0].mxu0 %v1026
    %v4402 = vpop.f32.mrb[0].mxu0
    %v4403 = vadd.f32 %v4210, %v4402
    %v4404 = vpop.f32.mrb[0].mxu0
    %v4405 = vadd.f32 %v4212, %v4404
    %v4406 = vpop.f32.mrb[0].mxu0
    %v4407 = vadd.f32 %v4214, %v4406
    %v4408 = vpop.f32.mrb[0].mxu0
    %v4409 = vadd.f32 %v4216, %v4408
    %4410 = vmatprep.mubr.bf16.mxu0 %v1035
    %4411 = vmatmul.mubr.bf16.gmra.mrb[0].mxu0 %v1034
    %v4412 = vpop.f32.mrb[0].mxu0
    %v4413 = vadd.f32 %v4220, %v4412
    %v4414 = vpop.f32.mrb[0].mxu0
    %v4415 = vadd.f32 %v4222, %v4414
    %v4416 = vpop.f32.mrb[0].mxu0
    %v4417 = vadd.f32 %v4224, %v4416
    %v4418 = vpop.f32.mrb[0].mxu0
    %v4419 = vadd.f32 %v4226, %v4418
    %4420 = vmatprep.mubr.bf16.mxu0 %v1043
    %4421 = vmatmul.mubr.bf16.gmra.mrb[0].mxu0 %v1042
    %v4422 = vpop.f32.mrb[0].mxu0
    %v4423 = vadd.f32 %v4230, %v4422
    %v4424 = vpop.f32.mrb[0].mxu0
    %v4425 = vadd.f32 %v4232, %v4424
    %v4426 = vpop.f32.mrb[0].mxu0
    %v4427 = vadd.f32 %v4234, %v4426
    %v4428 = vpop.f32.mrb[0].mxu0
    %v4429 = vadd.f32 %v4236, %v4428
    %4430 = vmatprep.mubr.bf16.mxu0 %v1051
    %4431 = vmatmul.mubr.bf16.gmra.mrb[0].mxu0 %v1050
    %v4432 = vpop.f32.mrb[0].mxu0
    %v4433 = vadd.f32 %v4240, %v4432
    %v4434 = vpop.f32.mrb[0].mxu0
    %v4435 = vadd.f32 %v4242, %v4434
    %v4436 = vpop.f32.mrb[0].mxu0
    %v4437 = vadd.f32 %v4244, %v4436
    %v4438 = vpop.f32.mrb[0].mxu0
    %v4439 = vadd.f32 %v4246, %v4438
    %4440 = vmatprep.mubr.bf16.mxu0 %v1059
    %4441 = vmatmul.mubr.bf16.gmra.mrb[0].mxu0 %v1058
    %v4442 = vpop.f32.mrb[0].mxu0
    %v4443 = vadd.f32 %v4250, %v4442
    %v4444 = vpop.f32.mrb[0].mxu0
    %v4445 = vadd.f32 %v4252, %v4444
    %v4446 = vpop.f32.mrb[0].mxu0
    %v4447 = vadd.f32 %v4254, %v4446
    %v4448 = vpop.f32.mrb[0].mxu0
    %v4449 = vadd.f32 %v4256, %v4448
    %4450 = vmatprep.mubr.bf16.mxu0 %v1067
    %4451 = vmatmul.mubr.bf16.gmra.mrb[0].mxu0 %v1066
    %v4452 = vpop.f32.mrb[0].mxu0
    %v4453 = vadd.f32 %v4260, %v4452
    %v4454 = vpop.f32.mrb[0].mxu0
    %v4455 = vadd.f32 %v4262, %v4454
    %v4456 = vpop.f32.mrb[0].mxu0
    %v4457 = vadd.f32 %v4264, %v4456
    %v4458 = vpop.f32.mrb[0].mxu0
    %v4459 = vadd.f32 %v4266, %v4458
    %4460 = vmatprep.mubr.bf16.mxu0 %v1075
    %4461 = vmatmul.mubr.bf16.gmra.mrb[0].mxu0 %v1074
    %v4462 = vpop.f32.mrb[0].mxu0
    %v4463 = vadd.f32 %v4270, %v4462
    %v4464 = vpop.f32.mrb[0].mxu0
    %v4465 = vadd.f32 %v4272, %v4464
    %v4466 = vpop.f32.mrb[0].mxu0
    %v4467 = vadd.f32 %v4274, %v4466
    %v4468 = vpop.f32.mrb[0].mxu0
    %v4469 = vadd.f32 %v4276, %v4468
    %4470 = vmatprep.mubr.bf16.mxu0 %v1083
    %4471 = vmatmul.mubr.bf16.gmra.mrb[0].mxu0 %v1082
    %v4472 = vpop.f32.mrb[0].mxu0
    %v4473 = vadd.f32 %v4280, %v4472
    %v4474 = vpop.f32.mrb[0].mxu0
    %v4475 = vadd.f32 %v4282, %v4474
    %v4476 = vpop.f32.mrb[0].mxu0
    %v4477 = vadd.f32 %v4284, %v4476
    %v4478 = vpop.f32.mrb[0].mxu0
    %v4479 = vadd.f32 %v4286, %v4478
    %4480 = vmatprep.mubr.bf16.mxu0 %v1091
    %4481 = vmatmul.mubr.bf16.gmra.mrb[0].mxu0 %v1090
    %v4482 = vpop.f32.mrb[0].mxu0
    %v4483 = vadd.f32 %v4290, %v4482
    %v4484 = vpop.f32.mrb[0].mxu0
    %v4485 = vadd.f32 %v4292, %v4484
    %v4486 = vpop.f32.mrb[0].mxu0
    %v4487 = vadd.f32 %v4294, %v4486
    %v4488 = vpop.f32.mrb[0].mxu0
    %v4489 = vadd.f32 %v4296, %v4488
    %4490 = vmatprep.mubr.bf16.mxu0 %v1099
    %4491 = vmatmul.mubr.bf16.gmra.mrb[0].mxu0 %v1098
    %v4492 = vpop.f32.mrb[0].mxu0
    %v4493 = vadd.f32 %v4300, %v4492
    %v4494 = vpop.f32.mrb[0].mxu0
    %v4495 = vadd.f32 %v4302, %v4494
    %v4496 = vpop.f32.mrb[0].mxu0
    %v4497 = vadd.f32 %v4304, %v4496
    %v4498 = vpop.f32.mrb[0].mxu0
    %v4499 = vadd.f32 %v4306, %v4498
    %4500 = vdwg.mxu0
    %4501 = vmatprep.subr.bf16.mxu0 %v2673
    %4502 = vmatpush1.bf16.msra.mxu0 %v2672
    %4503 = vmatprep.subr.bf16.mxu0 %v2679
    %4504 = vmatpush1.bf16.msra.mxu0 %v2678
    %4505 = vmatprep.subr.bf16.mxu0 %v2685
    %4506 = vmatpush1.bf16.msra.mxu0 %v2684
    %4507 = vmatprep.subr.bf16.mxu0 %v2691
    %4508 = vmatpush1.bf16.msra.mxu0 %v2690
    %4509 = vmatprep.subr.bf16.mxu0 %v2697
    %4510 = vmatpush1.bf16.msra.mxu0 %v2696
    %4511 = vmatprep.subr.bf16.mxu0 %v2703
    %4512 = vmatpush1.bf16.msra.mxu0 %v2702
    %4513 = vmatprep.subr.bf16.mxu0 %v2709
    %4514 = vmatpush1.bf16.msra.mxu0 %v2708
    %4515 = vmatprep.subr.bf16.mxu0 %v2715
    %4516 = vmatpush1.bf16.msra.mxu0 %v2714
    %4517 = vmatprep.subr.bf16.mxu0 %v2721
    %4518 = vmatpush1.bf16.msra.mxu0 %v2720
    %4519 = vmatprep.subr.bf16.mxu0 %v2727
    %4520 = vmatpush1.bf16.msra.mxu0 %v2726
    %4521 = vmatprep.subr.bf16.mxu0 %v2733
    %4522 = vmatpush1.bf16.msra.mxu0 %v2732
    %4523 = vmatprep.subr.bf16.mxu0 %v2739
    %4524 = vmatpush1.bf16.msra.mxu0 %v2738
    %4525 = vmatprep.subr.bf16.mxu0 %v2745
    %4526 = vmatpush1.bf16.msra.mxu0 %v2744
    %4527 = vmatprep.subr.bf16.mxu0 %v2751
    %4528 = vmatpush1.bf16.msra.mxu0 %v2750
    %4529 = vmatprep.subr.bf16.mxu0 %v2757
    %4530 = vmatpush1.bf16.msra.mxu0 %v2756
    %4531 = vmatprep.subr.bf16.mxu0 %v2763
    %4532 = vmatpush1.bf16.msra.mxu0 %v2762
    %4533 = vmatprep.mubr.bf16.mxu0 %v981
    %4534 = vmatmul.mubr.bf16.gmra.mrb[0].mxu0 %v980
    %v4535 = vpop.f32.mrb[0].mxu0
    %v4536 = vadd.f32 %v4343, %v4535
    %v4537 = vpop.f32.mrb[0].mxu0
    %v4538 = vadd.f32 %v4345, %v4537
    %v4539 = vpop.f32.mrb[0].mxu0
    %v4540 = vadd.f32 %v4347, %v4539
    %v4541 = vpop.f32.mrb[0].mxu0
    %v4542 = vadd.f32 %v4349, %v4541
    %4543 = vmatprep.mubr.bf16.mxu0 %v989
    %4544 = vmatmul.mubr.bf16.gmra.mrb[0].mxu0 %v988
    %v4545 = vpop.f32.mrb[0].mxu0
    %v4546 = vadd.f32 %v4353, %v4545
    %v4547 = vpop.f32.mrb[0].mxu0
    %v4548 = vadd.f32 %v4355, %v4547
    %v4549 = vpop.f32.mrb[0].mxu0
    %v4550 = vadd.f32 %v4357, %v4549
    %v4551 = vpop.f32.mrb[0].mxu0
    %v4552 = vadd.f32 %v4359, %v4551
    %4553 = vmatprep.mubr.bf16.mxu0 %v997
    %4554 = vmatmul.mubr.bf16.gmra.mrb[0].mxu0 %v996
    %v4555 = vpop.f32.mrb[0].mxu0
    %v4556 = vadd.f32 %v4363, %v4555
    %v4557 = vpop.f32.mrb[0].mxu0
    %v4558 = vadd.f32 %v4365, %v4557
    %v4559 = vpop.f32.mrb[0].mxu0
    %v4560 = vadd.f32 %v4367, %v4559
    %v4561 = vpop.f32.mrb[0].mxu0
    %v4562 = vadd.f32 %v4369, %v4561
    %4563 = vmatprep.mubr.bf16.mxu0 %v1005
    %4564 = vmatmul.mubr.bf16.gmra.mrb[0].mxu0 %v1004
    %v4565 = vpop.f32.mrb[0].mxu0
    %v4566 = vadd.f32 %v4373, %v4565
    %v4567 = vpop.f32.mrb[0].mxu0
    %v4568 = vadd.f32 %v4375, %v4567
    %v4569 = vpop.f32.mrb[0].mxu0
    %v4570 = vadd.f32 %v4377, %v4569
    %v4571 = vpop.f32.mrb[0].mxu0
    %v4572 = vadd.f32 %v4379, %v4571
    %4573 = vmatprep.mubr.bf16.mxu0 %v1013
    %4574 = vmatmul.mubr.bf16.gmra.mrb[0].mxu0 %v1012
    %v4575 = vpop.f32.mrb[0].mxu0
    %v4576 = vadd.f32 %v4383, %v4575
    %v4577 = vpop.f32.mrb[0].mxu0
    %v4578 = vadd.f32 %v4385, %v4577
    %v4579 = vpop.f32.mrb[0].mxu0
    %v4580 = vadd.f32 %v4387, %v4579
    %v4581 = vpop.f32.mrb[0].mxu0
    %v4582 = vadd.f32 %v4389, %v4581
    %4583 = vmatprep.mubr.bf16.mxu0 %v1021
    %4584 = vmatmul.mubr.bf16.gmra.mrb[0].mxu0 %v1020
    %v4585 = vpop.f32.mrb[0].mxu0
    %v4586 = vadd.f32 %v4393, %v4585
    %v4587 = vpop.f32.mrb[0].mxu0
    %v4588 = vadd.f32 %v4395, %v4587
    %v4589 = vpop.f32.mrb[0].mxu0
    %v4590 = vadd.f32 %v4397, %v4589
    %v4591 = vpop.f32.mrb[0].mxu0
    %v4592 = vadd.f32 %v4399, %v4591
    %4593 = vmatprep.mubr.bf16.mxu0 %v1029
    %4594 = vmatmul.mubr.bf16.gmra.mrb[0].mxu0 %v1028
    %v4595 = vpop.f32.mrb[0].mxu0
    %v4596 = vadd.f32 %v4403, %v4595
    %v4597 = vpop.f32.mrb[0].mxu0
    %v4598 = vadd.f32 %v4405, %v4597
    %v4599 = vpop.f32.mrb[0].mxu0
    %v4600 = vadd.f32 %v4407, %v4599
    %v4601 = vpop.f32.mrb[0].mxu0
    %v4602 = vadd.f32 %v4409, %v4601
    %4603 = vmatprep.mubr.bf16.mxu0 %v1037
    %4604 = vmatmul.mubr.bf16.gmra.mrb[0].mxu0 %v1036
    %v4605 = vpop.f32.mrb[0].mxu0
    %v4606 = vadd.f32 %v4413, %v4605
    %v4607 = vpop.f32.mrb[0].mxu0
    %v4608 = vadd.f32 %v4415, %v4607
    %v4609 = vpop.f32.mrb[0].mxu0
    %v4610 = vadd.f32 %v4417, %v4609
    %v4611 = vpop.f32.mrb[0].mxu0
    %v4612 = vadd.f32 %v4419, %v4611
    %4613 = vmatprep.mubr.bf16.mxu0 %v1045
    %4614 = vmatmul.mubr.bf16.gmra.mrb[0].mxu0 %v1044
    %v4615 = vpop.f32.mrb[0].mxu0
    %v4616 = vadd.f32 %v4423, %v4615
    %v4617 = vpop.f32.mrb[0].mxu0
    %v4618 = vadd.f32 %v4425, %v4617
    %v4619 = vpop.f32.mrb[0].mxu0
    %v4620 = vadd.f32 %v4427, %v4619
    %v4621 = vpop.f32.mrb[0].mxu0
    %v4622 = vadd.f32 %v4429, %v4621
    %4623 = vmatprep.mubr.bf16.mxu0 %v1053
    %4624 = vmatmul.mubr.bf16.gmra.mrb[0].mxu0 %v1052
    %v4625 = vpop.f32.mrb[0].mxu0
    %v4626 = vadd.f32 %v4433, %v4625
    %v4627 = vpop.f32.mrb[0].mxu0
    %v4628 = vadd.f32 %v4435, %v4627
    %v4629 = vpop.f32.mrb[0].mxu0
    %v4630 = vadd.f32 %v4437, %v4629
    %v4631 = vpop.f32.mrb[0].mxu0
    %v4632 = vadd.f32 %v4439, %v4631
    %4633 = vmatprep.mubr.bf16.mxu0 %v1061
    %4634 = vmatmul.mubr.bf16.gmra.mrb[0].mxu0 %v1060
    %v4635 = vpop.f32.mrb[0].mxu0
    %v4636 = vadd.f32 %v4443, %v4635
    %v4637 = vpop.f32.mrb[0].mxu0
    %v4638 = vadd.f32 %v4445, %v4637
    %v4639 = vpop.f32.mrb[0].mxu0
    %v4640 = vadd.f32 %v4447, %v4639
    %v4641 = vpop.f32.mrb[0].mxu0
    %v4642 = vadd.f32 %v4449, %v4641
    %4643 = vmatprep.mubr.bf16.mxu0 %v1069
    %4644 = vmatmul.mubr.bf16.gmra.mrb[0].mxu0 %v1068
    %v4645 = vpop.f32.mrb[0].mxu0
    %v4646 = vadd.f32 %v4453, %v4645
    %v4647 = vpop.f32.mrb[0].mxu0
    %v4648 = vadd.f32 %v4455, %v4647
    %v4649 = vpop.f32.mrb[0].mxu0
    %v4650 = vadd.f32 %v4457, %v4649
    %v4651 = vpop.f32.mrb[0].mxu0
    %v4652 = vadd.f32 %v4459, %v4651
    %4653 = vmatprep.mubr.bf16.mxu0 %v1077
    %4654 = vmatmul.mubr.bf16.gmra.mrb[0].mxu0 %v1076
    %v4655 = vpop.f32.mrb[0].mxu0
    %v4656 = vadd.f32 %v4463, %v4655
    %v4657 = vpop.f32.mrb[0].mxu0
    %v4658 = vadd.f32 %v4465, %v4657
    %v4659 = vpop.f32.mrb[0].mxu0
    %v4660 = vadd.f32 %v4467, %v4659
    %v4661 = vpop.f32.mrb[0].mxu0
    %v4662 = vadd.f32 %v4469, %v4661
    %4663 = vmatprep.mubr.bf16.mxu0 %v1085
    %4664 = vmatmul.mubr.bf16.gmra.mrb[0].mxu0 %v1084
    %v4665 = vpop.f32.mrb[0].mxu0
    %v4666 = vadd.f32 %v4473, %v4665
    %v4667 = vpop.f32.mrb[0].mxu0
    %v4668 = vadd.f32 %v4475, %v4667
    %v4669 = vpop.f32.mrb[0].mxu0
    %v4670 = vadd.f32 %v4477, %v4669
    %v4671 = vpop.f32.mrb[0].mxu0
    %v4672 = vadd.f32 %v4479, %v4671
    %4673 = vmatprep.mubr.bf16.mxu0 %v1093
    %4674 = vmatmul.mubr.bf16.gmra.mrb[0].mxu0 %v1092
    %v4675 = vpop.f32.mrb[0].mxu0
    %v4676 = vadd.f32 %v4483, %v4675
    %v4677 = vpop.f32.mrb[0].mxu0
    %v4678 = vadd.f32 %v4485, %v4677
    %v4679 = vpop.f32.mrb[0].mxu0
    %v4680 = vadd.f32 %v4487, %v4679
    %v4681 = vpop.f32.mrb[0].mxu0
    %v4682 = vadd.f32 %v4489, %v4681
    %4683 = vmatprep.mubr.bf16.mxu0 %v1101
    %4684 = vmatmul.mubr.bf16.gmra.mrb[0].mxu0 %v1100
    %v4685 = vpop.f32.mrb[0].mxu0
    %v4686 = vadd.f32 %v4493, %v4685
    %v4687 = vpop.f32.mrb[0].mxu0
    %v4688 = vadd.f32 %v4495, %v4687
    %v4689 = vpop.f32.mrb[0].mxu0
    %v4690 = vadd.f32 %v4497, %v4689
    %v4691 = vpop.f32.mrb[0].mxu0
    %v4692 = vadd.f32 %v4499, %v4691
    %4693 = vdwg.mxu0
    %4694 = vmatprep.subr.bf16.mxu0 %v2387
    %4695 = vmatpush1.bf16.msra.mxu0 %v2386
    %4696 = vmatprep.subr.bf16.mxu0 %v2393
    %4697 = vmatpush1.bf16.msra.mxu0 %v2392
    %4698 = vmatprep.subr.bf16.mxu0 %v2399
    %4699 = vmatpush1.bf16.msra.mxu0 %v2398
    %4700 = vmatprep.subr.bf16.mxu0 %v2405
    %4701 = vmatpush1.bf16.msra.mxu0 %v2404
    %4702 = vmatprep.subr.bf16.mxu0 %v2411
    %4703 = vmatpush1.bf16.msra.mxu0 %v2410
    %4704 = vmatprep.subr.bf16.mxu0 %v2417
    %4705 = vmatpush1.bf16.msra.mxu0 %v2416
    %4706 = vmatprep.subr.bf16.mxu0 %v2423
    %4707 = vmatpush1.bf16.msra.mxu0 %v2422
    %4708 = vmatprep.subr.bf16.mxu0 %v2429
    %4709 = vmatpush1.bf16.msra.mxu0 %v2428
    %4710 = vmatprep.subr.bf16.mxu0 %v2435
    %4711 = vmatpush1.bf16.msra.mxu0 %v2434
    %4712 = vmatprep.subr.bf16.mxu0 %v2441
    %4713 = vmatpush1.bf16.msra.mxu0 %v2440
    %4714 = vmatprep.subr.bf16.mxu0 %v2447
    %4715 = vmatpush1.bf16.msra.mxu0 %v2446
    %4716 = vmatprep.subr.bf16.mxu0 %v2453
    %4717 = vmatpush1.bf16.msra.mxu0 %v2452
    %4718 = vmatprep.subr.bf16.mxu0 %v2459
    %4719 = vmatpush1.bf16.msra.mxu0 %v2458
    %4720 = vmatprep.subr.bf16.mxu0 %v2465
    %4721 = vmatpush1.bf16.msra.mxu0 %v2464
    %4722 = vmatprep.subr.bf16.mxu0 %v2471
    %4723 = vmatpush1.bf16.msra.mxu0 %v2470
    %4724 = vmatprep.subr.bf16.mxu0 %v2477
    %4725 = vmatpush1.bf16.msra.mxu0 %v2476
    %4726 = vmatprep.mubr.bf16.mxu0 %v975
    %4727 = vmatmul.mubr.bf16.gmra.mrb[0].mxu0 %v974
    %v4728 = vpop.f32.mrb[0].mxu0
    %v4729 = vadd.f32 %v579, %v4728
    %v4730 = vpop.f32.mrb[0].mxu0
    %v4731 = vadd.f32 %v583, %v4730
    %v4732 = vpop.f32.mrb[0].mxu0
    %v4733 = vadd.f32 %v579, %v4732
    %v4734 = vpop.f32.mrb[0].mxu0
    %v4735 = vadd.f32 %v583, %v4734
    %4736 = vmatprep.mubr.bf16.mxu0 %v983
    %4737 = vmatmul.mubr.bf16.gmra.mrb[0].mxu0 %v982
    %v4738 = vpop.f32.mrb[0].mxu0
    %v4739 = vadd.f32 %v579, %v4738
    %v4740 = vpop.f32.mrb[0].mxu0
    %v4741 = vadd.f32 %v583, %v4740
    %v4742 = vpop.f32.mrb[0].mxu0
    %v4743 = vadd.f32 %v579, %v4742
    %v4744 = vpop.f32.mrb[0].mxu0
    %v4745 = vadd.f32 %v583, %v4744
    %4746 = vmatprep.mubr.bf16.mxu0 %v991
    %4747 = vmatmul.mubr.bf16.gmra.mrb[0].mxu0 %v990
    %v4748 = vpop.f32.mrb[0].mxu0
    %v4749 = vadd.f32 %v579, %v4748
    %v4750 = vpop.f32.mrb[0].mxu0
    %v4751 = vadd.f32 %v583, %v4750
    %v4752 = vpop.f32.mrb[0].mxu0
    %v4753 = vadd.f32 %v579, %v4752
    %v4754 = vpop.f32.mrb[0].mxu0
    %v4755 = vadd.f32 %v583, %v4754
    %4756 = vmatprep.mubr.bf16.mxu0 %v999
    %4757 = vmatmul.mubr.bf16.gmra.mrb[0].mxu0 %v998
    %v4758 = vpop.f32.mrb[0].mxu0
    %v4759 = vadd.f32 %v579, %v4758
    %v4760 = vpop.f32.mrb[0].mxu0
    %v4761 = vadd.f32 %v583, %v4760
    %v4762 = vpop.f32.mrb[0].mxu0
    %v4763 = vadd.f32 %v579, %v4762
    %v4764 = vpop.f32.mrb[0].mxu0
    %v4765 = vadd.f32 %v583, %v4764
    %4766 = vmatprep.mubr.bf16.mxu0 %v1007
    %4767 = vmatmul.mubr.bf16.gmra.mrb[0].mxu0 %v1006
    %v4768 = vpop.f32.mrb[0].mxu0
    %v4769 = vadd.f32 %v579, %v4768
    %v4770 = vpop.f32.mrb[0].mxu0
    %v4771 = vadd.f32 %v583, %v4770
    %v4772 = vpop.f32.mrb[0].mxu0
    %v4773 = vadd.f32 %v579, %v4772
    %v4774 = vpop.f32.mrb[0].mxu0
    %v4775 = vadd.f32 %v583, %v4774
    %4776 = vmatprep.mubr.bf16.mxu0 %v1015
    %4777 = vmatmul.mubr.bf16.gmra.mrb[0].mxu0 %v1014
    %v4778 = vpop.f32.mrb[0].mxu0
    %v4779 = vadd.f32 %v579, %v4778
    %v4780 = vpop.f32.mrb[0].mxu0
    %v4781 = vadd.f32 %v583, %v4780
    %v4782 = vpop.f32.mrb[0].mxu0
    %v4783 = vadd.f32 %v579, %v4782
    %v4784 = vpop.f32.mrb[0].mxu0
    %v4785 = vadd.f32 %v583, %v4784
    %4786 = vmatprep.mubr.bf16.mxu0 %v1023
    %4787 = vmatmul.mubr.bf16.gmra.mrb[0].mxu0 %v1022
    %v4788 = vpop.f32.mrb[0].mxu0
    %v4789 = vadd.f32 %v579, %v4788
    %v4790 = vpop.f32.mrb[0].mxu0
    %v4791 = vadd.f32 %v583, %v4790
    %v4792 = vpop.f32.mrb[0].mxu0
    %v4793 = vadd.f32 %v579, %v4792
    %v4794 = vpop.f32.mrb[0].mxu0
    %v4795 = vadd.f32 %v583, %v4794
    %4796 = vmatprep.mubr.bf16.mxu0 %v1031
    %4797 = vmatmul.mubr.bf16.gmra.mrb[0].mxu0 %v1030
    %v4798 = vpop.f32.mrb[0].mxu0
    %v4799 = vadd.f32 %v579, %v4798
    %v4800 = vpop.f32.mrb[0].mxu0
    %v4801 = vadd.f32 %v583, %v4800
    %v4802 = vpop.f32.mrb[0].mxu0
    %v4803 = vadd.f32 %v579, %v4802
    %v4804 = vpop.f32.mrb[0].mxu0
    %v4805 = vadd.f32 %v583, %v4804
    %4806 = vmatprep.mubr.bf16.mxu0 %v1039
    %4807 = vmatmul.mubr.bf16.gmra.mrb[0].mxu0 %v1038
    %v4808 = vpop.f32.mrb[0].mxu0
    %v4809 = vadd.f32 %v579, %v4808
    %v4810 = vpop.f32.mrb[0].mxu0
    %v4811 = vadd.f32 %v583, %v4810
    %v4812 = vpop.f32.mrb[0].mxu0
    %v4813 = vadd.f32 %v579, %v4812
    %v4814 = vpop.f32.mrb[0].mxu0
    %v4815 = vadd.f32 %v583, %v4814
    %4816 = vmatprep.mubr.bf16.mxu0 %v1047
    %4817 = vmatmul.mubr.bf16.gmra.mrb[0].mxu0 %v1046
    %v4818 = vpop.f32.mrb[0].mxu0
    %v4819 = vadd.f32 %v579, %v4818
    %v4820 = vpop.f32.mrb[0].mxu0
    %v4821 = vadd.f32 %v583, %v4820
    %v4822 = vpop.f32.mrb[0].mxu0
    %v4823 = vadd.f32 %v579, %v4822
    %v4824 = vpop.f32.mrb[0].mxu0
    %v4825 = vadd.f32 %v583, %v4824
    %4826 = vmatprep.mubr.bf16.mxu0 %v1055
    %4827 = vmatmul.mubr.bf16.gmra.mrb[0].mxu0 %v1054
    %v4828 = vpop.f32.mrb[0].mxu0
    %v4829 = vadd.f32 %v579, %v4828
    %v4830 = vpop.f32.mrb[0].mxu0
    %v4831 = vadd.f32 %v583, %v4830
    %v4832 = vpop.f32.mrb[0].mxu0
    %v4833 = vadd.f32 %v579, %v4832
    %v4834 = vpop.f32.mrb[0].mxu0
    %v4835 = vadd.f32 %v583, %v4834
    %4836 = vmatprep.mubr.bf16.mxu0 %v1063
    %4837 = vmatmul.mubr.bf16.gmra.mrb[0].mxu0 %v1062
    %v4838 = vpop.f32.mrb[0].mxu0
    %v4839 = vadd.f32 %v579, %v4838
    %v4840 = vpop.f32.mrb[0].mxu0
    %v4841 = vadd.f32 %v583, %v4840
    %v4842 = vpop.f32.mrb[0].mxu0
    %v4843 = vadd.f32 %v579, %v4842
    %v4844 = vpop.f32.mrb[0].mxu0
    %v4845 = vadd.f32 %v583, %v4844
    %4846 = vmatprep.mubr.bf16.mxu0 %v1071
    %4847 = vmatmul.mubr.bf16.gmra.mrb[0].mxu0 %v1070
    %v4848 = vpop.f32.mrb[0].mxu0
    %v4849 = vadd.f32 %v579, %v4848
    %v4850 = vpop.f32.mrb[0].mxu0
    %v4851 = vadd.f32 %v583, %v4850
    %v4852 = vpop.f32.mrb[0].mxu0
    %v4853 = vadd.f32 %v579, %v4852
    %v4854 = vpop.f32.mrb[0].mxu0
    %v4855 = vadd.f32 %v583, %v4854
    %4856 = vmatprep.mubr.bf16.mxu0 %v1079
    %4857 = vmatmul.mubr.bf16.gmra.mrb[0].mxu0 %v1078
    %v4858 = vpop.f32.mrb[0].mxu0
    %v4859 = vadd.f32 %v579, %v4858
    %v4860 = vpop.f32.mrb[0].mxu0
    %v4861 = vadd.f32 %v583, %v4860
    %v4862 = vpop.f32.mrb[0].mxu0
    %v4863 = vadd.f32 %v579, %v4862
    %v4864 = vpop.f32.mrb[0].mxu0
    %v4865 = vadd.f32 %v583, %v4864
    %4866 = vmatprep.mubr.bf16.mxu0 %v1087
    %4867 = vmatmul.mubr.bf16.gmra.mrb[0].mxu0 %v1086
    %v4868 = vpop.f32.mrb[0].mxu0
    %v4869 = vadd.f32 %v579, %v4868
    %v4870 = vpop.f32.mrb[0].mxu0
    %v4871 = vadd.f32 %v583, %v4870
    %v4872 = vpop.f32.mrb[0].mxu0
    %v4873 = vadd.f32 %v579, %v4872
    %v4874 = vpop.f32.mrb[0].mxu0
    %v4875 = vadd.f32 %v583, %v4874
    %4876 = vmatprep.mubr.bf16.mxu0 %v1095
    %4877 = vmatmul.mubr.bf16.gmra.mrb[0].mxu0 %v1094
    %v4878 = vpop.f32.mrb[0].mxu0
    %v4879 = vadd.f32 %v579, %v4878
    %v4880 = vpop.f32.mrb[0].mxu0
    %v4881 = vadd.f32 %v583, %v4880
    %v4882 = vpop.f32.mrb[0].mxu0
    %v4883 = vadd.f32 %v579, %v4882
    %v4884 = vpop.f32.mrb[0].mxu0
    %v4885 = vadd.f32 %v583, %v4884
    %4886 = vdwg.mxu0
    %4887 = vmatprep.subr.bf16.mxu0 %v2483
    %4888 = vmatpush1.bf16.msra.mxu0 %v2482
    %4889 = vmatprep.subr.bf16.mxu0 %v2489
    %4890 = vmatpush1.bf16.msra.mxu0 %v2488
    %4891 = vmatprep.subr.bf16.mxu0 %v2495
    %4892 = vmatpush1.bf16.msra.mxu0 %v2494
    %4893 = vmatprep.subr.bf16.mxu0 %v2501
    %4894 = vmatpush1.bf16.msra.mxu0 %v2500
    %4895 = vmatprep.subr.bf16.mxu0 %v2507
    %4896 = vmatpush1.bf16.msra.mxu0 %v2506
    %4897 = vmatprep.subr.bf16.mxu0 %v2513
    %4898 = vmatpush1.bf16.msra.mxu0 %v2512
    %4899 = vmatprep.subr.bf16.mxu0 %v2519
    %4900 = vmatpush1.bf16.msra.mxu0 %v2518
    %4901 = vmatprep.subr.bf16.mxu0 %v2525
    %4902 = vmatpush1.bf16.msra.mxu0 %v2524
    %4903 = vmatprep.subr.bf16.mxu0 %v2531
    %4904 = vmatpush1.bf16.msra.mxu0 %v2530
    %4905 = vmatprep.subr.bf16.mxu0 %v2537
    %4906 = vmatpush1.bf16.msra.mxu0 %v2536
    %4907 = vmatprep.subr.bf16.mxu0 %v2543
    %4908 = vmatpush1.bf16.msra.mxu0 %v2542
    %4909 = vmatprep.subr.bf16.mxu0 %v2549
    %4910 = vmatpush1.bf16.msra.mxu0 %v2548
    %4911 = vmatprep.subr.bf16.mxu0 %v2555
    %4912 = vmatpush1.bf16.msra.mxu0 %v2554
    %4913 = vmatprep.subr.bf16.mxu0 %v2561
    %4914 = vmatpush1.bf16.msra.mxu0 %v2560
    %4915 = vmatprep.subr.bf16.mxu0 %v2567
    %4916 = vmatpush1.bf16.msra.mxu0 %v2566
    %4917 = vmatprep.subr.bf16.mxu0 %v2573
    %4918 = vmatpush1.bf16.msra.mxu0 %v2572
    %4919 = vmatprep.mubr.bf16.mxu0 %v977
    %4920 = vmatmul.mubr.bf16.gmra.mrb[0].mxu0 %v976
    %v4921 = vpop.f32.mrb[0].mxu0
    %v4922 = vadd.f32 %v4729, %v4921
    %v4923 = vpop.f32.mrb[0].mxu0
    %v4924 = vadd.f32 %v4731, %v4923
    %v4925 = vpop.f32.mrb[0].mxu0
    %v4926 = vadd.f32 %v4733, %v4925
    %v4927 = vpop.f32.mrb[0].mxu0
    %v4928 = vadd.f32 %v4735, %v4927
    %4929 = vmatprep.mubr.bf16.mxu0 %v985
    %4930 = vmatmul.mubr.bf16.gmra.mrb[0].mxu0 %v984
    %v4931 = vpop.f32.mrb[0].mxu0
    %v4932 = vadd.f32 %v4739, %v4931
    %v4933 = vpop.f32.mrb[0].mxu0
    %v4934 = vadd.f32 %v4741, %v4933
    %v4935 = vpop.f32.mrb[0].mxu0
    %v4936 = vadd.f32 %v4743, %v4935
    %v4937 = vpop.f32.mrb[0].mxu0
    %v4938 = vadd.f32 %v4745, %v4937
    %4939 = vmatprep.mubr.bf16.mxu0 %v993
    %4940 = vmatmul.mubr.bf16.gmra.mrb[0].mxu0 %v992
    %v4941 = vpop.f32.mrb[0].mxu0
    %v4942 = vadd.f32 %v4749, %v4941
    %v4943 = vpop.f32.mrb[0].mxu0
    %v4944 = vadd.f32 %v4751, %v4943
    %v4945 = vpop.f32.mrb[0].mxu0
    %v4946 = vadd.f32 %v4753, %v4945
    %v4947 = vpop.f32.mrb[0].mxu0
    %v4948 = vadd.f32 %v4755, %v4947
    %4949 = vmatprep.mubr.bf16.mxu0 %v1001
    %4950 = vmatmul.mubr.bf16.gmra.mrb[0].mxu0 %v1000
    %v4951 = vpop.f32.mrb[0].mxu0
    %v4952 = vadd.f32 %v4759, %v4951
    %v4953 = vpop.f32.mrb[0].mxu0
    %v4954 = vadd.f32 %v4761, %v4953
    %v4955 = vpop.f32.mrb[0].mxu0
    %v4956 = vadd.f32 %v4763, %v4955
    %v4957 = vpop.f32.mrb[0].mxu0
    %v4958 = vadd.f32 %v4765, %v4957
    %4959 = vmatprep.mubr.bf16.mxu0 %v1009
    %4960 = vmatmul.mubr.bf16.gmra.mrb[0].mxu0 %v1008
    %v4961 = vpop.f32.mrb[0].mxu0
    %v4962 = vadd.f32 %v4769, %v4961
    %v4963 = vpop.f32.mrb[0].mxu0
    %v4964 = vadd.f32 %v4771, %v4963
    %v4965 = vpop.f32.mrb[0].mxu0
    %v4966 = vadd.f32 %v4773, %v4965
    %v4967 = vpop.f32.mrb[0].mxu0
    %v4968 = vadd.f32 %v4775, %v4967
    %4969 = vmatprep.mubr.bf16.mxu0 %v1017
    %4970 = vmatmul.mubr.bf16.gmra.mrb[0].mxu0 %v1016
    %v4971 = vpop.f32.mrb[0].mxu0
    %v4972 = vadd.f32 %v4779, %v4971
    %v4973 = vpop.f32.mrb[0].mxu0
    %v4974 = vadd.f32 %v4781, %v4973
    %v4975 = vpop.f32.mrb[0].mxu0
    %v4976 = vadd.f32 %v4783, %v4975
    %v4977 = vpop.f32.mrb[0].mxu0
    %v4978 = vadd.f32 %v4785, %v4977
    %4979 = vmatprep.mubr.bf16.mxu0 %v1025
    %4980 = vmatmul.mubr.bf16.gmra.mrb[0].mxu0 %v1024
    %v4981 = vpop.f32.mrb[0].mxu0
    %v4982 = vadd.f32 %v4789, %v4981
    %v4983 = vpop.f32.mrb[0].mxu0
    %v4984 = vadd.f32 %v4791, %v4983
    %v4985 = vpop.f32.mrb[0].mxu0
    %v4986 = vadd.f32 %v4793, %v4985
    %v4987 = vpop.f32.mrb[0].mxu0
    %v4988 = vadd.f32 %v4795, %v4987
    %4989 = vmatprep.mubr.bf16.mxu0 %v1033
    %4990 = vmatmul.mubr.bf16.gmra.mrb[0].mxu0 %v1032
    %v4991 = vpop.f32.mrb[0].mxu0
    %v4992 = vadd.f32 %v4799, %v4991
    %v4993 = vpop.f32.mrb[0].mxu0
    %v4994 = vadd.f32 %v4801, %v4993
    %v4995 = vpop.f32.mrb[0].mxu0
    %v4996 = vadd.f32 %v4803, %v4995
    %v4997 = vpop.f32.mrb[0].mxu0
    %v4998 = vadd.f32 %v4805, %v4997
    %4999 = vmatprep.mubr.bf16.mxu0 %v1041
    %5000 = vmatmul.mubr.bf16.gmra.mrb[0].mxu0 %v1040
    %v5001 = vpop.f32.mrb[0].mxu0
    %v5002 = vadd.f32 %v4809, %v5001
    %v5003 = vpop.f32.mrb[0].mxu0
    %v5004 = vadd.f32 %v4811, %v5003
    %v5005 = vpop.f32.mrb[0].mxu0
    %v5006 = vadd.f32 %v4813, %v5005
    %v5007 = vpop.f32.mrb[0].mxu0
    %v5008 = vadd.f32 %v4815, %v5007
    %5009 = vmatprep.mubr.bf16.mxu0 %v1049
    %5010 = vmatmul.mubr.bf16.gmra.mrb[0].mxu0 %v1048
    %v5011 = vpop.f32.mrb[0].mxu0
    %v5012 = vadd.f32 %v4819, %v5011
    %v5013 = vpop.f32.mrb[0].mxu0
    %v5014 = vadd.f32 %v4821, %v5013
    %v5015 = vpop.f32.mrb[0].mxu0
    %v5016 = vadd.f32 %v4823, %v5015
    %v5017 = vpop.f32.mrb[0].mxu0
    %v5018 = vadd.f32 %v4825, %v5017
    %5019 = vmatprep.mubr.bf16.mxu0 %v1057
    %5020 = vmatmul.mubr.bf16.gmra.mrb[0].mxu0 %v1056
    %v5021 = vpop.f32.mrb[0].mxu0
    %v5022 = vadd.f32 %v4829, %v5021
    %v5023 = vpop.f32.mrb[0].mxu0
    %v5024 = vadd.f32 %v4831, %v5023
    %v5025 = vpop.f32.mrb[0].mxu0
    %v5026 = vadd.f32 %v4833, %v5025
    %v5027 = vpop.f32.mrb[0].mxu0
    %v5028 = vadd.f32 %v4835, %v5027
    %5029 = vmatprep.mubr.bf16.mxu0 %v1065
    %5030 = vmatmul.mubr.bf16.gmra.mrb[0].mxu0 %v1064
    %v5031 = vpop.f32.mrb[0].mxu0
    %v5032 = vadd.f32 %v4839, %v5031
    %v5033 = vpop.f32.mrb[0].mxu0
    %v5034 = vadd.f32 %v4841, %v5033
    %v5035 = vpop.f32.mrb[0].mxu0
    %v5036 = vadd.f32 %v4843, %v5035
    %v5037 = vpop.f32.mrb[0].mxu0
    %v5038 = vadd.f32 %v4845, %v5037
    %5039 = vmatprep.mubr.bf16.mxu0 %v1073
    %5040 = vmatmul.mubr.bf16.gmra.mrb[0].mxu0 %v1072
    %v5041 = vpop.f32.mrb[0].mxu0
    %v5042 = vadd.f32 %v4849, %v5041
    %v5043 = vpop.f32.mrb[0].mxu0
    %v5044 = vadd.f32 %v4851, %v5043
    %v5045 = vpop.f32.mrb[0].mxu0
    %v5046 = vadd.f32 %v4853, %v5045
    %v5047 = vpop.f32.mrb[0].mxu0
    %v5048 = vadd.f32 %v4855, %v5047
    %5049 = vmatprep.mubr.bf16.mxu0 %v1081
    %5050 = vmatmul.mubr.bf16.gmra.mrb[0].mxu0 %v1080
    %v5051 = vpop.f32.mrb[0].mxu0
    %v5052 = vadd.f32 %v4859, %v5051
    %v5053 = vpop.f32.mrb[0].mxu0
    %v5054 = vadd.f32 %v4861, %v5053
    %v5055 = vpop.f32.mrb[0].mxu0
    %v5056 = vadd.f32 %v4863, %v5055
    %v5057 = vpop.f32.mrb[0].mxu0
    %v5058 = vadd.f32 %v4865, %v5057
    %5059 = vmatprep.mubr.bf16.mxu0 %v1089
    %5060 = vmatmul.mubr.bf16.gmra.mrb[0].mxu0 %v1088
    %v5061 = vpop.f32.mrb[0].mxu0
    %v5062 = vadd.f32 %v4869, %v5061
    %v5063 = vpop.f32.mrb[0].mxu0
    %v5064 = vadd.f32 %v4871, %v5063
    %v5065 = vpop.f32.mrb[0].mxu0
    %v5066 = vadd.f32 %v4873, %v5065
    %v5067 = vpop.f32.mrb[0].mxu0
    %v5068 = vadd.f32 %v4875, %v5067
    %5069 = vmatprep.mubr.bf16.mxu0 %v1097
    %5070 = vmatmul.mubr.bf16.gmra.mrb[0].mxu0 %v1096
    %v5071 = vpop.f32.mrb[0].mxu0
    %v5072 = vadd.f32 %v4879, %v5071
    %v5073 = vpop.f32.mrb[0].mxu0
    %v5074 = vadd.f32 %v4881, %v5073
    %v5075 = vpop.f32.mrb[0].mxu0
    %v5076 = vadd.f32 %v4883, %v5075
    %v5077 = vpop.f32.mrb[0].mxu0
    %v5078 = vadd.f32 %v4885, %v5077
    %5079 = vdwg.mxu0
    %5080 = vmatprep.subr.bf16.mxu0 %v2579
    %5081 = vmatpush1.bf16.msra.mxu0 %v2578
    %5082 = vmatprep.subr.bf16.mxu0 %v2585
    %5083 = vmatpush1.bf16.msra.mxu0 %v2584
    %5084 = vmatprep.subr.bf16.mxu0 %v2591
    %5085 = vmatpush1.bf16.msra.mxu0 %v2590
    %5086 = vmatprep.subr.bf16.mxu0 %v2597
    %5087 = vmatpush1.bf16.msra.mxu0 %v2596
    %5088 = vmatprep.subr.bf16.mxu0 %v2603
    %5089 = vmatpush1.bf16.msra.mxu0 %v2602
    %5090 = vmatprep.subr.bf16.mxu0 %v2609
    %5091 = vmatpush1.bf16.msra.mxu0 %v2608
    %5092 = vmatprep.subr.bf16.mxu0 %v2615
    %5093 = vmatpush1.bf16.msra.mxu0 %v2614
    %5094 = vmatprep.subr.bf16.mxu0 %v2621
    %5095 = vmatpush1.bf16.msra.mxu0 %v2620
    %5096 = vmatprep.subr.bf16.mxu0 %v2627
    %5097 = vmatpush1.bf16.msra.mxu0 %v2626
    %5098 = vmatprep.subr.bf16.mxu0 %v2633
    %5099 = vmatpush1.bf16.msra.mxu0 %v2632
    %5100 = vmatprep.subr.bf16.mxu0 %v2639
    %5101 = vmatpush1.bf16.msra.mxu0 %v2638
    %5102 = vmatprep.subr.bf16.mxu0 %v2645
    %5103 = vmatpush1.bf16.msra.mxu0 %v2644
    %5104 = vmatprep.subr.bf16.mxu0 %v2651
    %5105 = vmatpush1.bf16.msra.mxu0 %v2650
    %5106 = vmatprep.subr.bf16.mxu0 %v2657
    %5107 = vmatpush1.bf16.msra.mxu0 %v2656
    %5108 = vmatprep.subr.bf16.mxu0 %v2663
    %5109 = vmatpush1.bf16.msra.mxu0 %v2662
    %5110 = vmatprep.subr.bf16.mxu0 %v2669
    %5111 = vmatpush1.bf16.msra.mxu0 %v2668
    %5112 = vmatprep.mubr.bf16.mxu0 %v979
    %5113 = vmatmul.mubr.bf16.gmra.mrb[0].mxu0 %v978
    %v5114 = vpop.f32.mrb[0].mxu0
    %v5115 = vadd.f32 %v4922, %v5114
    %v5116 = vpop.f32.mrb[0].mxu0
    %v5117 = vadd.f32 %v4924, %v5116
    %v5118 = vpop.f32.mrb[0].mxu0
    %v5119 = vadd.f32 %v4926, %v5118
    %v5120 = vpop.f32.mrb[0].mxu0
    %v5121 = vadd.f32 %v4928, %v5120
    %5122 = vmatprep.mubr.bf16.mxu0 %v987
    %5123 = vmatmul.mubr.bf16.gmra.mrb[0].mxu0 %v986
    %v5124 = vpop.f32.mrb[0].mxu0
    %v5125 = vadd.f32 %v4932, %v5124
    %v5126 = vpop.f32.mrb[0].mxu0
    %v5127 = vadd.f32 %v4934, %v5126
    %v5128 = vpop.f32.mrb[0].mxu0
    %v5129 = vadd.f32 %v4936, %v5128
    %v5130 = vpop.f32.mrb[0].mxu0
    %v5131 = vadd.f32 %v4938, %v5130
    %5132 = vmatprep.mubr.bf16.mxu0 %v995
    %5133 = vmatmul.mubr.bf16.gmra.mrb[0].mxu0 %v994
    %v5134 = vpop.f32.mrb[0].mxu0
    %v5135 = vadd.f32 %v4942, %v5134
    %v5136 = vpop.f32.mrb[0].mxu0
    %v5137 = vadd.f32 %v4944, %v5136
    %v5138 = vpop.f32.mrb[0].mxu0
    %v5139 = vadd.f32 %v4946, %v5138
    %v5140 = vpop.f32.mrb[0].mxu0
    %v5141 = vadd.f32 %v4948, %v5140
    %5142 = vmatprep.mubr.bf16.mxu0 %v1003
    %5143 = vmatmul.mubr.bf16.gmra.mrb[0].mxu0 %v1002
    %v5144 = vpop.f32.mrb[0].mxu0
    %v5145 = vadd.f32 %v4952, %v5144
    %v5146 = vpop.f32.mrb[0].mxu0
    %v5147 = vadd.f32 %v4954, %v5146
    %v5148 = vpop.f32.mrb[0].mxu0
    %v5149 = vadd.f32 %v4956, %v5148
    %v5150 = vpop.f32.mrb[0].mxu0
    %v5151 = vadd.f32 %v4958, %v5150
    %5152 = vmatprep.mubr.bf16.mxu0 %v1011
    %5153 = vmatmul.mubr.bf16.gmra.mrb[0].mxu0 %v1010
    %v5154 = vpop.f32.mrb[0].mxu0
    %v5155 = vadd.f32 %v4962, %v5154
    %v5156 = vpop.f32.mrb[0].mxu0
    %v5157 = vadd.f32 %v4964, %v5156
    %v5158 = vpop.f32.mrb[0].mxu0
    %v5159 = vadd.f32 %v4966, %v5158
    %v5160 = vpop.f32.mrb[0].mxu0
    %v5161 = vadd.f32 %v4968, %v5160
    %5162 = vmatprep.mubr.bf16.mxu0 %v1019
    %5163 = vmatmul.mubr.bf16.gmra.mrb[0].mxu0 %v1018
    %v5164 = vpop.f32.mrb[0].mxu0
    %v5165 = vadd.f32 %v4972, %v5164
    %v5166 = vpop.f32.mrb[0].mxu0
    %v5167 = vadd.f32 %v4974, %v5166
    %v5168 = vpop.f32.mrb[0].mxu0
    %v5169 = vadd.f32 %v4976, %v5168
    %v5170 = vpop.f32.mrb[0].mxu0
    %v5171 = vadd.f32 %v4978, %v5170
    %5172 = vmatprep.mubr.bf16.mxu0 %v1027
    %5173 = vmatmul.mubr.bf16.gmra.mrb[0].mxu0 %v1026
    %v5174 = vpop.f32.mrb[0].mxu0
    %v5175 = vadd.f32 %v4982, %v5174
    %v5176 = vpop.f32.mrb[0].mxu0
    %v5177 = vadd.f32 %v4984, %v5176
    %v5178 = vpop.f32.mrb[0].mxu0
    %v5179 = vadd.f32 %v4986, %v5178
    %v5180 = vpop.f32.mrb[0].mxu0
    %v5181 = vadd.f32 %v4988, %v5180
    %5182 = vmatprep.mubr.bf16.mxu0 %v1035
    %5183 = vmatmul.mubr.bf16.gmra.mrb[0].mxu0 %v1034
    %v5184 = vpop.f32.mrb[0].mxu0
    %v5185 = vadd.f32 %v4992, %v5184
    %v5186 = vpop.f32.mrb[0].mxu0
    %v5187 = vadd.f32 %v4994, %v5186
    %v5188 = vpop.f32.mrb[0].mxu0
    %v5189 = vadd.f32 %v4996, %v5188
    %v5190 = vpop.f32.mrb[0].mxu0
    %v5191 = vadd.f32 %v4998, %v5190
    %5192 = vmatprep.mubr.bf16.mxu0 %v1043
    %5193 = vmatmul.mubr.bf16.gmra.mrb[0].mxu0 %v1042
    %v5194 = vpop.f32.mrb[0].mxu0
    %v5195 = vadd.f32 %v5002, %v5194
    %v5196 = vpop.f32.mrb[0].mxu0
    %v5197 = vadd.f32 %v5004, %v5196
    %v5198 = vpop.f32.mrb[0].mxu0
    %v5199 = vadd.f32 %v5006, %v5198
    %v5200 = vpop.f32.mrb[0].mxu0
    %v5201 = vadd.f32 %v5008, %v5200
    %5202 = vmatprep.mubr.bf16.mxu0 %v1051
    %5203 = vmatmul.mubr.bf16.gmra.mrb[0].mxu0 %v1050
    %v5204 = vpop.f32.mrb[0].mxu0
    %v5205 = vadd.f32 %v5012, %v5204
    %v5206 = vpop.f32.mrb[0].mxu0
    %v5207 = vadd.f32 %v5014, %v5206
    %v5208 = vpop.f32.mrb[0].mxu0
    %v5209 = vadd.f32 %v5016, %v5208
    %v5210 = vpop.f32.mrb[0].mxu0
    %v5211 = vadd.f32 %v5018, %v5210
    %5212 = vmatprep.mubr.bf16.mxu0 %v1059
    %5213 = vmatmul.mubr.bf16.gmra.mrb[0].mxu0 %v1058
    %v5214 = vpop.f32.mrb[0].mxu0
    %v5215 = vadd.f32 %v5022, %v5214
    %v5216 = vpop.f32.mrb[0].mxu0
    %v5217 = vadd.f32 %v5024, %v5216
    %v5218 = vpop.f32.mrb[0].mxu0
    %v5219 = vadd.f32 %v5026, %v5218
    %v5220 = vpop.f32.mrb[0].mxu0
    %v5221 = vadd.f32 %v5028, %v5220
    %5222 = vmatprep.mubr.bf16.mxu0 %v1067
    %5223 = vmatmul.mubr.bf16.gmra.mrb[0].mxu0 %v1066
    %v5224 = vpop.f32.mrb[0].mxu0
    %v5225 = vadd.f32 %v5032, %v5224
    %v5226 = vpop.f32.mrb[0].mxu0
    %v5227 = vadd.f32 %v5034, %v5226
    %v5228 = vpop.f32.mrb[0].mxu0
    %v5229 = vadd.f32 %v5036, %v5228
    %v5230 = vpop.f32.mrb[0].mxu0
    %v5231 = vadd.f32 %v5038, %v5230
    %5232 = vmatprep.mubr.bf16.mxu0 %v1075
    %5233 = vmatmul.mubr.bf16.gmra.mrb[0].mxu0 %v1074
    %v5234 = vpop.f32.mrb[0].mxu0
    %v5235 = vadd.f32 %v5042, %v5234
    %v5236 = vpop.f32.mrb[0].mxu0
    %v5237 = vadd.f32 %v5044, %v5236
    %v5238 = vpop.f32.mrb[0].mxu0
    %v5239 = vadd.f32 %v5046, %v5238
    %v5240 = vpop.f32.mrb[0].mxu0
    %v5241 = vadd.f32 %v5048, %v5240
    %5242 = vmatprep.mubr.bf16.mxu0 %v1083
    %5243 = vmatmul.mubr.bf16.gmra.mrb[0].mxu0 %v1082
    %v5244 = vpop.f32.mrb[0].mxu0
    %v5245 = vadd.f32 %v5052, %v5244
    %v5246 = vpop.f32.mrb[0].mxu0
    %v5247 = vadd.f32 %v5054, %v5246
    %v5248 = vpop.f32.mrb[0].mxu0
    %v5249 = vadd.f32 %v5056, %v5248
    %v5250 = vpop.f32.mrb[0].mxu0
    %v5251 = vadd.f32 %v5058, %v5250
    %5252 = vmatprep.mubr.bf16.mxu0 %v1091
    %5253 = vmatmul.mubr.bf16.gmra.mrb[0].mxu0 %v1090
    %v5254 = vpop.f32.mrb[0].mxu0
    %v5255 = vadd.f32 %v5062, %v5254
    %v5256 = vpop.f32.mrb[0].mxu0
    %v5257 = vadd.f32 %v5064, %v5256
    %v5258 = vpop.f32.mrb[0].mxu0
    %v5259 = vadd.f32 %v5066, %v5258
    %v5260 = vpop.f32.mrb[0].mxu0
    %v5261 = vadd.f32 %v5068, %v5260
    %5262 = vmatprep.mubr.bf16.mxu0 %v1099
    %5263 = vmatmul.mubr.bf16.gmra.mrb[0].mxu0 %v1098
    %v5264 = vpop.f32.mrb[0].mxu0
    %v5265 = vadd.f32 %v5072, %v5264
    %v5266 = vpop.f32.mrb[0].mxu0
    %v5267 = vadd.f32 %v5074, %v5266
    %v5268 = vpop.f32.mrb[0].mxu0
    %v5269 = vadd.f32 %v5076, %v5268
    %v5270 = vpop.f32.mrb[0].mxu0
    %v5271 = vadd.f32 %v5078, %v5270
    %5272 = vdwg.mxu0
    %5273 = vmatprep.subr.bf16.mxu0 %v2675
    %5274 = vmatpush1.bf16.msra.mxu0 %v2674
    %5275 = vmatprep.subr.bf16.mxu0 %v2681
    %5276 = vmatpush1.bf16.msra.mxu0 %v2680
    %5277 = vmatprep.subr.bf16.mxu0 %v2687
    %5278 = vmatpush1.bf16.msra.mxu0 %v2686
    %5279 = vmatprep.subr.bf16.mxu0 %v2693
    %5280 = vmatpush1.bf16.msra.mxu0 %v2692
    %5281 = vmatprep.subr.bf16.mxu0 %v2699
    %5282 = vmatpush1.bf16.msra.mxu0 %v2698
    %5283 = vmatprep.subr.bf16.mxu0 %v2705
    %5284 = vmatpush1.bf16.msra.mxu0 %v2704
    %5285 = vmatprep.subr.bf16.mxu0 %v2711
    %5286 = vmatpush1.bf16.msra.mxu0 %v2710
    %5287 = vmatprep.subr.bf16.mxu0 %v2717
    %5288 = vmatpush1.bf16.msra.mxu0 %v2716
    %5289 = vmatprep.subr.bf16.mxu0 %v2723
    %5290 = vmatpush1.bf16.msra.mxu0 %v2722
    %5291 = vmatprep.subr.bf16.mxu0 %v2729
    %5292 = vmatpush1.bf16.msra.mxu0 %v2728
    %5293 = vmatprep.subr.bf16.mxu0 %v2735
    %5294 = vmatpush1.bf16.msra.mxu0 %v2734
    %5295 = vmatprep.subr.bf16.mxu0 %v2741
    %5296 = vmatpush1.bf16.msra.mxu0 %v2740
    %5297 = vmatprep.subr.bf16.mxu0 %v2747
    %5298 = vmatpush1.bf16.msra.mxu0 %v2746
    %5299 = vmatprep.subr.bf16.mxu0 %v2753
    %5300 = vmatpush1.bf16.msra.mxu0 %v2752
    %5301 = vmatprep.subr.bf16.mxu0 %v2759
    %5302 = vmatpush1.bf16.msra.mxu0 %v2758
    %5303 = vmatprep.subr.bf16.mxu0 %v2765
    %5304 = vmatpush1.bf16.msra.mxu0 %v2764
    %5305 = vmatprep.mubr.bf16.mxu0 %v981
    %5306 = vmatmul.mubr.bf16.gmra.mrb[0].mxu0 %v980
    %v5307 = vpop.f32.mrb[0].mxu0
    %v5308 = vadd.f32 %v5115, %v5307
    %v5309 = vpop.f32.mrb[0].mxu0
    %v5310 = vadd.f32 %v5117, %v5309
    %v5311 = vpop.f32.mrb[0].mxu0
    %v5312 = vadd.f32 %v5119, %v5311
    %v5313 = vpop.f32.mrb[0].mxu0
    %v5314 = vadd.f32 %v5121, %v5313
    %5315 = vmatprep.mubr.bf16.mxu0 %v989
    %5316 = vmatmul.mubr.bf16.gmra.mrb[0].mxu0 %v988
    %v5317 = vpop.f32.mrb[0].mxu0
    %v5318 = vadd.f32 %v5125, %v5317
    %v5319 = vpop.f32.mrb[0].mxu0
    %v5320 = vadd.f32 %v5127, %v5319
    %v5321 = vpop.f32.mrb[0].mxu0
    %v5322 = vadd.f32 %v5129, %v5321
    %v5323 = vpop.f32.mrb[0].mxu0
    %v5324 = vadd.f32 %v5131, %v5323
    %5325 = vmatprep.mubr.bf16.mxu0 %v997
    %5326 = vmatmul.mubr.bf16.gmra.mrb[0].mxu0 %v996
    %v5327 = vpop.f32.mrb[0].mxu0
    %v5328 = vadd.f32 %v5135, %v5327
    %v5329 = vpop.f32.mrb[0].mxu0
    %v5330 = vadd.f32 %v5137, %v5329
    %v5331 = vpop.f32.mrb[0].mxu0
    %v5332 = vadd.f32 %v5139, %v5331
    %v5333 = vpop.f32.mrb[0].mxu0
    %v5334 = vadd.f32 %v5141, %v5333
    %5335 = vmatprep.mubr.bf16.mxu0 %v1005
    %5336 = vmatmul.mubr.bf16.gmra.mrb[0].mxu0 %v1004
    %v5337 = vpop.f32.mrb[0].mxu0
    %v5338 = vadd.f32 %v5145, %v5337
    %v5339 = vpop.f32.mrb[0].mxu0
    %v5340 = vadd.f32 %v5147, %v5339
    %v5341 = vpop.f32.mrb[0].mxu0
    %v5342 = vadd.f32 %v5149, %v5341
    %v5343 = vpop.f32.mrb[0].mxu0
    %v5344 = vadd.f32 %v5151, %v5343
    %5345 = vmatprep.mubr.bf16.mxu0 %v1013
    %5346 = vmatmul.mubr.bf16.gmra.mrb[0].mxu0 %v1012
    %v5347 = vpop.f32.mrb[0].mxu0
    %v5348 = vadd.f32 %v5155, %v5347
    %v5349 = vpop.f32.mrb[0].mxu0
    %v5350 = vadd.f32 %v5157, %v5349
    %v5351 = vpop.f32.mrb[0].mxu0
    %v5352 = vadd.f32 %v5159, %v5351
    %v5353 = vpop.f32.mrb[0].mxu0
    %v5354 = vadd.f32 %v5161, %v5353
    %5355 = vmatprep.mubr.bf16.mxu0 %v1021
    %5356 = vmatmul.mubr.bf16.gmra.mrb[0].mxu0 %v1020
    %v5357 = vpop.f32.mrb[0].mxu0
    %v5358 = vadd.f32 %v5165, %v5357
    %v5359 = vpop.f32.mrb[0].mxu0
    %v5360 = vadd.f32 %v5167, %v5359
    %v5361 = vpop.f32.mrb[0].mxu0
    %v5362 = vadd.f32 %v5169, %v5361
    %v5363 = vpop.f32.mrb[0].mxu0
    %v5364 = vadd.f32 %v5171, %v5363
    %5365 = vmatprep.mubr.bf16.mxu0 %v1029
    %5366 = vmatmul.mubr.bf16.gmra.mrb[0].mxu0 %v1028
    %v5367 = vpop.f32.mrb[0].mxu0
    %v5368 = vadd.f32 %v5175, %v5367
    %v5369 = vpop.f32.mrb[0].mxu0
    %v5370 = vadd.f32 %v5177, %v5369
    %v5371 = vpop.f32.mrb[0].mxu0
    %v5372 = vadd.f32 %v5179, %v5371
    %v5373 = vpop.f32.mrb[0].mxu0
    %v5374 = vadd.f32 %v5181, %v5373
    %5375 = vmatprep.mubr.bf16.mxu0 %v1037
    %5376 = vmatmul.mubr.bf16.gmra.mrb[0].mxu0 %v1036
    %v5377 = vpop.f32.mrb[0].mxu0
    %v5378 = vadd.f32 %v5185, %v5377
    %v5379 = vpop.f32.mrb[0].mxu0
    %v5380 = vadd.f32 %v5187, %v5379
    %v5381 = vpop.f32.mrb[0].mxu0
    %v5382 = vadd.f32 %v5189, %v5381
    %v5383 = vpop.f32.mrb[0].mxu0
    %v5384 = vadd.f32 %v5191, %v5383
    %5385 = vmatprep.mubr.bf16.mxu0 %v1045
    %5386 = vmatmul.mubr.bf16.gmra.mrb[0].mxu0 %v1044
    %v5387 = vpop.f32.mrb[0].mxu0
    %v5388 = vadd.f32 %v5195, %v5387
    %v5389 = vpop.f32.mrb[0].mxu0
    %v5390 = vadd.f32 %v5197, %v5389
    %v5391 = vpop.f32.mrb[0].mxu0
    %v5392 = vadd.f32 %v5199, %v5391
    %v5393 = vpop.f32.mrb[0].mxu0
    %v5394 = vadd.f32 %v5201, %v5393
    %5395 = vmatprep.mubr.bf16.mxu0 %v1053
    %5396 = vmatmul.mubr.bf16.gmra.mrb[0].mxu0 %v1052
    %v5397 = vpop.f32.mrb[0].mxu0
    %v5398 = vadd.f32 %v5205, %v5397
    %v5399 = vpop.f32.mrb[0].mxu0
    %v5400 = vadd.f32 %v5207, %v5399
    %v5401 = vpop.f32.mrb[0].mxu0
    %v5402 = vadd.f32 %v5209, %v5401
    %v5403 = vpop.f32.mrb[0].mxu0
    %v5404 = vadd.f32 %v5211, %v5403
    %5405 = vmatprep.mubr.bf16.mxu0 %v1061
    %5406 = vmatmul.mubr.bf16.gmra.mrb[0].mxu0 %v1060
    %v5407 = vpop.f32.mrb[0].mxu0
    %v5408 = vadd.f32 %v5215, %v5407
    %v5409 = vpop.f32.mrb[0].mxu0
    %v5410 = vadd.f32 %v5217, %v5409
    %v5411 = vpop.f32.mrb[0].mxu0
    %v5412 = vadd.f32 %v5219, %v5411
    %v5413 = vpop.f32.mrb[0].mxu0
    %v5414 = vadd.f32 %v5221, %v5413
    %5415 = vmatprep.mubr.bf16.mxu0 %v1069
    %5416 = vmatmul.mubr.bf16.gmra.mrb[0].mxu0 %v1068
    %v5417 = vpop.f32.mrb[0].mxu0
    %v5418 = vadd.f32 %v5225, %v5417
    %v5419 = vpop.f32.mrb[0].mxu0
    %v5420 = vadd.f32 %v5227, %v5419
    %v5421 = vpop.f32.mrb[0].mxu0
    %v5422 = vadd.f32 %v5229, %v5421
    %v5423 = vpop.f32.mrb[0].mxu0
    %v5424 = vadd.f32 %v5231, %v5423
    %5425 = vmatprep.mubr.bf16.mxu0 %v1077
    %5426 = vmatmul.mubr.bf16.gmra.mrb[0].mxu0 %v1076
    %v5427 = vpop.f32.mrb[0].mxu0
    %v5428 = vadd.f32 %v5235, %v5427
    %v5429 = vpop.f32.mrb[0].mxu0
    %v5430 = vadd.f32 %v5237, %v5429
    %v5431 = vpop.f32.mrb[0].mxu0
    %v5432 = vadd.f32 %v5239, %v5431
    %v5433 = vpop.f32.mrb[0].mxu0
    %v5434 = vadd.f32 %v5241, %v5433
    %5435 = vmatprep.mubr.bf16.mxu0 %v1085
    %5436 = vmatmul.mubr.bf16.gmra.mrb[0].mxu0 %v1084
    %v5437 = vpop.f32.mrb[0].mxu0
    %v5438 = vadd.f32 %v5245, %v5437
    %v5439 = vpop.f32.mrb[0].mxu0
    %v5440 = vadd.f32 %v5247, %v5439
    %v5441 = vpop.f32.mrb[0].mxu0
    %v5442 = vadd.f32 %v5249, %v5441
    %v5443 = vpop.f32.mrb[0].mxu0
    %v5444 = vadd.f32 %v5251, %v5443
    %5445 = vmatprep.mubr.bf16.mxu0 %v1093
    %5446 = vmatmul.mubr.bf16.gmra.mrb[0].mxu0 %v1092
    %v5447 = vpop.f32.mrb[0].mxu0
    %v5448 = vadd.f32 %v5255, %v5447
    %v5449 = vpop.f32.mrb[0].mxu0
    %v5450 = vadd.f32 %v5257, %v5449
    %v5451 = vpop.f32.mrb[0].mxu0
    %v5452 = vadd.f32 %v5259, %v5451
    %v5453 = vpop.f32.mrb[0].mxu0
    %v5454 = vadd.f32 %v5261, %v5453
    %5455 = vmatprep.mubr.bf16.mxu0 %v1101
    %5456 = vmatmul.mubr.bf16.gmra.mrb[0].mxu0 %v1100
    %v5457 = vpop.f32.mrb[0].mxu0
    %v5458 = vadd.f32 %v5265, %v5457
    %v5459 = vpop.f32.mrb[0].mxu0
    %v5460 = vadd.f32 %v5267, %v5459
    %v5461 = vpop.f32.mrb[0].mxu0
    %v5462 = vadd.f32 %v5269, %v5461
    %v5463 = vpop.f32.mrb[0].mxu0
    %v5464 = vadd.f32 %v5271, %v5463
    %5465 = vdwg.mxu0
    %v5466 = vmax.f32 %v3764, 0.0
    %v5467 = vmax.f32 %v3766, 0.0
    %v5468 = vmax.f32 %v4536, 0.0
    %v5469 = vmax.f32 %v4538, 0.0
    %v5470 = vmax.f32 %v5308, 0.0
    %v5471 = vmax.f32 %v5310, 0.0
    %v5472 = vmax.f32 %v3768, 0.0
    %v5473 = vmax.f32 %v3770, 0.0
    %v5474 = vmax.f32 %v4540, 0.0
    %v5475 = vmax.f32 %v4542, 0.0
    %v5476 = vmax.f32 %v5312, 0.0
    %v5477 = vmax.f32 %v5314, 0.0
    %v5478 = vmax.f32 %v3774, 0.0
    %v5479 = vmax.f32 %v3776, 0.0
    %v5480 = vmax.f32 %v4546, 0.0
    %v5481 = vmax.f32 %v4548, 0.0
    %v5482 = vmax.f32 %v5318, 0.0
    %v5483 = vmax.f32 %v5320, 0.0
    %v5484 = vmax.f32 %v3778, 0.0
    %v5485 = vmax.f32 %v3780, 0.0
    %v5486 = vmax.f32 %v4550, 0.0
    %v5487 = vmax.f32 %v4552, 0.0
    %v5488 = vmax.f32 %v5322, 0.0
    %v5489 = vmax.f32 %v5324, 0.0
    %v5490 = vmax.f32 %v3784, 0.0
    %v5491 = vmax.f32 %v3786, 0.0
    %v5492 = vmax.f32 %v4556, 0.0
    %v5493 = vmax.f32 %v4558, 0.0
    %v5494 = vmax.f32 %v5328, 0.0
    %v5495 = vmax.f32 %v5330, 0.0
    %v5496 = vmax.f32 %v3788, 0.0
    %v5497 = vmax.f32 %v3790, 0.0
    %v5498 = vmax.f32 %v4560, 0.0
    %v5499 = vmax.f32 %v4562, 0.0
    %v5500 = vmax.f32 %v5332, 0.0
    %v5501 = vmax.f32 %v5334, 0.0
    %v5502 = vmax.f32 %v3794, 0.0
    %v5503 = vmax.f32 %v3796, 0.0
    %v5504 = vmax.f32 %v4566, 0.0
    %v5505 = vmax.f32 %v4568, 0.0
    %v5506 = vmax.f32 %v5338, 0.0
    %v5507 = vmax.f32 %v5340, 0.0
    %v5508 = vmax.f32 %v3798, 0.0
    %v5509 = vmax.f32 %v3800, 0.0
    %v5510 = vmax.f32 %v4570, 0.0
    %v5511 = vmax.f32 %v4572, 0.0
    %v5512 = vmax.f32 %v5342, 0.0
    %v5513 = vmax.f32 %v5344, 0.0
    %v5514 = vmax.f32 %v3804, 0.0
    %v5515 = vmax.f32 %v3806, 0.0
    %v5516 = vmax.f32 %v4576, 0.0
    %v5517 = vmax.f32 %v4578, 0.0
    %v5518 = vmax.f32 %v5348, 0.0
    %v5519 = vmax.f32 %v5350, 0.0
    %v5520 = vmax.f32 %v3808, 0.0
    %v5521 = vmax.f32 %v3810, 0.0
    %v5522 = vmax.f32 %v4580, 0.0
    %v5523 = vmax.f32 %v4582, 0.0
    %v5524 = vmax.f32 %v5352, 0.0
    %v5525 = vmax.f32 %v5354, 0.0
    %v5526 = vmax.f32 %v3814, 0.0
    %v5527 = vmax.f32 %v3816, 0.0
    %v5528 = vmax.f32 %v4586, 0.0
    %v5529 = vmax.f32 %v4588, 0.0
    %v5530 = vmax.f32 %v5358, 0.0
    %v5531 = vmax.f32 %v5360, 0.0
    %v5532 = vmax.f32 %v3818, 0.0
    %v5533 = vmax.f32 %v3820, 0.0
    %v5534 = vmax.f32 %v4590, 0.0
    %v5535 = vmax.f32 %v4592, 0.0
    %v5536 = vmax.f32 %v5362, 0.0
    %v5537 = vmax.f32 %v5364, 0.0
    %v5538 = vmax.f32 %v3824, 0.0
    %v5539 = vmax.f32 %v3826, 0.0
    %v5540 = vmax.f32 %v4596, 0.0
    %v5541 = vmax.f32 %v4598, 0.0
    %v5542 = vmax.f32 %v5368, 0.0
    %v5543 = vmax.f32 %v5370, 0.0
    %v5544 = vmax.f32 %v3828, 0.0
    %v5545 = vmax.f32 %v3830, 0.0
    %v5546 = vmax.f32 %v4600, 0.0
    %v5547 = vmax.f32 %v4602, 0.0
    %v5548 = vmax.f32 %v5372, 0.0
    %v5549 = vmax.f32 %v5374, 0.0
    %v5550 = vmax.f32 %v3834, 0.0
    %v5551 = vmax.f32 %v3836, 0.0
    %v5552 = vmax.f32 %v4606, 0.0
    %v5553 = vmax.f32 %v4608, 0.0
    %v5554 = vmax.f32 %v5378, 0.0
    %v5555 = vmax.f32 %v5380, 0.0
    %v5556 = vmax.f32 %v3838, 0.0
    %v5557 = vmax.f32 %v3840, 0.0
    %v5558 = vmax.f32 %v4610, 0.0
    %v5559 = vmax.f32 %v4612, 0.0
    %v5560 = vmax.f32 %v5382, 0.0
    %v5561 = vmax.f32 %v5384, 0.0
    %v5562 = vmax.f32 %v3844, 0.0
    %v5563 = vmax.f32 %v3846, 0.0
    %v5564 = vmax.f32 %v4616, 0.0
    %v5565 = vmax.f32 %v4618, 0.0
    %v5566 = vmax.f32 %v5388, 0.0
    %v5567 = vmax.f32 %v5390, 0.0
    %v5568 = vmax.f32 %v3848, 0.0
    %v5569 = vmax.f32 %v3850, 0.0
    %v5570 = vmax.f32 %v4620, 0.0
    %v5571 = vmax.f32 %v4622, 0.0
    %v5572 = vmax.f32 %v5392, 0.0
    %v5573 = vmax.f32 %v5394, 0.0
    %v5574 = vmax.f32 %v3854, 0.0
    %v5575 = vmax.f32 %v3856, 0.0
    %v5576 = vmax.f32 %v4626, 0.0
    %v5577 = vmax.f32 %v4628, 0.0
    %v5578 = vmax.f32 %v5398, 0.0
    %v5579 = vmax.f32 %v5400, 0.0
    %v5580 = vmax.f32 %v3858, 0.0
    %v5581 = vmax.f32 %v3860, 0.0
    %v5582 = vmax.f32 %v4630, 0.0
    %v5583 = vmax.f32 %v4632, 0.0
    %v5584 = vmax.f32 %v5402, 0.0
    %v5585 = vmax.f32 %v5404, 0.0
    %v5586 = vmax.f32 %v3864, 0.0
    %v5587 = vmax.f32 %v3866, 0.0
    %v5588 = vmax.f32 %v4636, 0.0
    %v5589 = vmax.f32 %v4638, 0.0
    %v5590 = vmax.f32 %v5408, 0.0
    %v5591 = vmax.f32 %v5410, 0.0
    %v5592 = vmax.f32 %v3868, 0.0
    %v5593 = vmax.f32 %v3870, 0.0
    %v5594 = vmax.f32 %v4640, 0.0
    %v5595 = vmax.f32 %v4642, 0.0
    %v5596 = vmax.f32 %v5412, 0.0
    %v5597 = vmax.f32 %v5414, 0.0
    %v5598 = vmax.f32 %v3874, 0.0
    %v5599 = vmax.f32 %v3876, 0.0
    %v5600 = vmax.f32 %v4646, 0.0
    %v5601 = vmax.f32 %v4648, 0.0
    %v5602 = vmax.f32 %v5418, 0.0
    %v5603 = vmax.f32 %v5420, 0.0
    %v5604 = vmax.f32 %v3878, 0.0
    %v5605 = vmax.f32 %v3880, 0.0
    %v5606 = vmax.f32 %v4650, 0.0
    %v5607 = vmax.f32 %v4652, 0.0
    %v5608 = vmax.f32 %v5422, 0.0
    %v5609 = vmax.f32 %v5424, 0.0
    %v5610 = vmax.f32 %v3884, 0.0
    %v5611 = vmax.f32 %v3886, 0.0
    %v5612 = vmax.f32 %v4656, 0.0
    %v5613 = vmax.f32 %v4658, 0.0
    %v5614 = vmax.f32 %v5428, 0.0
    %v5615 = vmax.f32 %v5430, 0.0
    %v5616 = vmax.f32 %v3888, 0.0
    %v5617 = vmax.f32 %v3890, 0.0
    %v5618 = vmax.f32 %v4660, 0.0
    %v5619 = vmax.f32 %v4662, 0.0
    %v5620 = vmax.f32 %v5432, 0.0
    %v5621 = vmax.f32 %v5434, 0.0
    %v5622 = vmax.f32 %v3894, 0.0
    %v5623 = vmax.f32 %v3896, 0.0
    %v5624 = vmax.f32 %v4666, 0.0
    %v5625 = vmax.f32 %v4668, 0.0
    %v5626 = vmax.f32 %v5438, 0.0
    %v5627 = vmax.f32 %v5440, 0.0
    %v5628 = vmax.f32 %v3898, 0.0
    %v5629 = vmax.f32 %v3900, 0.0
    %v5630 = vmax.f32 %v4670, 0.0
    %v5631 = vmax.f32 %v4672, 0.0
    %v5632 = vmax.f32 %v5442, 0.0
    %v5633 = vmax.f32 %v5444, 0.0
    %v5634 = vmax.f32 %v3904, 0.0
    %v5635 = vmax.f32 %v3906, 0.0
    %v5636 = vmax.f32 %v4676, 0.0
    %v5637 = vmax.f32 %v4678, 0.0
    %v5638 = vmax.f32 %v5448, 0.0
    %v5639 = vmax.f32 %v5450, 0.0
    %v5640 = vmax.f32 %v3908, 0.0
    %v5641 = vmax.f32 %v3910, 0.0
    %v5642 = vmax.f32 %v4680, 0.0
    %v5643 = vmax.f32 %v4682, 0.0
    %v5644 = vmax.f32 %v5452, 0.0
    %v5645 = vmax.f32 %v5454, 0.0
    %v5646 = vmax.f32 %v3914, 0.0
    %v5647 = vmax.f32 %v3916, 0.0
    %v5648 = vmax.f32 %v4686, 0.0
    %v5649 = vmax.f32 %v4688, 0.0
    %v5650 = vmax.f32 %v5458, 0.0
    %v5651 = vmax.f32 %v5460, 0.0
    %v5652 = vmax.f32 %v3918, 0.0
    %v5653 = vmax.f32 %v3920, 0.0
    %v5654 = vmax.f32 %v4690, 0.0
    %v5655 = vmax.f32 %v4692, 0.0
    %v5656 = vmax.f32 %v5462, 0.0
    %v5657 = vmax.f32 %v5464, 0.0
    %v5658 = vpack.c.bf16 %v5472, %v5466
    %v5659 = vpack.c.bf16 %v5473, %v5467
    %v5660 = vpack.c.bf16 %v5474, %v5468
    %v5661 = vpack.c.bf16 %v5475, %v5469
    %v5662 = vpack.c.bf16 %v5476, %v5470
    %v5663 = vpack.c.bf16 %v5477, %v5471
    %v5664 = vpack.c.bf16 %v5484, %v5478
    %v5665 = vpack.c.bf16 %v5485, %v5479
    %v5666 = vpack.c.bf16 %v5486, %v5480
    %v5667 = vpack.c.bf16 %v5487, %v5481
    %v5668 = vpack.c.bf16 %v5488, %v5482
    %v5669 = vpack.c.bf16 %v5489, %v5483
    %v5670 = vpack.c.bf16 %v5496, %v5490
    %v5671 = vpack.c.bf16 %v5497, %v5491
    %v5672 = vpack.c.bf16 %v5498, %v5492
    %v5673 = vpack.c.bf16 %v5499, %v5493
    %v5674 = vpack.c.bf16 %v5500, %v5494
    %v5675 = vpack.c.bf16 %v5501, %v5495
    %v5676 = vpack.c.bf16 %v5508, %v5502
    %v5677 = vpack.c.bf16 %v5509, %v5503
    %v5678 = vpack.c.bf16 %v5510, %v5504
    %v5679 = vpack.c.bf16 %v5511, %v5505
    %v5680 = vpack.c.bf16 %v5512, %v5506
    %v5681 = vpack.c.bf16 %v5513, %v5507
    %v5682 = vpack.c.bf16 %v5520, %v5514
    %v5683 = vpack.c.bf16 %v5521, %v5515
    %v5684 = vpack.c.bf16 %v5522, %v5516
    %v5685 = vpack.c.bf16 %v5523, %v5517
    %v5686 = vpack.c.bf16 %v5524, %v5518
    %v5687 = vpack.c.bf16 %v5525, %v5519
    %v5688 = vpack.c.bf16 %v5532, %v5526
    %v5689 = vpack.c.bf16 %v5533, %v5527
    %v5690 = vpack.c.bf16 %v5534, %v5528
    %v5691 = vpack.c.bf16 %v5535, %v5529
    %v5692 = vpack.c.bf16 %v5536, %v5530
    %v5693 = vpack.c.bf16 %v5537, %v5531
    %v5694 = vpack.c.bf16 %v5544, %v5538
    %v5695 = vpack.c.bf16 %v5545, %v5539
    %v5696 = vpack.c.bf16 %v5546, %v5540
    %v5697 = vpack.c.bf16 %v5547, %v5541
    %v5698 = vpack.c.bf16 %v5548, %v5542
    %v5699 = vpack.c.bf16 %v5549, %v5543
    %v5700 = vpack.c.bf16 %v5556, %v5550
    %v5701 = vpack.c.bf16 %v5557, %v5551
    %v5702 = vpack.c.bf16 %v5558, %v5552
    %v5703 = vpack.c.bf16 %v5559, %v5553
    %v5704 = vpack.c.bf16 %v5560, %v5554
    %v5705 = vpack.c.bf16 %v5561, %v5555
    %v5706 = vpack.c.bf16 %v5568, %v5562
    %v5707 = vpack.c.bf16 %v5569, %v5563
    %v5708 = vpack.c.bf16 %v5570, %v5564
    %v5709 = vpack.c.bf16 %v5571, %v5565
    %v5710 = vpack.c.bf16 %v5572, %v5566
    %v5711 = vpack.c.bf16 %v5573, %v5567
    %v5712 = vpack.c.bf16 %v5580, %v5574
    %v5713 = vpack.c.bf16 %v5581, %v5575
    %v5714 = vpack.c.bf16 %v5582, %v5576
    %v5715 = vpack.c.bf16 %v5583, %v5577
    %v5716 = vpack.c.bf16 %v5584, %v5578
    %v5717 = vpack.c.bf16 %v5585, %v5579
    %v5718 = vpack.c.bf16 %v5592, %v5586
    %v5719 = vpack.c.bf16 %v5593, %v5587
    %v5720 = vpack.c.bf16 %v5594, %v5588
    %v5721 = vpack.c.bf16 %v5595, %v5589
    %v5722 = vpack.c.bf16 %v5596, %v5590
    %v5723 = vpack.c.bf16 %v5597, %v5591
    %v5724 = vpack.c.bf16 %v5604, %v5598
    %v5725 = vpack.c.bf16 %v5605, %v5599
    %v5726 = vpack.c.bf16 %v5606, %v5600
    %v5727 = vpack.c.bf16 %v5607, %v5601
    %v5728 = vpack.c.bf16 %v5608, %v5602
    %v5729 = vpack.c.bf16 %v5609, %v5603
    %v5730 = vpack.c.bf16 %v5616, %v5610
    %v5731 = vpack.c.bf16 %v5617, %v5611
    %v5732 = vpack.c.bf16 %v5618, %v5612
    %v5733 = vpack.c.bf16 %v5619, %v5613
    %v5734 = vpack.c.bf16 %v5620, %v5614
    %v5735 = vpack.c.bf16 %v5621, %v5615
    %v5736 = vpack.c.bf16 %v5628, %v5622
    %v5737 = vpack.c.bf16 %v5629, %v5623
    %v5738 = vpack.c.bf16 %v5630, %v5624
    %v5739 = vpack.c.bf16 %v5631, %v5625
    %v5740 = vpack.c.bf16 %v5632, %v5626
    %v5741 = vpack.c.bf16 %v5633, %v5627
    %v5742 = vpack.c.bf16 %v5640, %v5634
    %v5743 = vpack.c.bf16 %v5641, %v5635
    %v5744 = vpack.c.bf16 %v5642, %v5636
    %v5745 = vpack.c.bf16 %v5643, %v5637
    %v5746 = vpack.c.bf16 %v5644, %v5638
    %v5747 = vpack.c.bf16 %v5645, %v5639
    %v5748 = vpack.c.bf16 %v5652, %v5646
    %v5749 = vpack.c.bf16 %v5653, %v5647
    %v5750 = vpack.c.bf16 %v5654, %v5648
    %v5751 = vpack.c.bf16 %v5655, %v5649
    %v5752 = vpack.c.bf16 %v5656, %v5650
    %v5753 = vpack.c.bf16 %v5657, %v5651
    %v5754 = vld [vmem:[#allocation6] sm:$0xff]
    %v5755 = vld [vmem:[#allocation6 + $0x8] sm:$0xff]
    %v5756 = vld [vmem:[#allocation6 + $0x10] sm:$0xff]
    %v5757 = vld [vmem:[#allocation6 + $0x18] sm:$0xff]
    %v5758 = vld [vmem:[#allocation6 + $0x20] sm:$0xff]
    %v5759 = vld [vmem:[#allocation6 + $0x28] sm:$0xff]
    %v5760 = vld [vmem:[#allocation6 + $0x30] sm:$0xff]
    %v5761 = vld [vmem:[#allocation6 + $0x38] sm:$0xff]
    %v5762 = vld [vmem:[#allocation6 + $0x40] sm:$0xff]
    %v5763 = vld [vmem:[#allocation6 + $0x48] sm:$0xff]
    %v5764 = vld [vmem:[#allocation6 + $0x50] sm:$0xff]
    %v5765 = vld [vmem:[#allocation6 + $0x58] sm:$0xff]
    %v5766 = vld [vmem:[#allocation6 + $0x60] sm:$0xff]
    %v5767 = vld [vmem:[#allocation6 + $0x68] sm:$0xff]
    %v5768 = vld [vmem:[#allocation6 + $0x70] sm:$0xff]
    %v5769 = vld [vmem:[#allocation6 + $0x78] sm:$0xff]
    %v5770 = vld [vmem:[#allocation6 + $0x80] sm:$0xff]
    %v5771 = vld [vmem:[#allocation6 + $0x88] sm:$0xff]
    %v5772 = vld [vmem:[#allocation6 + $0x90] sm:$0xff]
    %v5773 = vld [vmem:[#allocation6 + $0x98] sm:$0xff]
    %v5774 = vld [vmem:[#allocation6 + $0xa0] sm:$0xff]
    %v5775 = vld [vmem:[#allocation6 + $0xa8] sm:$0xff]
    %v5776 = vld [vmem:[#allocation6 + $0xb0] sm:$0xff]
    %v5777 = vld [vmem:[#allocation6 + $0xb8] sm:$0xff]
    %v5778 = vld [vmem:[#allocation6 + $0xc0] sm:$0xff]
    %v5779 = vld [vmem:[#allocation6 + $0xc8] sm:$0xff]
    %v5780 = vld [vmem:[#allocation6 + $0xd0] sm:$0xff]
    %v5781 = vld [vmem:[#allocation6 + $0xd8] sm:$0xff]
    %v5782 = vld [vmem:[#allocation6 + $0xe0] sm:$0xff]
    %v5783 = vld [vmem:[#allocation6 + $0xe8] sm:$0xff]
    %v5784 = vld [vmem:[#allocation6 + $0xf0] sm:$0xff]
    %v5785 = vld [vmem:[#allocation6 + $0xf8] sm:$0xff]
    %v5786 = vld [vmem:[#allocation6 + $0x100] sm:$0xff]
    %v5787 = vld [vmem:[#allocation6 + $0x108] sm:$0xff]
    %v5788 = vld [vmem:[#allocation6 + $0x110] sm:$0xff]
    %v5789 = vld [vmem:[#allocation6 + $0x118] sm:$0xff]
    %v5790 = vld [vmem:[#allocation6 + $0x120] sm:$0xff]
    %v5791 = vld [vmem:[#allocation6 + $0x128] sm:$0xff]
    %v5792 = vld [vmem:[#allocation6 + $0x130] sm:$0xff]
    %v5793 = vld [vmem:[#allocation6 + $0x138] sm:$0xff]
    %v5794 = vld [vmem:[#allocation6 + $0x140] sm:$0xff]
    %v5795 = vld [vmem:[#allocation6 + $0x148] sm:$0xff]
    %v5796 = vld [vmem:[#allocation6 + $0x150] sm:$0xff]
    %v5797 = vld [vmem:[#allocation6 + $0x158] sm:$0xff]
    %v5798 = vld [vmem:[#allocation6 + $0x160] sm:$0xff]
    %v5799 = vld [vmem:[#allocation6 + $0x168] sm:$0xff]
    %v5800 = vld [vmem:[#allocation6 + $0x170] sm:$0xff]
    %v5801 = vld [vmem:[#allocation6 + $0x178] sm:$0xff]
    %v5802 = vld [vmem:[#allocation6 + $0x180] sm:$0xff]
    %v5803 = vld [vmem:[#allocation6 + $0x188] sm:$0xff]
    %v5804 = vld [vmem:[#allocation6 + $0x190] sm:$0xff]
    %v5805 = vld [vmem:[#allocation6 + $0x198] sm:$0xff]
    %v5806 = vld [vmem:[#allocation6 + $0x1a0] sm:$0xff]
    %v5807 = vld [vmem:[#allocation6 + $0x1a8] sm:$0xff]
    %v5808 = vld [vmem:[#allocation6 + $0x1b0] sm:$0xff]
    %v5809 = vld [vmem:[#allocation6 + $0x1b8] sm:$0xff]
    %v5810 = vld [vmem:[#allocation6 + $0x1c0] sm:$0xff]
    %v5811 = vld [vmem:[#allocation6 + $0x1c8] sm:$0xff]
    %v5812 = vld [vmem:[#allocation6 + $0x1d0] sm:$0xff]
    %v5813 = vld [vmem:[#allocation6 + $0x1d8] sm:$0xff]
    %v5814 = vld [vmem:[#allocation6 + $0x1e0] sm:$0xff]
    %v5815 = vld [vmem:[#allocation6 + $0x1e8] sm:$0xff]
    %v5816 = vld [vmem:[#allocation6 + $0x1f0] sm:$0xff]
    %v5817 = vld [vmem:[#allocation6 + $0x1f8] sm:$0xff]
    %v5818 = vld [vmem:[#allocation6 + $0x200] sm:$0xff]
    %v5819 = vld [vmem:[#allocation6 + $0x208] sm:$0xff]
    %v5820 = vld [vmem:[#allocation6 + $0x210] sm:$0xff]
    %v5821 = vld [vmem:[#allocation6 + $0x218] sm:$0xff]
    %v5822 = vld [vmem:[#allocation6 + $0x220] sm:$0xff]
    %v5823 = vld [vmem:[#allocation6 + $0x228] sm:$0xff]
    %v5824 = vld [vmem:[#allocation6 + $0x230] sm:$0xff]
    %v5825 = vld [vmem:[#allocation6 + $0x238] sm:$0xff]
    %v5826 = vld [vmem:[#allocation6 + $0x240] sm:$0xff]
    %v5827 = vld [vmem:[#allocation6 + $0x248] sm:$0xff]
    %v5828 = vld [vmem:[#allocation6 + $0x250] sm:$0xff]
    %v5829 = vld [vmem:[#allocation6 + $0x258] sm:$0xff]
    %v5830 = vld [vmem:[#allocation6 + $0x260] sm:$0xff]
    %v5831 = vld [vmem:[#allocation6 + $0x268] sm:$0xff]
    %v5832 = vld [vmem:[#allocation6 + $0x270] sm:$0xff]
    %v5833 = vld [vmem:[#allocation6 + $0x278] sm:$0xff]
    %v5834 = vld [vmem:[#allocation6 + $0x280] sm:$0xff]
    %v5835 = vld [vmem:[#allocation6 + $0x288] sm:$0xff]
    %v5836 = vld [vmem:[#allocation6 + $0x290] sm:$0xff]
    %v5837 = vld [vmem:[#allocation6 + $0x298] sm:$0xff]
    %v5838 = vld [vmem:[#allocation6 + $0x2a0] sm:$0xff]
    %v5839 = vld [vmem:[#allocation6 + $0x2a8] sm:$0xff]
    %v5840 = vld [vmem:[#allocation6 + $0x2b0] sm:$0xff]
    %v5841 = vld [vmem:[#allocation6 + $0x2b8] sm:$0xff]
    %v5842 = vld [vmem:[#allocation6 + $0x2c0] sm:$0xff]
    %v5843 = vld [vmem:[#allocation6 + $0x2c8] sm:$0xff]
    %v5844 = vld [vmem:[#allocation6 + $0x2d0] sm:$0xff]
    %v5845 = vld [vmem:[#allocation6 + $0x2d8] sm:$0xff]
    %v5846 = vld [vmem:[#allocation6 + $0x2e0] sm:$0xff]
    %v5847 = vld [vmem:[#allocation6 + $0x2e8] sm:$0xff]
    %v5848 = vld [vmem:[#allocation6 + $0x2f0] sm:$0xff]
    %v5849 = vld [vmem:[#allocation6 + $0x2f8] sm:$0xff]
    %v5850 = vld [vmem:[#allocation6 + $0x300] sm:$0xff]
    %v5851 = vld [vmem:[#allocation6 + $0x308] sm:$0xff]
    %v5852 = vld [vmem:[#allocation6 + $0x310] sm:$0xff]
    %v5853 = vld [vmem:[#allocation6 + $0x318] sm:$0xff]
    %v5854 = vld [vmem:[#allocation6 + $0x320] sm:$0xff]
    %v5855 = vld [vmem:[#allocation6 + $0x328] sm:$0xff]
    %v5856 = vld [vmem:[#allocation6 + $0x330] sm:$0xff]
    %v5857 = vld [vmem:[#allocation6 + $0x338] sm:$0xff]
    %v5858 = vld [vmem:[#allocation6 + $0x340] sm:$0xff]
    %v5859 = vld [vmem:[#allocation6 + $0x348] sm:$0xff]
    %v5860 = vld [vmem:[#allocation6 + $0x350] sm:$0xff]
    %v5861 = vld [vmem:[#allocation6 + $0x358] sm:$0xff]
    %v5862 = vld [vmem:[#allocation6 + $0x360] sm:$0xff]
    %v5863 = vld [vmem:[#allocation6 + $0x368] sm:$0xff]
    %v5864 = vld [vmem:[#allocation6 + $0x370] sm:$0xff]
    %v5865 = vld [vmem:[#allocation6 + $0x378] sm:$0xff]
    %v5866 = vld [vmem:[#allocation6 + $0x380] sm:$0xff]
    %v5867 = vld [vmem:[#allocation6 + $0x388] sm:$0xff]
    %v5868 = vld [vmem:[#allocation6 + $0x390] sm:$0xff]
    %v5869 = vld [vmem:[#allocation6 + $0x398] sm:$0xff]
    %v5870 = vld [vmem:[#allocation6 + $0x3a0] sm:$0xff]
    %v5871 = vld [vmem:[#allocation6 + $0x3a8] sm:$0xff]
    %v5872 = vld [vmem:[#allocation6 + $0x3b0] sm:$0xff]
    %v5873 = vld [vmem:[#allocation6 + $0x3b8] sm:$0xff]
    %v5874 = vld [vmem:[#allocation6 + $0x3c0] sm:$0xff]
    %v5875 = vld [vmem:[#allocation6 + $0x3c8] sm:$0xff]
    %v5876 = vld [vmem:[#allocation6 + $0x3d0] sm:$0xff]
    %v5877 = vld [vmem:[#allocation6 + $0x3d8] sm:$0xff]
    %v5878 = vld [vmem:[#allocation6 + $0x3e0] sm:$0xff]
    %v5879 = vld [vmem:[#allocation6 + $0x3e8] sm:$0xff]
    %v5880 = vld [vmem:[#allocation6 + $0x3f0] sm:$0xff]
    %v5881 = vld [vmem:[#allocation6 + $0x3f8] sm:$0xff]
    %v5882 = vld [vmem:[#allocation6 + $0x400] sm:$0xff]
    %v5883 = vld [vmem:[#allocation6 + $0x408] sm:$0xff]
    %v5884 = vld [vmem:[#allocation6 + $0x410] sm:$0xff]
    %v5885 = vld [vmem:[#allocation6 + $0x418] sm:$0xff]
    %v5886 = vld [vmem:[#allocation6 + $0x420] sm:$0xff]
    %v5887 = vld [vmem:[#allocation6 + $0x428] sm:$0xff]
    %v5888 = vld [vmem:[#allocation6 + $0x430] sm:$0xff]
    %v5889 = vld [vmem:[#allocation6 + $0x438] sm:$0xff]
    %v5890 = vld [vmem:[#allocation6 + $0x440] sm:$0xff]
    %v5891 = vld [vmem:[#allocation6 + $0x448] sm:$0xff]
    %v5892 = vld [vmem:[#allocation6 + $0x450] sm:$0xff]
    %v5893 = vld [vmem:[#allocation6 + $0x458] sm:$0xff]
    %v5894 = vld [vmem:[#allocation6 + $0x460] sm:$0xff]
    %v5895 = vld [vmem:[#allocation6 + $0x468] sm:$0xff]
    %v5896 = vld [vmem:[#allocation6 + $0x470] sm:$0xff]
    %v5897 = vld [vmem:[#allocation6 + $0x478] sm:$0xff]
    %v5898 = vld [vmem:[#allocation6 + $0x480] sm:$0xff]
    %v5899 = vld [vmem:[#allocation6 + $0x488] sm:$0xff]
    %v5900 = vld [vmem:[#allocation6 + $0x490] sm:$0xff]
    %v5901 = vld [vmem:[#allocation6 + $0x498] sm:$0xff]
    %v5902 = vld [vmem:[#allocation6 + $0x4a0] sm:$0xff]
    %v5903 = vld [vmem:[#allocation6 + $0x4a8] sm:$0xff]
    %v5904 = vld [vmem:[#allocation6 + $0x4b0] sm:$0xff]
    %v5905 = vld [vmem:[#allocation6 + $0x4b8] sm:$0xff]
    %v5906 = vld [vmem:[#allocation6 + $0x4c0] sm:$0xff]
    %v5907 = vld [vmem:[#allocation6 + $0x4c8] sm:$0xff]
    %v5908 = vld [vmem:[#allocation6 + $0x4d0] sm:$0xff]
    %v5909 = vld [vmem:[#allocation6 + $0x4d8] sm:$0xff]
    %v5910 = vld [vmem:[#allocation6 + $0x4e0] sm:$0xff]
    %v5911 = vld [vmem:[#allocation6 + $0x4e8] sm:$0xff]
    %v5912 = vld [vmem:[#allocation6 + $0x4f0] sm:$0xff]
    %v5913 = vld [vmem:[#allocation6 + $0x4f8] sm:$0xff]
    %v5914 = vld [vmem:[#allocation6 + $0x500] sm:$0xff]
    %v5915 = vld [vmem:[#allocation6 + $0x508] sm:$0xff]
    %v5916 = vld [vmem:[#allocation6 + $0x510] sm:$0xff]
    %v5917 = vld [vmem:[#allocation6 + $0x518] sm:$0xff]
    %v5918 = vld [vmem:[#allocation6 + $0x520] sm:$0xff]
    %v5919 = vld [vmem:[#allocation6 + $0x528] sm:$0xff]
    %v5920 = vld [vmem:[#allocation6 + $0x530] sm:$0xff]
    %v5921 = vld [vmem:[#allocation6 + $0x538] sm:$0xff]
    %v5922 = vld [vmem:[#allocation6 + $0x540] sm:$0xff]
    %v5923 = vld [vmem:[#allocation6 + $0x548] sm:$0xff]
    %v5924 = vld [vmem:[#allocation6 + $0x550] sm:$0xff]
    %v5925 = vld [vmem:[#allocation6 + $0x558] sm:$0xff]
    %v5926 = vld [vmem:[#allocation6 + $0x560] sm:$0xff]
    %v5927 = vld [vmem:[#allocation6 + $0x568] sm:$0xff]
    %v5928 = vld [vmem:[#allocation6 + $0x570] sm:$0xff]
    %v5929 = vld [vmem:[#allocation6 + $0x578] sm:$0xff]
    %v5930 = vld [vmem:[#allocation6 + $0x580] sm:$0xff]
    %v5931 = vld [vmem:[#allocation6 + $0x588] sm:$0xff]
    %v5932 = vld [vmem:[#allocation6 + $0x590] sm:$0xff]
    %v5933 = vld [vmem:[#allocation6 + $0x598] sm:$0xff]
    %v5934 = vld [vmem:[#allocation6 + $0x5a0] sm:$0xff]
    %v5935 = vld [vmem:[#allocation6 + $0x5a8] sm:$0xff]
    %v5936 = vld [vmem:[#allocation6 + $0x5b0] sm:$0xff]
    %v5937 = vld [vmem:[#allocation6 + $0x5b8] sm:$0xff]
    %v5938 = vld [vmem:[#allocation6 + $0x5c0] sm:$0xff]
    %v5939 = vld [vmem:[#allocation6 + $0x5c8] sm:$0xff]
    %v5940 = vld [vmem:[#allocation6 + $0x5d0] sm:$0xff]
    %v5941 = vld [vmem:[#allocation6 + $0x5d8] sm:$0xff]
    %v5942 = vld [vmem:[#allocation6 + $0x5e0] sm:$0xff]
    %v5943 = vld [vmem:[#allocation6 + $0x5e8] sm:$0xff]
    %v5944 = vld [vmem:[#allocation6 + $0x5f0] sm:$0xff]
    %v5945 = vld [vmem:[#allocation6 + $0x5f8] sm:$0xff]
    %v5946 = vld [vmem:[#allocation6 + $0x600] sm:$0xff]
    %v5947 = vld [vmem:[#allocation6 + $0x608] sm:$0xff]
    %v5948 = vld [vmem:[#allocation6 + $0x610] sm:$0xff]
    %v5949 = vld [vmem:[#allocation6 + $0x618] sm:$0xff]
    %v5950 = vld [vmem:[#allocation6 + $0x620] sm:$0xff]
    %v5951 = vld [vmem:[#allocation6 + $0x628] sm:$0xff]
    %v5952 = vld [vmem:[#allocation6 + $0x630] sm:$0xff]
    %v5953 = vld [vmem:[#allocation6 + $0x638] sm:$0xff]
    %v5954 = vld [vmem:[#allocation6 + $0x640] sm:$0xff]
    %v5955 = vld [vmem:[#allocation6 + $0x648] sm:$0xff]
    %v5956 = vld [vmem:[#allocation6 + $0x650] sm:$0xff]
    %v5957 = vld [vmem:[#allocation6 + $0x658] sm:$0xff]
    %v5958 = vld [vmem:[#allocation6 + $0x660] sm:$0xff]
    %v5959 = vld [vmem:[#allocation6 + $0x668] sm:$0xff]
    %v5960 = vld [vmem:[#allocation6 + $0x670] sm:$0xff]
    %v5961 = vld [vmem:[#allocation6 + $0x678] sm:$0xff]
    %v5962 = vld [vmem:[#allocation6 + $0x680] sm:$0xff]
    %v5963 = vld [vmem:[#allocation6 + $0x688] sm:$0xff]
    %v5964 = vld [vmem:[#allocation6 + $0x690] sm:$0xff]
    %v5965 = vld [vmem:[#allocation6 + $0x698] sm:$0xff]
    %v5966 = vld [vmem:[#allocation6 + $0x6a0] sm:$0xff]
    %v5967 = vld [vmem:[#allocation6 + $0x6a8] sm:$0xff]
    %v5968 = vld [vmem:[#allocation6 + $0x6b0] sm:$0xff]
    %v5969 = vld [vmem:[#allocation6 + $0x6b8] sm:$0xff]
    %v5970 = vld [vmem:[#allocation6 + $0x6c0] sm:$0xff]
    %v5971 = vld [vmem:[#allocation6 + $0x6c8] sm:$0xff]
    %v5972 = vld [vmem:[#allocation6 + $0x6d0] sm:$0xff]
    %v5973 = vld [vmem:[#allocation6 + $0x6d8] sm:$0xff]
    %v5974 = vld [vmem:[#allocation6 + $0x6e0] sm:$0xff]
    %v5975 = vld [vmem:[#allocation6 + $0x6e8] sm:$0xff]
    %v5976 = vld [vmem:[#allocation6 + $0x6f0] sm:$0xff]
    %v5977 = vld [vmem:[#allocation6 + $0x6f8] sm:$0xff]
    %v5978 = vld [vmem:[#allocation6 + $0x700] sm:$0xff]
    %v5979 = vld [vmem:[#allocation6 + $0x708] sm:$0xff]
    %v5980 = vld [vmem:[#allocation6 + $0x710] sm:$0xff]
    %v5981 = vld [vmem:[#allocation6 + $0x718] sm:$0xff]
    %v5982 = vld [vmem:[#allocation6 + $0x720] sm:$0xff]
    %v5983 = vld [vmem:[#allocation6 + $0x728] sm:$0xff]
    %v5984 = vld [vmem:[#allocation6 + $0x730] sm:$0xff]
    %v5985 = vld [vmem:[#allocation6 + $0x738] sm:$0xff]
    %v5986 = vld [vmem:[#allocation6 + $0x740] sm:$0xff]
    %v5987 = vld [vmem:[#allocation6 + $0x748] sm:$0xff]
    %v5988 = vld [vmem:[#allocation6 + $0x750] sm:$0xff]
    %v5989 = vld [vmem:[#allocation6 + $0x758] sm:$0xff]
    %v5990 = vld [vmem:[#allocation6 + $0x760] sm:$0xff]
    %v5991 = vld [vmem:[#allocation6 + $0x768] sm:$0xff]
    %v5992 = vld [vmem:[#allocation6 + $0x770] sm:$0xff]
    %v5993 = vld [vmem:[#allocation6 + $0x778] sm:$0xff]
    %v5994 = vld [vmem:[#allocation6 + $0x780] sm:$0xff]
    %v5995 = vld [vmem:[#allocation6 + $0x788] sm:$0xff]
    %v5996 = vld [vmem:[#allocation6 + $0x790] sm:$0xff]
    %v5997 = vld [vmem:[#allocation6 + $0x798] sm:$0xff]
    %v5998 = vld [vmem:[#allocation6 + $0x7a0] sm:$0xff]
    %v5999 = vld [vmem:[#allocation6 + $0x7a8] sm:$0xff]
    %v6000 = vld [vmem:[#allocation6 + $0x7b0] sm:$0xff]
    %v6001 = vld [vmem:[#allocation6 + $0x7b8] sm:$0xff]
    %v6002 = vld [vmem:[#allocation6 + $0x7c0] sm:$0xff]
    %v6003 = vld [vmem:[#allocation6 + $0x7c8] sm:$0xff]
    %v6004 = vld [vmem:[#allocation6 + $0x7d0] sm:$0xff]
    %v6005 = vld [vmem:[#allocation6 + $0x7d8] sm:$0xff]
    %v6006 = vld [vmem:[#allocation6 + $0x7e0] sm:$0xff]
    %v6007 = vld [vmem:[#allocation6 + $0x7e8] sm:$0xff]
    %v6008 = vld [vmem:[#allocation6 + $0x7f0] sm:$0xff]
    %v6009 = vld [vmem:[#allocation6 + $0x7f8] sm:$0xff]
    %v6010 = vld [vmem:[#allocation6 + $0x800] sm:$0xff]
    %v6011 = vld [vmem:[#allocation6 + $0x808] sm:$0xff]
    %v6012 = vld [vmem:[#allocation6 + $0x810] sm:$0xff]
    %v6013 = vld [vmem:[#allocation6 + $0x818] sm:$0xff]
    %v6014 = vld [vmem:[#allocation6 + $0x820] sm:$0xff]
    %v6015 = vld [vmem:[#allocation6 + $0x828] sm:$0xff]
    %v6016 = vld [vmem:[#allocation6 + $0x830] sm:$0xff]
    %v6017 = vld [vmem:[#allocation6 + $0x838] sm:$0xff]
    %v6018 = vld [vmem:[#allocation6 + $0x840] sm:$0xff]
    %v6019 = vld [vmem:[#allocation6 + $0x848] sm:$0xff]
    %v6020 = vld [vmem:[#allocation6 + $0x850] sm:$0xff]
    %v6021 = vld [vmem:[#allocation6 + $0x858] sm:$0xff]
    %v6022 = vld [vmem:[#allocation6 + $0x860] sm:$0xff]
    %v6023 = vld [vmem:[#allocation6 + $0x868] sm:$0xff]
    %v6024 = vld [vmem:[#allocation6 + $0x870] sm:$0xff]
    %v6025 = vld [vmem:[#allocation6 + $0x878] sm:$0xff]
    %v6026 = vld [vmem:[#allocation6 + $0x880] sm:$0xff]
    %v6027 = vld [vmem:[#allocation6 + $0x888] sm:$0xff]
    %v6028 = vld [vmem:[#allocation6 + $0x890] sm:$0xff]
    %v6029 = vld [vmem:[#allocation6 + $0x898] sm:$0xff]
    %v6030 = vld [vmem:[#allocation6 + $0x8a0] sm:$0xff]
    %v6031 = vld [vmem:[#allocation6 + $0x8a8] sm:$0xff]
    %v6032 = vld [vmem:[#allocation6 + $0x8b0] sm:$0xff]
    %v6033 = vld [vmem:[#allocation6 + $0x8b8] sm:$0xff]
    %v6034 = vld [vmem:[#allocation6 + $0x8c0] sm:$0xff]
    %v6035 = vld [vmem:[#allocation6 + $0x8c8] sm:$0xff]
    %v6036 = vld [vmem:[#allocation6 + $0x8d0] sm:$0xff]
    %v6037 = vld [vmem:[#allocation6 + $0x8d8] sm:$0xff]
    %v6038 = vld [vmem:[#allocation6 + $0x8e0] sm:$0xff]
    %v6039 = vld [vmem:[#allocation6 + $0x8e8] sm:$0xff]
    %v6040 = vld [vmem:[#allocation6 + $0x8f0] sm:$0xff]
    %v6041 = vld [vmem:[#allocation6 + $0x8f8] sm:$0xff]
    %v6042 = vld [vmem:[#allocation6 + $0x900] sm:$0xff]
    %v6043 = vld [vmem:[#allocation6 + $0x908] sm:$0xff]
    %v6044 = vld [vmem:[#allocation6 + $0x910] sm:$0xff]
    %v6045 = vld [vmem:[#allocation6 + $0x918] sm:$0xff]
    %v6046 = vld [vmem:[#allocation6 + $0x920] sm:$0xff]
    %v6047 = vld [vmem:[#allocation6 + $0x928] sm:$0xff]
    %v6048 = vld [vmem:[#allocation6 + $0x930] sm:$0xff]
    %v6049 = vld [vmem:[#allocation6 + $0x938] sm:$0xff]
    %v6050 = vld [vmem:[#allocation6 + $0x940] sm:$0xff]
    %v6051 = vld [vmem:[#allocation6 + $0x948] sm:$0xff]
    %v6052 = vld [vmem:[#allocation6 + $0x950] sm:$0xff]
    %v6053 = vld [vmem:[#allocation6 + $0x958] sm:$0xff]
    %v6054 = vld [vmem:[#allocation6 + $0x960] sm:$0xff]
    %v6055 = vld [vmem:[#allocation6 + $0x968] sm:$0xff]
    %v6056 = vld [vmem:[#allocation6 + $0x970] sm:$0xff]
    %v6057 = vld [vmem:[#allocation6 + $0x978] sm:$0xff]
    %v6058 = vld [vmem:[#allocation6 + $0x980] sm:$0xff]
    %v6059 = vld [vmem:[#allocation6 + $0x988] sm:$0xff]
    %v6060 = vld [vmem:[#allocation6 + $0x990] sm:$0xff]
    %v6061 = vld [vmem:[#allocation6 + $0x998] sm:$0xff]
    %v6062 = vld [vmem:[#allocation6 + $0x9a0] sm:$0xff]
    %v6063 = vld [vmem:[#allocation6 + $0x9a8] sm:$0xff]
    %v6064 = vld [vmem:[#allocation6 + $0x9b0] sm:$0xff]
    %v6065 = vld [vmem:[#allocation6 + $0x9b8] sm:$0xff]
    %v6066 = vld [vmem:[#allocation6 + $0x9c0] sm:$0xff]
    %v6067 = vld [vmem:[#allocation6 + $0x9c8] sm:$0xff]
    %v6068 = vld [vmem:[#allocation6 + $0x9d0] sm:$0xff]
    %v6069 = vld [vmem:[#allocation6 + $0x9d8] sm:$0xff]
    %v6070 = vld [vmem:[#allocation6 + $0x9e0] sm:$0xff]
    %v6071 = vld [vmem:[#allocation6 + $0x9e8] sm:$0xff]
    %v6072 = vld [vmem:[#allocation6 + $0x9f0] sm:$0xff]
    %v6073 = vld [vmem:[#allocation6 + $0x9f8] sm:$0xff]
    %v6074 = vld [vmem:[#allocation6 + $0xa00] sm:$0xff]
    %v6075 = vld [vmem:[#allocation6 + $0xa08] sm:$0xff]
    %v6076 = vld [vmem:[#allocation6 + $0xa10] sm:$0xff]
    %v6077 = vld [vmem:[#allocation6 + $0xa18] sm:$0xff]
    %v6078 = vld [vmem:[#allocation6 + $0xa20] sm:$0xff]
    %v6079 = vld [vmem:[#allocation6 + $0xa28] sm:$0xff]
    %v6080 = vld [vmem:[#allocation6 + $0xa30] sm:$0xff]
    %v6081 = vld [vmem:[#allocation6 + $0xa38] sm:$0xff]
    %v6082 = vld [vmem:[#allocation6 + $0xa40] sm:$0xff]
    %v6083 = vld [vmem:[#allocation6 + $0xa48] sm:$0xff]
    %v6084 = vld [vmem:[#allocation6 + $0xa50] sm:$0xff]
    %v6085 = vld [vmem:[#allocation6 + $0xa58] sm:$0xff]
    %v6086 = vld [vmem:[#allocation6 + $0xa60] sm:$0xff]
    %v6087 = vld [vmem:[#allocation6 + $0xa68] sm:$0xff]
    %v6088 = vld [vmem:[#allocation6 + $0xa70] sm:$0xff]
    %v6089 = vld [vmem:[#allocation6 + $0xa78] sm:$0xff]
    %v6090 = vld [vmem:[#allocation6 + $0xa80] sm:$0xff]
    %v6091 = vld [vmem:[#allocation6 + $0xa88] sm:$0xff]
    %v6092 = vld [vmem:[#allocation6 + $0xa90] sm:$0xff]
    %v6093 = vld [vmem:[#allocation6 + $0xa98] sm:$0xff]
    %v6094 = vld [vmem:[#allocation6 + $0xaa0] sm:$0xff]
    %v6095 = vld [vmem:[#allocation6 + $0xaa8] sm:$0xff]
    %v6096 = vld [vmem:[#allocation6 + $0xab0] sm:$0xff]
    %v6097 = vld [vmem:[#allocation6 + $0xab8] sm:$0xff]
    %v6098 = vld [vmem:[#allocation6 + $0xac0] sm:$0xff]
    %v6099 = vld [vmem:[#allocation6 + $0xac8] sm:$0xff]
    %v6100 = vld [vmem:[#allocation6 + $0xad0] sm:$0xff]
    %v6101 = vld [vmem:[#allocation6 + $0xad8] sm:$0xff]
    %v6102 = vld [vmem:[#allocation6 + $0xae0] sm:$0xff]
    %v6103 = vld [vmem:[#allocation6 + $0xae8] sm:$0xff]
    %v6104 = vld [vmem:[#allocation6 + $0xaf0] sm:$0xff]
    %v6105 = vld [vmem:[#allocation6 + $0xaf8] sm:$0xff]
    %v6106 = vld [vmem:[#allocation6 + $0xb00] sm:$0xff]
    %v6107 = vld [vmem:[#allocation6 + $0xb08] sm:$0xff]
    %v6108 = vld [vmem:[#allocation6 + $0xb10] sm:$0xff]
    %v6109 = vld [vmem:[#allocation6 + $0xb18] sm:$0xff]
    %v6110 = vld [vmem:[#allocation6 + $0xb20] sm:$0xff]
    %v6111 = vld [vmem:[#allocation6 + $0xb28] sm:$0xff]
    %v6112 = vld [vmem:[#allocation6 + $0xb30] sm:$0xff]
    %v6113 = vld [vmem:[#allocation6 + $0xb38] sm:$0xff]
    %v6114 = vld [vmem:[#allocation6 + $0xb40] sm:$0xff]
    %v6115 = vld [vmem:[#allocation6 + $0xb48] sm:$0xff]
    %v6116 = vld [vmem:[#allocation6 + $0xb50] sm:$0xff]
    %v6117 = vld [vmem:[#allocation6 + $0xb58] sm:$0xff]
    %v6118 = vld [vmem:[#allocation6 + $0xb60] sm:$0xff]
    %v6119 = vld [vmem:[#allocation6 + $0xb68] sm:$0xff]
    %v6120 = vld [vmem:[#allocation6 + $0xb70] sm:$0xff]
    %v6121 = vld [vmem:[#allocation6 + $0xb78] sm:$0xff]
    %v6122 = vld [vmem:[#allocation6 + $0xb80] sm:$0xff]
    %v6123 = vld [vmem:[#allocation6 + $0xb88] sm:$0xff]
    %v6124 = vld [vmem:[#allocation6 + $0xb90] sm:$0xff]
    %v6125 = vld [vmem:[#allocation6 + $0xb98] sm:$0xff]
    %v6126 = vld [vmem:[#allocation6 + $0xba0] sm:$0xff]
    %v6127 = vld [vmem:[#allocation6 + $0xba8] sm:$0xff]
    %v6128 = vld [vmem:[#allocation6 + $0xbb0] sm:$0xff]
    %v6129 = vld [vmem:[#allocation6 + $0xbb8] sm:$0xff]
    %v6130 = vld [vmem:[#allocation6 + $0xbc0] sm:$0xff]
    %v6131 = vld [vmem:[#allocation6 + $0xbc8] sm:$0xff]
    %v6132 = vld [vmem:[#allocation6 + $0xbd0] sm:$0xff]
    %v6133 = vld [vmem:[#allocation6 + $0xbd8] sm:$0xff]
    %v6134 = vld [vmem:[#allocation6 + $0xbe0] sm:$0xff]
    %v6135 = vld [vmem:[#allocation6 + $0xbe8] sm:$0xff]
    %v6136 = vld [vmem:[#allocation6 + $0xbf0] sm:$0xff]
    %v6137 = vld [vmem:[#allocation6 + $0xbf8] sm:$0xff]
    %v6138 = vld [vmem:[%s4] sm:$0xff]
    %v6140 = vlaneseq
    %v6141 = vshrl.u32 %v6140, 7
    %v6142 = vsub.s32 0, %v6141
    %v6143 = vrot.slane %v6138, %v6142
    %v6144 = vlaneseq
    %v6145 = vshrl.u32 %v6144, 7
    %v6146 = vsub.s32 1, %v6145
    %v6147 = vrot.slane %v6138, %v6146
    %v6148 = vlaneseq
    %v6149 = vshrl.u32 %v6148, 7
    %v6150 = vsub.s32 2, %v6149
    %v6151 = vrot.slane %v6138, %v6150
    %v6152 = vlaneseq
    %v6153 = vshrl.u32 %v6152, 7
    %v6154 = vsub.s32 3, %v6153
    %v6155 = vrot.slane %v6138, %v6154
    %v6156 = vlaneseq
    %v6157 = vshrl.u32 %v6156, 7
    %v6158 = vsub.s32 4, %v6157
    %v6159 = vrot.slane %v6138, %v6158
    %v6160 = vlaneseq
    %v6161 = vshrl.u32 %v6160, 7
    %v6162 = vsub.s32 5, %v6161
    %v6163 = vrot.slane %v6138, %v6162
    %v6164 = vlaneseq
    %v6165 = vshrl.u32 %v6164, 7
    %v6166 = vsub.s32 6, %v6165
    %v6167 = vrot.slane %v6138, %v6166
    %v6168 = vlaneseq
    %v6169 = vshrl.u32 %v6168, 7
    %v6170 = vsub.s32 7, %v6169
    %v6171 = vrot.slane %v6138, %v6170
    %v6564 = vunpack.c.l.b16 %v5754
    %v6565 = vunpack.c.h.b16 %v5754
    %v6566 = vunpack.c.l.b16 %v5755
    %v6567 = vunpack.c.h.b16 %v5755
    %v6568 = vunpack.c.l.b16 %v5756
    %v6569 = vunpack.c.h.b16 %v5756
    %v6570 = vunpack.c.l.b16 %v5757
    %v6571 = vunpack.c.h.b16 %v5757
    %v6572 = vunpack.c.l.b16 %v5758
    %v6573 = vunpack.c.h.b16 %v5758
    %v6574 = vunpack.c.l.b16 %v5759
    %v6575 = vunpack.c.h.b16 %v5759
    %v6576 = vunpack.c.l.b16 %v5760
    %v6577 = vunpack.c.h.b16 %v5760
    %v6578 = vunpack.c.l.b16 %v5761
    %v6579 = vunpack.c.h.b16 %v5761
    %v6580 = vunpack.c.l.b16 %v5762
    %v6581 = vunpack.c.h.b16 %v5762
    %v6582 = vunpack.c.l.b16 %v5763
    %v6583 = vunpack.c.h.b16 %v5763
    %v6584 = vunpack.c.l.b16 %v5764
    %v6585 = vunpack.c.h.b16 %v5764
    %v6586 = vunpack.c.l.b16 %v5765
    %v6587 = vunpack.c.h.b16 %v5765
    %v6588 = vunpack.c.l.b16 %v5766
    %v6589 = vunpack.c.h.b16 %v5766
    %v6590 = vunpack.c.l.b16 %v5767
    %v6591 = vunpack.c.h.b16 %v5767
    %v6592 = vunpack.c.l.b16 %v5768
    %v6593 = vunpack.c.h.b16 %v5768
    %v6594 = vunpack.c.l.b16 %v5769
    %v6595 = vunpack.c.h.b16 %v5769
    %v6596 = vunpack.c.l.b16 %v5770
    %v6597 = vunpack.c.h.b16 %v5770
    %v6598 = vunpack.c.l.b16 %v5771
    %v6599 = vunpack.c.h.b16 %v5771
    %v6600 = vunpack.c.l.b16 %v5772
    %v6601 = vunpack.c.h.b16 %v5772
    %v6602 = vunpack.c.l.b16 %v5773
    %v6603 = vunpack.c.h.b16 %v5773
    %v6604 = vunpack.c.l.b16 %v5774
    %v6605 = vunpack.c.h.b16 %v5774
    %v6606 = vunpack.c.l.b16 %v5775
    %v6607 = vunpack.c.h.b16 %v5775
    %v6608 = vunpack.c.l.b16 %v5776
    %v6609 = vunpack.c.h.b16 %v5776
    %v6610 = vunpack.c.l.b16 %v5777
    %v6611 = vunpack.c.h.b16 %v5777
    %v6612 = vunpack.c.l.b16 %v5778
    %v6613 = vunpack.c.h.b16 %v5778
    %v6614 = vunpack.c.l.b16 %v5779
    %v6615 = vunpack.c.h.b16 %v5779
    %v6616 = vunpack.c.l.b16 %v5780
    %v6617 = vunpack.c.h.b16 %v5780
    %v6618 = vunpack.c.l.b16 %v5781
    %v6619 = vunpack.c.h.b16 %v5781
    %v6620 = vunpack.c.l.b16 %v5782
    %v6621 = vunpack.c.h.b16 %v5782
    %v6622 = vunpack.c.l.b16 %v5783
    %v6623 = vunpack.c.h.b16 %v5783
    %v6624 = vunpack.c.l.b16 %v5784
    %v6625 = vunpack.c.h.b16 %v5784
    %v6626 = vunpack.c.l.b16 %v5785
    %v6627 = vunpack.c.h.b16 %v5785
    %v6628 = vunpack.c.l.b16 %v5786
    %v6629 = vunpack.c.h.b16 %v5786
    %v6630 = vunpack.c.l.b16 %v5787
    %v6631 = vunpack.c.h.b16 %v5787
    %v6632 = vunpack.c.l.b16 %v5788
    %v6633 = vunpack.c.h.b16 %v5788
    %v6634 = vunpack.c.l.b16 %v5789
    %v6635 = vunpack.c.h.b16 %v5789
    %v6636 = vunpack.c.l.b16 %v5790
    %v6637 = vunpack.c.h.b16 %v5790
    %v6638 = vunpack.c.l.b16 %v5791
    %v6639 = vunpack.c.h.b16 %v5791
    %v6640 = vunpack.c.l.b16 %v5792
    %v6641 = vunpack.c.h.b16 %v5792
    %v6642 = vunpack.c.l.b16 %v5793
    %v6643 = vunpack.c.h.b16 %v5793
    %v6644 = vunpack.c.l.b16 %v5794
    %v6645 = vunpack.c.h.b16 %v5794
    %v6646 = vunpack.c.l.b16 %v5795
    %v6647 = vunpack.c.h.b16 %v5795
    %v6648 = vunpack.c.l.b16 %v5796
    %v6649 = vunpack.c.h.b16 %v5796
    %v6650 = vunpack.c.l.b16 %v5797
    %v6651 = vunpack.c.h.b16 %v5797
    %v6652 = vunpack.c.l.b16 %v5798
    %v6653 = vunpack.c.h.b16 %v5798
    %v6654 = vunpack.c.l.b16 %v5799
    %v6655 = vunpack.c.h.b16 %v5799
    %v6656 = vunpack.c.l.b16 %v5800
    %v6657 = vunpack.c.h.b16 %v5800
    %v6658 = vunpack.c.l.b16 %v5801
    %v6659 = vunpack.c.h.b16 %v5801
    %v6660 = vunpack.c.l.b16 %v5802
    %v6661 = vunpack.c.h.b16 %v5802
    %v6662 = vunpack.c.l.b16 %v5803
    %v6663 = vunpack.c.h.b16 %v5803
    %v6664 = vunpack.c.l.b16 %v5804
    %v6665 = vunpack.c.h.b16 %v5804
    %v6666 = vunpack.c.l.b16 %v5805
    %v6667 = vunpack.c.h.b16 %v5805
    %v6668 = vunpack.c.l.b16 %v5806
    %v6669 = vunpack.c.h.b16 %v5806
    %v6670 = vunpack.c.l.b16 %v5807
    %v6671 = vunpack.c.h.b16 %v5807
    %v6672 = vunpack.c.l.b16 %v5808
    %v6673 = vunpack.c.h.b16 %v5808
    %v6674 = vunpack.c.l.b16 %v5809
    %v6675 = vunpack.c.h.b16 %v5809
    %v6676 = vunpack.c.l.b16 %v5810
    %v6677 = vunpack.c.h.b16 %v5810
    %v6678 = vunpack.c.l.b16 %v5811
    %v6679 = vunpack.c.h.b16 %v5811
    %v6680 = vunpack.c.l.b16 %v5812
    %v6681 = vunpack.c.h.b16 %v5812
    %v6682 = vunpack.c.l.b16 %v5813
    %v6683 = vunpack.c.h.b16 %v5813
    %v6684 = vunpack.c.l.b16 %v5814
    %v6685 = vunpack.c.h.b16 %v5814
    %v6686 = vunpack.c.l.b16 %v5815
    %v6687 = vunpack.c.h.b16 %v5815
    %v6688 = vunpack.c.l.b16 %v5816
    %v6689 = vunpack.c.h.b16 %v5816
    %v6690 = vunpack.c.l.b16 %v5817
    %v6691 = vunpack.c.h.b16 %v5817
    %v6692 = vunpack.c.l.b16 %v5818
    %v6693 = vunpack.c.h.b16 %v5818
    %v6694 = vunpack.c.l.b16 %v5819
    %v6695 = vunpack.c.h.b16 %v5819
    %v6696 = vunpack.c.l.b16 %v5820
    %v6697 = vunpack.c.h.b16 %v5820
    %v6698 = vunpack.c.l.b16 %v5821
    %v6699 = vunpack.c.h.b16 %v5821
    %v6700 = vunpack.c.l.b16 %v5822
    %v6701 = vunpack.c.h.b16 %v5822
    %v6702 = vunpack.c.l.b16 %v5823
    %v6703 = vunpack.c.h.b16 %v5823
    %v6704 = vunpack.c.l.b16 %v5824
    %v6705 = vunpack.c.h.b16 %v5824
    %v6706 = vunpack.c.l.b16 %v5825
    %v6707 = vunpack.c.h.b16 %v5825
    %v6708 = vunpack.c.l.b16 %v5826
    %v6709 = vunpack.c.h.b16 %v5826
    %v6710 = vunpack.c.l.b16 %v5827
    %v6711 = vunpack.c.h.b16 %v5827
    %v6712 = vunpack.c.l.b16 %v5828
    %v6713 = vunpack.c.h.b16 %v5828
    %v6714 = vunpack.c.l.b16 %v5829
    %v6715 = vunpack.c.h.b16 %v5829
    %v6716 = vunpack.c.l.b16 %v5830
    %v6717 = vunpack.c.h.b16 %v5830
    %v6718 = vunpack.c.l.b16 %v5831
    %v6719 = vunpack.c.h.b16 %v5831
    %v6720 = vunpack.c.l.b16 %v5832
    %v6721 = vunpack.c.h.b16 %v5832
    %v6722 = vunpack.c.l.b16 %v5833
    %v6723 = vunpack.c.h.b16 %v5833
    %v6724 = vunpack.c.l.b16 %v5834
    %v6725 = vunpack.c.h.b16 %v5834
    %v6726 = vunpack.c.l.b16 %v5835
    %v6727 = vunpack.c.h.b16 %v5835
    %v6728 = vunpack.c.l.b16 %v5836
    %v6729 = vunpack.c.h.b16 %v5836
    %v6730 = vunpack.c.l.b16 %v5837
    %v6731 = vunpack.c.h.b16 %v5837
    %v6732 = vunpack.c.l.b16 %v5838
    %v6733 = vunpack.c.h.b16 %v5838
    %v6734 = vunpack.c.l.b16 %v5839
    %v6735 = vunpack.c.h.b16 %v5839
    %v6736 = vunpack.c.l.b16 %v5840
    %v6737 = vunpack.c.h.b16 %v5840
    %v6738 = vunpack.c.l.b16 %v5841
    %v6739 = vunpack.c.h.b16 %v5841
    %v6740 = vunpack.c.l.b16 %v5842
    %v6741 = vunpack.c.h.b16 %v5842
    %v6742 = vunpack.c.l.b16 %v5843
    %v6743 = vunpack.c.h.b16 %v5843
    %v6744 = vunpack.c.l.b16 %v5844
    %v6745 = vunpack.c.h.b16 %v5844
    %v6746 = vunpack.c.l.b16 %v5845
    %v6747 = vunpack.c.h.b16 %v5845
    %v6748 = vunpack.c.l.b16 %v5846
    %v6749 = vunpack.c.h.b16 %v5846
    %v6750 = vunpack.c.l.b16 %v5847
    %v6751 = vunpack.c.h.b16 %v5847
    %v6752 = vunpack.c.l.b16 %v5848
    %v6753 = vunpack.c.h.b16 %v5848
    %v6754 = vunpack.c.l.b16 %v5849
    %v6755 = vunpack.c.h.b16 %v5849
    %v6756 = vunpack.c.l.b16 %v5850
    %v6757 = vunpack.c.h.b16 %v5850
    %v6758 = vunpack.c.l.b16 %v5851
    %v6759 = vunpack.c.h.b16 %v5851
    %v6760 = vunpack.c.l.b16 %v5852
    %v6761 = vunpack.c.h.b16 %v5852
    %v6762 = vunpack.c.l.b16 %v5853
    %v6763 = vunpack.c.h.b16 %v5853
    %v6764 = vunpack.c.l.b16 %v5854
    %v6765 = vunpack.c.h.b16 %v5854
    %v6766 = vunpack.c.l.b16 %v5855
    %v6767 = vunpack.c.h.b16 %v5855
    %v6768 = vunpack.c.l.b16 %v5856
    %v6769 = vunpack.c.h.b16 %v5856
    %v6770 = vunpack.c.l.b16 %v5857
    %v6771 = vunpack.c.h.b16 %v5857
    %v6772 = vunpack.c.l.b16 %v5858
    %v6773 = vunpack.c.h.b16 %v5858
    %v6774 = vunpack.c.l.b16 %v5859
    %v6775 = vunpack.c.h.b16 %v5859
    %v6776 = vunpack.c.l.b16 %v5860
    %v6777 = vunpack.c.h.b16 %v5860
    %v6778 = vunpack.c.l.b16 %v5861
    %v6779 = vunpack.c.h.b16 %v5861
    %v6780 = vunpack.c.l.b16 %v5862
    %v6781 = vunpack.c.h.b16 %v5862
    %v6782 = vunpack.c.l.b16 %v5863
    %v6783 = vunpack.c.h.b16 %v5863
    %v6784 = vunpack.c.l.b16 %v5864
    %v6785 = vunpack.c.h.b16 %v5864
    %v6786 = vunpack.c.l.b16 %v5865
    %v6787 = vunpack.c.h.b16 %v5865
    %v6788 = vunpack.c.l.b16 %v5866
    %v6789 = vunpack.c.h.b16 %v5866
    %v6790 = vunpack.c.l.b16 %v5867
    %v6791 = vunpack.c.h.b16 %v5867
    %v6792 = vunpack.c.l.b16 %v5868
    %v6793 = vunpack.c.h.b16 %v5868
    %v6794 = vunpack.c.l.b16 %v5869
    %v6795 = vunpack.c.h.b16 %v5869
    %v6796 = vunpack.c.l.b16 %v5870
    %v6797 = vunpack.c.h.b16 %v5870
    %v6798 = vunpack.c.l.b16 %v5871
    %v6799 = vunpack.c.h.b16 %v5871
    %v6800 = vunpack.c.l.b16 %v5872
    %v6801 = vunpack.c.h.b16 %v5872
    %v6802 = vunpack.c.l.b16 %v5873
    %v6803 = vunpack.c.h.b16 %v5873
    %v6804 = vunpack.c.l.b16 %v5874
    %v6805 = vunpack.c.h.b16 %v5874
    %v6806 = vunpack.c.l.b16 %v5875
    %v6807 = vunpack.c.h.b16 %v5875
    %v6808 = vunpack.c.l.b16 %v5876
    %v6809 = vunpack.c.h.b16 %v5876
    %v6810 = vunpack.c.l.b16 %v5877
    %v6811 = vunpack.c.h.b16 %v5877
    %v6812 = vunpack.c.l.b16 %v5878
    %v6813 = vunpack.c.h.b16 %v5878
    %v6814 = vunpack.c.l.b16 %v5879
    %v6815 = vunpack.c.h.b16 %v5879
    %v6816 = vunpack.c.l.b16 %v5880
    %v6817 = vunpack.c.h.b16 %v5880
    %v6818 = vunpack.c.l.b16 %v5881
    %v6819 = vunpack.c.h.b16 %v5881
    %v6820 = vunpack.c.l.b16 %v5882
    %v6821 = vunpack.c.h.b16 %v5882
    %v6822 = vunpack.c.l.b16 %v5883
    %v6823 = vunpack.c.h.b16 %v5883
    %v6824 = vunpack.c.l.b16 %v5884
    %v6825 = vunpack.c.h.b16 %v5884
    %v6826 = vunpack.c.l.b16 %v5885
    %v6827 = vunpack.c.h.b16 %v5885
    %v6828 = vunpack.c.l.b16 %v5886
    %v6829 = vunpack.c.h.b16 %v5886
    %v6830 = vunpack.c.l.b16 %v5887
    %v6831 = vunpack.c.h.b16 %v5887
    %v6832 = vunpack.c.l.b16 %v5888
    %v6833 = vunpack.c.h.b16 %v5888
    %v6834 = vunpack.c.l.b16 %v5889
    %v6835 = vunpack.c.h.b16 %v5889
    %v6836 = vunpack.c.l.b16 %v5890
    %v6837 = vunpack.c.h.b16 %v5890
    %v6838 = vunpack.c.l.b16 %v5891
    %v6839 = vunpack.c.h.b16 %v5891
    %v6840 = vunpack.c.l.b16 %v5892
    %v6841 = vunpack.c.h.b16 %v5892
    %v6842 = vunpack.c.l.b16 %v5893
    %v6843 = vunpack.c.h.b16 %v5893
    %v6844 = vunpack.c.l.b16 %v5894
    %v6845 = vunpack.c.h.b16 %v5894
    %v6846 = vunpack.c.l.b16 %v5895
    %v6847 = vunpack.c.h.b16 %v5895
    %v6848 = vunpack.c.l.b16 %v5896
    %v6849 = vunpack.c.h.b16 %v5896
    %v6850 = vunpack.c.l.b16 %v5897
    %v6851 = vunpack.c.h.b16 %v5897
    %v6852 = vunpack.c.l.b16 %v5898
    %v6853 = vunpack.c.h.b16 %v5898
    %v6854 = vunpack.c.l.b16 %v5899
    %v6855 = vunpack.c.h.b16 %v5899
    %v6856 = vunpack.c.l.b16 %v5900
    %v6857 = vunpack.c.h.b16 %v5900
    %v6858 = vunpack.c.l.b16 %v5901
    %v6859 = vunpack.c.h.b16 %v5901
    %v6860 = vunpack.c.l.b16 %v5902
    %v6861 = vunpack.c.h.b16 %v5902
    %v6862 = vunpack.c.l.b16 %v5903
    %v6863 = vunpack.c.h.b16 %v5903
    %v6864 = vunpack.c.l.b16 %v5904
    %v6865 = vunpack.c.h.b16 %v5904
    %v6866 = vunpack.c.l.b16 %v5905
    %v6867 = vunpack.c.h.b16 %v5905
    %v6868 = vunpack.c.l.b16 %v5906
    %v6869 = vunpack.c.h.b16 %v5906
    %v6870 = vunpack.c.l.b16 %v5907
    %v6871 = vunpack.c.h.b16 %v5907
    %v6872 = vunpack.c.l.b16 %v5908
    %v6873 = vunpack.c.h.b16 %v5908
    %v6874 = vunpack.c.l.b16 %v5909
    %v6875 = vunpack.c.h.b16 %v5909
    %v6876 = vunpack.c.l.b16 %v5910
    %v6877 = vunpack.c.h.b16 %v5910
    %v6878 = vunpack.c.l.b16 %v5911
    %v6879 = vunpack.c.h.b16 %v5911
    %v6880 = vunpack.c.l.b16 %v5912
    %v6881 = vunpack.c.h.b16 %v5912
    %v6882 = vunpack.c.l.b16 %v5913
    %v6883 = vunpack.c.h.b16 %v5913
    %v6884 = vunpack.c.l.b16 %v5914
    %v6885 = vunpack.c.h.b16 %v5914
    %v6886 = vunpack.c.l.b16 %v5915
    %v6887 = vunpack.c.h.b16 %v5915
    %v6888 = vunpack.c.l.b16 %v5916
    %v6889 = vunpack.c.h.b16 %v5916
    %v6890 = vunpack.c.l.b16 %v5917
    %v6891 = vunpack.c.h.b16 %v5917
    %v6892 = vunpack.c.l.b16 %v5918
    %v6893 = vunpack.c.h.b16 %v5918
    %v6894 = vunpack.c.l.b16 %v5919
    %v6895 = vunpack.c.h.b16 %v5919
    %v6896 = vunpack.c.l.b16 %v5920
    %v6897 = vunpack.c.h.b16 %v5920
    %v6898 = vunpack.c.l.b16 %v5921
    %v6899 = vunpack.c.h.b16 %v5921
    %v6900 = vunpack.c.l.b16 %v5922
    %v6901 = vunpack.c.h.b16 %v5922
    %v6902 = vunpack.c.l.b16 %v5923
    %v6903 = vunpack.c.h.b16 %v5923
    %v6904 = vunpack.c.l.b16 %v5924
    %v6905 = vunpack.c.h.b16 %v5924
    %v6906 = vunpack.c.l.b16 %v5925
    %v6907 = vunpack.c.h.b16 %v5925
    %v6908 = vunpack.c.l.b16 %v5926
    %v6909 = vunpack.c.h.b16 %v5926
    %v6910 = vunpack.c.l.b16 %v5927
    %v6911 = vunpack.c.h.b16 %v5927
    %v6912 = vunpack.c.l.b16 %v5928
    %v6913 = vunpack.c.h.b16 %v5928
    %v6914 = vunpack.c.l.b16 %v5929
    %v6915 = vunpack.c.h.b16 %v5929
    %v6916 = vunpack.c.l.b16 %v5930
    %v6917 = vunpack.c.h.b16 %v5930
    %v6918 = vunpack.c.l.b16 %v5931
    %v6919 = vunpack.c.h.b16 %v5931
    %v6920 = vunpack.c.l.b16 %v5932
    %v6921 = vunpack.c.h.b16 %v5932
    %v6922 = vunpack.c.l.b16 %v5933
    %v6923 = vunpack.c.h.b16 %v5933
    %v6924 = vunpack.c.l.b16 %v5934
    %v6925 = vunpack.c.h.b16 %v5934
    %v6926 = vunpack.c.l.b16 %v5935
    %v6927 = vunpack.c.h.b16 %v5935
    %v6928 = vunpack.c.l.b16 %v5936
    %v6929 = vunpack.c.h.b16 %v5936
    %v6930 = vunpack.c.l.b16 %v5937
    %v6931 = vunpack.c.h.b16 %v5937
    %v6932 = vunpack.c.l.b16 %v5938
    %v6933 = vunpack.c.h.b16 %v5938
    %v6934 = vunpack.c.l.b16 %v5939
    %v6935 = vunpack.c.h.b16 %v5939
    %v6936 = vunpack.c.l.b16 %v5940
    %v6937 = vunpack.c.h.b16 %v5940
    %v6938 = vunpack.c.l.b16 %v5941
    %v6939 = vunpack.c.h.b16 %v5941
    %v6940 = vunpack.c.l.b16 %v5942
    %v6941 = vunpack.c.h.b16 %v5942
    %v6942 = vunpack.c.l.b16 %v5943
    %v6943 = vunpack.c.h.b16 %v5943
    %v6944 = vunpack.c.l.b16 %v5944
    %v6945 = vunpack.c.h.b16 %v5944
    %v6946 = vunpack.c.l.b16 %v5945
    %v6947 = vunpack.c.h.b16 %v5945
    %v6948 = vunpack.c.l.b16 %v5946
    %v6949 = vunpack.c.h.b16 %v5946
    %v6950 = vunpack.c.l.b16 %v5947
    %v6951 = vunpack.c.h.b16 %v5947
    %v6952 = vunpack.c.l.b16 %v5948
    %v6953 = vunpack.c.h.b16 %v5948
    %v6954 = vunpack.c.l.b16 %v5949
    %v6955 = vunpack.c.h.b16 %v5949
    %v6956 = vunpack.c.l.b16 %v5950
    %v6957 = vunpack.c.h.b16 %v5950
    %v6958 = vunpack.c.l.b16 %v5951
    %v6959 = vunpack.c.h.b16 %v5951
    %v6960 = vunpack.c.l.b16 %v5952
    %v6961 = vunpack.c.h.b16 %v5952
    %v6962 = vunpack.c.l.b16 %v5953
    %v6963 = vunpack.c.h.b16 %v5953
    %v6964 = vunpack.c.l.b16 %v5954
    %v6965 = vunpack.c.h.b16 %v5954
    %v6966 = vunpack.c.l.b16 %v5955
    %v6967 = vunpack.c.h.b16 %v5955
    %v6968 = vunpack.c.l.b16 %v5956
    %v6969 = vunpack.c.h.b16 %v5956
    %v6970 = vunpack.c.l.b16 %v5957
    %v6971 = vunpack.c.h.b16 %v5957
    %v6972 = vunpack.c.l.b16 %v5958
    %v6973 = vunpack.c.h.b16 %v5958
    %v6974 = vunpack.c.l.b16 %v5959
    %v6975 = vunpack.c.h.b16 %v5959
    %v6976 = vunpack.c.l.b16 %v5960
    %v6977 = vunpack.c.h.b16 %v5960
    %v6978 = vunpack.c.l.b16 %v5961
    %v6979 = vunpack.c.h.b16 %v5961
    %v6980 = vunpack.c.l.b16 %v5962
    %v6981 = vunpack.c.h.b16 %v5962
    %v6982 = vunpack.c.l.b16 %v5963
    %v6983 = vunpack.c.h.b16 %v5963
    %v6984 = vunpack.c.l.b16 %v5964
    %v6985 = vunpack.c.h.b16 %v5964
    %v6986 = vunpack.c.l.b16 %v5965
    %v6987 = vunpack.c.h.b16 %v5965
    %v6988 = vunpack.c.l.b16 %v5966
    %v6989 = vunpack.c.h.b16 %v5966
    %v6990 = vunpack.c.l.b16 %v5967
    %v6991 = vunpack.c.h.b16 %v5967
    %v6992 = vunpack.c.l.b16 %v5968
    %v6993 = vunpack.c.h.b16 %v5968
    %v6994 = vunpack.c.l.b16 %v5969
    %v6995 = vunpack.c.h.b16 %v5969
    %v6996 = vunpack.c.l.b16 %v5970
    %v6997 = vunpack.c.h.b16 %v5970
    %v6998 = vunpack.c.l.b16 %v5971
    %v6999 = vunpack.c.h.b16 %v5971
    %v7000 = vunpack.c.l.b16 %v5972
    %v7001 = vunpack.c.h.b16 %v5972
    %v7002 = vunpack.c.l.b16 %v5973
    %v7003 = vunpack.c.h.b16 %v5973
    %v7004 = vunpack.c.l.b16 %v5974
    %v7005 = vunpack.c.h.b16 %v5974
    %v7006 = vunpack.c.l.b16 %v5975
    %v7007 = vunpack.c.h.b16 %v5975
    %v7008 = vunpack.c.l.b16 %v5976
    %v7009 = vunpack.c.h.b16 %v5976
    %v7010 = vunpack.c.l.b16 %v5977
    %v7011 = vunpack.c.h.b16 %v5977
    %v7012 = vunpack.c.l.b16 %v5978
    %v7013 = vunpack.c.h.b16 %v5978
    %v7014 = vunpack.c.l.b16 %v5979
    %v7015 = vunpack.c.h.b16 %v5979
    %v7016 = vunpack.c.l.b16 %v5980
    %v7017 = vunpack.c.h.b16 %v5980
    %v7018 = vunpack.c.l.b16 %v5981
    %v7019 = vunpack.c.h.b16 %v5981
    %v7020 = vunpack.c.l.b16 %v5982
    %v7021 = vunpack.c.h.b16 %v5982
    %v7022 = vunpack.c.l.b16 %v5983
    %v7023 = vunpack.c.h.b16 %v5983
    %v7024 = vunpack.c.l.b16 %v5984
    %v7025 = vunpack.c.h.b16 %v5984
    %v7026 = vunpack.c.l.b16 %v5985
    %v7027 = vunpack.c.h.b16 %v5985
    %v7028 = vunpack.c.l.b16 %v5986
    %v7029 = vunpack.c.h.b16 %v5986
    %v7030 = vunpack.c.l.b16 %v5987
    %v7031 = vunpack.c.h.b16 %v5987
    %v7032 = vunpack.c.l.b16 %v5988
    %v7033 = vunpack.c.h.b16 %v5988
    %v7034 = vunpack.c.l.b16 %v5989
    %v7035 = vunpack.c.h.b16 %v5989
    %v7036 = vunpack.c.l.b16 %v5990
    %v7037 = vunpack.c.h.b16 %v5990
    %v7038 = vunpack.c.l.b16 %v5991
    %v7039 = vunpack.c.h.b16 %v5991
    %v7040 = vunpack.c.l.b16 %v5992
    %v7041 = vunpack.c.h.b16 %v5992
    %v7042 = vunpack.c.l.b16 %v5993
    %v7043 = vunpack.c.h.b16 %v5993
    %v7044 = vunpack.c.l.b16 %v5994
    %v7045 = vunpack.c.h.b16 %v5994
    %v7046 = vunpack.c.l.b16 %v5995
    %v7047 = vunpack.c.h.b16 %v5995
    %v7048 = vunpack.c.l.b16 %v5996
    %v7049 = vunpack.c.h.b16 %v5996
    %v7050 = vunpack.c.l.b16 %v5997
    %v7051 = vunpack.c.h.b16 %v5997
    %v7052 = vunpack.c.l.b16 %v5998
    %v7053 = vunpack.c.h.b16 %v5998
    %v7054 = vunpack.c.l.b16 %v5999
    %v7055 = vunpack.c.h.b16 %v5999
    %v7056 = vunpack.c.l.b16 %v6000
    %v7057 = vunpack.c.h.b16 %v6000
    %v7058 = vunpack.c.l.b16 %v6001
    %v7059 = vunpack.c.h.b16 %v6001
    %v7060 = vunpack.c.l.b16 %v6002
    %v7061 = vunpack.c.h.b16 %v6002
    %v7062 = vunpack.c.l.b16 %v6003
    %v7063 = vunpack.c.h.b16 %v6003
    %v7064 = vunpack.c.l.b16 %v6004
    %v7065 = vunpack.c.h.b16 %v6004
    %v7066 = vunpack.c.l.b16 %v6005
    %v7067 = vunpack.c.h.b16 %v6005
    %v7068 = vunpack.c.l.b16 %v6006
    %v7069 = vunpack.c.h.b16 %v6006
    %v7070 = vunpack.c.l.b16 %v6007
    %v7071 = vunpack.c.h.b16 %v6007
    %v7072 = vunpack.c.l.b16 %v6008
    %v7073 = vunpack.c.h.b16 %v6008
    %v7074 = vunpack.c.l.b16 %v6009
    %v7075 = vunpack.c.h.b16 %v6009
    %v7076 = vunpack.c.l.b16 %v6010
    %v7077 = vunpack.c.h.b16 %v6010
    %v7078 = vunpack.c.l.b16 %v6011
    %v7079 = vunpack.c.h.b16 %v6011
    %v7080 = vunpack.c.l.b16 %v6012
    %v7081 = vunpack.c.h.b16 %v6012
    %v7082 = vunpack.c.l.b16 %v6013
    %v7083 = vunpack.c.h.b16 %v6013
    %v7084 = vunpack.c.l.b16 %v6014
    %v7085 = vunpack.c.h.b16 %v6014
    %v7086 = vunpack.c.l.b16 %v6015
    %v7087 = vunpack.c.h.b16 %v6015
    %v7088 = vunpack.c.l.b16 %v6016
    %v7089 = vunpack.c.h.b16 %v6016
    %v7090 = vunpack.c.l.b16 %v6017
    %v7091 = vunpack.c.h.b16 %v6017
    %v7092 = vunpack.c.l.b16 %v6018
    %v7093 = vunpack.c.h.b16 %v6018
    %v7094 = vunpack.c.l.b16 %v6019
    %v7095 = vunpack.c.h.b16 %v6019
    %v7096 = vunpack.c.l.b16 %v6020
    %v7097 = vunpack.c.h.b16 %v6020
    %v7098 = vunpack.c.l.b16 %v6021
    %v7099 = vunpack.c.h.b16 %v6021
    %v7100 = vunpack.c.l.b16 %v6022
    %v7101 = vunpack.c.h.b16 %v6022
    %v7102 = vunpack.c.l.b16 %v6023
    %v7103 = vunpack.c.h.b16 %v6023
    %v7104 = vunpack.c.l.b16 %v6024
    %v7105 = vunpack.c.h.b16 %v6024
    %v7106 = vunpack.c.l.b16 %v6025
    %v7107 = vunpack.c.h.b16 %v6025
    %v7108 = vunpack.c.l.b16 %v6026
    %v7109 = vunpack.c.h.b16 %v6026
    %v7110 = vunpack.c.l.b16 %v6027
    %v7111 = vunpack.c.h.b16 %v6027
    %v7112 = vunpack.c.l.b16 %v6028
    %v7113 = vunpack.c.h.b16 %v6028
    %v7114 = vunpack.c.l.b16 %v6029
    %v7115 = vunpack.c.h.b16 %v6029
    %v7116 = vunpack.c.l.b16 %v6030
    %v7117 = vunpack.c.h.b16 %v6030
    %v7118 = vunpack.c.l.b16 %v6031
    %v7119 = vunpack.c.h.b16 %v6031
    %v7120 = vunpack.c.l.b16 %v6032
    %v7121 = vunpack.c.h.b16 %v6032
    %v7122 = vunpack.c.l.b16 %v6033
    %v7123 = vunpack.c.h.b16 %v6033
    %v7124 = vunpack.c.l.b16 %v6034
    %v7125 = vunpack.c.h.b16 %v6034
    %v7126 = vunpack.c.l.b16 %v6035
    %v7127 = vunpack.c.h.b16 %v6035
    %v7128 = vunpack.c.l.b16 %v6036
    %v7129 = vunpack.c.h.b16 %v6036
    %v7130 = vunpack.c.l.b16 %v6037
    %v7131 = vunpack.c.h.b16 %v6037
    %v7132 = vunpack.c.l.b16 %v6038
    %v7133 = vunpack.c.h.b16 %v6038
    %v7134 = vunpack.c.l.b16 %v6039
    %v7135 = vunpack.c.h.b16 %v6039
    %v7136 = vunpack.c.l.b16 %v6040
    %v7137 = vunpack.c.h.b16 %v6040
    %v7138 = vunpack.c.l.b16 %v6041
    %v7139 = vunpack.c.h.b16 %v6041
    %v7140 = vunpack.c.l.b16 %v6042
    %v7141 = vunpack.c.h.b16 %v6042
    %v7142 = vunpack.c.l.b16 %v6043
    %v7143 = vunpack.c.h.b16 %v6043
    %v7144 = vunpack.c.l.b16 %v6044
    %v7145 = vunpack.c.h.b16 %v6044
    %v7146 = vunpack.c.l.b16 %v6045
    %v7147 = vunpack.c.h.b16 %v6045
    %v7148 = vunpack.c.l.b16 %v6046
    %v7149 = vunpack.c.h.b16 %v6046
    %v7150 = vunpack.c.l.b16 %v6047
    %v7151 = vunpack.c.h.b16 %v6047
    %v7152 = vunpack.c.l.b16 %v6048
    %v7153 = vunpack.c.h.b16 %v6048
    %v7154 = vunpack.c.l.b16 %v6049
    %v7155 = vunpack.c.h.b16 %v6049
    %v7156 = vunpack.c.l.b16 %v6050
    %v7157 = vunpack.c.h.b16 %v6050
    %v7158 = vunpack.c.l.b16 %v6051
    %v7159 = vunpack.c.h.b16 %v6051
    %v7160 = vunpack.c.l.b16 %v6052
    %v7161 = vunpack.c.h.b16 %v6052
    %v7162 = vunpack.c.l.b16 %v6053
    %v7163 = vunpack.c.h.b16 %v6053
    %v7164 = vunpack.c.l.b16 %v6054
    %v7165 = vunpack.c.h.b16 %v6054
    %v7166 = vunpack.c.l.b16 %v6055
    %v7167 = vunpack.c.h.b16 %v6055
    %v7168 = vunpack.c.l.b16 %v6056
    %v7169 = vunpack.c.h.b16 %v6056
    %v7170 = vunpack.c.l.b16 %v6057
    %v7171 = vunpack.c.h.b16 %v6057
    %v7172 = vunpack.c.l.b16 %v6058
    %v7173 = vunpack.c.h.b16 %v6058
    %v7174 = vunpack.c.l.b16 %v6059
    %v7175 = vunpack.c.h.b16 %v6059
    %v7176 = vunpack.c.l.b16 %v6060
    %v7177 = vunpack.c.h.b16 %v6060
    %v7178 = vunpack.c.l.b16 %v6061
    %v7179 = vunpack.c.h.b16 %v6061
    %v7180 = vunpack.c.l.b16 %v6062
    %v7181 = vunpack.c.h.b16 %v6062
    %v7182 = vunpack.c.l.b16 %v6063
    %v7183 = vunpack.c.h.b16 %v6063
    %v7184 = vunpack.c.l.b16 %v6064
    %v7185 = vunpack.c.h.b16 %v6064
    %v7186 = vunpack.c.l.b16 %v6065
    %v7187 = vunpack.c.h.b16 %v6065
    %v7188 = vunpack.c.l.b16 %v6066
    %v7189 = vunpack.c.h.b16 %v6066
    %v7190 = vunpack.c.l.b16 %v6067
    %v7191 = vunpack.c.h.b16 %v6067
    %v7192 = vunpack.c.l.b16 %v6068
    %v7193 = vunpack.c.h.b16 %v6068
    %v7194 = vunpack.c.l.b16 %v6069
    %v7195 = vunpack.c.h.b16 %v6069
    %v7196 = vunpack.c.l.b16 %v6070
    %v7197 = vunpack.c.h.b16 %v6070
    %v7198 = vunpack.c.l.b16 %v6071
    %v7199 = vunpack.c.h.b16 %v6071
    %v7200 = vunpack.c.l.b16 %v6072
    %v7201 = vunpack.c.h.b16 %v6072
    %v7202 = vunpack.c.l.b16 %v6073
    %v7203 = vunpack.c.h.b16 %v6073
    %v7204 = vunpack.c.l.b16 %v6074
    %v7205 = vunpack.c.h.b16 %v6074
    %v7206 = vunpack.c.l.b16 %v6075
    %v7207 = vunpack.c.h.b16 %v6075
    %v7208 = vunpack.c.l.b16 %v6076
    %v7209 = vunpack.c.h.b16 %v6076
    %v7210 = vunpack.c.l.b16 %v6077
    %v7211 = vunpack.c.h.b16 %v6077
    %v7212 = vunpack.c.l.b16 %v6078
    %v7213 = vunpack.c.h.b16 %v6078
    %v7214 = vunpack.c.l.b16 %v6079
    %v7215 = vunpack.c.h.b16 %v6079
    %v7216 = vunpack.c.l.b16 %v6080
    %v7217 = vunpack.c.h.b16 %v6080
    %v7218 = vunpack.c.l.b16 %v6081
    %v7219 = vunpack.c.h.b16 %v6081
    %v7220 = vunpack.c.l.b16 %v6082
    %v7221 = vunpack.c.h.b16 %v6082
    %v7222 = vunpack.c.l.b16 %v6083
    %v7223 = vunpack.c.h.b16 %v6083
    %v7224 = vunpack.c.l.b16 %v6084
    %v7225 = vunpack.c.h.b16 %v6084
    %v7226 = vunpack.c.l.b16 %v6085
    %v7227 = vunpack.c.h.b16 %v6085
    %v7228 = vunpack.c.l.b16 %v6086
    %v7229 = vunpack.c.h.b16 %v6086
    %v7230 = vunpack.c.l.b16 %v6087
    %v7231 = vunpack.c.h.b16 %v6087
    %v7232 = vunpack.c.l.b16 %v6088
    %v7233 = vunpack.c.h.b16 %v6088
    %v7234 = vunpack.c.l.b16 %v6089
    %v7235 = vunpack.c.h.b16 %v6089
    %v7236 = vunpack.c.l.b16 %v6090
    %v7237 = vunpack.c.h.b16 %v6090
    %v7238 = vunpack.c.l.b16 %v6091
    %v7239 = vunpack.c.h.b16 %v6091
    %v7240 = vunpack.c.l.b16 %v6092
    %v7241 = vunpack.c.h.b16 %v6092
    %v7242 = vunpack.c.l.b16 %v6093
    %v7243 = vunpack.c.h.b16 %v6093
    %v7244 = vunpack.c.l.b16 %v6094
    %v7245 = vunpack.c.h.b16 %v6094
    %v7246 = vunpack.c.l.b16 %v6095
    %v7247 = vunpack.c.h.b16 %v6095
    %v7248 = vunpack.c.l.b16 %v6096
    %v7249 = vunpack.c.h.b16 %v6096
    %v7250 = vunpack.c.l.b16 %v6097
    %v7251 = vunpack.c.h.b16 %v6097
    %v7252 = vunpack.c.l.b16 %v6098
    %v7253 = vunpack.c.h.b16 %v6098
    %v7254 = vunpack.c.l.b16 %v6099
    %v7255 = vunpack.c.h.b16 %v6099
    %v7256 = vunpack.c.l.b16 %v6100
    %v7257 = vunpack.c.h.b16 %v6100
    %v7258 = vunpack.c.l.b16 %v6101
    %v7259 = vunpack.c.h.b16 %v6101
    %v7260 = vunpack.c.l.b16 %v6102
    %v7261 = vunpack.c.h.b16 %v6102
    %v7262 = vunpack.c.l.b16 %v6103
    %v7263 = vunpack.c.h.b16 %v6103
    %v7264 = vunpack.c.l.b16 %v6104
    %v7265 = vunpack.c.h.b16 %v6104
    %v7266 = vunpack.c.l.b16 %v6105
    %v7267 = vunpack.c.h.b16 %v6105
    %v7268 = vunpack.c.l.b16 %v6106
    %v7269 = vunpack.c.h.b16 %v6106
    %v7270 = vunpack.c.l.b16 %v6107
    %v7271 = vunpack.c.h.b16 %v6107
    %v7272 = vunpack.c.l.b16 %v6108
    %v7273 = vunpack.c.h.b16 %v6108
    %v7274 = vunpack.c.l.b16 %v6109
    %v7275 = vunpack.c.h.b16 %v6109
    %v7276 = vunpack.c.l.b16 %v6110
    %v7277 = vunpack.c.h.b16 %v6110
    %v7278 = vunpack.c.l.b16 %v6111
    %v7279 = vunpack.c.h.b16 %v6111
    %v7280 = vunpack.c.l.b16 %v6112
    %v7281 = vunpack.c.h.b16 %v6112
    %v7282 = vunpack.c.l.b16 %v6113
    %v7283 = vunpack.c.h.b16 %v6113
    %v7284 = vunpack.c.l.b16 %v6114
    %v7285 = vunpack.c.h.b16 %v6114
    %v7286 = vunpack.c.l.b16 %v6115
    %v7287 = vunpack.c.h.b16 %v6115
    %v7288 = vunpack.c.l.b16 %v6116
    %v7289 = vunpack.c.h.b16 %v6116
    %v7290 = vunpack.c.l.b16 %v6117
    %v7291 = vunpack.c.h.b16 %v6117
    %v7292 = vunpack.c.l.b16 %v6118
    %v7293 = vunpack.c.h.b16 %v6118
    %v7294 = vunpack.c.l.b16 %v6119
    %v7295 = vunpack.c.h.b16 %v6119
    %v7296 = vunpack.c.l.b16 %v6120
    %v7297 = vunpack.c.h.b16 %v6120
    %v7298 = vunpack.c.l.b16 %v6121
    %v7299 = vunpack.c.h.b16 %v6121
    %v7300 = vunpack.c.l.b16 %v6122
    %v7301 = vunpack.c.h.b16 %v6122
    %v7302 = vunpack.c.l.b16 %v6123
    %v7303 = vunpack.c.h.b16 %v6123
    %v7304 = vunpack.c.l.b16 %v6124
    %v7305 = vunpack.c.h.b16 %v6124
    %v7306 = vunpack.c.l.b16 %v6125
    %v7307 = vunpack.c.h.b16 %v6125
    %v7308 = vunpack.c.l.b16 %v6126
    %v7309 = vunpack.c.h.b16 %v6126
    %v7310 = vunpack.c.l.b16 %v6127
    %v7311 = vunpack.c.h.b16 %v6127
    %v7312 = vunpack.c.l.b16 %v6128
    %v7313 = vunpack.c.h.b16 %v6128
    %v7314 = vunpack.c.l.b16 %v6129
    %v7315 = vunpack.c.h.b16 %v6129
    %v7316 = vunpack.c.l.b16 %v6130
    %v7317 = vunpack.c.h.b16 %v6130
    %v7318 = vunpack.c.l.b16 %v6131
    %v7319 = vunpack.c.h.b16 %v6131
    %v7320 = vunpack.c.l.b16 %v6132
    %v7321 = vunpack.c.h.b16 %v6132
    %v7322 = vunpack.c.l.b16 %v6133
    %v7323 = vunpack.c.h.b16 %v6133
    %v7324 = vunpack.c.l.b16 %v6134
    %v7325 = vunpack.c.h.b16 %v6134
    %v7326 = vunpack.c.l.b16 %v6135
    %v7327 = vunpack.c.h.b16 %v6135
    %v7328 = vunpack.c.l.b16 %v6136
    %v7329 = vunpack.c.h.b16 %v6136
    %v7330 = vunpack.c.l.b16 %v6137
    %v7331 = vunpack.c.h.b16 %v6137
    %v7332 = vpack.c.b16 %v6572, %v6564
    %v7333 = vpack.c.b16 %v6573, %v6565
    %v7334 = vpack.c.b16 %v6574, %v6566
    %v7335 = vpack.c.b16 %v6575, %v6567
    %v7336 = vpack.c.b16 %v6576, %v6568
    %v7337 = vpack.c.b16 %v6577, %v6569
    %v7338 = vpack.c.b16 %v6578, %v6570
    %v7339 = vpack.c.b16 %v6579, %v6571
    %v7340 = vpack.c.b16 %v6588, %v6580
    %v7341 = vpack.c.b16 %v6589, %v6581
    %v7342 = vpack.c.b16 %v6590, %v6582
    %v7343 = vpack.c.b16 %v6591, %v6583
    %v7344 = vpack.c.b16 %v6592, %v6584
    %v7345 = vpack.c.b16 %v6593, %v6585
    %v7346 = vpack.c.b16 %v6594, %v6586
    %v7347 = vpack.c.b16 %v6595, %v6587
    %v7348 = vpack.c.b16 %v6604, %v6596
    %v7349 = vpack.c.b16 %v6605, %v6597
    %v7350 = vpack.c.b16 %v6606, %v6598
    %v7351 = vpack.c.b16 %v6607, %v6599
    %v7352 = vpack.c.b16 %v6608, %v6600
    %v7353 = vpack.c.b16 %v6609, %v6601
    %v7354 = vpack.c.b16 %v6610, %v6602
    %v7355 = vpack.c.b16 %v6611, %v6603
    %v7356 = vpack.c.b16 %v6620, %v6612
    %v7357 = vpack.c.b16 %v6621, %v6613
    %v7358 = vpack.c.b16 %v6622, %v6614
    %v7359 = vpack.c.b16 %v6623, %v6615
    %v7360 = vpack.c.b16 %v6624, %v6616
    %v7361 = vpack.c.b16 %v6625, %v6617
    %v7362 = vpack.c.b16 %v6626, %v6618
    %v7363 = vpack.c.b16 %v6627, %v6619
    %v7364 = vpack.c.b16 %v6636, %v6628
    %v7365 = vpack.c.b16 %v6637, %v6629
    %v7366 = vpack.c.b16 %v6638, %v6630
    %v7367 = vpack.c.b16 %v6639, %v6631
    %v7368 = vpack.c.b16 %v6640, %v6632
    %v7369 = vpack.c.b16 %v6641, %v6633
    %v7370 = vpack.c.b16 %v6642, %v6634
    %v7371 = vpack.c.b16 %v6643, %v6635
    %v7372 = vpack.c.b16 %v6652, %v6644
    %v7373 = vpack.c.b16 %v6653, %v6645
    %v7374 = vpack.c.b16 %v6654, %v6646
    %v7375 = vpack.c.b16 %v6655, %v6647
    %v7376 = vpack.c.b16 %v6656, %v6648
    %v7377 = vpack.c.b16 %v6657, %v6649
    %v7378 = vpack.c.b16 %v6658, %v6650
    %v7379 = vpack.c.b16 %v6659, %v6651
    %v7380 = vpack.c.b16 %v6668, %v6660
    %v7381 = vpack.c.b16 %v6669, %v6661
    %v7382 = vpack.c.b16 %v6670, %v6662
    %v7383 = vpack.c.b16 %v6671, %v6663
    %v7384 = vpack.c.b16 %v6672, %v6664
    %v7385 = vpack.c.b16 %v6673, %v6665
    %v7386 = vpack.c.b16 %v6674, %v6666
    %v7387 = vpack.c.b16 %v6675, %v6667
    %v7388 = vpack.c.b16 %v6684, %v6676
    %v7389 = vpack.c.b16 %v6685, %v6677
    %v7390 = vpack.c.b16 %v6686, %v6678
    %v7391 = vpack.c.b16 %v6687, %v6679
    %v7392 = vpack.c.b16 %v6688, %v6680
    %v7393 = vpack.c.b16 %v6689, %v6681
    %v7394 = vpack.c.b16 %v6690, %v6682
    %v7395 = vpack.c.b16 %v6691, %v6683
    %v7396 = vpack.c.b16 %v6700, %v6692
    %v7397 = vpack.c.b16 %v6701, %v6693
    %v7398 = vpack.c.b16 %v6702, %v6694
    %v7399 = vpack.c.b16 %v6703, %v6695
    %v7400 = vpack.c.b16 %v6704, %v6696
    %v7401 = vpack.c.b16 %v6705, %v6697
    %v7402 = vpack.c.b16 %v6706, %v6698
    %v7403 = vpack.c.b16 %v6707, %v6699
    %v7404 = vpack.c.b16 %v6716, %v6708
    %v7405 = vpack.c.b16 %v6717, %v6709
    %v7406 = vpack.c.b16 %v6718, %v6710
    %v7407 = vpack.c.b16 %v6719, %v6711
    %v7408 = vpack.c.b16 %v6720, %v6712
    %v7409 = vpack.c.b16 %v6721, %v6713
    %v7410 = vpack.c.b16 %v6722, %v6714
    %v7411 = vpack.c.b16 %v6723, %v6715
    %v7412 = vpack.c.b16 %v6732, %v6724
    %v7413 = vpack.c.b16 %v6733, %v6725
    %v7414 = vpack.c.b16 %v6734, %v6726
    %v7415 = vpack.c.b16 %v6735, %v6727
    %v7416 = vpack.c.b16 %v6736, %v6728
    %v7417 = vpack.c.b16 %v6737, %v6729
    %v7418 = vpack.c.b16 %v6738, %v6730
    %v7419 = vpack.c.b16 %v6739, %v6731
    %v7420 = vpack.c.b16 %v6748, %v6740
    %v7421 = vpack.c.b16 %v6749, %v6741
    %v7422 = vpack.c.b16 %v6750, %v6742
    %v7423 = vpack.c.b16 %v6751, %v6743
    %v7424 = vpack.c.b16 %v6752, %v6744
    %v7425 = vpack.c.b16 %v6753, %v6745
    %v7426 = vpack.c.b16 %v6754, %v6746
    %v7427 = vpack.c.b16 %v6755, %v6747
    %v7428 = vpack.c.b16 %v6764, %v6756
    %v7429 = vpack.c.b16 %v6765, %v6757
    %v7430 = vpack.c.b16 %v6766, %v6758
    %v7431 = vpack.c.b16 %v6767, %v6759
    %v7432 = vpack.c.b16 %v6768, %v6760
    %v7433 = vpack.c.b16 %v6769, %v6761
    %v7434 = vpack.c.b16 %v6770, %v6762
    %v7435 = vpack.c.b16 %v6771, %v6763
    %v7436 = vpack.c.b16 %v6780, %v6772
    %v7437 = vpack.c.b16 %v6781, %v6773
    %v7438 = vpack.c.b16 %v6782, %v6774
    %v7439 = vpack.c.b16 %v6783, %v6775
    %v7440 = vpack.c.b16 %v6784, %v6776
    %v7441 = vpack.c.b16 %v6785, %v6777
    %v7442 = vpack.c.b16 %v6786, %v6778
    %v7443 = vpack.c.b16 %v6787, %v6779
    %v7444 = vpack.c.b16 %v6796, %v6788
    %v7445 = vpack.c.b16 %v6797, %v6789
    %v7446 = vpack.c.b16 %v6798, %v6790
    %v7447 = vpack.c.b16 %v6799, %v6791
    %v7448 = vpack.c.b16 %v6800, %v6792
    %v7449 = vpack.c.b16 %v6801, %v6793
    %v7450 = vpack.c.b16 %v6802, %v6794
    %v7451 = vpack.c.b16 %v6803, %v6795
    %v7452 = vpack.c.b16 %v6812, %v6804
    %v7453 = vpack.c.b16 %v6813, %v6805
    %v7454 = vpack.c.b16 %v6814, %v6806
    %v7455 = vpack.c.b16 %v6815, %v6807
    %v7456 = vpack.c.b16 %v6816, %v6808
    %v7457 = vpack.c.b16 %v6817, %v6809
    %v7458 = vpack.c.b16 %v6818, %v6810
    %v7459 = vpack.c.b16 %v6819, %v6811
    %v7460 = vpack.c.b16 %v6828, %v6820
    %v7461 = vpack.c.b16 %v6829, %v6821
    %v7462 = vpack.c.b16 %v6830, %v6822
    %v7463 = vpack.c.b16 %v6831, %v6823
    %v7464 = vpack.c.b16 %v6832, %v6824
    %v7465 = vpack.c.b16 %v6833, %v6825
    %v7466 = vpack.c.b16 %v6834, %v6826
    %v7467 = vpack.c.b16 %v6835, %v6827
    %v7468 = vpack.c.b16 %v6844, %v6836
    %v7469 = vpack.c.b16 %v6845, %v6837
    %v7470 = vpack.c.b16 %v6846, %v6838
    %v7471 = vpack.c.b16 %v6847, %v6839
    %v7472 = vpack.c.b16 %v6848, %v6840
    %v7473 = vpack.c.b16 %v6849, %v6841
    %v7474 = vpack.c.b16 %v6850, %v6842
    %v7475 = vpack.c.b16 %v6851, %v6843
    %v7476 = vpack.c.b16 %v6860, %v6852
    %v7477 = vpack.c.b16 %v6861, %v6853
    %v7478 = vpack.c.b16 %v6862, %v6854
    %v7479 = vpack.c.b16 %v6863, %v6855
    %v7480 = vpack.c.b16 %v6864, %v6856
    %v7481 = vpack.c.b16 %v6865, %v6857
    %v7482 = vpack.c.b16 %v6866, %v6858
    %v7483 = vpack.c.b16 %v6867, %v6859
    %v7484 = vpack.c.b16 %v6876, %v6868
    %v7485 = vpack.c.b16 %v6877, %v6869
    %v7486 = vpack.c.b16 %v6878, %v6870
    %v7487 = vpack.c.b16 %v6879, %v6871
    %v7488 = vpack.c.b16 %v6880, %v6872
    %v7489 = vpack.c.b16 %v6881, %v6873
    %v7490 = vpack.c.b16 %v6882, %v6874
    %v7491 = vpack.c.b16 %v6883, %v6875
    %v7492 = vpack.c.b16 %v6892, %v6884
    %v7493 = vpack.c.b16 %v6893, %v6885
    %v7494 = vpack.c.b16 %v6894, %v6886
    %v7495 = vpack.c.b16 %v6895, %v6887
    %v7496 = vpack.c.b16 %v6896, %v6888
    %v7497 = vpack.c.b16 %v6897, %v6889
    %v7498 = vpack.c.b16 %v6898, %v6890
    %v7499 = vpack.c.b16 %v6899, %v6891
    %v7500 = vpack.c.b16 %v6908, %v6900
    %v7501 = vpack.c.b16 %v6909, %v6901
    %v7502 = vpack.c.b16 %v6910, %v6902
    %v7503 = vpack.c.b16 %v6911, %v6903
    %v7504 = vpack.c.b16 %v6912, %v6904
    %v7505 = vpack.c.b16 %v6913, %v6905
    %v7506 = vpack.c.b16 %v6914, %v6906
    %v7507 = vpack.c.b16 %v6915, %v6907
    %v7508 = vpack.c.b16 %v6924, %v6916
    %v7509 = vpack.c.b16 %v6925, %v6917
    %v7510 = vpack.c.b16 %v6926, %v6918
    %v7511 = vpack.c.b16 %v6927, %v6919
    %v7512 = vpack.c.b16 %v6928, %v6920
    %v7513 = vpack.c.b16 %v6929, %v6921
    %v7514 = vpack.c.b16 %v6930, %v6922
    %v7515 = vpack.c.b16 %v6931, %v6923
    %v7516 = vpack.c.b16 %v6940, %v6932
    %v7517 = vpack.c.b16 %v6941, %v6933
    %v7518 = vpack.c.b16 %v6942, %v6934
    %v7519 = vpack.c.b16 %v6943, %v6935
    %v7520 = vpack.c.b16 %v6944, %v6936
    %v7521 = vpack.c.b16 %v6945, %v6937
    %v7522 = vpack.c.b16 %v6946, %v6938
    %v7523 = vpack.c.b16 %v6947, %v6939
    %v7524 = vpack.c.b16 %v6956, %v6948
    %v7525 = vpack.c.b16 %v6957, %v6949
    %v7526 = vpack.c.b16 %v6958, %v6950
    %v7527 = vpack.c.b16 %v6959, %v6951
    %v7528 = vpack.c.b16 %v6960, %v6952
    %v7529 = vpack.c.b16 %v6961, %v6953
    %v7530 = vpack.c.b16 %v6962, %v6954
    %v7531 = vpack.c.b16 %v6963, %v6955
    %v7532 = vpack.c.b16 %v6972, %v6964
    %v7533 = vpack.c.b16 %v6973, %v6965
    %v7534 = vpack.c.b16 %v6974, %v6966
    %v7535 = vpack.c.b16 %v6975, %v6967
    %v7536 = vpack.c.b16 %v6976, %v6968
    %v7537 = vpack.c.b16 %v6977, %v6969
    %v7538 = vpack.c.b16 %v6978, %v6970
    %v7539 = vpack.c.b16 %v6979, %v6971
    %v7540 = vpack.c.b16 %v6988, %v6980
    %v7541 = vpack.c.b16 %v6989, %v6981
    %v7542 = vpack.c.b16 %v6990, %v6982
    %v7543 = vpack.c.b16 %v6991, %v6983
    %v7544 = vpack.c.b16 %v6992, %v6984
    %v7545 = vpack.c.b16 %v6993, %v6985
    %v7546 = vpack.c.b16 %v6994, %v6986
    %v7547 = vpack.c.b16 %v6995, %v6987
    %v7548 = vpack.c.b16 %v7004, %v6996
    %v7549 = vpack.c.b16 %v7005, %v6997
    %v7550 = vpack.c.b16 %v7006, %v6998
    %v7551 = vpack.c.b16 %v7007, %v6999
    %v7552 = vpack.c.b16 %v7008, %v7000
    %v7553 = vpack.c.b16 %v7009, %v7001
    %v7554 = vpack.c.b16 %v7010, %v7002
    %v7555 = vpack.c.b16 %v7011, %v7003
    %v7556 = vpack.c.b16 %v7020, %v7012
    %v7557 = vpack.c.b16 %v7021, %v7013
    %v7558 = vpack.c.b16 %v7022, %v7014
    %v7559 = vpack.c.b16 %v7023, %v7015
    %v7560 = vpack.c.b16 %v7024, %v7016
    %v7561 = vpack.c.b16 %v7025, %v7017
    %v7562 = vpack.c.b16 %v7026, %v7018
    %v7563 = vpack.c.b16 %v7027, %v7019
    %v7564 = vpack.c.b16 %v7036, %v7028
    %v7565 = vpack.c.b16 %v7037, %v7029
    %v7566 = vpack.c.b16 %v7038, %v7030
    %v7567 = vpack.c.b16 %v7039, %v7031
    %v7568 = vpack.c.b16 %v7040, %v7032
    %v7569 = vpack.c.b16 %v7041, %v7033
    %v7570 = vpack.c.b16 %v7042, %v7034
    %v7571 = vpack.c.b16 %v7043, %v7035
    %v7572 = vpack.c.b16 %v7052, %v7044
    %v7573 = vpack.c.b16 %v7053, %v7045
    %v7574 = vpack.c.b16 %v7054, %v7046
    %v7575 = vpack.c.b16 %v7055, %v7047
    %v7576 = vpack.c.b16 %v7056, %v7048
    %v7577 = vpack.c.b16 %v7057, %v7049
    %v7578 = vpack.c.b16 %v7058, %v7050
    %v7579 = vpack.c.b16 %v7059, %v7051
    %v7580 = vpack.c.b16 %v7068, %v7060
    %v7581 = vpack.c.b16 %v7069, %v7061
    %v7582 = vpack.c.b16 %v7070, %v7062
    %v7583 = vpack.c.b16 %v7071, %v7063
    %v7584 = vpack.c.b16 %v7072, %v7064
    %v7585 = vpack.c.b16 %v7073, %v7065
    %v7586 = vpack.c.b16 %v7074, %v7066
    %v7587 = vpack.c.b16 %v7075, %v7067
    %v7588 = vpack.c.b16 %v7084, %v7076
    %v7589 = vpack.c.b16 %v7085, %v7077
    %v7590 = vpack.c.b16 %v7086, %v7078
    %v7591 = vpack.c.b16 %v7087, %v7079
    %v7592 = vpack.c.b16 %v7088, %v7080
    %v7593 = vpack.c.b16 %v7089, %v7081
    %v7594 = vpack.c.b16 %v7090, %v7082
    %v7595 = vpack.c.b16 %v7091, %v7083
    %v7596 = vpack.c.b16 %v7100, %v7092
    %v7597 = vpack.c.b16 %v7101, %v7093
    %v7598 = vpack.c.b16 %v7102, %v7094
    %v7599 = vpack.c.b16 %v7103, %v7095
    %v7600 = vpack.c.b16 %v7104, %v7096
    %v7601 = vpack.c.b16 %v7105, %v7097
    %v7602 = vpack.c.b16 %v7106, %v7098
    %v7603 = vpack.c.b16 %v7107, %v7099
    %v7604 = vpack.c.b16 %v7116, %v7108
    %v7605 = vpack.c.b16 %v7117, %v7109
    %v7606 = vpack.c.b16 %v7118, %v7110
    %v7607 = vpack.c.b16 %v7119, %v7111
    %v7608 = vpack.c.b16 %v7120, %v7112
    %v7609 = vpack.c.b16 %v7121, %v7113
    %v7610 = vpack.c.b16 %v7122, %v7114
    %v7611 = vpack.c.b16 %v7123, %v7115
    %v7612 = vpack.c.b16 %v7132, %v7124
    %v7613 = vpack.c.b16 %v7133, %v7125
    %v7614 = vpack.c.b16 %v7134, %v7126
    %v7615 = vpack.c.b16 %v7135, %v7127
    %v7616 = vpack.c.b16 %v7136, %v7128
    %v7617 = vpack.c.b16 %v7137, %v7129
    %v7618 = vpack.c.b16 %v7138, %v7130
    %v7619 = vpack.c.b16 %v7139, %v7131
    %v7620 = vpack.c.b16 %v7148, %v7140
    %v7621 = vpack.c.b16 %v7149, %v7141
    %v7622 = vpack.c.b16 %v7150, %v7142
    %v7623 = vpack.c.b16 %v7151, %v7143
    %v7624 = vpack.c.b16 %v7152, %v7144
    %v7625 = vpack.c.b16 %v7153, %v7145
    %v7626 = vpack.c.b16 %v7154, %v7146
    %v7627 = vpack.c.b16 %v7155, %v7147
    %v7628 = vpack.c.b16 %v7164, %v7156
    %v7629 = vpack.c.b16 %v7165, %v7157
    %v7630 = vpack.c.b16 %v7166, %v7158
    %v7631 = vpack.c.b16 %v7167, %v7159
    %v7632 = vpack.c.b16 %v7168, %v7160
    %v7633 = vpack.c.b16 %v7169, %v7161
    %v7634 = vpack.c.b16 %v7170, %v7162
    %v7635 = vpack.c.b16 %v7171, %v7163
    %v7636 = vpack.c.b16 %v7180, %v7172
    %v7637 = vpack.c.b16 %v7181, %v7173
    %v7638 = vpack.c.b16 %v7182, %v7174
    %v7639 = vpack.c.b16 %v7183, %v7175
    %v7640 = vpack.c.b16 %v7184, %v7176
    %v7641 = vpack.c.b16 %v7185, %v7177
    %v7642 = vpack.c.b16 %v7186, %v7178
    %v7643 = vpack.c.b16 %v7187, %v7179
    %v7644 = vpack.c.b16 %v7196, %v7188
    %v7645 = vpack.c.b16 %v7197, %v7189
    %v7646 = vpack.c.b16 %v7198, %v7190
    %v7647 = vpack.c.b16 %v7199, %v7191
    %v7648 = vpack.c.b16 %v7200, %v7192
    %v7649 = vpack.c.b16 %v7201, %v7193
    %v7650 = vpack.c.b16 %v7202, %v7194
    %v7651 = vpack.c.b16 %v7203, %v7195
    %v7652 = vpack.c.b16 %v7212, %v7204
    %v7653 = vpack.c.b16 %v7213, %v7205
    %v7654 = vpack.c.b16 %v7214, %v7206
    %v7655 = vpack.c.b16 %v7215, %v7207
    %v7656 = vpack.c.b16 %v7216, %v7208
    %v7657 = vpack.c.b16 %v7217, %v7209
    %v7658 = vpack.c.b16 %v7218, %v7210
    %v7659 = vpack.c.b16 %v7219, %v7211
    %v7660 = vpack.c.b16 %v7228, %v7220
    %v7661 = vpack.c.b16 %v7229, %v7221
    %v7662 = vpack.c.b16 %v7230, %v7222
    %v7663 = vpack.c.b16 %v7231, %v7223
    %v7664 = vpack.c.b16 %v7232, %v7224
    %v7665 = vpack.c.b16 %v7233, %v7225
    %v7666 = vpack.c.b16 %v7234, %v7226
    %v7667 = vpack.c.b16 %v7235, %v7227
    %v7668 = vpack.c.b16 %v7244, %v7236
    %v7669 = vpack.c.b16 %v7245, %v7237
    %v7670 = vpack.c.b16 %v7246, %v7238
    %v7671 = vpack.c.b16 %v7247, %v7239
    %v7672 = vpack.c.b16 %v7248, %v7240
    %v7673 = vpack.c.b16 %v7249, %v7241
    %v7674 = vpack.c.b16 %v7250, %v7242
    %v7675 = vpack.c.b16 %v7251, %v7243
    %v7676 = vpack.c.b16 %v7260, %v7252
    %v7677 = vpack.c.b16 %v7261, %v7253
    %v7678 = vpack.c.b16 %v7262, %v7254
    %v7679 = vpack.c.b16 %v7263, %v7255
    %v7680 = vpack.c.b16 %v7264, %v7256
    %v7681 = vpack.c.b16 %v7265, %v7257
    %v7682 = vpack.c.b16 %v7266, %v7258
    %v7683 = vpack.c.b16 %v7267, %v7259
    %v7684 = vpack.c.b16 %v7276, %v7268
    %v7685 = vpack.c.b16 %v7277, %v7269
    %v7686 = vpack.c.b16 %v7278, %v7270
    %v7687 = vpack.c.b16 %v7279, %v7271
    %v7688 = vpack.c.b16 %v7280, %v7272
    %v7689 = vpack.c.b16 %v7281, %v7273
    %v7690 = vpack.c.b16 %v7282, %v7274
    %v7691 = vpack.c.b16 %v7283, %v7275
    %v7692 = vpack.c.b16 %v7292, %v7284
    %v7693 = vpack.c.b16 %v7293, %v7285
    %v7694 = vpack.c.b16 %v7294, %v7286
    %v7695 = vpack.c.b16 %v7295, %v7287
    %v7696 = vpack.c.b16 %v7296, %v7288
    %v7697 = vpack.c.b16 %v7297, %v7289
    %v7698 = vpack.c.b16 %v7298, %v7290
    %v7699 = vpack.c.b16 %v7299, %v7291
    %v7700 = vpack.c.b16 %v7308, %v7300
    %v7701 = vpack.c.b16 %v7309, %v7301
    %v7702 = vpack.c.b16 %v7310, %v7302
    %v7703 = vpack.c.b16 %v7311, %v7303
    %v7704 = vpack.c.b16 %v7312, %v7304
    %v7705 = vpack.c.b16 %v7313, %v7305
    %v7706 = vpack.c.b16 %v7314, %v7306
    %v7707 = vpack.c.b16 %v7315, %v7307
    %v7708 = vpack.c.b16 %v7324, %v7316
    %v7709 = vpack.c.b16 %v7325, %v7317
    %v7710 = vpack.c.b16 %v7326, %v7318
    %v7711 = vpack.c.b16 %v7327, %v7319
    %v7712 = vpack.c.b16 %v7328, %v7320
    %v7713 = vpack.c.b16 %v7329, %v7321
    %v7714 = vpack.c.b16 %v7330, %v7322
    %v7715 = vpack.c.b16 %v7331, %v7323
    %8100 = vmatprep.subr.bf16.mxu0 %v7333
    %8101 = vmatpush1.bf16.msra.mxu0 %v7332
    %8102 = vmatprep.subr.bf16.mxu0 %v7341
    %8103 = vmatpush1.bf16.msra.mxu0 %v7340
    %8104 = vmatprep.subr.bf16.mxu0 %v7349
    %8105 = vmatpush1.bf16.msra.mxu0 %v7348
    %8106 = vmatprep.subr.bf16.mxu0 %v7357
    %8107 = vmatpush1.bf16.msra.mxu0 %v7356
    %8108 = vmatprep.subr.bf16.mxu0 %v7365
    %8109 = vmatpush1.bf16.msra.mxu0 %v7364
    %8110 = vmatprep.subr.bf16.mxu0 %v7373
    %8111 = vmatpush1.bf16.msra.mxu0 %v7372
    %8112 = vmatprep.subr.bf16.mxu0 %v7381
    %8113 = vmatpush1.bf16.msra.mxu0 %v7380
    %8114 = vmatprep.subr.bf16.mxu0 %v7389
    %8115 = vmatpush1.bf16.msra.mxu0 %v7388
    %8116 = vmatprep.subr.bf16.mxu0 %v7397
    %8117 = vmatpush1.bf16.msra.mxu0 %v7396
    %8118 = vmatprep.subr.bf16.mxu0 %v7405
    %8119 = vmatpush1.bf16.msra.mxu0 %v7404
    %8120 = vmatprep.subr.bf16.mxu0 %v7413
    %8121 = vmatpush1.bf16.msra.mxu0 %v7412
    %8122 = vmatprep.subr.bf16.mxu0 %v7421
    %8123 = vmatpush1.bf16.msra.mxu0 %v7420
    %8124 = vmatprep.subr.bf16.mxu0 %v7429
    %8125 = vmatpush1.bf16.msra.mxu0 %v7428
    %8126 = vmatprep.subr.bf16.mxu0 %v7437
    %8127 = vmatpush1.bf16.msra.mxu0 %v7436
    %8128 = vmatprep.subr.bf16.mxu0 %v7445
    %8129 = vmatpush1.bf16.msra.mxu0 %v7444
    %8130 = vmatprep.subr.bf16.mxu0 %v7453
    %8131 = vmatpush1.bf16.msra.mxu0 %v7452
    %8132 = vmatprep.mubr.bf16.mxu0 %v5659
    %8133 = vmatmul.mubr.bf16.gmra.mrb[0].mxu0 %v5658
    %v8134 = vpop.f32.mrb[0].mxu0
    %v8135 = vadd.f32 %v6143, %v8134
    %v8136 = vpop.f32.mrb[0].mxu0
    %v8137 = vadd.f32 %v6147, %v8136
    %v8138 = vpop.f32.mrb[0].mxu0
    %v8139 = vadd.f32 %v6143, %v8138
    %v8140 = vpop.f32.mrb[0].mxu0
    %v8141 = vadd.f32 %v6147, %v8140
    %8142 = vmatprep.mubr.bf16.mxu0 %v5665
    %8143 = vmatmul.mubr.bf16.gmra.mrb[0].mxu0 %v5664
    %v8144 = vpop.f32.mrb[0].mxu0
    %v8145 = vadd.f32 %v6143, %v8144
    %v8146 = vpop.f32.mrb[0].mxu0
    %v8147 = vadd.f32 %v6147, %v8146
    %v8148 = vpop.f32.mrb[0].mxu0
    %v8149 = vadd.f32 %v6143, %v8148
    %v8150 = vpop.f32.mrb[0].mxu0
    %v8151 = vadd.f32 %v6147, %v8150
    %8152 = vmatprep.mubr.bf16.mxu0 %v5671
    %8153 = vmatmul.mubr.bf16.gmra.mrb[0].mxu0 %v5670
    %v8154 = vpop.f32.mrb[0].mxu0
    %v8155 = vadd.f32 %v6143, %v8154
    %v8156 = vpop.f32.mrb[0].mxu0
    %v8157 = vadd.f32 %v6147, %v8156
    %v8158 = vpop.f32.mrb[0].mxu0
    %v8159 = vadd.f32 %v6143, %v8158
    %v8160 = vpop.f32.mrb[0].mxu0
    %v8161 = vadd.f32 %v6147, %v8160
    %8162 = vmatprep.mubr.bf16.mxu0 %v5677
    %8163 = vmatmul.mubr.bf16.gmra.mrb[0].mxu0 %v5676
    %v8164 = vpop.f32.mrb[0].mxu0
    %v8165 = vadd.f32 %v6143, %v8164
    %v8166 = vpop.f32.mrb[0].mxu0
    %v8167 = vadd.f32 %v6147, %v8166
    %v8168 = vpop.f32.mrb[0].mxu0
    %v8169 = vadd.f32 %v6143, %v8168
    %v8170 = vpop.f32.mrb[0].mxu0
    %v8171 = vadd.f32 %v6147, %v8170
    %8172 = vmatprep.mubr.bf16.mxu0 %v5683
    %8173 = vmatmul.mubr.bf16.gmra.mrb[0].mxu0 %v5682
    %v8174 = vpop.f32.mrb[0].mxu0
    %v8175 = vadd.f32 %v6143, %v8174
    %v8176 = vpop.f32.mrb[0].mxu0
    %v8177 = vadd.f32 %v6147, %v8176
    %v8178 = vpop.f32.mrb[0].mxu0
    %v8179 = vadd.f32 %v6143, %v8178
    %v8180 = vpop.f32.mrb[0].mxu0
    %v8181 = vadd.f32 %v6147, %v8180
    %8182 = vmatprep.mubr.bf16.mxu0 %v5689
    %8183 = vmatmul.mubr.bf16.gmra.mrb[0].mxu0 %v5688
    %v8184 = vpop.f32.mrb[0].mxu0
    %v8185 = vadd.f32 %v6143, %v8184
    %v8186 = vpop.f32.mrb[0].mxu0
    %v8187 = vadd.f32 %v6147, %v8186
    %v8188 = vpop.f32.mrb[0].mxu0
    %v8189 = vadd.f32 %v6143, %v8188
    %v8190 = vpop.f32.mrb[0].mxu0
    %v8191 = vadd.f32 %v6147, %v8190
    %8192 = vmatprep.mubr.bf16.mxu0 %v5695
    %8193 = vmatmul.mubr.bf16.gmra.mrb[0].mxu0 %v5694
    %v8194 = vpop.f32.mrb[0].mxu0
    %v8195 = vadd.f32 %v6143, %v8194
    %v8196 = vpop.f32.mrb[0].mxu0
    %v8197 = vadd.f32 %v6147, %v8196
    %v8198 = vpop.f32.mrb[0].mxu0
    %v8199 = vadd.f32 %v6143, %v8198
    %v8200 = vpop.f32.mrb[0].mxu0
    %v8201 = vadd.f32 %v6147, %v8200
    %8202 = vmatprep.mubr.bf16.mxu0 %v5701
    %8203 = vmatmul.mubr.bf16.gmra.mrb[0].mxu0 %v5700
    %v8204 = vpop.f32.mrb[0].mxu0
    %v8205 = vadd.f32 %v6143, %v8204
    %v8206 = vpop.f32.mrb[0].mxu0
    %v8207 = vadd.f32 %v6147, %v8206
    %v8208 = vpop.f32.mrb[0].mxu0
    %v8209 = vadd.f32 %v6143, %v8208
    %v8210 = vpop.f32.mrb[0].mxu0
    %v8211 = vadd.f32 %v6147, %v8210
    %8212 = vmatprep.mubr.bf16.mxu0 %v5707
    %8213 = vmatmul.mubr.bf16.gmra.mrb[0].mxu0 %v5706
    %v8214 = vpop.f32.mrb[0].mxu0
    %v8215 = vadd.f32 %v6143, %v8214
    %v8216 = vpop.f32.mrb[0].mxu0
    %v8217 = vadd.f32 %v6147, %v8216
    %v8218 = vpop.f32.mrb[0].mxu0
    %v8219 = vadd.f32 %v6143, %v8218
    %v8220 = vpop.f32.mrb[0].mxu0
    %v8221 = vadd.f32 %v6147, %v8220
    %8222 = vmatprep.mubr.bf16.mxu0 %v5713
    %8223 = vmatmul.mubr.bf16.gmra.mrb[0].mxu0 %v5712
    %v8224 = vpop.f32.mrb[0].mxu0
    %v8225 = vadd.f32 %v6143, %v8224
    %v8226 = vpop.f32.mrb[0].mxu0
    %v8227 = vadd.f32 %v6147, %v8226
    %v8228 = vpop.f32.mrb[0].mxu0
    %v8229 = vadd.f32 %v6143, %v8228
    %v8230 = vpop.f32.mrb[0].mxu0
    %v8231 = vadd.f32 %v6147, %v8230
    %8232 = vmatprep.mubr.bf16.mxu0 %v5719
    %8233 = vmatmul.mubr.bf16.gmra.mrb[0].mxu0 %v5718
    %v8234 = vpop.f32.mrb[0].mxu0
    %v8235 = vadd.f32 %v6143, %v8234
    %v8236 = vpop.f32.mrb[0].mxu0
    %v8237 = vadd.f32 %v6147, %v8236
    %v8238 = vpop.f32.mrb[0].mxu0
    %v8239 = vadd.f32 %v6143, %v8238
    %v8240 = vpop.f32.mrb[0].mxu0
    %v8241 = vadd.f32 %v6147, %v8240
    %8242 = vmatprep.mubr.bf16.mxu0 %v5725
    %8243 = vmatmul.mubr.bf16.gmra.mrb[0].mxu0 %v5724
    %v8244 = vpop.f32.mrb[0].mxu0
    %v8245 = vadd.f32 %v6143, %v8244
    %v8246 = vpop.f32.mrb[0].mxu0
    %v8247 = vadd.f32 %v6147, %v8246
    %v8248 = vpop.f32.mrb[0].mxu0
    %v8249 = vadd.f32 %v6143, %v8248
    %v8250 = vpop.f32.mrb[0].mxu0
    %v8251 = vadd.f32 %v6147, %v8250
    %8252 = vmatprep.mubr.bf16.mxu0 %v5731
    %8253 = vmatmul.mubr.bf16.gmra.mrb[0].mxu0 %v5730
    %v8254 = vpop.f32.mrb[0].mxu0
    %v8255 = vadd.f32 %v6143, %v8254
    %v8256 = vpop.f32.mrb[0].mxu0
    %v8257 = vadd.f32 %v6147, %v8256
    %v8258 = vpop.f32.mrb[0].mxu0
    %v8259 = vadd.f32 %v6143, %v8258
    %v8260 = vpop.f32.mrb[0].mxu0
    %v8261 = vadd.f32 %v6147, %v8260
    %8262 = vmatprep.mubr.bf16.mxu0 %v5737
    %8263 = vmatmul.mubr.bf16.gmra.mrb[0].mxu0 %v5736
    %v8264 = vpop.f32.mrb[0].mxu0
    %v8265 = vadd.f32 %v6143, %v8264
    %v8266 = vpop.f32.mrb[0].mxu0
    %v8267 = vadd.f32 %v6147, %v8266
    %v8268 = vpop.f32.mrb[0].mxu0
    %v8269 = vadd.f32 %v6143, %v8268
    %v8270 = vpop.f32.mrb[0].mxu0
    %v8271 = vadd.f32 %v6147, %v8270
    %8272 = vmatprep.mubr.bf16.mxu0 %v5743
    %8273 = vmatmul.mubr.bf16.gmra.mrb[0].mxu0 %v5742
    %v8274 = vpop.f32.mrb[0].mxu0
    %v8275 = vadd.f32 %v6143, %v8274
    %v8276 = vpop.f32.mrb[0].mxu0
    %v8277 = vadd.f32 %v6147, %v8276
    %v8278 = vpop.f32.mrb[0].mxu0
    %v8279 = vadd.f32 %v6143, %v8278
    %v8280 = vpop.f32.mrb[0].mxu0
    %v8281 = vadd.f32 %v6147, %v8280
    %8282 = vmatprep.mubr.bf16.mxu0 %v5749
    %8283 = vmatmul.mubr.bf16.gmra.mrb[0].mxu0 %v5748
    %v8284 = vpop.f32.mrb[0].mxu0
    %v8285 = vadd.f32 %v6143, %v8284
    %v8286 = vpop.f32.mrb[0].mxu0
    %v8287 = vadd.f32 %v6147, %v8286
    %v8288 = vpop.f32.mrb[0].mxu0
    %v8289 = vadd.f32 %v6143, %v8288
    %v8290 = vpop.f32.mrb[0].mxu0
    %v8291 = vadd.f32 %v6147, %v8290
    %8292 = vdwg.mxu0
    %8293 = vmatprep.subr.bf16.mxu0 %v7461
    %8294 = vmatpush1.bf16.msra.mxu0 %v7460
    %8295 = vmatprep.subr.bf16.mxu0 %v7469
    %8296 = vmatpush1.bf16.msra.mxu0 %v7468
    %8297 = vmatprep.subr.bf16.mxu0 %v7477
    %8298 = vmatpush1.bf16.msra.mxu0 %v7476
    %8299 = vmatprep.subr.bf16.mxu0 %v7485
    %8300 = vmatpush1.bf16.msra.mxu0 %v7484
    %8301 = vmatprep.subr.bf16.mxu0 %v7493
    %8302 = vmatpush1.bf16.msra.mxu0 %v7492
    %8303 = vmatprep.subr.bf16.mxu0 %v7501
    %8304 = vmatpush1.bf16.msra.mxu0 %v7500
    %8305 = vmatprep.subr.bf16.mxu0 %v7509
    %8306 = vmatpush1.bf16.msra.mxu0 %v7508
    %8307 = vmatprep.subr.bf16.mxu0 %v7517
    %8308 = vmatpush1.bf16.msra.mxu0 %v7516
    %8309 = vmatprep.subr.bf16.mxu0 %v7525
    %8310 = vmatpush1.bf16.msra.mxu0 %v7524
    %8311 = vmatprep.subr.bf16.mxu0 %v7533
    %8312 = vmatpush1.bf16.msra.mxu0 %v7532
    %8313 = vmatprep.subr.bf16.mxu0 %v7541
    %8314 = vmatpush1.bf16.msra.mxu0 %v7540
    %8315 = vmatprep.subr.bf16.mxu0 %v7549
    %8316 = vmatpush1.bf16.msra.mxu0 %v7548
    %8317 = vmatprep.subr.bf16.mxu0 %v7557
    %8318 = vmatpush1.bf16.msra.mxu0 %v7556
    %8319 = vmatprep.subr.bf16.mxu0 %v7565
    %8320 = vmatpush1.bf16.msra.mxu0 %v7564
    %8321 = vmatprep.subr.bf16.mxu0 %v7573
    %8322 = vmatpush1.bf16.msra.mxu0 %v7572
    %8323 = vmatprep.subr.bf16.mxu0 %v7581
    %8324 = vmatpush1.bf16.msra.mxu0 %v7580
    %8325 = vmatprep.mubr.bf16.mxu0 %v5661
    %8326 = vmatmul.mubr.bf16.gmra.mrb[0].mxu0 %v5660
    %v8327 = vpop.f32.mrb[0].mxu0
    %v8328 = vadd.f32 %v8135, %v8327
    %v8329 = vpop.f32.mrb[0].mxu0
    %v8330 = vadd.f32 %v8137, %v8329
    %v8331 = vpop.f32.mrb[0].mxu0
    %v8332 = vadd.f32 %v8139, %v8331
    %v8333 = vpop.f32.mrb[0].mxu0
    %v8334 = vadd.f32 %v8141, %v8333
    %8335 = vmatprep.mubr.bf16.mxu0 %v5667
    %8336 = vmatmul.mubr.bf16.gmra.mrb[0].mxu0 %v5666
    %v8337 = vpop.f32.mrb[0].mxu0
    %v8338 = vadd.f32 %v8145, %v8337
    %v8339 = vpop.f32.mrb[0].mxu0
    %v8340 = vadd.f32 %v8147, %v8339
    %v8341 = vpop.f32.mrb[0].mxu0
    %v8342 = vadd.f32 %v8149, %v8341
    %v8343 = vpop.f32.mrb[0].mxu0
    %v8344 = vadd.f32 %v8151, %v8343
    %8345 = vmatprep.mubr.bf16.mxu0 %v5673
    %8346 = vmatmul.mubr.bf16.gmra.mrb[0].mxu0 %v5672
    %v8347 = vpop.f32.mrb[0].mxu0
    %v8348 = vadd.f32 %v8155, %v8347
    %v8349 = vpop.f32.mrb[0].mxu0
    %v8350 = vadd.f32 %v8157, %v8349
    %v8351 = vpop.f32.mrb[0].mxu0
    %v8352 = vadd.f32 %v8159, %v8351
    %v8353 = vpop.f32.mrb[0].mxu0
    %v8354 = vadd.f32 %v8161, %v8353
    %8355 = vmatprep.mubr.bf16.mxu0 %v5679
    %8356 = vmatmul.mubr.bf16.gmra.mrb[0].mxu0 %v5678
    %v8357 = vpop.f32.mrb[0].mxu0
    %v8358 = vadd.f32 %v8165, %v8357
    %v8359 = vpop.f32.mrb[0].mxu0
    %v8360 = vadd.f32 %v8167, %v8359
    %v8361 = vpop.f32.mrb[0].mxu0
    %v8362 = vadd.f32 %v8169, %v8361
    %v8363 = vpop.f32.mrb[0].mxu0
    %v8364 = vadd.f32 %v8171, %v8363
    %8365 = vmatprep.mubr.bf16.mxu0 %v5685
    %8366 = vmatmul.mubr.bf16.gmra.mrb[0].mxu0 %v5684
    %v8367 = vpop.f32.mrb[0].mxu0
    %v8368 = vadd.f32 %v8175, %v8367
    %v8369 = vpop.f32.mrb[0].mxu0
    %v8370 = vadd.f32 %v8177, %v8369
    %v8371 = vpop.f32.mrb[0].mxu0
    %v8372 = vadd.f32 %v8179, %v8371
    %v8373 = vpop.f32.mrb[0].mxu0
    %v8374 = vadd.f32 %v8181, %v8373
    %8375 = vmatprep.mubr.bf16.mxu0 %v5691
    %8376 = vmatmul.mubr.bf16.gmra.mrb[0].mxu0 %v5690
    %v8377 = vpop.f32.mrb[0].mxu0
    %v8378 = vadd.f32 %v8185, %v8377
    %v8379 = vpop.f32.mrb[0].mxu0
    %v8380 = vadd.f32 %v8187, %v8379
    %v8381 = vpop.f32.mrb[0].mxu0
    %v8382 = vadd.f32 %v8189, %v8381
    %v8383 = vpop.f32.mrb[0].mxu0
    %v8384 = vadd.f32 %v8191, %v8383
    %8385 = vmatprep.mubr.bf16.mxu0 %v5697
    %8386 = vmatmul.mubr.bf16.gmra.mrb[0].mxu0 %v5696
    %v8387 = vpop.f32.mrb[0].mxu0
    %v8388 = vadd.f32 %v8195, %v8387
    %v8389 = vpop.f32.mrb[0].mxu0
    %v8390 = vadd.f32 %v8197, %v8389
    %v8391 = vpop.f32.mrb[0].mxu0
    %v8392 = vadd.f32 %v8199, %v8391
    %v8393 = vpop.f32.mrb[0].mxu0
    %v8394 = vadd.f32 %v8201, %v8393
    %8395 = vmatprep.mubr.bf16.mxu0 %v5703
    %8396 = vmatmul.mubr.bf16.gmra.mrb[0].mxu0 %v5702
    %v8397 = vpop.f32.mrb[0].mxu0
    %v8398 = vadd.f32 %v8205, %v8397
    %v8399 = vpop.f32.mrb[0].mxu0
    %v8400 = vadd.f32 %v8207, %v8399
    %v8401 = vpop.f32.mrb[0].mxu0
    %v8402 = vadd.f32 %v8209, %v8401
    %v8403 = vpop.f32.mrb[0].mxu0
    %v8404 = vadd.f32 %v8211, %v8403
    %8405 = vmatprep.mubr.bf16.mxu0 %v5709
    %8406 = vmatmul.mubr.bf16.gmra.mrb[0].mxu0 %v5708
    %v8407 = vpop.f32.mrb[0].mxu0
    %v8408 = vadd.f32 %v8215, %v8407
    %v8409 = vpop.f32.mrb[0].mxu0
    %v8410 = vadd.f32 %v8217, %v8409
    %v8411 = vpop.f32.mrb[0].mxu0
    %v8412 = vadd.f32 %v8219, %v8411
    %v8413 = vpop.f32.mrb[0].mxu0
    %v8414 = vadd.f32 %v8221, %v8413
    %8415 = vmatprep.mubr.bf16.mxu0 %v5715
    %8416 = vmatmul.mubr.bf16.gmra.mrb[0].mxu0 %v5714
    %v8417 = vpop.f32.mrb[0].mxu0
    %v8418 = vadd.f32 %v8225, %v8417
    %v8419 = vpop.f32.mrb[0].mxu0
    %v8420 = vadd.f32 %v8227, %v8419
    %v8421 = vpop.f32.mrb[0].mxu0
    %v8422 = vadd.f32 %v8229, %v8421
    %v8423 = vpop.f32.mrb[0].mxu0
    %v8424 = vadd.f32 %v8231, %v8423
    %8425 = vmatprep.mubr.bf16.mxu0 %v5721
    %8426 = vmatmul.mubr.bf16.gmra.mrb[0].mxu0 %v5720
    %v8427 = vpop.f32.mrb[0].mxu0
    %v8428 = vadd.f32 %v8235, %v8427
    %v8429 = vpop.f32.mrb[0].mxu0
    %v8430 = vadd.f32 %v8237, %v8429
    %v8431 = vpop.f32.mrb[0].mxu0
    %v8432 = vadd.f32 %v8239, %v8431
    %v8433 = vpop.f32.mrb[0].mxu0
    %v8434 = vadd.f32 %v8241, %v8433
    %8435 = vmatprep.mubr.bf16.mxu0 %v5727
    %8436 = vmatmul.mubr.bf16.gmra.mrb[0].mxu0 %v5726
    %v8437 = vpop.f32.mrb[0].mxu0
    %v8438 = vadd.f32 %v8245, %v8437
    %v8439 = vpop.f32.mrb[0].mxu0
    %v8440 = vadd.f32 %v8247, %v8439
    %v8441 = vpop.f32.mrb[0].mxu0
    %v8442 = vadd.f32 %v8249, %v8441
    %v8443 = vpop.f32.mrb[0].mxu0
    %v8444 = vadd.f32 %v8251, %v8443
    %8445 = vmatprep.mubr.bf16.mxu0 %v5733
    %8446 = vmatmul.mubr.bf16.gmra.mrb[0].mxu0 %v5732
    %v8447 = vpop.f32.mrb[0].mxu0
    %v8448 = vadd.f32 %v8255, %v8447
    %v8449 = vpop.f32.mrb[0].mxu0
    %v8450 = vadd.f32 %v8257, %v8449
    %v8451 = vpop.f32.mrb[0].mxu0
    %v8452 = vadd.f32 %v8259, %v8451
    %v8453 = vpop.f32.mrb[0].mxu0
    %v8454 = vadd.f32 %v8261, %v8453
    %8455 = vmatprep.mubr.bf16.mxu0 %v5739
    %8456 = vmatmul.mubr.bf16.gmra.mrb[0].mxu0 %v5738
    %v8457 = vpop.f32.mrb[0].mxu0
    %v8458 = vadd.f32 %v8265, %v8457
    %v8459 = vpop.f32.mrb[0].mxu0
    %v8460 = vadd.f32 %v8267, %v8459
    %v8461 = vpop.f32.mrb[0].mxu0
    %v8462 = vadd.f32 %v8269, %v8461
    %v8463 = vpop.f32.mrb[0].mxu0
    %v8464 = vadd.f32 %v8271, %v8463
    %8465 = vmatprep.mubr.bf16.mxu0 %v5745
    %8466 = vmatmul.mubr.bf16.gmra.mrb[0].mxu0 %v5744
    %v8467 = vpop.f32.mrb[0].mxu0
    %v8468 = vadd.f32 %v8275, %v8467
    %v8469 = vpop.f32.mrb[0].mxu0
    %v8470 = vadd.f32 %v8277, %v8469
    %v8471 = vpop.f32.mrb[0].mxu0
    %v8472 = vadd.f32 %v8279, %v8471
    %v8473 = vpop.f32.mrb[0].mxu0
    %v8474 = vadd.f32 %v8281, %v8473
    %8475 = vmatprep.mubr.bf16.mxu0 %v5751
    %8476 = vmatmul.mubr.bf16.gmra.mrb[0].mxu0 %v5750
    %v8477 = vpop.f32.mrb[0].mxu0
    %v8478 = vadd.f32 %v8285, %v8477
    %v8479 = vpop.f32.mrb[0].mxu0
    %v8480 = vadd.f32 %v8287, %v8479
    %v8481 = vpop.f32.mrb[0].mxu0
    %v8482 = vadd.f32 %v8289, %v8481
    %v8483 = vpop.f32.mrb[0].mxu0
    %v8484 = vadd.f32 %v8291, %v8483
    %8485 = vdwg.mxu0
    %8486 = vmatprep.subr.bf16.mxu0 %v7589
    %8487 = vmatpush1.bf16.msra.mxu0 %v7588
    %8488 = vmatprep.subr.bf16.mxu0 %v7597
    %8489 = vmatpush1.bf16.msra.mxu0 %v7596
    %8490 = vmatprep.subr.bf16.mxu0 %v7605
    %8491 = vmatpush1.bf16.msra.mxu0 %v7604
    %8492 = vmatprep.subr.bf16.mxu0 %v7613
    %8493 = vmatpush1.bf16.msra.mxu0 %v7612
    %8494 = vmatprep.subr.bf16.mxu0 %v7621
    %8495 = vmatpush1.bf16.msra.mxu0 %v7620
    %8496 = vmatprep.subr.bf16.mxu0 %v7629
    %8497 = vmatpush1.bf16.msra.mxu0 %v7628
    %8498 = vmatprep.subr.bf16.mxu0 %v7637
    %8499 = vmatpush1.bf16.msra.mxu0 %v7636
    %8500 = vmatprep.subr.bf16.mxu0 %v7645
    %8501 = vmatpush1.bf16.msra.mxu0 %v7644
    %8502 = vmatprep.subr.bf16.mxu0 %v7653
    %8503 = vmatpush1.bf16.msra.mxu0 %v7652
    %8504 = vmatprep.subr.bf16.mxu0 %v7661
    %8505 = vmatpush1.bf16.msra.mxu0 %v7660
    %8506 = vmatprep.subr.bf16.mxu0 %v7669
    %8507 = vmatpush1.bf16.msra.mxu0 %v7668
    %8508 = vmatprep.subr.bf16.mxu0 %v7677
    %8509 = vmatpush1.bf16.msra.mxu0 %v7676
    %8510 = vmatprep.subr.bf16.mxu0 %v7685
    %8511 = vmatpush1.bf16.msra.mxu0 %v7684
    %8512 = vmatprep.subr.bf16.mxu0 %v7693
    %8513 = vmatpush1.bf16.msra.mxu0 %v7692
    %8514 = vmatprep.subr.bf16.mxu0 %v7701
    %8515 = vmatpush1.bf16.msra.mxu0 %v7700
    %8516 = vmatprep.subr.bf16.mxu0 %v7709
    %8517 = vmatpush1.bf16.msra.mxu0 %v7708
    %8518 = vmatprep.mubr.bf16.mxu0 %v5663
    %8519 = vmatmul.mubr.bf16.gmra.mrb[0].mxu0 %v5662
    %v8520 = vpop.f32.mrb[0].mxu0
    %v8521 = vadd.f32 %v8328, %v8520
    %v8522 = vpop.f32.mrb[0].mxu0
    %v8523 = vadd.f32 %v8330, %v8522
    %v8524 = vpop.f32.mrb[0].mxu0
    %v8525 = vadd.f32 %v8332, %v8524
    %v8526 = vpop.f32.mrb[0].mxu0
    %v8527 = vadd.f32 %v8334, %v8526
    %8528 = vmatprep.mubr.bf16.mxu0 %v5669
    %8529 = vmatmul.mubr.bf16.gmra.mrb[0].mxu0 %v5668
    %v8530 = vpop.f32.mrb[0].mxu0
    %v8531 = vadd.f32 %v8338, %v8530
    %v8532 = vpop.f32.mrb[0].mxu0
    %v8533 = vadd.f32 %v8340, %v8532
    %v8534 = vpop.f32.mrb[0].mxu0
    %v8535 = vadd.f32 %v8342, %v8534
    %v8536 = vpop.f32.mrb[0].mxu0
    %v8537 = vadd.f32 %v8344, %v8536
    %8538 = vmatprep.mubr.bf16.mxu0 %v5675
    %8539 = vmatmul.mubr.bf16.gmra.mrb[0].mxu0 %v5674
    %v8540 = vpop.f32.mrb[0].mxu0
    %v8541 = vadd.f32 %v8348, %v8540
    %v8542 = vpop.f32.mrb[0].mxu0
    %v8543 = vadd.f32 %v8350, %v8542
    %v8544 = vpop.f32.mrb[0].mxu0
    %v8545 = vadd.f32 %v8352, %v8544
    %v8546 = vpop.f32.mrb[0].mxu0
    %v8547 = vadd.f32 %v8354, %v8546
    %8548 = vmatprep.mubr.bf16.mxu0 %v5681
    %8549 = vmatmul.mubr.bf16.gmra.mrb[0].mxu0 %v5680
    %v8550 = vpop.f32.mrb[0].mxu0
    %v8551 = vadd.f32 %v8358, %v8550
    %v8552 = vpop.f32.mrb[0].mxu0
    %v8553 = vadd.f32 %v8360, %v8552
    %v8554 = vpop.f32.mrb[0].mxu0
    %v8555 = vadd.f32 %v8362, %v8554
    %v8556 = vpop.f32.mrb[0].mxu0
    %v8557 = vadd.f32 %v8364, %v8556
    %8558 = vmatprep.mubr.bf16.mxu0 %v5687
    %8559 = vmatmul.mubr.bf16.gmra.mrb[0].mxu0 %v5686
    %v8560 = vpop.f32.mrb[0].mxu0
    %v8561 = vadd.f32 %v8368, %v8560
    %v8562 = vpop.f32.mrb[0].mxu0
    %v8563 = vadd.f32 %v8370, %v8562
    %v8564 = vpop.f32.mrb[0].mxu0
    %v8565 = vadd.f32 %v8372, %v8564
    %v8566 = vpop.f32.mrb[0].mxu0
    %v8567 = vadd.f32 %v8374, %v8566
    %8568 = vmatprep.mubr.bf16.mxu0 %v5693
    %8569 = vmatmul.mubr.bf16.gmra.mrb[0].mxu0 %v5692
    %v8570 = vpop.f32.mrb[0].mxu0
    %v8571 = vadd.f32 %v8378, %v8570
    %v8572 = vpop.f32.mrb[0].mxu0
    %v8573 = vadd.f32 %v8380, %v8572
    %v8574 = vpop.f32.mrb[0].mxu0
    %v8575 = vadd.f32 %v8382, %v8574
    %v8576 = vpop.f32.mrb[0].mxu0
    %v8577 = vadd.f32 %v8384, %v8576
    %8578 = vmatprep.mubr.bf16.mxu0 %v5699
    %8579 = vmatmul.mubr.bf16.gmra.mrb[0].mxu0 %v5698
    %v8580 = vpop.f32.mrb[0].mxu0
    %v8581 = vadd.f32 %v8388, %v8580
    %v8582 = vpop.f32.mrb[0].mxu0
    %v8583 = vadd.f32 %v8390, %v8582
    %v8584 = vpop.f32.mrb[0].mxu0
    %v8585 = vadd.f32 %v8392, %v8584
    %v8586 = vpop.f32.mrb[0].mxu0
    %v8587 = vadd.f32 %v8394, %v8586
    %8588 = vmatprep.mubr.bf16.mxu0 %v5705
    %8589 = vmatmul.mubr.bf16.gmra.mrb[0].mxu0 %v5704
    %v8590 = vpop.f32.mrb[0].mxu0
    %v8591 = vadd.f32 %v8398, %v8590
    %v8592 = vpop.f32.mrb[0].mxu0
    %v8593 = vadd.f32 %v8400, %v8592
    %v8594 = vpop.f32.mrb[0].mxu0
    %v8595 = vadd.f32 %v8402, %v8594
    %v8596 = vpop.f32.mrb[0].mxu0
    %v8597 = vadd.f32 %v8404, %v8596
    %8598 = vmatprep.mubr.bf16.mxu0 %v5711
    %8599 = vmatmul.mubr.bf16.gmra.mrb[0].mxu0 %v5710
    %v8600 = vpop.f32.mrb[0].mxu0
    %v8601 = vadd.f32 %v8408, %v8600
    %v8602 = vpop.f32.mrb[0].mxu0
    %v8603 = vadd.f32 %v8410, %v8602
    %v8604 = vpop.f32.mrb[0].mxu0
    %v8605 = vadd.f32 %v8412, %v8604
    %v8606 = vpop.f32.mrb[0].mxu0
    %v8607 = vadd.f32 %v8414, %v8606
    %8608 = vmatprep.mubr.bf16.mxu0 %v5717
    %8609 = vmatmul.mubr.bf16.gmra.mrb[0].mxu0 %v5716
    %v8610 = vpop.f32.mrb[0].mxu0
    %v8611 = vadd.f32 %v8418, %v8610
    %v8612 = vpop.f32.mrb[0].mxu0
    %v8613 = vadd.f32 %v8420, %v8612
    %v8614 = vpop.f32.mrb[0].mxu0
    %v8615 = vadd.f32 %v8422, %v8614
    %v8616 = vpop.f32.mrb[0].mxu0
    %v8617 = vadd.f32 %v8424, %v8616
    %8618 = vmatprep.mubr.bf16.mxu0 %v5723
    %8619 = vmatmul.mubr.bf16.gmra.mrb[0].mxu0 %v5722
    %v8620 = vpop.f32.mrb[0].mxu0
    %v8621 = vadd.f32 %v8428, %v8620
    %v8622 = vpop.f32.mrb[0].mxu0
    %v8623 = vadd.f32 %v8430, %v8622
    %v8624 = vpop.f32.mrb[0].mxu0
    %v8625 = vadd.f32 %v8432, %v8624
    %v8626 = vpop.f32.mrb[0].mxu0
    %v8627 = vadd.f32 %v8434, %v8626
    %8628 = vmatprep.mubr.bf16.mxu0 %v5729
    %8629 = vmatmul.mubr.bf16.gmra.mrb[0].mxu0 %v5728
    %v8630 = vpop.f32.mrb[0].mxu0
    %v8631 = vadd.f32 %v8438, %v8630
    %v8632 = vpop.f32.mrb[0].mxu0
    %v8633 = vadd.f32 %v8440, %v8632
    %v8634 = vpop.f32.mrb[0].mxu0
    %v8635 = vadd.f32 %v8442, %v8634
    %v8636 = vpop.f32.mrb[0].mxu0
    %v8637 = vadd.f32 %v8444, %v8636
    %8638 = vmatprep.mubr.bf16.mxu0 %v5735
    %8639 = vmatmul.mubr.bf16.gmra.mrb[0].mxu0 %v5734
    %v8640 = vpop.f32.mrb[0].mxu0
    %v8641 = vadd.f32 %v8448, %v8640
    %v8642 = vpop.f32.mrb[0].mxu0
    %v8643 = vadd.f32 %v8450, %v8642
    %v8644 = vpop.f32.mrb[0].mxu0
    %v8645 = vadd.f32 %v8452, %v8644
    %v8646 = vpop.f32.mrb[0].mxu0
    %v8647 = vadd.f32 %v8454, %v8646
    %8648 = vmatprep.mubr.bf16.mxu0 %v5741
    %8649 = vmatmul.mubr.bf16.gmra.mrb[0].mxu0 %v5740
    %v8650 = vpop.f32.mrb[0].mxu0
    %v8651 = vadd.f32 %v8458, %v8650
    %v8652 = vpop.f32.mrb[0].mxu0
    %v8653 = vadd.f32 %v8460, %v8652
    %v8654 = vpop.f32.mrb[0].mxu0
    %v8655 = vadd.f32 %v8462, %v8654
    %v8656 = vpop.f32.mrb[0].mxu0
    %v8657 = vadd.f32 %v8464, %v8656
    %8658 = vmatprep.mubr.bf16.mxu0 %v5747
    %8659 = vmatmul.mubr.bf16.gmra.mrb[0].mxu0 %v5746
    %v8660 = vpop.f32.mrb[0].mxu0
    %v8661 = vadd.f32 %v8468, %v8660
    %v8662 = vpop.f32.mrb[0].mxu0
    %v8663 = vadd.f32 %v8470, %v8662
    %v8664 = vpop.f32.mrb[0].mxu0
    %v8665 = vadd.f32 %v8472, %v8664
    %v8666 = vpop.f32.mrb[0].mxu0
    %v8667 = vadd.f32 %v8474, %v8666
    %8668 = vmatprep.mubr.bf16.mxu0 %v5753
    %8669 = vmatmul.mubr.bf16.gmra.mrb[0].mxu0 %v5752
    %v8670 = vpop.f32.mrb[0].mxu0
    %v8671 = vadd.f32 %v8478, %v8670
    %v8672 = vpop.f32.mrb[0].mxu0
    %v8673 = vadd.f32 %v8480, %v8672
    %v8674 = vpop.f32.mrb[0].mxu0
    %v8675 = vadd.f32 %v8482, %v8674
    %v8676 = vpop.f32.mrb[0].mxu0
    %v8677 = vadd.f32 %v8484, %v8676
    %8678 = vdwg.mxu0
    %8679 = vmatprep.subr.bf16.mxu0 %v7335
    %8680 = vmatpush1.bf16.msra.mxu0 %v7334
    %8681 = vmatprep.subr.bf16.mxu0 %v7343
    %8682 = vmatpush1.bf16.msra.mxu0 %v7342
    %8683 = vmatprep.subr.bf16.mxu0 %v7351
    %8684 = vmatpush1.bf16.msra.mxu0 %v7350
    %8685 = vmatprep.subr.bf16.mxu0 %v7359
    %8686 = vmatpush1.bf16.msra.mxu0 %v7358
    %8687 = vmatprep.subr.bf16.mxu0 %v7367
    %8688 = vmatpush1.bf16.msra.mxu0 %v7366
    %8689 = vmatprep.subr.bf16.mxu0 %v7375
    %8690 = vmatpush1.bf16.msra.mxu0 %v7374
    %8691 = vmatprep.subr.bf16.mxu0 %v7383
    %8692 = vmatpush1.bf16.msra.mxu0 %v7382
    %8693 = vmatprep.subr.bf16.mxu0 %v7391
    %8694 = vmatpush1.bf16.msra.mxu0 %v7390
    %8695 = vmatprep.subr.bf16.mxu0 %v7399
    %8696 = vmatpush1.bf16.msra.mxu0 %v7398
    %8697 = vmatprep.subr.bf16.mxu0 %v7407
    %8698 = vmatpush1.bf16.msra.mxu0 %v7406
    %8699 = vmatprep.subr.bf16.mxu0 %v7415
    %8700 = vmatpush1.bf16.msra.mxu0 %v7414
    %8701 = vmatprep.subr.bf16.mxu0 %v7423
    %8702 = vmatpush1.bf16.msra.mxu0 %v7422
    %8703 = vmatprep.subr.bf16.mxu0 %v7431
    %8704 = vmatpush1.bf16.msra.mxu0 %v7430
    %8705 = vmatprep.subr.bf16.mxu0 %v7439
    %8706 = vmatpush1.bf16.msra.mxu0 %v7438
    %8707 = vmatprep.subr.bf16.mxu0 %v7447
    %8708 = vmatpush1.bf16.msra.mxu0 %v7446
    %8709 = vmatprep.subr.bf16.mxu0 %v7455
    %8710 = vmatpush1.bf16.msra.mxu0 %v7454
    %8711 = vmatprep.mubr.bf16.mxu0 %v5659
    %8712 = vmatmul.mubr.bf16.gmra.mrb[0].mxu0 %v5658
    %v8713 = vpop.f32.mrb[0].mxu0
    %v8714 = vadd.f32 %v6151, %v8713
    %v8715 = vpop.f32.mrb[0].mxu0
    %v8716 = vadd.f32 %v6155, %v8715
    %v8717 = vpop.f32.mrb[0].mxu0
    %v8718 = vadd.f32 %v6151, %v8717
    %v8719 = vpop.f32.mrb[0].mxu0
    %v8720 = vadd.f32 %v6155, %v8719
    %8721 = vmatprep.mubr.bf16.mxu0 %v5665
    %8722 = vmatmul.mubr.bf16.gmra.mrb[0].mxu0 %v5664
    %v8723 = vpop.f32.mrb[0].mxu0
    %v8724 = vadd.f32 %v6151, %v8723
    %v8725 = vpop.f32.mrb[0].mxu0
    %v8726 = vadd.f32 %v6155, %v8725
    %v8727 = vpop.f32.mrb[0].mxu0
    %v8728 = vadd.f32 %v6151, %v8727
    %v8729 = vpop.f32.mrb[0].mxu0
    %v8730 = vadd.f32 %v6155, %v8729
    %8731 = vmatprep.mubr.bf16.mxu0 %v5671
    %8732 = vmatmul.mubr.bf16.gmra.mrb[0].mxu0 %v5670
    %v8733 = vpop.f32.mrb[0].mxu0
    %v8734 = vadd.f32 %v6151, %v8733
    %v8735 = vpop.f32.mrb[0].mxu0
    %v8736 = vadd.f32 %v6155, %v8735
    %v8737 = vpop.f32.mrb[0].mxu0
    %v8738 = vadd.f32 %v6151, %v8737
    %v8739 = vpop.f32.mrb[0].mxu0
    %v8740 = vadd.f32 %v6155, %v8739
    %8741 = vmatprep.mubr.bf16.mxu0 %v5677
    %8742 = vmatmul.mubr.bf16.gmra.mrb[0].mxu0 %v5676
    %v8743 = vpop.f32.mrb[0].mxu0
    %v8744 = vadd.f32 %v6151, %v8743
    %v8745 = vpop.f32.mrb[0].mxu0
    %v8746 = vadd.f32 %v6155, %v8745
    %v8747 = vpop.f32.mrb[0].mxu0
    %v8748 = vadd.f32 %v6151, %v8747
    %v8749 = vpop.f32.mrb[0].mxu0
    %v8750 = vadd.f32 %v6155, %v8749
    %8751 = vmatprep.mubr.bf16.mxu0 %v5683
    %8752 = vmatmul.mubr.bf16.gmra.mrb[0].mxu0 %v5682
    %v8753 = vpop.f32.mrb[0].mxu0
    %v8754 = vadd.f32 %v6151, %v8753
    %v8755 = vpop.f32.mrb[0].mxu0
    %v8756 = vadd.f32 %v6155, %v8755
    %v8757 = vpop.f32.mrb[0].mxu0
    %v8758 = vadd.f32 %v6151, %v8757
    %v8759 = vpop.f32.mrb[0].mxu0
    %v8760 = vadd.f32 %v6155, %v8759
    %8761 = vmatprep.mubr.bf16.mxu0 %v5689
    %8762 = vmatmul.mubr.bf16.gmra.mrb[0].mxu0 %v5688
    %v8763 = vpop.f32.mrb[0].mxu0
    %v8764 = vadd.f32 %v6151, %v8763
    %v8765 = vpop.f32.mrb[0].mxu0
    %v8766 = vadd.f32 %v6155, %v8765
    %v8767 = vpop.f32.mrb[0].mxu0
    %v8768 = vadd.f32 %v6151, %v8767
    %v8769 = vpop.f32.mrb[0].mxu0
    %v8770 = vadd.f32 %v6155, %v8769
    %8771 = vmatprep.mubr.bf16.mxu0 %v5695
    %8772 = vmatmul.mubr.bf16.gmra.mrb[0].mxu0 %v5694
    %v8773 = vpop.f32.mrb[0].mxu0
    %v8774 = vadd.f32 %v6151, %v8773
    %v8775 = vpop.f32.mrb[0].mxu0
    %v8776 = vadd.f32 %v6155, %v8775
    %v8777 = vpop.f32.mrb[0].mxu0
    %v8778 = vadd.f32 %v6151, %v8777
    %v8779 = vpop.f32.mrb[0].mxu0
    %v8780 = vadd.f32 %v6155, %v8779
    %8781 = vmatprep.mubr.bf16.mxu0 %v5701
    %8782 = vmatmul.mubr.bf16.gmra.mrb[0].mxu0 %v5700
    %v8783 = vpop.f32.mrb[0].mxu0
    %v8784 = vadd.f32 %v6151, %v8783
    %v8785 = vpop.f32.mrb[0].mxu0
    %v8786 = vadd.f32 %v6155, %v8785
    %v8787 = vpop.f32.mrb[0].mxu0
    %v8788 = vadd.f32 %v6151, %v8787
    %v8789 = vpop.f32.mrb[0].mxu0
    %v8790 = vadd.f32 %v6155, %v8789
    %8791 = vmatprep.mubr.bf16.mxu0 %v5707
    %8792 = vmatmul.mubr.bf16.gmra.mrb[0].mxu0 %v5706
    %v8793 = vpop.f32.mrb[0].mxu0
    %v8794 = vadd.f32 %v6151, %v8793
    %v8795 = vpop.f32.mrb[0].mxu0
    %v8796 = vadd.f32 %v6155, %v8795
    %v8797 = vpop.f32.mrb[0].mxu0
    %v8798 = vadd.f32 %v6151, %v8797
    %v8799 = vpop.f32.mrb[0].mxu0
    %v8800 = vadd.f32 %v6155, %v8799
    %8801 = vmatprep.mubr.bf16.mxu0 %v5713
    %8802 = vmatmul.mubr.bf16.gmra.mrb[0].mxu0 %v5712
    %v8803 = vpop.f32.mrb[0].mxu0
    %v8804 = vadd.f32 %v6151, %v8803
    %v8805 = vpop.f32.mrb[0].mxu0
    %v8806 = vadd.f32 %v6155, %v8805
    %v8807 = vpop.f32.mrb[0].mxu0
    %v8808 = vadd.f32 %v6151, %v8807
    %v8809 = vpop.f32.mrb[0].mxu0
    %v8810 = vadd.f32 %v6155, %v8809
    %8811 = vmatprep.mubr.bf16.mxu0 %v5719
    %8812 = vmatmul.mubr.bf16.gmra.mrb[0].mxu0 %v5718
    %v8813 = vpop.f32.mrb[0].mxu0
    %v8814 = vadd.f32 %v6151, %v8813
    %v8815 = vpop.f32.mrb[0].mxu0
    %v8816 = vadd.f32 %v6155, %v8815
    %v8817 = vpop.f32.mrb[0].mxu0
    %v8818 = vadd.f32 %v6151, %v8817
    %v8819 = vpop.f32.mrb[0].mxu0
    %v8820 = vadd.f32 %v6155, %v8819
    %8821 = vmatprep.mubr.bf16.mxu0 %v5725
    %8822 = vmatmul.mubr.bf16.gmra.mrb[0].mxu0 %v5724
    %v8823 = vpop.f32.mrb[0].mxu0
    %v8824 = vadd.f32 %v6151, %v8823
    %v8825 = vpop.f32.mrb[0].mxu0
    %v8826 = vadd.f32 %v6155, %v8825
    %v8827 = vpop.f32.mrb[0].mxu0
    %v8828 = vadd.f32 %v6151, %v8827
    %v8829 = vpop.f32.mrb[0].mxu0
    %v8830 = vadd.f32 %v6155, %v8829
    %8831 = vmatprep.mubr.bf16.mxu0 %v5731
    %8832 = vmatmul.mubr.bf16.gmra.mrb[0].mxu0 %v5730
    %v8833 = vpop.f32.mrb[0].mxu0
    %v8834 = vadd.f32 %v6151, %v8833
    %v8835 = vpop.f32.mrb[0].mxu0
    %v8836 = vadd.f32 %v6155, %v8835
    %v8837 = vpop.f32.mrb[0].mxu0
    %v8838 = vadd.f32 %v6151, %v8837
    %v8839 = vpop.f32.mrb[0].mxu0
    %v8840 = vadd.f32 %v6155, %v8839
    %8841 = vmatprep.mubr.bf16.mxu0 %v5737
    %8842 = vmatmul.mubr.bf16.gmra.mrb[0].mxu0 %v5736
    %v8843 = vpop.f32.mrb[0].mxu0
    %v8844 = vadd.f32 %v6151, %v8843
    %v8845 = vpop.f32.mrb[0].mxu0
    %v8846 = vadd.f32 %v6155, %v8845
    %v8847 = vpop.f32.mrb[0].mxu0
    %v8848 = vadd.f32 %v6151, %v8847
    %v8849 = vpop.f32.mrb[0].mxu0
    %v8850 = vadd.f32 %v6155, %v8849
    %8851 = vmatprep.mubr.bf16.mxu0 %v5743
    %8852 = vmatmul.mubr.bf16.gmra.mrb[0].mxu0 %v5742
    %v8853 = vpop.f32.mrb[0].mxu0
    %v8854 = vadd.f32 %v6151, %v8853
    %v8855 = vpop.f32.mrb[0].mxu0
    %v8856 = vadd.f32 %v6155, %v8855
    %v8857 = vpop.f32.mrb[0].mxu0
    %v8858 = vadd.f32 %v6151, %v8857
    %v8859 = vpop.f32.mrb[0].mxu0
    %v8860 = vadd.f32 %v6155, %v8859
    %8861 = vmatprep.mubr.bf16.mxu0 %v5749
    %8862 = vmatmul.mubr.bf16.gmra.mrb[0].mxu0 %v5748
    %v8863 = vpop.f32.mrb[0].mxu0
    %v8864 = vadd.f32 %v6151, %v8863
    %v8865 = vpop.f32.mrb[0].mxu0
    %v8866 = vadd.f32 %v6155, %v8865
    %v8867 = vpop.f32.mrb[0].mxu0
    %v8868 = vadd.f32 %v6151, %v8867
    %v8869 = vpop.f32.mrb[0].mxu0
    %v8870 = vadd.f32 %v6155, %v8869
    %8871 = vdwg.mxu0
    %8872 = vmatprep.subr.bf16.mxu0 %v7463
    %8873 = vmatpush1.bf16.msra.mxu0 %v7462
    %8874 = vmatprep.subr.bf16.mxu0 %v7471
    %8875 = vmatpush1.bf16.msra.mxu0 %v7470
    %8876 = vmatprep.subr.bf16.mxu0 %v7479
    %8877 = vmatpush1.bf16.msra.mxu0 %v7478
    %8878 = vmatprep.subr.bf16.mxu0 %v7487
    %8879 = vmatpush1.bf16.msra.mxu0 %v7486
    %8880 = vmatprep.subr.bf16.mxu0 %v7495
    %8881 = vmatpush1.bf16.msra.mxu0 %v7494
    %8882 = vmatprep.subr.bf16.mxu0 %v7503
    %8883 = vmatpush1.bf16.msra.mxu0 %v7502
    %8884 = vmatprep.subr.bf16.mxu0 %v7511
    %8885 = vmatpush1.bf16.msra.mxu0 %v7510
    %8886 = vmatprep.subr.bf16.mxu0 %v7519
    %8887 = vmatpush1.bf16.msra.mxu0 %v7518
    %8888 = vmatprep.subr.bf16.mxu0 %v7527
    %8889 = vmatpush1.bf16.msra.mxu0 %v7526
    %8890 = vmatprep.subr.bf16.mxu0 %v7535
    %8891 = vmatpush1.bf16.msra.mxu0 %v7534
    %8892 = vmatprep.subr.bf16.mxu0 %v7543
    %8893 = vmatpush1.bf16.msra.mxu0 %v7542
    %8894 = vmatprep.subr.bf16.mxu0 %v7551
    %8895 = vmatpush1.bf16.msra.mxu0 %v7550
    %8896 = vmatprep.subr.bf16.mxu0 %v7559
    %8897 = vmatpush1.bf16.msra.mxu0 %v7558
    %8898 = vmatprep.subr.bf16.mxu0 %v7567
    %8899 = vmatpush1.bf16.msra.mxu0 %v7566
    %8900 = vmatprep.subr.bf16.mxu0 %v7575
    %8901 = vmatpush1.bf16.msra.mxu0 %v7574
    %8902 = vmatprep.subr.bf16.mxu0 %v7583
    %8903 = vmatpush1.bf16.msra.mxu0 %v7582
    %8904 = vmatprep.mubr.bf16.mxu0 %v5661
    %8905 = vmatmul.mubr.bf16.gmra.mrb[0].mxu0 %v5660
    %v8906 = vpop.f32.mrb[0].mxu0
    %v8907 = vadd.f32 %v8714, %v8906
    %v8908 = vpop.f32.mrb[0].mxu0
    %v8909 = vadd.f32 %v8716, %v8908
    %v8910 = vpop.f32.mrb[0].mxu0
    %v8911 = vadd.f32 %v8718, %v8910
    %v8912 = vpop.f32.mrb[0].mxu0
    %v8913 = vadd.f32 %v8720, %v8912
    %8914 = vmatprep.mubr.bf16.mxu0 %v5667
    %8915 = vmatmul.mubr.bf16.gmra.mrb[0].mxu0 %v5666
    %v8916 = vpop.f32.mrb[0].mxu0
    %v8917 = vadd.f32 %v8724, %v8916
    %v8918 = vpop.f32.mrb[0].mxu0
    %v8919 = vadd.f32 %v8726, %v8918
    %v8920 = vpop.f32.mrb[0].mxu0
    %v8921 = vadd.f32 %v8728, %v8920
    %v8922 = vpop.f32.mrb[0].mxu0
    %v8923 = vadd.f32 %v8730, %v8922
    %8924 = vmatprep.mubr.bf16.mxu0 %v5673
    %8925 = vmatmul.mubr.bf16.gmra.mrb[0].mxu0 %v5672
    %v8926 = vpop.f32.mrb[0].mxu0
    %v8927 = vadd.f32 %v8734, %v8926
    %v8928 = vpop.f32.mrb[0].mxu0
    %v8929 = vadd.f32 %v8736, %v8928
    %v8930 = vpop.f32.mrb[0].mxu0
    %v8931 = vadd.f32 %v8738, %v8930
    %v8932 = vpop.f32.mrb[0].mxu0
    %v8933 = vadd.f32 %v8740, %v8932
    %8934 = vmatprep.mubr.bf16.mxu0 %v5679
    %8935 = vmatmul.mubr.bf16.gmra.mrb[0].mxu0 %v5678
    %v8936 = vpop.f32.mrb[0].mxu0
    %v8937 = vadd.f32 %v8744, %v8936
    %v8938 = vpop.f32.mrb[0].mxu0
    %v8939 = vadd.f32 %v8746, %v8938
    %v8940 = vpop.f32.mrb[0].mxu0
    %v8941 = vadd.f32 %v8748, %v8940
    %v8942 = vpop.f32.mrb[0].mxu0
    %v8943 = vadd.f32 %v8750, %v8942
    %8944 = vmatprep.mubr.bf16.mxu0 %v5685
    %8945 = vmatmul.mubr.bf16.gmra.mrb[0].mxu0 %v5684
    %v8946 = vpop.f32.mrb[0].mxu0
    %v8947 = vadd.f32 %v8754, %v8946
    %v8948 = vpop.f32.mrb[0].mxu0
    %v8949 = vadd.f32 %v8756, %v8948
    %v8950 = vpop.f32.mrb[0].mxu0
    %v8951 = vadd.f32 %v8758, %v8950
    %v8952 = vpop.f32.mrb[0].mxu0
    %v8953 = vadd.f32 %v8760, %v8952
    %8954 = vmatprep.mubr.bf16.mxu0 %v5691
    %8955 = vmatmul.mubr.bf16.gmra.mrb[0].mxu0 %v5690
    %v8956 = vpop.f32.mrb[0].mxu0
    %v8957 = vadd.f32 %v8764, %v8956
    %v8958 = vpop.f32.mrb[0].mxu0
    %v8959 = vadd.f32 %v8766, %v8958
    %v8960 = vpop.f32.mrb[0].mxu0
    %v8961 = vadd.f32 %v8768, %v8960
    %v8962 = vpop.f32.mrb[0].mxu0
    %v8963 = vadd.f32 %v8770, %v8962
    %8964 = vmatprep.mubr.bf16.mxu0 %v5697
    %8965 = vmatmul.mubr.bf16.gmra.mrb[0].mxu0 %v5696
    %v8966 = vpop.f32.mrb[0].mxu0
    %v8967 = vadd.f32 %v8774, %v8966
    %v8968 = vpop.f32.mrb[0].mxu0
    %v8969 = vadd.f32 %v8776, %v8968
    %v8970 = vpop.f32.mrb[0].mxu0
    %v8971 = vadd.f32 %v8778, %v8970
    %v8972 = vpop.f32.mrb[0].mxu0
    %v8973 = vadd.f32 %v8780, %v8972
    %8974 = vmatprep.mubr.bf16.mxu0 %v5703
    %8975 = vmatmul.mubr.bf16.gmra.mrb[0].mxu0 %v5702
    %v8976 = vpop.f32.mrb[0].mxu0
    %v8977 = vadd.f32 %v8784, %v8976
    %v8978 = vpop.f32.mrb[0].mxu0
    %v8979 = vadd.f32 %v8786, %v8978
    %v8980 = vpop.f32.mrb[0].mxu0
    %v8981 = vadd.f32 %v8788, %v8980
    %v8982 = vpop.f32.mrb[0].mxu0
    %v8983 = vadd.f32 %v8790, %v8982
    %8984 = vmatprep.mubr.bf16.mxu0 %v5709
    %8985 = vmatmul.mubr.bf16.gmra.mrb[0].mxu0 %v5708
    %v8986 = vpop.f32.mrb[0].mxu0
    %v8987 = vadd.f32 %v8794, %v8986
    %v8988 = vpop.f32.mrb[0].mxu0
    %v8989 = vadd.f32 %v8796, %v8988
    %v8990 = vpop.f32.mrb[0].mxu0
    %v8991 = vadd.f32 %v8798, %v8990
    %v8992 = vpop.f32.mrb[0].mxu0
    %v8993 = vadd.f32 %v8800, %v8992
    %8994 = vmatprep.mubr.bf16.mxu0 %v5715
    %8995 = vmatmul.mubr.bf16.gmra.mrb[0].mxu0 %v5714
    %v8996 = vpop.f32.mrb[0].mxu0
    %v8997 = vadd.f32 %v8804, %v8996
    %v8998 = vpop.f32.mrb[0].mxu0
    %v8999 = vadd.f32 %v8806, %v8998
    %v9000 = vpop.f32.mrb[0].mxu0
    %v9001 = vadd.f32 %v8808, %v9000
    %v9002 = vpop.f32.mrb[0].mxu0
    %v9003 = vadd.f32 %v8810, %v9002
    %9004 = vmatprep.mubr.bf16.mxu0 %v5721
    %9005 = vmatmul.mubr.bf16.gmra.mrb[0].mxu0 %v5720
    %v9006 = vpop.f32.mrb[0].mxu0
    %v9007 = vadd.f32 %v8814, %v9006
    %v9008 = vpop.f32.mrb[0].mxu0
    %v9009 = vadd.f32 %v8816, %v9008
    %v9010 = vpop.f32.mrb[0].mxu0
    %v9011 = vadd.f32 %v8818, %v9010
    %v9012 = vpop.f32.mrb[0].mxu0
    %v9013 = vadd.f32 %v8820, %v9012
    %9014 = vmatprep.mubr.bf16.mxu0 %v5727
    %9015 = vmatmul.mubr.bf16.gmra.mrb[0].mxu0 %v5726
    %v9016 = vpop.f32.mrb[0].mxu0
    %v9017 = vadd.f32 %v8824, %v9016
    %v9018 = vpop.f32.mrb[0].mxu0
    %v9019 = vadd.f32 %v8826, %v9018
    %v9020 = vpop.f32.mrb[0].mxu0
    %v9021 = vadd.f32 %v8828, %v9020
    %v9022 = vpop.f32.mrb[0].mxu0
    %v9023 = vadd.f32 %v8830, %v9022
    %9024 = vmatprep.mubr.bf16.mxu0 %v5733
    %9025 = vmatmul.mubr.bf16.gmra.mrb[0].mxu0 %v5732
    %v9026 = vpop.f32.mrb[0].mxu0
    %v9027 = vadd.f32 %v8834, %v9026
    %v9028 = vpop.f32.mrb[0].mxu0
    %v9029 = vadd.f32 %v8836, %v9028
    %v9030 = vpop.f32.mrb[0].mxu0
    %v9031 = vadd.f32 %v8838, %v9030
    %v9032 = vpop.f32.mrb[0].mxu0
    %v9033 = vadd.f32 %v8840, %v9032
    %9034 = vmatprep.mubr.bf16.mxu0 %v5739
    %9035 = vmatmul.mubr.bf16.gmra.mrb[0].mxu0 %v5738
    %v9036 = vpop.f32.mrb[0].mxu0
    %v9037 = vadd.f32 %v8844, %v9036
    %v9038 = vpop.f32.mrb[0].mxu0
    %v9039 = vadd.f32 %v8846, %v9038
    %v9040 = vpop.f32.mrb[0].mxu0
    %v9041 = vadd.f32 %v8848, %v9040
    %v9042 = vpop.f32.mrb[0].mxu0
    %v9043 = vadd.f32 %v8850, %v9042
    %9044 = vmatprep.mubr.bf16.mxu0 %v5745
    %9045 = vmatmul.mubr.bf16.gmra.mrb[0].mxu0 %v5744
    %v9046 = vpop.f32.mrb[0].mxu0
    %v9047 = vadd.f32 %v8854, %v9046
    %v9048 = vpop.f32.mrb[0].mxu0
    %v9049 = vadd.f32 %v8856, %v9048
    %v9050 = vpop.f32.mrb[0].mxu0
    %v9051 = vadd.f32 %v8858, %v9050
    %v9052 = vpop.f32.mrb[0].mxu0
    %v9053 = vadd.f32 %v8860, %v9052
    %9054 = vmatprep.mubr.bf16.mxu0 %v5751
    %9055 = vmatmul.mubr.bf16.gmra.mrb[0].mxu0 %v5750
    %v9056 = vpop.f32.mrb[0].mxu0
    %v9057 = vadd.f32 %v8864, %v9056
    %v9058 = vpop.f32.mrb[0].mxu0
    %v9059 = vadd.f32 %v8866, %v9058
    %v9060 = vpop.f32.mrb[0].mxu0
    %v9061 = vadd.f32 %v8868, %v9060
    %v9062 = vpop.f32.mrb[0].mxu0
    %v9063 = vadd.f32 %v8870, %v9062
    %9064 = vdwg.mxu0
    %9065 = vmatprep.subr.bf16.mxu0 %v7591
    %9066 = vmatpush1.bf16.msra.mxu0 %v7590
    %9067 = vmatprep.subr.bf16.mxu0 %v7599
    %9068 = vmatpush1.bf16.msra.mxu0 %v7598
    %9069 = vmatprep.subr.bf16.mxu0 %v7607
    %9070 = vmatpush1.bf16.msra.mxu0 %v7606
    %9071 = vmatprep.subr.bf16.mxu0 %v7615
    %9072 = vmatpush1.bf16.msra.mxu0 %v7614
    %9073 = vmatprep.subr.bf16.mxu0 %v7623
    %9074 = vmatpush1.bf16.msra.mxu0 %v7622
    %9075 = vmatprep.subr.bf16.mxu0 %v7631
    %9076 = vmatpush1.bf16.msra.mxu0 %v7630
    %9077 = vmatprep.subr.bf16.mxu0 %v7639
    %9078 = vmatpush1.bf16.msra.mxu0 %v7638
    %9079 = vmatprep.subr.bf16.mxu0 %v7647
    %9080 = vmatpush1.bf16.msra.mxu0 %v7646
    %9081 = vmatprep.subr.bf16.mxu0 %v7655
    %9082 = vmatpush1.bf16.msra.mxu0 %v7654
    %9083 = vmatprep.subr.bf16.mxu0 %v7663
    %9084 = vmatpush1.bf16.msra.mxu0 %v7662
    %9085 = vmatprep.subr.bf16.mxu0 %v7671
    %9086 = vmatpush1.bf16.msra.mxu0 %v7670
    %9087 = vmatprep.subr.bf16.mxu0 %v7679
    %9088 = vmatpush1.bf16.msra.mxu0 %v7678
    %9089 = vmatprep.subr.bf16.mxu0 %v7687
    %9090 = vmatpush1.bf16.msra.mxu0 %v7686
    %9091 = vmatprep.subr.bf16.mxu0 %v7695
    %9092 = vmatpush1.bf16.msra.mxu0 %v7694
    %9093 = vmatprep.subr.bf16.mxu0 %v7703
    %9094 = vmatpush1.bf16.msra.mxu0 %v7702
    %9095 = vmatprep.subr.bf16.mxu0 %v7711
    %9096 = vmatpush1.bf16.msra.mxu0 %v7710
    %9097 = vmatprep.mubr.bf16.mxu0 %v5663
    %9098 = vmatmul.mubr.bf16.gmra.mrb[0].mxu0 %v5662
    %v9099 = vpop.f32.mrb[0].mxu0
    %v9100 = vadd.f32 %v8907, %v9099
    %v9101 = vpop.f32.mrb[0].mxu0
    %v9102 = vadd.f32 %v8909, %v9101
    %v9103 = vpop.f32.mrb[0].mxu0
    %v9104 = vadd.f32 %v8911, %v9103
    %v9105 = vpop.f32.mrb[0].mxu0
    %v9106 = vadd.f32 %v8913, %v9105
    %9107 = vmatprep.mubr.bf16.mxu0 %v5669
    %9108 = vmatmul.mubr.bf16.gmra.mrb[0].mxu0 %v5668
    %v9109 = vpop.f32.mrb[0].mxu0
    %v9110 = vadd.f32 %v8917, %v9109
    %v9111 = vpop.f32.mrb[0].mxu0
    %v9112 = vadd.f32 %v8919, %v9111
    %v9113 = vpop.f32.mrb[0].mxu0
    %v9114 = vadd.f32 %v8921, %v9113
    %v9115 = vpop.f32.mrb[0].mxu0
    %v9116 = vadd.f32 %v8923, %v9115
    %9117 = vmatprep.mubr.bf16.mxu0 %v5675
    %9118 = vmatmul.mubr.bf16.gmra.mrb[0].mxu0 %v5674
    %v9119 = vpop.f32.mrb[0].mxu0
    %v9120 = vadd.f32 %v8927, %v9119
    %v9121 = vpop.f32.mrb[0].mxu0
    %v9122 = vadd.f32 %v8929, %v9121
    %v9123 = vpop.f32.mrb[0].mxu0
    %v9124 = vadd.f32 %v8931, %v9123
    %v9125 = vpop.f32.mrb[0].mxu0
    %v9126 = vadd.f32 %v8933, %v9125
    %9127 = vmatprep.mubr.bf16.mxu0 %v5681
    %9128 = vmatmul.mubr.bf16.gmra.mrb[0].mxu0 %v5680
    %v9129 = vpop.f32.mrb[0].mxu0
    %v9130 = vadd.f32 %v8937, %v9129
    %v9131 = vpop.f32.mrb[0].mxu0
    %v9132 = vadd.f32 %v8939, %v9131
    %v9133 = vpop.f32.mrb[0].mxu0
    %v9134 = vadd.f32 %v8941, %v9133
    %v9135 = vpop.f32.mrb[0].mxu0
    %v9136 = vadd.f32 %v8943, %v9135
    %9137 = vmatprep.mubr.bf16.mxu0 %v5687
    %9138 = vmatmul.mubr.bf16.gmra.mrb[0].mxu0 %v5686
    %v9139 = vpop.f32.mrb[0].mxu0
    %v9140 = vadd.f32 %v8947, %v9139
    %v9141 = vpop.f32.mrb[0].mxu0
    %v9142 = vadd.f32 %v8949, %v9141
    %v9143 = vpop.f32.mrb[0].mxu0
    %v9144 = vadd.f32 %v8951, %v9143
    %v9145 = vpop.f32.mrb[0].mxu0
    %v9146 = vadd.f32 %v8953, %v9145
    %9147 = vmatprep.mubr.bf16.mxu0 %v5693
    %9148 = vmatmul.mubr.bf16.gmra.mrb[0].mxu0 %v5692
    %v9149 = vpop.f32.mrb[0].mxu0
    %v9150 = vadd.f32 %v8957, %v9149
    %v9151 = vpop.f32.mrb[0].mxu0
    %v9152 = vadd.f32 %v8959, %v9151
    %v9153 = vpop.f32.mrb[0].mxu0
    %v9154 = vadd.f32 %v8961, %v9153
    %v9155 = vpop.f32.mrb[0].mxu0
    %v9156 = vadd.f32 %v8963, %v9155
    %9157 = vmatprep.mubr.bf16.mxu0 %v5699
    %9158 = vmatmul.mubr.bf16.gmra.mrb[0].mxu0 %v5698
    %v9159 = vpop.f32.mrb[0].mxu0
    %v9160 = vadd.f32 %v8967, %v9159
    %v9161 = vpop.f32.mrb[0].mxu0
    %v9162 = vadd.f32 %v8969, %v9161
    %v9163 = vpop.f32.mrb[0].mxu0
    %v9164 = vadd.f32 %v8971, %v9163
    %v9165 = vpop.f32.mrb[0].mxu0
    %v9166 = vadd.f32 %v8973, %v9165
    %9167 = vmatprep.mubr.bf16.mxu0 %v5705
    %9168 = vmatmul.mubr.bf16.gmra.mrb[0].mxu0 %v5704
    %v9169 = vpop.f32.mrb[0].mxu0
    %v9170 = vadd.f32 %v8977, %v9169
    %v9171 = vpop.f32.mrb[0].mxu0
    %v9172 = vadd.f32 %v8979, %v9171
    %v9173 = vpop.f32.mrb[0].mxu0
    %v9174 = vadd.f32 %v8981, %v9173
    %v9175 = vpop.f32.mrb[0].mxu0
    %v9176 = vadd.f32 %v8983, %v9175
    %9177 = vmatprep.mubr.bf16.mxu0 %v5711
    %9178 = vmatmul.mubr.bf16.gmra.mrb[0].mxu0 %v5710
    %v9179 = vpop.f32.mrb[0].mxu0
    %v9180 = vadd.f32 %v8987, %v9179
    %v9181 = vpop.f32.mrb[0].mxu0
    %v9182 = vadd.f32 %v8989, %v9181
    %v9183 = vpop.f32.mrb[0].mxu0
    %v9184 = vadd.f32 %v8991, %v9183
    %v9185 = vpop.f32.mrb[0].mxu0
    %v9186 = vadd.f32 %v8993, %v9185
    %9187 = vmatprep.mubr.bf16.mxu0 %v5717
    %9188 = vmatmul.mubr.bf16.gmra.mrb[0].mxu0 %v5716
    %v9189 = vpop.f32.mrb[0].mxu0
    %v9190 = vadd.f32 %v8997, %v9189
    %v9191 = vpop.f32.mrb[0].mxu0
    %v9192 = vadd.f32 %v8999, %v9191
    %v9193 = vpop.f32.mrb[0].mxu0
    %v9194 = vadd.f32 %v9001, %v9193
    %v9195 = vpop.f32.mrb[0].mxu0
    %v9196 = vadd.f32 %v9003, %v9195
    %9197 = vmatprep.mubr.bf16.mxu0 %v5723
    %9198 = vmatmul.mubr.bf16.gmra.mrb[0].mxu0 %v5722
    %v9199 = vpop.f32.mrb[0].mxu0
    %v9200 = vadd.f32 %v9007, %v9199
    %v9201 = vpop.f32.mrb[0].mxu0
    %v9202 = vadd.f32 %v9009, %v9201
    %v9203 = vpop.f32.mrb[0].mxu0
    %v9204 = vadd.f32 %v9011, %v9203
    %v9205 = vpop.f32.mrb[0].mxu0
    %v9206 = vadd.f32 %v9013, %v9205
    %9207 = vmatprep.mubr.bf16.mxu0 %v5729
    %9208 = vmatmul.mubr.bf16.gmra.mrb[0].mxu0 %v5728
    %v9209 = vpop.f32.mrb[0].mxu0
    %v9210 = vadd.f32 %v9017, %v9209
    %v9211 = vpop.f32.mrb[0].mxu0
    %v9212 = vadd.f32 %v9019, %v9211
    %v9213 = vpop.f32.mrb[0].mxu0
    %v9214 = vadd.f32 %v9021, %v9213
    %v9215 = vpop.f32.mrb[0].mxu0
    %v9216 = vadd.f32 %v9023, %v9215
    %9217 = vmatprep.mubr.bf16.mxu0 %v5735
    %9218 = vmatmul.mubr.bf16.gmra.mrb[0].mxu0 %v5734
    %v9219 = vpop.f32.mrb[0].mxu0
    %v9220 = vadd.f32 %v9027, %v9219
    %v9221 = vpop.f32.mrb[0].mxu0
    %v9222 = vadd.f32 %v9029, %v9221
    %v9223 = vpop.f32.mrb[0].mxu0
    %v9224 = vadd.f32 %v9031, %v9223
    %v9225 = vpop.f32.mrb[0].mxu0
    %v9226 = vadd.f32 %v9033, %v9225
    %9227 = vmatprep.mubr.bf16.mxu0 %v5741
    %9228 = vmatmul.mubr.bf16.gmra.mrb[0].mxu0 %v5740
    %v9229 = vpop.f32.mrb[0].mxu0
    %v9230 = vadd.f32 %v9037, %v9229
    %v9231 = vpop.f32.mrb[0].mxu0
    %v9232 = vadd.f32 %v9039, %v9231
    %v9233 = vpop.f32.mrb[0].mxu0
    %v9234 = vadd.f32 %v9041, %v9233
    %v9235 = vpop.f32.mrb[0].mxu0
    %v9236 = vadd.f32 %v9043, %v9235
    %9237 = vmatprep.mubr.bf16.mxu0 %v5747
    %9238 = vmatmul.mubr.bf16.gmra.mrb[0].mxu0 %v5746
    %v9239 = vpop.f32.mrb[0].mxu0
    %v9240 = vadd.f32 %v9047, %v9239
    %v9241 = vpop.f32.mrb[0].mxu0
    %v9242 = vadd.f32 %v9049, %v9241
    %v9243 = vpop.f32.mrb[0].mxu0
    %v9244 = vadd.f32 %v9051, %v9243
    %v9245 = vpop.f32.mrb[0].mxu0
    %v9246 = vadd.f32 %v9053, %v9245
    %9247 = vmatprep.mubr.bf16.mxu0 %v5753
    %9248 = vmatmul.mubr.bf16.gmra.mrb[0].mxu0 %v5752
    %v9249 = vpop.f32.mrb[0].mxu0
    %v9250 = vadd.f32 %v9057, %v9249
    %v9251 = vpop.f32.mrb[0].mxu0
    %v9252 = vadd.f32 %v9059, %v9251
    %v9253 = vpop.f32.mrb[0].mxu0
    %v9254 = vadd.f32 %v9061, %v9253
    %v9255 = vpop.f32.mrb[0].mxu0
    %v9256 = vadd.f32 %v9063, %v9255
    %9257 = vdwg.mxu0
    %9258 = vmatprep.subr.bf16.mxu0 %v7337
    %9259 = vmatpush1.bf16.msra.mxu0 %v7336
    %9260 = vmatprep.subr.bf16.mxu0 %v7345
    %9261 = vmatpush1.bf16.msra.mxu0 %v7344
    %9262 = vmatprep.subr.bf16.mxu0 %v7353
    %9263 = vmatpush1.bf16.msra.mxu0 %v7352
    %9264 = vmatprep.subr.bf16.mxu0 %v7361
    %9265 = vmatpush1.bf16.msra.mxu0 %v7360
    %9266 = vmatprep.subr.bf16.mxu0 %v7369
    %9267 = vmatpush1.bf16.msra.mxu0 %v7368
    %9268 = vmatprep.subr.bf16.mxu0 %v7377
    %9269 = vmatpush1.bf16.msra.mxu0 %v7376
    %9270 = vmatprep.subr.bf16.mxu0 %v7385
    %9271 = vmatpush1.bf16.msra.mxu0 %v7384
    %9272 = vmatprep.subr.bf16.mxu0 %v7393
    %9273 = vmatpush1.bf16.msra.mxu0 %v7392
    %9274 = vmatprep.subr.bf16.mxu0 %v7401
    %9275 = vmatpush1.bf16.msra.mxu0 %v7400
    %9276 = vmatprep.subr.bf16.mxu0 %v7409
    %9277 = vmatpush1.bf16.msra.mxu0 %v7408
    %9278 = vmatprep.subr.bf16.mxu0 %v7417
    %9279 = vmatpush1.bf16.msra.mxu0 %v7416
    %9280 = vmatprep.subr.bf16.mxu0 %v7425
    %9281 = vmatpush1.bf16.msra.mxu0 %v7424
    %9282 = vmatprep.subr.bf16.mxu0 %v7433
    %9283 = vmatpush1.bf16.msra.mxu0 %v7432
    %9284 = vmatprep.subr.bf16.mxu0 %v7441
    %9285 = vmatpush1.bf16.msra.mxu0 %v7440
    %9286 = vmatprep.subr.bf16.mxu0 %v7449
    %9287 = vmatpush1.bf16.msra.mxu0 %v7448
    %9288 = vmatprep.subr.bf16.mxu0 %v7457
    %9289 = vmatpush1.bf16.msra.mxu0 %v7456
    %9290 = vmatprep.mubr.bf16.mxu0 %v5659
    %9291 = vmatmul.mubr.bf16.gmra.mrb[0].mxu0 %v5658
    %v9292 = vpop.f32.mrb[0].mxu0
    %v9293 = vadd.f32 %v6159, %v9292
    %v9294 = vpop.f32.mrb[0].mxu0
    %v9295 = vadd.f32 %v6163, %v9294
    %v9296 = vpop.f32.mrb[0].mxu0
    %v9297 = vadd.f32 %v6159, %v9296
    %v9298 = vpop.f32.mrb[0].mxu0
    %v9299 = vadd.f32 %v6163, %v9298
    %9300 = vmatprep.mubr.bf16.mxu0 %v5665
    %9301 = vmatmul.mubr.bf16.gmra.mrb[0].mxu0 %v5664
    %v9302 = vpop.f32.mrb[0].mxu0
    %v9303 = vadd.f32 %v6159, %v9302
    %v9304 = vpop.f32.mrb[0].mxu0
    %v9305 = vadd.f32 %v6163, %v9304
    %v9306 = vpop.f32.mrb[0].mxu0
    %v9307 = vadd.f32 %v6159, %v9306
    %v9308 = vpop.f32.mrb[0].mxu0
    %v9309 = vadd.f32 %v6163, %v9308
    %9310 = vmatprep.mubr.bf16.mxu0 %v5671
    %9311 = vmatmul.mubr.bf16.gmra.mrb[0].mxu0 %v5670
    %v9312 = vpop.f32.mrb[0].mxu0
    %v9313 = vadd.f32 %v6159, %v9312
    %v9314 = vpop.f32.mrb[0].mxu0
    %v9315 = vadd.f32 %v6163, %v9314
    %v9316 = vpop.f32.mrb[0].mxu0
    %v9317 = vadd.f32 %v6159, %v9316
    %v9318 = vpop.f32.mrb[0].mxu0
    %v9319 = vadd.f32 %v6163, %v9318
    %9320 = vmatprep.mubr.bf16.mxu0 %v5677
    %9321 = vmatmul.mubr.bf16.gmra.mrb[0].mxu0 %v5676
    %v9322 = vpop.f32.mrb[0].mxu0
    %v9323 = vadd.f32 %v6159, %v9322
    %v9324 = vpop.f32.mrb[0].mxu0
    %v9325 = vadd.f32 %v6163, %v9324
    %v9326 = vpop.f32.mrb[0].mxu0
    %v9327 = vadd.f32 %v6159, %v9326
    %v9328 = vpop.f32.mrb[0].mxu0
    %v9329 = vadd.f32 %v6163, %v9328
    %9330 = vmatprep.mubr.bf16.mxu0 %v5683
    %9331 = vmatmul.mubr.bf16.gmra.mrb[0].mxu0 %v5682
    %v9332 = vpop.f32.mrb[0].mxu0
    %v9333 = vadd.f32 %v6159, %v9332
    %v9334 = vpop.f32.mrb[0].mxu0
    %v9335 = vadd.f32 %v6163, %v9334
    %v9336 = vpop.f32.mrb[0].mxu0
    %v9337 = vadd.f32 %v6159, %v9336
    %v9338 = vpop.f32.mrb[0].mxu0
    %v9339 = vadd.f32 %v6163, %v9338
    %9340 = vmatprep.mubr.bf16.mxu0 %v5689
    %9341 = vmatmul.mubr.bf16.gmra.mrb[0].mxu0 %v5688
    %v9342 = vpop.f32.mrb[0].mxu0
    %v9343 = vadd.f32 %v6159, %v9342
    %v9344 = vpop.f32.mrb[0].mxu0
    %v9345 = vadd.f32 %v6163, %v9344
    %v9346 = vpop.f32.mrb[0].mxu0
    %v9347 = vadd.f32 %v6159, %v9346
    %v9348 = vpop.f32.mrb[0].mxu0
    %v9349 = vadd.f32 %v6163, %v9348
    %9350 = vmatprep.mubr.bf16.mxu0 %v5695
    %9351 = vmatmul.mubr.bf16.gmra.mrb[0].mxu0 %v5694
    %v9352 = vpop.f32.mrb[0].mxu0
    %v9353 = vadd.f32 %v6159, %v9352
    %v9354 = vpop.f32.mrb[0].mxu0
    %v9355 = vadd.f32 %v6163, %v9354
    %v9356 = vpop.f32.mrb[0].mxu0
    %v9357 = vadd.f32 %v6159, %v9356
    %v9358 = vpop.f32.mrb[0].mxu0
    %v9359 = vadd.f32 %v6163, %v9358
    %9360 = vmatprep.mubr.bf16.mxu0 %v5701
    %9361 = vmatmul.mubr.bf16.gmra.mrb[0].mxu0 %v5700
    %v9362 = vpop.f32.mrb[0].mxu0
    %v9363 = vadd.f32 %v6159, %v9362
    %v9364 = vpop.f32.mrb[0].mxu0
    %v9365 = vadd.f32 %v6163, %v9364
    %v9366 = vpop.f32.mrb[0].mxu0
    %v9367 = vadd.f32 %v6159, %v9366
    %v9368 = vpop.f32.mrb[0].mxu0
    %v9369 = vadd.f32 %v6163, %v9368
    %9370 = vmatprep.mubr.bf16.mxu0 %v5707
    %9371 = vmatmul.mubr.bf16.gmra.mrb[0].mxu0 %v5706
    %v9372 = vpop.f32.mrb[0].mxu0
    %v9373 = vadd.f32 %v6159, %v9372
    %v9374 = vpop.f32.mrb[0].mxu0
    %v9375 = vadd.f32 %v6163, %v9374
    %v9376 = vpop.f32.mrb[0].mxu0
    %v9377 = vadd.f32 %v6159, %v9376
    %v9378 = vpop.f32.mrb[0].mxu0
    %v9379 = vadd.f32 %v6163, %v9378
    %9380 = vmatprep.mubr.bf16.mxu0 %v5713
    %9381 = vmatmul.mubr.bf16.gmra.mrb[0].mxu0 %v5712
    %v9382 = vpop.f32.mrb[0].mxu0
    %v9383 = vadd.f32 %v6159, %v9382
    %v9384 = vpop.f32.mrb[0].mxu0
    %v9385 = vadd.f32 %v6163, %v9384
    %v9386 = vpop.f32.mrb[0].mxu0
    %v9387 = vadd.f32 %v6159, %v9386
    %v9388 = vpop.f32.mrb[0].mxu0
    %v9389 = vadd.f32 %v6163, %v9388
    %9390 = vmatprep.mubr.bf16.mxu0 %v5719
    %9391 = vmatmul.mubr.bf16.gmra.mrb[0].mxu0 %v5718
    %v9392 = vpop.f32.mrb[0].mxu0
    %v9393 = vadd.f32 %v6159, %v9392
    %v9394 = vpop.f32.mrb[0].mxu0
    %v9395 = vadd.f32 %v6163, %v9394
    %v9396 = vpop.f32.mrb[0].mxu0
    %v9397 = vadd.f32 %v6159, %v9396
    %v9398 = vpop.f32.mrb[0].mxu0
    %v9399 = vadd.f32 %v6163, %v9398
    %9400 = vmatprep.mubr.bf16.mxu0 %v5725
    %9401 = vmatmul.mubr.bf16.gmra.mrb[0].mxu0 %v5724
    %v9402 = vpop.f32.mrb[0].mxu0
    %v9403 = vadd.f32 %v6159, %v9402
    %v9404 = vpop.f32.mrb[0].mxu0
    %v9405 = vadd.f32 %v6163, %v9404
    %v9406 = vpop.f32.mrb[0].mxu0
    %v9407 = vadd.f32 %v6159, %v9406
    %v9408 = vpop.f32.mrb[0].mxu0
    %v9409 = vadd.f32 %v6163, %v9408
    %9410 = vmatprep.mubr.bf16.mxu0 %v5731
    %9411 = vmatmul.mubr.bf16.gmra.mrb[0].mxu0 %v5730
    %v9412 = vpop.f32.mrb[0].mxu0
    %v9413 = vadd.f32 %v6159, %v9412
    %v9414 = vpop.f32.mrb[0].mxu0
    %v9415 = vadd.f32 %v6163, %v9414
    %v9416 = vpop.f32.mrb[0].mxu0
    %v9417 = vadd.f32 %v6159, %v9416
    %v9418 = vpop.f32.mrb[0].mxu0
    %v9419 = vadd.f32 %v6163, %v9418
    %9420 = vmatprep.mubr.bf16.mxu0 %v5737
    %9421 = vmatmul.mubr.bf16.gmra.mrb[0].mxu0 %v5736
    %v9422 = vpop.f32.mrb[0].mxu0
    %v9423 = vadd.f32 %v6159, %v9422
    %v9424 = vpop.f32.mrb[0].mxu0
    %v9425 = vadd.f32 %v6163, %v9424
    %v9426 = vpop.f32.mrb[0].mxu0
    %v9427 = vadd.f32 %v6159, %v9426
    %v9428 = vpop.f32.mrb[0].mxu0
    %v9429 = vadd.f32 %v6163, %v9428
    %9430 = vmatprep.mubr.bf16.mxu0 %v5743
    %9431 = vmatmul.mubr.bf16.gmra.mrb[0].mxu0 %v5742
    %v9432 = vpop.f32.mrb[0].mxu0
    %v9433 = vadd.f32 %v6159, %v9432
    %v9434 = vpop.f32.mrb[0].mxu0
    %v9435 = vadd.f32 %v6163, %v9434
    %v9436 = vpop.f32.mrb[0].mxu0
    %v9437 = vadd.f32 %v6159, %v9436
    %v9438 = vpop.f32.mrb[0].mxu0
    %v9439 = vadd.f32 %v6163, %v9438
    %9440 = vmatprep.mubr.bf16.mxu0 %v5749
    %9441 = vmatmul.mubr.bf16.gmra.mrb[0].mxu0 %v5748
    %v9442 = vpop.f32.mrb[0].mxu0
    %v9443 = vadd.f32 %v6159, %v9442
    %v9444 = vpop.f32.mrb[0].mxu0
    %v9445 = vadd.f32 %v6163, %v9444
    %v9446 = vpop.f32.mrb[0].mxu0
    %v9447 = vadd.f32 %v6159, %v9446
    %v9448 = vpop.f32.mrb[0].mxu0
    %v9449 = vadd.f32 %v6163, %v9448
    %9450 = vdwg.mxu0
    %9451 = vmatprep.subr.bf16.mxu0 %v7465
    %9452 = vmatpush1.bf16.msra.mxu0 %v7464
    %9453 = vmatprep.subr.bf16.mxu0 %v7473
    %9454 = vmatpush1.bf16.msra.mxu0 %v7472
    %9455 = vmatprep.subr.bf16.mxu0 %v7481
    %9456 = vmatpush1.bf16.msra.mxu0 %v7480
    %9457 = vmatprep.subr.bf16.mxu0 %v7489
    %9458 = vmatpush1.bf16.msra.mxu0 %v7488
    %9459 = vmatprep.subr.bf16.mxu0 %v7497
    %9460 = vmatpush1.bf16.msra.mxu0 %v7496
    %9461 = vmatprep.subr.bf16.mxu0 %v7505
    %9462 = vmatpush1.bf16.msra.mxu0 %v7504
    %9463 = vmatprep.subr.bf16.mxu0 %v7513
    %9464 = vmatpush1.bf16.msra.mxu0 %v7512
    %9465 = vmatprep.subr.bf16.mxu0 %v7521
    %9466 = vmatpush1.bf16.msra.mxu0 %v7520
    %9467 = vmatprep.subr.bf16.mxu0 %v7529
    %9468 = vmatpush1.bf16.msra.mxu0 %v7528
    %9469 = vmatprep.subr.bf16.mxu0 %v7537
    %9470 = vmatpush1.bf16.msra.mxu0 %v7536
    %9471 = vmatprep.subr.bf16.mxu0 %v7545
    %9472 = vmatpush1.bf16.msra.mxu0 %v7544
    %9473 = vmatprep.subr.bf16.mxu0 %v7553
    %9474 = vmatpush1.bf16.msra.mxu0 %v7552
    %9475 = vmatprep.subr.bf16.mxu0 %v7561
    %9476 = vmatpush1.bf16.msra.mxu0 %v7560
    %9477 = vmatprep.subr.bf16.mxu0 %v7569
    %9478 = vmatpush1.bf16.msra.mxu0 %v7568
    %9479 = vmatprep.subr.bf16.mxu0 %v7577
    %9480 = vmatpush1.bf16.msra.mxu0 %v7576
    %9481 = vmatprep.subr.bf16.mxu0 %v7585
    %9482 = vmatpush1.bf16.msra.mxu0 %v7584
    %9483 = vmatprep.mubr.bf16.mxu0 %v5661
    %9484 = vmatmul.mubr.bf16.gmra.mrb[0].mxu0 %v5660
    %v9485 = vpop.f32.mrb[0].mxu0
    %v9486 = vadd.f32 %v9293, %v9485
    %v9487 = vpop.f32.mrb[0].mxu0
    %v9488 = vadd.f32 %v9295, %v9487
    %v9489 = vpop.f32.mrb[0].mxu0
    %v9490 = vadd.f32 %v9297, %v9489
    %v9491 = vpop.f32.mrb[0].mxu0
    %v9492 = vadd.f32 %v9299, %v9491
    %9493 = vmatprep.mubr.bf16.mxu0 %v5667
    %9494 = vmatmul.mubr.bf16.gmra.mrb[0].mxu0 %v5666
    %v9495 = vpop.f32.mrb[0].mxu0
    %v9496 = vadd.f32 %v9303, %v9495
    %v9497 = vpop.f32.mrb[0].mxu0
    %v9498 = vadd.f32 %v9305, %v9497
    %v9499 = vpop.f32.mrb[0].mxu0
    %v9500 = vadd.f32 %v9307, %v9499
    %v9501 = vpop.f32.mrb[0].mxu0
    %v9502 = vadd.f32 %v9309, %v9501
    %9503 = vmatprep.mubr.bf16.mxu0 %v5673
    %9504 = vmatmul.mubr.bf16.gmra.mrb[0].mxu0 %v5672
    %v9505 = vpop.f32.mrb[0].mxu0
    %v9506 = vadd.f32 %v9313, %v9505
    %v9507 = vpop.f32.mrb[0].mxu0
    %v9508 = vadd.f32 %v9315, %v9507
    %v9509 = vpop.f32.mrb[0].mxu0
    %v9510 = vadd.f32 %v9317, %v9509
    %v9511 = vpop.f32.mrb[0].mxu0
    %v9512 = vadd.f32 %v9319, %v9511
    %9513 = vmatprep.mubr.bf16.mxu0 %v5679
    %9514 = vmatmul.mubr.bf16.gmra.mrb[0].mxu0 %v5678
    %v9515 = vpop.f32.mrb[0].mxu0
    %v9516 = vadd.f32 %v9323, %v9515
    %v9517 = vpop.f32.mrb[0].mxu0
    %v9518 = vadd.f32 %v9325, %v9517
    %v9519 = vpop.f32.mrb[0].mxu0
    %v9520 = vadd.f32 %v9327, %v9519
    %v9521 = vpop.f32.mrb[0].mxu0
    %v9522 = vadd.f32 %v9329, %v9521
    %9523 = vmatprep.mubr.bf16.mxu0 %v5685
    %9524 = vmatmul.mubr.bf16.gmra.mrb[0].mxu0 %v5684
    %v9525 = vpop.f32.mrb[0].mxu0
    %v9526 = vadd.f32 %v9333, %v9525
    %v9527 = vpop.f32.mrb[0].mxu0
    %v9528 = vadd.f32 %v9335, %v9527
    %v9529 = vpop.f32.mrb[0].mxu0
    %v9530 = vadd.f32 %v9337, %v9529
    %v9531 = vpop.f32.mrb[0].mxu0
    %v9532 = vadd.f32 %v9339, %v9531
    %9533 = vmatprep.mubr.bf16.mxu0 %v5691
    %9534 = vmatmul.mubr.bf16.gmra.mrb[0].mxu0 %v5690
    %v9535 = vpop.f32.mrb[0].mxu0
    %v9536 = vadd.f32 %v9343, %v9535
    %v9537 = vpop.f32.mrb[0].mxu0
    %v9538 = vadd.f32 %v9345, %v9537
    %v9539 = vpop.f32.mrb[0].mxu0
    %v9540 = vadd.f32 %v9347, %v9539
    %v9541 = vpop.f32.mrb[0].mxu0
    %v9542 = vadd.f32 %v9349, %v9541
    %9543 = vmatprep.mubr.bf16.mxu0 %v5697
    %9544 = vmatmul.mubr.bf16.gmra.mrb[0].mxu0 %v5696
    %v9545 = vpop.f32.mrb[0].mxu0
    %v9546 = vadd.f32 %v9353, %v9545
    %v9547 = vpop.f32.mrb[0].mxu0
    %v9548 = vadd.f32 %v9355, %v9547
    %v9549 = vpop.f32.mrb[0].mxu0
    %v9550 = vadd.f32 %v9357, %v9549
    %v9551 = vpop.f32.mrb[0].mxu0
    %v9552 = vadd.f32 %v9359, %v9551
    %9553 = vmatprep.mubr.bf16.mxu0 %v5703
    %9554 = vmatmul.mubr.bf16.gmra.mrb[0].mxu0 %v5702
    %v9555 = vpop.f32.mrb[0].mxu0
    %v9556 = vadd.f32 %v9363, %v9555
    %v9557 = vpop.f32.mrb[0].mxu0
    %v9558 = vadd.f32 %v9365, %v9557
    %v9559 = vpop.f32.mrb[0].mxu0
    %v9560 = vadd.f32 %v9367, %v9559
    %v9561 = vpop.f32.mrb[0].mxu0
    %v9562 = vadd.f32 %v9369, %v9561
    %9563 = vmatprep.mubr.bf16.mxu0 %v5709
    %9564 = vmatmul.mubr.bf16.gmra.mrb[0].mxu0 %v5708
    %v9565 = vpop.f32.mrb[0].mxu0
    %v9566 = vadd.f32 %v9373, %v9565
    %v9567 = vpop.f32.mrb[0].mxu0
    %v9568 = vadd.f32 %v9375, %v9567
    %v9569 = vpop.f32.mrb[0].mxu0
    %v9570 = vadd.f32 %v9377, %v9569
    %v9571 = vpop.f32.mrb[0].mxu0
    %v9572 = vadd.f32 %v9379, %v9571
    %9573 = vmatprep.mubr.bf16.mxu0 %v5715
    %9574 = vmatmul.mubr.bf16.gmra.mrb[0].mxu0 %v5714
    %v9575 = vpop.f32.mrb[0].mxu0
    %v9576 = vadd.f32 %v9383, %v9575
    %v9577 = vpop.f32.mrb[0].mxu0
    %v9578 = vadd.f32 %v9385, %v9577
    %v9579 = vpop.f32.mrb[0].mxu0
    %v9580 = vadd.f32 %v9387, %v9579
    %v9581 = vpop.f32.mrb[0].mxu0
    %v9582 = vadd.f32 %v9389, %v9581
    %9583 = vmatprep.mubr.bf16.mxu0 %v5721
    %9584 = vmatmul.mubr.bf16.gmra.mrb[0].mxu0 %v5720
    %v9585 = vpop.f32.mrb[0].mxu0
    %v9586 = vadd.f32 %v9393, %v9585
    %v9587 = vpop.f32.mrb[0].mxu0
    %v9588 = vadd.f32 %v9395, %v9587
    %v9589 = vpop.f32.mrb[0].mxu0
    %v9590 = vadd.f32 %v9397, %v9589
    %v9591 = vpop.f32.mrb[0].mxu0
    %v9592 = vadd.f32 %v9399, %v9591
    %9593 = vmatprep.mubr.bf16.mxu0 %v5727
    %9594 = vmatmul.mubr.bf16.gmra.mrb[0].mxu0 %v5726
    %v9595 = vpop.f32.mrb[0].mxu0
    %v9596 = vadd.f32 %v9403, %v9595
    %v9597 = vpop.f32.mrb[0].mxu0
    %v9598 = vadd.f32 %v9405, %v9597
    %v9599 = vpop.f32.mrb[0].mxu0
    %v9600 = vadd.f32 %v9407, %v9599
    %v9601 = vpop.f32.mrb[0].mxu0
    %v9602 = vadd.f32 %v9409, %v9601
    %9603 = vmatprep.mubr.bf16.mxu0 %v5733
    %9604 = vmatmul.mubr.bf16.gmra.mrb[0].mxu0 %v5732
    %v9605 = vpop.f32.mrb[0].mxu0
    %v9606 = vadd.f32 %v9413, %v9605
    %v9607 = vpop.f32.mrb[0].mxu0
    %v9608 = vadd.f32 %v9415, %v9607
    %v9609 = vpop.f32.mrb[0].mxu0
    %v9610 = vadd.f32 %v9417, %v9609
    %v9611 = vpop.f32.mrb[0].mxu0
    %v9612 = vadd.f32 %v9419, %v9611
    %9613 = vmatprep.mubr.bf16.mxu0 %v5739
    %9614 = vmatmul.mubr.bf16.gmra.mrb[0].mxu0 %v5738
    %v9615 = vpop.f32.mrb[0].mxu0
    %v9616 = vadd.f32 %v9423, %v9615
    %v9617 = vpop.f32.mrb[0].mxu0
    %v9618 = vadd.f32 %v9425, %v9617
    %v9619 = vpop.f32.mrb[0].mxu0
    %v9620 = vadd.f32 %v9427, %v9619
    %v9621 = vpop.f32.mrb[0].mxu0
    %v9622 = vadd.f32 %v9429, %v9621
    %9623 = vmatprep.mubr.bf16.mxu0 %v5745
    %9624 = vmatmul.mubr.bf16.gmra.mrb[0].mxu0 %v5744
    %v9625 = vpop.f32.mrb[0].mxu0
    %v9626 = vadd.f32 %v9433, %v9625
    %v9627 = vpop.f32.mrb[0].mxu0
    %v9628 = vadd.f32 %v9435, %v9627
    %v9629 = vpop.f32.mrb[0].mxu0
    %v9630 = vadd.f32 %v9437, %v9629
    %v9631 = vpop.f32.mrb[0].mxu0
    %v9632 = vadd.f32 %v9439, %v9631
    %9633 = vmatprep.mubr.bf16.mxu0 %v5751
    %9634 = vmatmul.mubr.bf16.gmra.mrb[0].mxu0 %v5750
    %v9635 = vpop.f32.mrb[0].mxu0
    %v9636 = vadd.f32 %v9443, %v9635
    %v9637 = vpop.f32.mrb[0].mxu0
    %v9638 = vadd.f32 %v9445, %v9637
    %v9639 = vpop.f32.mrb[0].mxu0
    %v9640 = vadd.f32 %v9447, %v9639
    %v9641 = vpop.f32.mrb[0].mxu0
    %v9642 = vadd.f32 %v9449, %v9641
    %9643 = vdwg.mxu0
    %9644 = vmatprep.subr.bf16.mxu0 %v7593
    %9645 = vmatpush1.bf16.msra.mxu0 %v7592
    %9646 = vmatprep.subr.bf16.mxu0 %v7601
    %9647 = vmatpush1.bf16.msra.mxu0 %v7600
    %9648 = vmatprep.subr.bf16.mxu0 %v7609
    %9649 = vmatpush1.bf16.msra.mxu0 %v7608
    %9650 = vmatprep.subr.bf16.mxu0 %v7617
    %9651 = vmatpush1.bf16.msra.mxu0 %v7616
    %9652 = vmatprep.subr.bf16.mxu0 %v7625
    %9653 = vmatpush1.bf16.msra.mxu0 %v7624
    %9654 = vmatprep.subr.bf16.mxu0 %v7633
    %9655 = vmatpush1.bf16.msra.mxu0 %v7632
    %9656 = vmatprep.subr.bf16.mxu0 %v7641
    %9657 = vmatpush1.bf16.msra.mxu0 %v7640
    %9658 = vmatprep.subr.bf16.mxu0 %v7649
    %9659 = vmatpush1.bf16.msra.mxu0 %v7648
    %9660 = vmatprep.subr.bf16.mxu0 %v7657
    %9661 = vmatpush1.bf16.msra.mxu0 %v7656
    %9662 = vmatprep.subr.bf16.mxu0 %v7665
    %9663 = vmatpush1.bf16.msra.mxu0 %v7664
    %9664 = vmatprep.subr.bf16.mxu0 %v7673
    %9665 = vmatpush1.bf16.msra.mxu0 %v7672
    %9666 = vmatprep.subr.bf16.mxu0 %v7681
    %9667 = vmatpush1.bf16.msra.mxu0 %v7680
    %9668 = vmatprep.subr.bf16.mxu0 %v7689
    %9669 = vmatpush1.bf16.msra.mxu0 %v7688
    %9670 = vmatprep.subr.bf16.mxu0 %v7697
    %9671 = vmatpush1.bf16.msra.mxu0 %v7696
    %9672 = vmatprep.subr.bf16.mxu0 %v7705
    %9673 = vmatpush1.bf16.msra.mxu0 %v7704
    %9674 = vmatprep.subr.bf16.mxu0 %v7713
    %9675 = vmatpush1.bf16.msra.mxu0 %v7712
    %9676 = vmatprep.mubr.bf16.mxu0 %v5663
    %9677 = vmatmul.mubr.bf16.gmra.mrb[0].mxu0 %v5662
    %v9678 = vpop.f32.mrb[0].mxu0
    %v9679 = vadd.f32 %v9486, %v9678
    %v9680 = vpop.f32.mrb[0].mxu0
    %v9681 = vadd.f32 %v9488, %v9680
    %v9682 = vpop.f32.mrb[0].mxu0
    %v9683 = vadd.f32 %v9490, %v9682
    %v9684 = vpop.f32.mrb[0].mxu0
    %v9685 = vadd.f32 %v9492, %v9684
    %9686 = vmatprep.mubr.bf16.mxu0 %v5669
    %9687 = vmatmul.mubr.bf16.gmra.mrb[0].mxu0 %v5668
    %v9688 = vpop.f32.mrb[0].mxu0
    %v9689 = vadd.f32 %v9496, %v9688
    %v9690 = vpop.f32.mrb[0].mxu0
    %v9691 = vadd.f32 %v9498, %v9690
    %v9692 = vpop.f32.mrb[0].mxu0
    %v9693 = vadd.f32 %v9500, %v9692
    %v9694 = vpop.f32.mrb[0].mxu0
    %v9695 = vadd.f32 %v9502, %v9694
    %9696 = vmatprep.mubr.bf16.mxu0 %v5675
    %9697 = vmatmul.mubr.bf16.gmra.mrb[0].mxu0 %v5674
    %v9698 = vpop.f32.mrb[0].mxu0
    %v9699 = vadd.f32 %v9506, %v9698
    %v9700 = vpop.f32.mrb[0].mxu0
    %v9701 = vadd.f32 %v9508, %v9700
    %v9702 = vpop.f32.mrb[0].mxu0
    %v9703 = vadd.f32 %v9510, %v9702
    %v9704 = vpop.f32.mrb[0].mxu0
    %v9705 = vadd.f32 %v9512, %v9704
    %9706 = vmatprep.mubr.bf16.mxu0 %v5681
    %9707 = vmatmul.mubr.bf16.gmra.mrb[0].mxu0 %v5680
    %v9708 = vpop.f32.mrb[0].mxu0
    %v9709 = vadd.f32 %v9516, %v9708
    %v9710 = vpop.f32.mrb[0].mxu0
    %v9711 = vadd.f32 %v9518, %v9710
    %v9712 = vpop.f32.mrb[0].mxu0
    %v9713 = vadd.f32 %v9520, %v9712
    %v9714 = vpop.f32.mrb[0].mxu0
    %v9715 = vadd.f32 %v9522, %v9714
    %9716 = vmatprep.mubr.bf16.mxu0 %v5687
    %9717 = vmatmul.mubr.bf16.gmra.mrb[0].mxu0 %v5686
    %v9718 = vpop.f32.mrb[0].mxu0
    %v9719 = vadd.f32 %v9526, %v9718
    %v9720 = vpop.f32.mrb[0].mxu0
    %v9721 = vadd.f32 %v9528, %v9720
    %v9722 = vpop.f32.mrb[0].mxu0
    %v9723 = vadd.f32 %v9530, %v9722
    %v9724 = vpop.f32.mrb[0].mxu0
    %v9725 = vadd.f32 %v9532, %v9724
    %9726 = vmatprep.mubr.bf16.mxu0 %v5693
    %9727 = vmatmul.mubr.bf16.gmra.mrb[0].mxu0 %v5692
    %v9728 = vpop.f32.mrb[0].mxu0
    %v9729 = vadd.f32 %v9536, %v9728
    %v9730 = vpop.f32.mrb[0].mxu0
    %v9731 = vadd.f32 %v9538, %v9730
    %v9732 = vpop.f32.mrb[0].mxu0
    %v9733 = vadd.f32 %v9540, %v9732
    %v9734 = vpop.f32.mrb[0].mxu0
    %v9735 = vadd.f32 %v9542, %v9734
    %9736 = vmatprep.mubr.bf16.mxu0 %v5699
    %9737 = vmatmul.mubr.bf16.gmra.mrb[0].mxu0 %v5698
    %v9738 = vpop.f32.mrb[0].mxu0
    %v9739 = vadd.f32 %v9546, %v9738
    %v9740 = vpop.f32.mrb[0].mxu0
    %v9741 = vadd.f32 %v9548, %v9740
    %v9742 = vpop.f32.mrb[0].mxu0
    %v9743 = vadd.f32 %v9550, %v9742
    %v9744 = vpop.f32.mrb[0].mxu0
    %v9745 = vadd.f32 %v9552, %v9744
    %9746 = vmatprep.mubr.bf16.mxu0 %v5705
    %9747 = vmatmul.mubr.bf16.gmra.mrb[0].mxu0 %v5704
    %v9748 = vpop.f32.mrb[0].mxu0
    %v9749 = vadd.f32 %v9556, %v9748
    %v9750 = vpop.f32.mrb[0].mxu0
    %v9751 = vadd.f32 %v9558, %v9750
    %v9752 = vpop.f32.mrb[0].mxu0
    %v9753 = vadd.f32 %v9560, %v9752
    %v9754 = vpop.f32.mrb[0].mxu0
    %v9755 = vadd.f32 %v9562, %v9754
    %9756 = vmatprep.mubr.bf16.mxu0 %v5711
    %9757 = vmatmul.mubr.bf16.gmra.mrb[0].mxu0 %v5710
    %v9758 = vpop.f32.mrb[0].mxu0
    %v9759 = vadd.f32 %v9566, %v9758
    %v9760 = vpop.f32.mrb[0].mxu0
    %v9761 = vadd.f32 %v9568, %v9760
    %v9762 = vpop.f32.mrb[0].mxu0
    %v9763 = vadd.f32 %v9570, %v9762
    %v9764 = vpop.f32.mrb[0].mxu0
    %v9765 = vadd.f32 %v9572, %v9764
    %9766 = vmatprep.mubr.bf16.mxu0 %v5717
    %9767 = vmatmul.mubr.bf16.gmra.mrb[0].mxu0 %v5716
    %v9768 = vpop.f32.mrb[0].mxu0
    %v9769 = vadd.f32 %v9576, %v9768
    %v9770 = vpop.f32.mrb[0].mxu0
    %v9771 = vadd.f32 %v9578, %v9770
    %v9772 = vpop.f32.mrb[0].mxu0
    %v9773 = vadd.f32 %v9580, %v9772
    %v9774 = vpop.f32.mrb[0].mxu0
    %v9775 = vadd.f32 %v9582, %v9774
    %9776 = vmatprep.mubr.bf16.mxu0 %v5723
    %9777 = vmatmul.mubr.bf16.gmra.mrb[0].mxu0 %v5722
    %v9778 = vpop.f32.mrb[0].mxu0
    %v9779 = vadd.f32 %v9586, %v9778
    %v9780 = vpop.f32.mrb[0].mxu0
    %v9781 = vadd.f32 %v9588, %v9780
    %v9782 = vpop.f32.mrb[0].mxu0
    %v9783 = vadd.f32 %v9590, %v9782
    %v9784 = vpop.f32.mrb[0].mxu0
    %v9785 = vadd.f32 %v9592, %v9784
    %9786 = vmatprep.mubr.bf16.mxu0 %v5729
    %9787 = vmatmul.mubr.bf16.gmra.mrb[0].mxu0 %v5728
    %v9788 = vpop.f32.mrb[0].mxu0
    %v9789 = vadd.f32 %v9596, %v9788
    %v9790 = vpop.f32.mrb[0].mxu0
    %v9791 = vadd.f32 %v9598, %v9790
    %v9792 = vpop.f32.mrb[0].mxu0
    %v9793 = vadd.f32 %v9600, %v9792
    %v9794 = vpop.f32.mrb[0].mxu0
    %v9795 = vadd.f32 %v9602, %v9794
    %9796 = vmatprep.mubr.bf16.mxu0 %v5735
    %9797 = vmatmul.mubr.bf16.gmra.mrb[0].mxu0 %v5734
    %v9798 = vpop.f32.mrb[0].mxu0
    %v9799 = vadd.f32 %v9606, %v9798
    %v9800 = vpop.f32.mrb[0].mxu0
    %v9801 = vadd.f32 %v9608, %v9800
    %v9802 = vpop.f32.mrb[0].mxu0
    %v9803 = vadd.f32 %v9610, %v9802
    %v9804 = vpop.f32.mrb[0].mxu0
    %v9805 = vadd.f32 %v9612, %v9804
    %9806 = vmatprep.mubr.bf16.mxu0 %v5741
    %9807 = vmatmul.mubr.bf16.gmra.mrb[0].mxu0 %v5740
    %v9808 = vpop.f32.mrb[0].mxu0
    %v9809 = vadd.f32 %v9616, %v9808
    %v9810 = vpop.f32.mrb[0].mxu0
    %v9811 = vadd.f32 %v9618, %v9810
    %v9812 = vpop.f32.mrb[0].mxu0
    %v9813 = vadd.f32 %v9620, %v9812
    %v9814 = vpop.f32.mrb[0].mxu0
    %v9815 = vadd.f32 %v9622, %v9814
    %9816 = vmatprep.mubr.bf16.mxu0 %v5747
    %9817 = vmatmul.mubr.bf16.gmra.mrb[0].mxu0 %v5746
    %v9818 = vpop.f32.mrb[0].mxu0
    %v9819 = vadd.f32 %v9626, %v9818
    %v9820 = vpop.f32.mrb[0].mxu0
    %v9821 = vadd.f32 %v9628, %v9820
    %v9822 = vpop.f32.mrb[0].mxu0
    %v9823 = vadd.f32 %v9630, %v9822
    %v9824 = vpop.f32.mrb[0].mxu0
    %v9825 = vadd.f32 %v9632, %v9824
    %9826 = vmatprep.mubr.bf16.mxu0 %v5753
    %9827 = vmatmul.mubr.bf16.gmra.mrb[0].mxu0 %v5752
    %v9828 = vpop.f32.mrb[0].mxu0
    %v9829 = vadd.f32 %v9636, %v9828
    %v9830 = vpop.f32.mrb[0].mxu0
    %v9831 = vadd.f32 %v9638, %v9830
    %v9832 = vpop.f32.mrb[0].mxu0
    %v9833 = vadd.f32 %v9640, %v9832
    %v9834 = vpop.f32.mrb[0].mxu0
    %v9835 = vadd.f32 %v9642, %v9834
    %9836 = vdwg.mxu0
    %9837 = vmatprep.subr.bf16.mxu0 %v7339
    %9838 = vmatpush1.bf16.msra.mxu0 %v7338
    %9839 = vmatprep.subr.bf16.mxu0 %v7347
    %9840 = vmatpush1.bf16.msra.mxu0 %v7346
    %9841 = vmatprep.subr.bf16.mxu0 %v7355
    %9842 = vmatpush1.bf16.msra.mxu0 %v7354
    %9843 = vmatprep.subr.bf16.mxu0 %v7363
    %9844 = vmatpush1.bf16.msra.mxu0 %v7362
    %9845 = vmatprep.subr.bf16.mxu0 %v7371
    %9846 = vmatpush1.bf16.msra.mxu0 %v7370
    %9847 = vmatprep.subr.bf16.mxu0 %v7379
    %9848 = vmatpush1.bf16.msra.mxu0 %v7378
    %9849 = vmatprep.subr.bf16.mxu0 %v7387
    %9850 = vmatpush1.bf16.msra.mxu0 %v7386
    %9851 = vmatprep.subr.bf16.mxu0 %v7395
    %9852 = vmatpush1.bf16.msra.mxu0 %v7394
    %9853 = vmatprep.subr.bf16.mxu0 %v7403
    %9854 = vmatpush1.bf16.msra.mxu0 %v7402
    %9855 = vmatprep.subr.bf16.mxu0 %v7411
    %9856 = vmatpush1.bf16.msra.mxu0 %v7410
    %9857 = vmatprep.subr.bf16.mxu0 %v7419
    %9858 = vmatpush1.bf16.msra.mxu0 %v7418
    %9859 = vmatprep.subr.bf16.mxu0 %v7427
    %9860 = vmatpush1.bf16.msra.mxu0 %v7426
    %9861 = vmatprep.subr.bf16.mxu0 %v7435
    %9862 = vmatpush1.bf16.msra.mxu0 %v7434
    %9863 = vmatprep.subr.bf16.mxu0 %v7443
    %9864 = vmatpush1.bf16.msra.mxu0 %v7442
    %9865 = vmatprep.subr.bf16.mxu0 %v7451
    %9866 = vmatpush1.bf16.msra.mxu0 %v7450
    %9867 = vmatprep.subr.bf16.mxu0 %v7459
    %9868 = vmatpush1.bf16.msra.mxu0 %v7458
    %9869 = vmatprep.mubr.bf16.mxu0 %v5659
    %9870 = vmatmul.mubr.bf16.gmra.mrb[0].mxu0 %v5658
    %v9871 = vpop.f32.mrb[0].mxu0
    %v9872 = vadd.f32 %v6167, %v9871
    %v9873 = vpop.f32.mrb[0].mxu0
    %v9874 = vadd.f32 %v6171, %v9873
    %v9875 = vpop.f32.mrb[0].mxu0
    %v9876 = vadd.f32 %v6167, %v9875
    %v9877 = vpop.f32.mrb[0].mxu0
    %v9878 = vadd.f32 %v6171, %v9877
    %9879 = vmatprep.mubr.bf16.mxu0 %v5665
    %9880 = vmatmul.mubr.bf16.gmra.mrb[0].mxu0 %v5664
    %v9881 = vpop.f32.mrb[0].mxu0
    %v9882 = vadd.f32 %v6167, %v9881
    %v9883 = vpop.f32.mrb[0].mxu0
    %v9884 = vadd.f32 %v6171, %v9883
    %v9885 = vpop.f32.mrb[0].mxu0
    %v9886 = vadd.f32 %v6167, %v9885
    %v9887 = vpop.f32.mrb[0].mxu0
    %v9888 = vadd.f32 %v6171, %v9887
    %9889 = vmatprep.mubr.bf16.mxu0 %v5671
    %9890 = vmatmul.mubr.bf16.gmra.mrb[0].mxu0 %v5670
    %v9891 = vpop.f32.mrb[0].mxu0
    %v9892 = vadd.f32 %v6167, %v9891
    %v9893 = vpop.f32.mrb[0].mxu0
    %v9894 = vadd.f32 %v6171, %v9893
    %v9895 = vpop.f32.mrb[0].mxu0
    %v9896 = vadd.f32 %v6167, %v9895
    %v9897 = vpop.f32.mrb[0].mxu0
    %v9898 = vadd.f32 %v6171, %v9897
    %9899 = vmatprep.mubr.bf16.mxu0 %v5677
    %9900 = vmatmul.mubr.bf16.gmra.mrb[0].mxu0 %v5676
    %v9901 = vpop.f32.mrb[0].mxu0
    %v9902 = vadd.f32 %v6167, %v9901
    %v9903 = vpop.f32.mrb[0].mxu0
    %v9904 = vadd.f32 %v6171, %v9903
    %v9905 = vpop.f32.mrb[0].mxu0
    %v9906 = vadd.f32 %v6167, %v9905
    %v9907 = vpop.f32.mrb[0].mxu0
    %v9908 = vadd.f32 %v6171, %v9907
    %9909 = vmatprep.mubr.bf16.mxu0 %v5683
    %9910 = vmatmul.mubr.bf16.gmra.mrb[0].mxu0 %v5682
    %v9911 = vpop.f32.mrb[0].mxu0
    %v9912 = vadd.f32 %v6167, %v9911
    %v9913 = vpop.f32.mrb[0].mxu0
    %v9914 = vadd.f32 %v6171, %v9913
    %v9915 = vpop.f32.mrb[0].mxu0
    %v9916 = vadd.f32 %v6167, %v9915
    %v9917 = vpop.f32.mrb[0].mxu0
    %v9918 = vadd.f32 %v6171, %v9917
    %9919 = vmatprep.mubr.bf16.mxu0 %v5689
    %9920 = vmatmul.mubr.bf16.gmra.mrb[0].mxu0 %v5688
    %v9921 = vpop.f32.mrb[0].mxu0
    %v9922 = vadd.f32 %v6167, %v9921
    %v9923 = vpop.f32.mrb[0].mxu0
    %v9924 = vadd.f32 %v6171, %v9923
    %v9925 = vpop.f32.mrb[0].mxu0
    %v9926 = vadd.f32 %v6167, %v9925
    %v9927 = vpop.f32.mrb[0].mxu0
    %v9928 = vadd.f32 %v6171, %v9927
    %9929 = vmatprep.mubr.bf16.mxu0 %v5695
    %9930 = vmatmul.mubr.bf16.gmra.mrb[0].mxu0 %v5694
    %v9931 = vpop.f32.mrb[0].mxu0
    %v9932 = vadd.f32 %v6167, %v9931
    %v9933 = vpop.f32.mrb[0].mxu0
    %v9934 = vadd.f32 %v6171, %v9933
    %v9935 = vpop.f32.mrb[0].mxu0
    %v9936 = vadd.f32 %v6167, %v9935
    %v9937 = vpop.f32.mrb[0].mxu0
    %v9938 = vadd.f32 %v6171, %v9937
    %9939 = vmatprep.mubr.bf16.mxu0 %v5701
    %9940 = vmatmul.mubr.bf16.gmra.mrb[0].mxu0 %v5700
    %v9941 = vpop.f32.mrb[0].mxu0
    %v9942 = vadd.f32 %v6167, %v9941
    %v9943 = vpop.f32.mrb[0].mxu0
    %v9944 = vadd.f32 %v6171, %v9943
    %v9945 = vpop.f32.mrb[0].mxu0
    %v9946 = vadd.f32 %v6167, %v9945
    %v9947 = vpop.f32.mrb[0].mxu0
    %v9948 = vadd.f32 %v6171, %v9947
    %9949 = vmatprep.mubr.bf16.mxu0 %v5707
    %9950 = vmatmul.mubr.bf16.gmra.mrb[0].mxu0 %v5706
    %v9951 = vpop.f32.mrb[0].mxu0
    %v9952 = vadd.f32 %v6167, %v9951
    %v9953 = vpop.f32.mrb[0].mxu0
    %v9954 = vadd.f32 %v6171, %v9953
    %v9955 = vpop.f32.mrb[0].mxu0
    %v9956 = vadd.f32 %v6167, %v9955
    %v9957 = vpop.f32.mrb[0].mxu0
    %v9958 = vadd.f32 %v6171, %v9957
    %9959 = vmatprep.mubr.bf16.mxu0 %v5713
    %9960 = vmatmul.mubr.bf16.gmra.mrb[0].mxu0 %v5712
    %v9961 = vpop.f32.mrb[0].mxu0
    %v9962 = vadd.f32 %v6167, %v9961
    %v9963 = vpop.f32.mrb[0].mxu0
    %v9964 = vadd.f32 %v6171, %v9963
    %v9965 = vpop.f32.mrb[0].mxu0
    %v9966 = vadd.f32 %v6167, %v9965
    %v9967 = vpop.f32.mrb[0].mxu0
    %v9968 = vadd.f32 %v6171, %v9967
    %9969 = vmatprep.mubr.bf16.mxu0 %v5719
    %9970 = vmatmul.mubr.bf16.gmra.mrb[0].mxu0 %v5718
    %v9971 = vpop.f32.mrb[0].mxu0
    %v9972 = vadd.f32 %v6167, %v9971
    %v9973 = vpop.f32.mrb[0].mxu0
    %v9974 = vadd.f32 %v6171, %v9973
    %v9975 = vpop.f32.mrb[0].mxu0
    %v9976 = vadd.f32 %v6167, %v9975
    %v9977 = vpop.f32.mrb[0].mxu0
    %v9978 = vadd.f32 %v6171, %v9977
    %9979 = vmatprep.mubr.bf16.mxu0 %v5725
    %9980 = vmatmul.mubr.bf16.gmra.mrb[0].mxu0 %v5724
    %v9981 = vpop.f32.mrb[0].mxu0
    %v9982 = vadd.f32 %v6167, %v9981
    %v9983 = vpop.f32.mrb[0].mxu0
    %v9984 = vadd.f32 %v6171, %v9983
    %v9985 = vpop.f32.mrb[0].mxu0
    %v9986 = vadd.f32 %v6167, %v9985
    %v9987 = vpop.f32.mrb[0].mxu0
    %v9988 = vadd.f32 %v6171, %v9987
    %9989 = vmatprep.mubr.bf16.mxu0 %v5731
    %9990 = vmatmul.mubr.bf16.gmra.mrb[0].mxu0 %v5730
    %v9991 = vpop.f32.mrb[0].mxu0
    %v9992 = vadd.f32 %v6167, %v9991
    %v9993 = vpop.f32.mrb[0].mxu0
    %v9994 = vadd.f32 %v6171, %v9993
    %v9995 = vpop.f32.mrb[0].mxu0
    %v9996 = vadd.f32 %v6167, %v9995
    %v9997 = vpop.f32.mrb[0].mxu0
    %v9998 = vadd.f32 %v6171, %v9997
    %9999 = vmatprep.mubr.bf16.mxu0 %v5737
    %10000 = vmatmul.mubr.bf16.gmra.mrb[0].mxu0 %v5736
    %v10001 = vpop.f32.mrb[0].mxu0
    %v10002 = vadd.f32 %v6167, %v10001
    %v10003 = vpop.f32.mrb[0].mxu0
    %v10004 = vadd.f32 %v6171, %v10003
    %v10005 = vpop.f32.mrb[0].mxu0
    %v10006 = vadd.f32 %v6167, %v10005
    %v10007 = vpop.f32.mrb[0].mxu0
    %v10008 = vadd.f32 %v6171, %v10007
    %10009 = vmatprep.mubr.bf16.mxu0 %v5743
    %10010 = vmatmul.mubr.bf16.gmra.mrb[0].mxu0 %v5742
    %v10011 = vpop.f32.mrb[0].mxu0
    %v10012 = vadd.f32 %v6167, %v10011
    %v10013 = vpop.f32.mrb[0].mxu0
    %v10014 = vadd.f32 %v6171, %v10013
    %v10015 = vpop.f32.mrb[0].mxu0
    %v10016 = vadd.f32 %v6167, %v10015
    %v10017 = vpop.f32.mrb[0].mxu0
    %v10018 = vadd.f32 %v6171, %v10017
    %10019 = vmatprep.mubr.bf16.mxu0 %v5749
    %10020 = vmatmul.mubr.bf16.gmra.mrb[0].mxu0 %v5748
    %v10021 = vpop.f32.mrb[0].mxu0
    %v10022 = vadd.f32 %v6167, %v10021
    %v10023 = vpop.f32.mrb[0].mxu0
    %v10024 = vadd.f32 %v6171, %v10023
    %v10025 = vpop.f32.mrb[0].mxu0
    %v10026 = vadd.f32 %v6167, %v10025
    %v10027 = vpop.f32.mrb[0].mxu0
    %v10028 = vadd.f32 %v6171, %v10027
    %10029 = vdwg.mxu0
    %10030 = vmatprep.subr.bf16.mxu0 %v7467
    %10031 = vmatpush1.bf16.msra.mxu0 %v7466
    %10032 = vmatprep.subr.bf16.mxu0 %v7475
    %10033 = vmatpush1.bf16.msra.mxu0 %v7474
    %10034 = vmatprep.subr.bf16.mxu0 %v7483
    %10035 = vmatpush1.bf16.msra.mxu0 %v7482
    %10036 = vmatprep.subr.bf16.mxu0 %v7491
    %10037 = vmatpush1.bf16.msra.mxu0 %v7490
    %10038 = vmatprep.subr.bf16.mxu0 %v7499
    %10039 = vmatpush1.bf16.msra.mxu0 %v7498
    %10040 = vmatprep.subr.bf16.mxu0 %v7507
    %10041 = vmatpush1.bf16.msra.mxu0 %v7506
    %10042 = vmatprep.subr.bf16.mxu0 %v7515
    %10043 = vmatpush1.bf16.msra.mxu0 %v7514
    %10044 = vmatprep.subr.bf16.mxu0 %v7523
    %10045 = vmatpush1.bf16.msra.mxu0 %v7522
    %10046 = vmatprep.subr.bf16.mxu0 %v7531
    %10047 = vmatpush1.bf16.msra.mxu0 %v7530
    %10048 = vmatprep.subr.bf16.mxu0 %v7539
    %10049 = vmatpush1.bf16.msra.mxu0 %v7538
    %10050 = vmatprep.subr.bf16.mxu0 %v7547
    %10051 = vmatpush1.bf16.msra.mxu0 %v7546
    %10052 = vmatprep.subr.bf16.mxu0 %v7555
    %10053 = vmatpush1.bf16.msra.mxu0 %v7554
    %10054 = vmatprep.subr.bf16.mxu0 %v7563
    %10055 = vmatpush1.bf16.msra.mxu0 %v7562
    %10056 = vmatprep.subr.bf16.mxu0 %v7571
    %10057 = vmatpush1.bf16.msra.mxu0 %v7570
    %10058 = vmatprep.subr.bf16.mxu0 %v7579
    %10059 = vmatpush1.bf16.msra.mxu0 %v7578
    %10060 = vmatprep.subr.bf16.mxu0 %v7587
    %10061 = vmatpush1.bf16.msra.mxu0 %v7586
    %10062 = vmatprep.mubr.bf16.mxu0 %v5661
    %10063 = vmatmul.mubr.bf16.gmra.mrb[0].mxu0 %v5660
    %v10064 = vpop.f32.mrb[0].mxu0
    %v10065 = vadd.f32 %v9872, %v10064
    %v10066 = vpop.f32.mrb[0].mxu0
    %v10067 = vadd.f32 %v9874, %v10066
    %v10068 = vpop.f32.mrb[0].mxu0
    %v10069 = vadd.f32 %v9876, %v10068
    %v10070 = vpop.f32.mrb[0].mxu0
    %v10071 = vadd.f32 %v9878, %v10070
    %10072 = vmatprep.mubr.bf16.mxu0 %v5667
    %10073 = vmatmul.mubr.bf16.gmra.mrb[0].mxu0 %v5666
    %v10074 = vpop.f32.mrb[0].mxu0
    %v10075 = vadd.f32 %v9882, %v10074
    %v10076 = vpop.f32.mrb[0].mxu0
    %v10077 = vadd.f32 %v9884, %v10076
    %v10078 = vpop.f32.mrb[0].mxu0
    %v10079 = vadd.f32 %v9886, %v10078
    %v10080 = vpop.f32.mrb[0].mxu0
    %v10081 = vadd.f32 %v9888, %v10080
    %10082 = vmatprep.mubr.bf16.mxu0 %v5673
    %10083 = vmatmul.mubr.bf16.gmra.mrb[0].mxu0 %v5672
    %v10084 = vpop.f32.mrb[0].mxu0
    %v10085 = vadd.f32 %v9892, %v10084
    %v10086 = vpop.f32.mrb[0].mxu0
    %v10087 = vadd.f32 %v9894, %v10086
    %v10088 = vpop.f32.mrb[0].mxu0
    %v10089 = vadd.f32 %v9896, %v10088
    %v10090 = vpop.f32.mrb[0].mxu0
    %v10091 = vadd.f32 %v9898, %v10090
    %10092 = vmatprep.mubr.bf16.mxu0 %v5679
    %10093 = vmatmul.mubr.bf16.gmra.mrb[0].mxu0 %v5678
    %v10094 = vpop.f32.mrb[0].mxu0
    %v10095 = vadd.f32 %v9902, %v10094
    %v10096 = vpop.f32.mrb[0].mxu0
    %v10097 = vadd.f32 %v9904, %v10096
    %v10098 = vpop.f32.mrb[0].mxu0
    %v10099 = vadd.f32 %v9906, %v10098
    %v10100 = vpop.f32.mrb[0].mxu0
    %v10101 = vadd.f32 %v9908, %v10100
    %10102 = vmatprep.mubr.bf16.mxu0 %v5685
    %10103 = vmatmul.mubr.bf16.gmra.mrb[0].mxu0 %v5684
    %v10104 = vpop.f32.mrb[0].mxu0
    %v10105 = vadd.f32 %v9912, %v10104
    %v10106 = vpop.f32.mrb[0].mxu0
    %v10107 = vadd.f32 %v9914, %v10106
    %v10108 = vpop.f32.mrb[0].mxu0
    %v10109 = vadd.f32 %v9916, %v10108
    %v10110 = vpop.f32.mrb[0].mxu0
    %v10111 = vadd.f32 %v9918, %v10110
    %10112 = vmatprep.mubr.bf16.mxu0 %v5691
    %10113 = vmatmul.mubr.bf16.gmra.mrb[0].mxu0 %v5690
    %v10114 = vpop.f32.mrb[0].mxu0
    %v10115 = vadd.f32 %v9922, %v10114
    %v10116 = vpop.f32.mrb[0].mxu0
    %v10117 = vadd.f32 %v9924, %v10116
    %v10118 = vpop.f32.mrb[0].mxu0
    %v10119 = vadd.f32 %v9926, %v10118
    %v10120 = vpop.f32.mrb[0].mxu0
    %v10121 = vadd.f32 %v9928, %v10120
    %10122 = vmatprep.mubr.bf16.mxu0 %v5697
    %10123 = vmatmul.mubr.bf16.gmra.mrb[0].mxu0 %v5696
    %v10124 = vpop.f32.mrb[0].mxu0
    %v10125 = vadd.f32 %v9932, %v10124
    %v10126 = vpop.f32.mrb[0].mxu0
    %v10127 = vadd.f32 %v9934, %v10126
    %v10128 = vpop.f32.mrb[0].mxu0
    %v10129 = vadd.f32 %v9936, %v10128
    %v10130 = vpop.f32.mrb[0].mxu0
    %v10131 = vadd.f32 %v9938, %v10130
    %10132 = vmatprep.mubr.bf16.mxu0 %v5703
    %10133 = vmatmul.mubr.bf16.gmra.mrb[0].mxu0 %v5702
    %v10134 = vpop.f32.mrb[0].mxu0
    %v10135 = vadd.f32 %v9942, %v10134
    %v10136 = vpop.f32.mrb[0].mxu0
    %v10137 = vadd.f32 %v9944, %v10136
    %v10138 = vpop.f32.mrb[0].mxu0
    %v10139 = vadd.f32 %v9946, %v10138
    %v10140 = vpop.f32.mrb[0].mxu0
    %v10141 = vadd.f32 %v9948, %v10140
    %10142 = vmatprep.mubr.bf16.mxu0 %v5709
    %10143 = vmatmul.mubr.bf16.gmra.mrb[0].mxu0 %v5708
    %v10144 = vpop.f32.mrb[0].mxu0
    %v10145 = vadd.f32 %v9952, %v10144
    %v10146 = vpop.f32.mrb[0].mxu0
    %v10147 = vadd.f32 %v9954, %v10146
    %v10148 = vpop.f32.mrb[0].mxu0
    %v10149 = vadd.f32 %v9956, %v10148
    %v10150 = vpop.f32.mrb[0].mxu0
    %v10151 = vadd.f32 %v9958, %v10150
    %10152 = vmatprep.mubr.bf16.mxu0 %v5715
    %10153 = vmatmul.mubr.bf16.gmra.mrb[0].mxu0 %v5714
    %v10154 = vpop.f32.mrb[0].mxu0
    %v10155 = vadd.f32 %v9962, %v10154
    %v10156 = vpop.f32.mrb[0].mxu0
    %v10157 = vadd.f32 %v9964, %v10156
    %v10158 = vpop.f32.mrb[0].mxu0
    %v10159 = vadd.f32 %v9966, %v10158
    %v10160 = vpop.f32.mrb[0].mxu0
    %v10161 = vadd.f32 %v9968, %v10160
    %10162 = vmatprep.mubr.bf16.mxu0 %v5721
    %10163 = vmatmul.mubr.bf16.gmra.mrb[0].mxu0 %v5720
    %v10164 = vpop.f32.mrb[0].mxu0
    %v10165 = vadd.f32 %v9972, %v10164
    %v10166 = vpop.f32.mrb[0].mxu0
    %v10167 = vadd.f32 %v9974, %v10166
    %v10168 = vpop.f32.mrb[0].mxu0
    %v10169 = vadd.f32 %v9976, %v10168
    %v10170 = vpop.f32.mrb[0].mxu0
    %v10171 = vadd.f32 %v9978, %v10170
    %10172 = vmatprep.mubr.bf16.mxu0 %v5727
    %10173 = vmatmul.mubr.bf16.gmra.mrb[0].mxu0 %v5726
    %v10174 = vpop.f32.mrb[0].mxu0
    %v10175 = vadd.f32 %v9982, %v10174
    %v10176 = vpop.f32.mrb[0].mxu0
    %v10177 = vadd.f32 %v9984, %v10176
    %v10178 = vpop.f32.mrb[0].mxu0
    %v10179 = vadd.f32 %v9986, %v10178
    %v10180 = vpop.f32.mrb[0].mxu0
    %v10181 = vadd.f32 %v9988, %v10180
    %10182 = vmatprep.mubr.bf16.mxu0 %v5733
    %10183 = vmatmul.mubr.bf16.gmra.mrb[0].mxu0 %v5732
    %v10184 = vpop.f32.mrb[0].mxu0
    %v10185 = vadd.f32 %v9992, %v10184
    %v10186 = vpop.f32.mrb[0].mxu0
    %v10187 = vadd.f32 %v9994, %v10186
    %v10188 = vpop.f32.mrb[0].mxu0
    %v10189 = vadd.f32 %v9996, %v10188
    %v10190 = vpop.f32.mrb[0].mxu0
    %v10191 = vadd.f32 %v9998, %v10190
    %10192 = vmatprep.mubr.bf16.mxu0 %v5739
    %10193 = vmatmul.mubr.bf16.gmra.mrb[0].mxu0 %v5738
    %v10194 = vpop.f32.mrb[0].mxu0
    %v10195 = vadd.f32 %v10002, %v10194
    %v10196 = vpop.f32.mrb[0].mxu0
    %v10197 = vadd.f32 %v10004, %v10196
    %v10198 = vpop.f32.mrb[0].mxu0
    %v10199 = vadd.f32 %v10006, %v10198
    %v10200 = vpop.f32.mrb[0].mxu0
    %v10201 = vadd.f32 %v10008, %v10200
    %10202 = vmatprep.mubr.bf16.mxu0 %v5745
    %10203 = vmatmul.mubr.bf16.gmra.mrb[0].mxu0 %v5744
    %v10204 = vpop.f32.mrb[0].mxu0
    %v10205 = vadd.f32 %v10012, %v10204
    %v10206 = vpop.f32.mrb[0].mxu0
    %v10207 = vadd.f32 %v10014, %v10206
    %v10208 = vpop.f32.mrb[0].mxu0
    %v10209 = vadd.f32 %v10016, %v10208
    %v10210 = vpop.f32.mrb[0].mxu0
    %v10211 = vadd.f32 %v10018, %v10210
    %10212 = vmatprep.mubr.bf16.mxu0 %v5751
    %10213 = vmatmul.mubr.bf16.gmra.mrb[0].mxu0 %v5750
    %v10214 = vpop.f32.mrb[0].mxu0
    %v10215 = vadd.f32 %v10022, %v10214
    %v10216 = vpop.f32.mrb[0].mxu0
    %v10217 = vadd.f32 %v10024, %v10216
    %v10218 = vpop.f32.mrb[0].mxu0
    %v10219 = vadd.f32 %v10026, %v10218
    %v10220 = vpop.f32.mrb[0].mxu0
    %v10221 = vadd.f32 %v10028, %v10220
    %10222 = vdwg.mxu0
    %10223 = vmatprep.subr.bf16.mxu0 %v7595
    %10224 = vmatpush1.bf16.msra.mxu0 %v7594
    %10225 = vmatprep.subr.bf16.mxu0 %v7603
    %10226 = vmatpush1.bf16.msra.mxu0 %v7602
    %10227 = vmatprep.subr.bf16.mxu0 %v7611
    %10228 = vmatpush1.bf16.msra.mxu0 %v7610
    %10229 = vmatprep.subr.bf16.mxu0 %v7619
    %10230 = vmatpush1.bf16.msra.mxu0 %v7618
    %10231 = vmatprep.subr.bf16.mxu0 %v7627
    %10232 = vmatpush1.bf16.msra.mxu0 %v7626
    %10233 = vmatprep.subr.bf16.mxu0 %v7635
    %10234 = vmatpush1.bf16.msra.mxu0 %v7634
    %10235 = vmatprep.subr.bf16.mxu0 %v7643
    %10236 = vmatpush1.bf16.msra.mxu0 %v7642
    %10237 = vmatprep.subr.bf16.mxu0 %v7651
    %10238 = vmatpush1.bf16.msra.mxu0 %v7650
    %10239 = vmatprep.subr.bf16.mxu0 %v7659
    %10240 = vmatpush1.bf16.msra.mxu0 %v7658
    %10241 = vmatprep.subr.bf16.mxu0 %v7667
    %10242 = vmatpush1.bf16.msra.mxu0 %v7666
    %10243 = vmatprep.subr.bf16.mxu0 %v7675
    %10244 = vmatpush1.bf16.msra.mxu0 %v7674
    %10245 = vmatprep.subr.bf16.mxu0 %v7683
    %10246 = vmatpush1.bf16.msra.mxu0 %v7682
    %10247 = vmatprep.subr.bf16.mxu0 %v7691
    %10248 = vmatpush1.bf16.msra.mxu0 %v7690
    %10249 = vmatprep.subr.bf16.mxu0 %v7699
    %10250 = vmatpush1.bf16.msra.mxu0 %v7698
    %10251 = vmatprep.subr.bf16.mxu0 %v7707
    %10252 = vmatpush1.bf16.msra.mxu0 %v7706
    %10253 = vmatprep.subr.bf16.mxu0 %v7715
    %10254 = vmatpush1.bf16.msra.mxu0 %v7714
    %10255 = vmatprep.mubr.bf16.mxu0 %v5663
    %10256 = vmatmul.mubr.bf16.gmra.mrb[0].mxu0 %v5662
    %v10257 = vpop.f32.mrb[0].mxu0
    %v10258 = vadd.f32 %v10065, %v10257
    %v10259 = vpop.f32.mrb[0].mxu0
    %v10260 = vadd.f32 %v10067, %v10259
    %v10261 = vpop.f32.mrb[0].mxu0
    %v10262 = vadd.f32 %v10069, %v10261
    %v10263 = vpop.f32.mrb[0].mxu0
    %v10264 = vadd.f32 %v10071, %v10263
    %10265 = vmatprep.mubr.bf16.mxu0 %v5669
    %10266 = vmatmul.mubr.bf16.gmra.mrb[0].mxu0 %v5668
    %v10267 = vpop.f32.mrb[0].mxu0
    %v10268 = vadd.f32 %v10075, %v10267
    %v10269 = vpop.f32.mrb[0].mxu0
    %v10270 = vadd.f32 %v10077, %v10269
    %v10271 = vpop.f32.mrb[0].mxu0
    %v10272 = vadd.f32 %v10079, %v10271
    %v10273 = vpop.f32.mrb[0].mxu0
    %v10274 = vadd.f32 %v10081, %v10273
    %10275 = vmatprep.mubr.bf16.mxu0 %v5675
    %10276 = vmatmul.mubr.bf16.gmra.mrb[0].mxu0 %v5674
    %v10277 = vpop.f32.mrb[0].mxu0
    %v10278 = vadd.f32 %v10085, %v10277
    %v10279 = vpop.f32.mrb[0].mxu0
    %v10280 = vadd.f32 %v10087, %v10279
    %v10281 = vpop.f32.mrb[0].mxu0
    %v10282 = vadd.f32 %v10089, %v10281
    %v10283 = vpop.f32.mrb[0].mxu0
    %v10284 = vadd.f32 %v10091, %v10283
    %10285 = vmatprep.mubr.bf16.mxu0 %v5681
    %10286 = vmatmul.mubr.bf16.gmra.mrb[0].mxu0 %v5680
    %v10287 = vpop.f32.mrb[0].mxu0
    %v10288 = vadd.f32 %v10095, %v10287
    %v10289 = vpop.f32.mrb[0].mxu0
    %v10290 = vadd.f32 %v10097, %v10289
    %v10291 = vpop.f32.mrb[0].mxu0
    %v10292 = vadd.f32 %v10099, %v10291
    %v10293 = vpop.f32.mrb[0].mxu0
    %v10294 = vadd.f32 %v10101, %v10293
    %10295 = vmatprep.mubr.bf16.mxu0 %v5687
    %10296 = vmatmul.mubr.bf16.gmra.mrb[0].mxu0 %v5686
    %v10297 = vpop.f32.mrb[0].mxu0
    %v10298 = vadd.f32 %v10105, %v10297
    %v10299 = vpop.f32.mrb[0].mxu0
    %v10300 = vadd.f32 %v10107, %v10299
    %v10301 = vpop.f32.mrb[0].mxu0
    %v10302 = vadd.f32 %v10109, %v10301
    %v10303 = vpop.f32.mrb[0].mxu0
    %v10304 = vadd.f32 %v10111, %v10303
    %10305 = vmatprep.mubr.bf16.mxu0 %v5693
    %10306 = vmatmul.mubr.bf16.gmra.mrb[0].mxu0 %v5692
    %v10307 = vpop.f32.mrb[0].mxu0
    %v10308 = vadd.f32 %v10115, %v10307
    %v10309 = vpop.f32.mrb[0].mxu0
    %v10310 = vadd.f32 %v10117, %v10309
    %v10311 = vpop.f32.mrb[0].mxu0
    %v10312 = vadd.f32 %v10119, %v10311
    %v10313 = vpop.f32.mrb[0].mxu0
    %v10314 = vadd.f32 %v10121, %v10313
    %10315 = vmatprep.mubr.bf16.mxu0 %v5699
    %10316 = vmatmul.mubr.bf16.gmra.mrb[0].mxu0 %v5698
    %v10317 = vpop.f32.mrb[0].mxu0
    %v10318 = vadd.f32 %v10125, %v10317
    %v10319 = vpop.f32.mrb[0].mxu0
    %v10320 = vadd.f32 %v10127, %v10319
    %v10321 = vpop.f32.mrb[0].mxu0
    %v10322 = vadd.f32 %v10129, %v10321
    %v10323 = vpop.f32.mrb[0].mxu0
    %v10324 = vadd.f32 %v10131, %v10323
    %10325 = vmatprep.mubr.bf16.mxu0 %v5705
    %10326 = vmatmul.mubr.bf16.gmra.mrb[0].mxu0 %v5704
    %v10327 = vpop.f32.mrb[0].mxu0
    %v10328 = vadd.f32 %v10135, %v10327
    %v10329 = vpop.f32.mrb[0].mxu0
    %v10330 = vadd.f32 %v10137, %v10329
    %v10331 = vpop.f32.mrb[0].mxu0
    %v10332 = vadd.f32 %v10139, %v10331
    %v10333 = vpop.f32.mrb[0].mxu0
    %v10334 = vadd.f32 %v10141, %v10333
    %10335 = vmatprep.mubr.bf16.mxu0 %v5711
    %10336 = vmatmul.mubr.bf16.gmra.mrb[0].mxu0 %v5710
    %v10337 = vpop.f32.mrb[0].mxu0
    %v10338 = vadd.f32 %v10145, %v10337
    %v10339 = vpop.f32.mrb[0].mxu0
    %v10340 = vadd.f32 %v10147, %v10339
    %v10341 = vpop.f32.mrb[0].mxu0
    %v10342 = vadd.f32 %v10149, %v10341
    %v10343 = vpop.f32.mrb[0].mxu0
    %v10344 = vadd.f32 %v10151, %v10343
    %10345 = vmatprep.mubr.bf16.mxu0 %v5717
    %10346 = vmatmul.mubr.bf16.gmra.mrb[0].mxu0 %v5716
    %v10347 = vpop.f32.mrb[0].mxu0
    %v10348 = vadd.f32 %v10155, %v10347
    %v10349 = vpop.f32.mrb[0].mxu0
    %v10350 = vadd.f32 %v10157, %v10349
    %v10351 = vpop.f32.mrb[0].mxu0
    %v10352 = vadd.f32 %v10159, %v10351
    %v10353 = vpop.f32.mrb[0].mxu0
    %v10354 = vadd.f32 %v10161, %v10353
    %10355 = vmatprep.mubr.bf16.mxu0 %v5723
    %10356 = vmatmul.mubr.bf16.gmra.mrb[0].mxu0 %v5722
    %v10357 = vpop.f32.mrb[0].mxu0
    %v10358 = vadd.f32 %v10165, %v10357
    %v10359 = vpop.f32.mrb[0].mxu0
    %v10360 = vadd.f32 %v10167, %v10359
    %v10361 = vpop.f32.mrb[0].mxu0
    %v10362 = vadd.f32 %v10169, %v10361
    %v10363 = vpop.f32.mrb[0].mxu0
    %v10364 = vadd.f32 %v10171, %v10363
    %10365 = vmatprep.mubr.bf16.mxu0 %v5729
    %10366 = vmatmul.mubr.bf16.gmra.mrb[0].mxu0 %v5728
    %v10367 = vpop.f32.mrb[0].mxu0
    %v10368 = vadd.f32 %v10175, %v10367
    %v10369 = vpop.f32.mrb[0].mxu0
    %v10370 = vadd.f32 %v10177, %v10369
    %v10371 = vpop.f32.mrb[0].mxu0
    %v10372 = vadd.f32 %v10179, %v10371
    %v10373 = vpop.f32.mrb[0].mxu0
    %v10374 = vadd.f32 %v10181, %v10373
    %10375 = vmatprep.mubr.bf16.mxu0 %v5735
    %10376 = vmatmul.mubr.bf16.gmra.mrb[0].mxu0 %v5734
    %v10377 = vpop.f32.mrb[0].mxu0
    %v10378 = vadd.f32 %v10185, %v10377
    %v10379 = vpop.f32.mrb[0].mxu0
    %v10380 = vadd.f32 %v10187, %v10379
    %v10381 = vpop.f32.mrb[0].mxu0
    %v10382 = vadd.f32 %v10189, %v10381
    %v10383 = vpop.f32.mrb[0].mxu0
    %v10384 = vadd.f32 %v10191, %v10383
    %10385 = vmatprep.mubr.bf16.mxu0 %v5741
    %10386 = vmatmul.mubr.bf16.gmra.mrb[0].mxu0 %v5740
    %v10387 = vpop.f32.mrb[0].mxu0
    %v10388 = vadd.f32 %v10195, %v10387
    %v10389 = vpop.f32.mrb[0].mxu0
    %v10390 = vadd.f32 %v10197, %v10389
    %v10391 = vpop.f32.mrb[0].mxu0
    %v10392 = vadd.f32 %v10199, %v10391
    %v10393 = vpop.f32.mrb[0].mxu0
    %v10394 = vadd.f32 %v10201, %v10393
    %10395 = vmatprep.mubr.bf16.mxu0 %v5747
    %10396 = vmatmul.mubr.bf16.gmra.mrb[0].mxu0 %v5746
    %v10397 = vpop.f32.mrb[0].mxu0
    %v10398 = vadd.f32 %v10205, %v10397
    %v10399 = vpop.f32.mrb[0].mxu0
    %v10400 = vadd.f32 %v10207, %v10399
    %v10401 = vpop.f32.mrb[0].mxu0
    %v10402 = vadd.f32 %v10209, %v10401
    %v10403 = vpop.f32.mrb[0].mxu0
    %v10404 = vadd.f32 %v10211, %v10403
    %10405 = vmatprep.mubr.bf16.mxu0 %v5753
    %10406 = vmatmul.mubr.bf16.gmra.mrb[0].mxu0 %v5752
    %v10407 = vpop.f32.mrb[0].mxu0
    %v10408 = vadd.f32 %v10215, %v10407
    %v10409 = vpop.f32.mrb[0].mxu0
    %v10410 = vadd.f32 %v10217, %v10409
    %v10411 = vpop.f32.mrb[0].mxu0
    %v10412 = vadd.f32 %v10219, %v10411
    %v10413 = vpop.f32.mrb[0].mxu0
    %v10414 = vadd.f32 %v10221, %v10413
    %10415 = vdwg.mxu0
    %v10416 = vtanh.pop %v8521
    %v10417 = vtanh.pop %v8523
    %v10418 = vtanh.pop %v9100
    %v10419 = vtanh.pop %v9102
    %v10420 = vtanh.pop %v8525
    %v10421 = vtanh.pop %v8527
    %v10422 = vtanh.pop %v9104
    %v10423 = vtanh.pop %v9106
    %v10424 = vtanh.pop %v8531
    %v10425 = vtanh.pop %v8533
    %v10426 = vtanh.pop %v9110
    %v10427 = vtanh.pop %v9112
    %v10428 = vtanh.pop %v8535
    %v10429 = vtanh.pop %v8537
    %v10430 = vtanh.pop %v9114
    %v10431 = vtanh.pop %v9116
    %v10432 = vtanh.pop %v8541
    %v10433 = vtanh.pop %v8543
    %v10434 = vtanh.pop %v9120
    %v10435 = vtanh.pop %v9122
    %v10436 = vtanh.pop %v8545
    %v10437 = vtanh.pop %v8547
    %v10438 = vtanh.pop %v9124
    %v10439 = vtanh.pop %v9126
    %v10440 = vtanh.pop %v8551
    %v10441 = vtanh.pop %v8553
    %v10442 = vtanh.pop %v9130
    %v10443 = vtanh.pop %v9132
    %v10444 = vtanh.pop %v8555
    %v10445 = vtanh.pop %v8557
    %v10446 = vtanh.pop %v9134
    %v10447 = vtanh.pop %v9136
    %v10448 = vtanh.pop %v8561
    %v10449 = vtanh.pop %v8563
    %v10450 = vtanh.pop %v9140
    %v10451 = vtanh.pop %v9142
    %v10452 = vtanh.pop %v8565
    %v10453 = vtanh.pop %v8567
    %v10454 = vtanh.pop %v9144
    %v10455 = vtanh.pop %v9146
    %v10456 = vtanh.pop %v8571
    %v10457 = vtanh.pop %v8573
    %v10458 = vtanh.pop %v9150
    %v10459 = vtanh.pop %v9152
    %v10460 = vtanh.pop %v8575
    %v10461 = vtanh.pop %v8577
    %v10462 = vtanh.pop %v9154
    %v10463 = vtanh.pop %v9156
    %v10464 = vtanh.pop %v8581
    %v10465 = vtanh.pop %v8583
    %v10466 = vtanh.pop %v9160
    %v10467 = vtanh.pop %v9162
    %v10468 = vtanh.pop %v8585
    %v10469 = vtanh.pop %v8587
    %v10470 = vtanh.pop %v9164
    %v10471 = vtanh.pop %v9166
    %v10472 = vtanh.pop %v8591
    %v10473 = vtanh.pop %v8593
    %v10474 = vtanh.pop %v9170
    %v10475 = vtanh.pop %v9172
    %v10476 = vtanh.pop %v8595
    %v10477 = vtanh.pop %v8597
    %v10478 = vtanh.pop %v9174
    %v10479 = vtanh.pop %v9176
    %v10480 = vtanh.pop %v8601
    %v10481 = vtanh.pop %v8603
    %v10482 = vtanh.pop %v9180
    %v10483 = vtanh.pop %v9182
    %v10484 = vtanh.pop %v8605
    %v10485 = vtanh.pop %v8607
    %v10486 = vtanh.pop %v9184
    %v10487 = vtanh.pop %v9186
    %v10488 = vtanh.pop %v8611
    %v10489 = vtanh.pop %v8613
    %v10490 = vtanh.pop %v9190
    %v10491 = vtanh.pop %v9192
    %v10492 = vtanh.pop %v8615
    %v10493 = vtanh.pop %v8617
    %v10494 = vtanh.pop %v9194
    %v10495 = vtanh.pop %v9196
    %v10496 = vtanh.pop %v8621
    %v10497 = vtanh.pop %v8623
    %v10498 = vtanh.pop %v9200
    %v10499 = vtanh.pop %v9202
    %v10500 = vtanh.pop %v8625
    %v10501 = vtanh.pop %v8627
    %v10502 = vtanh.pop %v9204
    %v10503 = vtanh.pop %v9206
    %v10504 = vtanh.pop %v8631
    %v10505 = vtanh.pop %v8633
    %v10506 = vtanh.pop %v9210
    %v10507 = vtanh.pop %v9212
    %v10508 = vtanh.pop %v8635
    %v10509 = vtanh.pop %v8637
    %v10510 = vtanh.pop %v9214
    %v10511 = vtanh.pop %v9216
    %v10512 = vtanh.pop %v8641
    %v10513 = vtanh.pop %v8643
    %v10514 = vtanh.pop %v9220
    %v10515 = vtanh.pop %v9222
    %v10516 = vtanh.pop %v8645
    %v10517 = vtanh.pop %v8647
    %v10518 = vtanh.pop %v9224
    %v10519 = vtanh.pop %v9226
    %v10520 = vtanh.pop %v8651
    %v10521 = vtanh.pop %v8653
    %v10522 = vtanh.pop %v9230
    %v10523 = vtanh.pop %v9232
    %v10524 = vtanh.pop %v8655
    %v10525 = vtanh.pop %v8657
    %v10526 = vtanh.pop %v9234
    %v10527 = vtanh.pop %v9236
    %v10528 = vtanh.pop %v8661
    %v10529 = vtanh.pop %v8663
    %v10530 = vtanh.pop %v9240
    %v10531 = vtanh.pop %v9242
    %v10532 = vtanh.pop %v8665
    %v10533 = vtanh.pop %v8667
    %v10534 = vtanh.pop %v9244
    %v10535 = vtanh.pop %v9246
    %v10536 = vtanh.pop %v8671
    %v10537 = vtanh.pop %v8673
    %v10538 = vtanh.pop %v9250
    %v10539 = vtanh.pop %v9252
    %v10540 = vtanh.pop %v8675
    %v10541 = vtanh.pop %v8677
    %v10542 = vtanh.pop %v9254
    %v10543 = vtanh.pop %v9256
    %v10544 = vxor.u32 %v9679, 2147483648
    %v10545 = vxor.u32 %v9681, 2147483648
    %v10546 = vxor.u32 %v10258, 2147483648
    %v10547 = vxor.u32 %v10260, 2147483648
    %v10548 = vxor.u32 %v9683, 2147483648
    %v10549 = vxor.u32 %v9685, 2147483648
    %v10550 = vxor.u32 %v10262, 2147483648
    %v10551 = vxor.u32 %v10264, 2147483648
    %v10552 = vxor.u32 %v9689, 2147483648
    %v10553 = vxor.u32 %v9691, 2147483648
    %v10554 = vxor.u32 %v10268, 2147483648
    %v10555 = vxor.u32 %v10270, 2147483648
    %v10556 = vxor.u32 %v9693, 2147483648
    %v10557 = vxor.u32 %v9695, 2147483648
    %v10558 = vxor.u32 %v10272, 2147483648
    %v10559 = vxor.u32 %v10274, 2147483648
    %v10560 = vxor.u32 %v9699, 2147483648
    %v10561 = vxor.u32 %v9701, 2147483648
    %v10562 = vxor.u32 %v10278, 2147483648
    %v10563 = vxor.u32 %v10280, 2147483648
    %v10564 = vxor.u32 %v9703, 2147483648
    %v10565 = vxor.u32 %v9705, 2147483648
    %v10566 = vxor.u32 %v10282, 2147483648
    %v10567 = vxor.u32 %v10284, 2147483648
    %v10568 = vxor.u32 %v9709, 2147483648
    %v10569 = vxor.u32 %v9711, 2147483648
    %v10570 = vxor.u32 %v10288, 2147483648
    %v10571 = vxor.u32 %v10290, 2147483648
    %v10572 = vxor.u32 %v9713, 2147483648
    %v10573 = vxor.u32 %v9715, 2147483648
    %v10574 = vxor.u32 %v10292, 2147483648
    %v10575 = vxor.u32 %v10294, 2147483648
    %v10576 = vxor.u32 %v9719, 2147483648
    %v10577 = vxor.u32 %v9721, 2147483648
    %v10578 = vxor.u32 %v10298, 2147483648
    %v10579 = vxor.u32 %v10300, 2147483648
    %v10580 = vxor.u32 %v9723, 2147483648
    %v10581 = vxor.u32 %v9725, 2147483648
    %v10582 = vxor.u32 %v10302, 2147483648
    %v10583 = vxor.u32 %v10304, 2147483648
    %v10584 = vxor.u32 %v9729, 2147483648
    %v10585 = vxor.u32 %v9731, 2147483648
    %v10586 = vxor.u32 %v10308, 2147483648
    %v10587 = vxor.u32 %v10310, 2147483648
    %v10588 = vxor.u32 %v9733, 2147483648
    %v10589 = vxor.u32 %v9735, 2147483648
    %v10590 = vxor.u32 %v10312, 2147483648
    %v10591 = vxor.u32 %v10314, 2147483648
    %v10592 = vxor.u32 %v9739, 2147483648
    %v10593 = vxor.u32 %v9741, 2147483648
    %v10594 = vxor.u32 %v10318, 2147483648
    %v10595 = vxor.u32 %v10320, 2147483648
    %v10596 = vxor.u32 %v9743, 2147483648
    %v10597 = vxor.u32 %v9745, 2147483648
    %v10598 = vxor.u32 %v10322, 2147483648
    %v10599 = vxor.u32 %v10324, 2147483648
    %v10600 = vxor.u32 %v9749, 2147483648
    %v10601 = vxor.u32 %v9751, 2147483648
    %v10602 = vxor.u32 %v10328, 2147483648
    %v10603 = vxor.u32 %v10330, 2147483648
    %v10604 = vxor.u32 %v9753, 2147483648
    %v10605 = vxor.u32 %v9755, 2147483648
    %v10606 = vxor.u32 %v10332, 2147483648
    %v10607 = vxor.u32 %v10334, 2147483648
    %v10608 = vxor.u32 %v9759, 2147483648
    %v10609 = vxor.u32 %v9761, 2147483648
    %v10610 = vxor.u32 %v10338, 2147483648
    %v10611 = vxor.u32 %v10340, 2147483648
    %v10612 = vxor.u32 %v9763, 2147483648
    %v10613 = vxor.u32 %v9765, 2147483648
    %v10614 = vxor.u32 %v10342, 2147483648
    %v10615 = vxor.u32 %v10344, 2147483648
    %v10616 = vxor.u32 %v9769, 2147483648
    %v10617 = vxor.u32 %v9771, 2147483648
    %v10618 = vxor.u32 %v10348, 2147483648
    %v10619 = vxor.u32 %v10350, 2147483648
    %v10620 = vxor.u32 %v9773, 2147483648
    %v10621 = vxor.u32 %v9775, 2147483648
    %v10622 = vxor.u32 %v10352, 2147483648
    %v10623 = vxor.u32 %v10354, 2147483648
    %v10624 = vxor.u32 %v9779, 2147483648
    %v10625 = vxor.u32 %v9781, 2147483648
    %v10626 = vxor.u32 %v10358, 2147483648
    %v10627 = vxor.u32 %v10360, 2147483648
    %v10628 = vxor.u32 %v9783, 2147483648
    %v10629 = vxor.u32 %v9785, 2147483648
    %v10630 = vxor.u32 %v10362, 2147483648
    %v10631 = vxor.u32 %v10364, 2147483648
    %v10632 = vxor.u32 %v9789, 2147483648
    %v10633 = vxor.u32 %v9791, 2147483648
    %v10634 = vxor.u32 %v10368, 2147483648
    %v10635 = vxor.u32 %v10370, 2147483648
    %v10636 = vxor.u32 %v9793, 2147483648
    %v10637 = vxor.u32 %v9795, 2147483648
    %v10638 = vxor.u32 %v10372, 2147483648
    %v10639 = vxor.u32 %v10374, 2147483648
    %v10640 = vxor.u32 %v9799, 2147483648
    %v10641 = vxor.u32 %v9801, 2147483648
    %v10642 = vxor.u32 %v10378, 2147483648
    %v10643 = vxor.u32 %v10380, 2147483648
    %v10644 = vxor.u32 %v9803, 2147483648
    %v10645 = vxor.u32 %v9805, 2147483648
    %v10646 = vxor.u32 %v10382, 2147483648
    %v10647 = vxor.u32 %v10384, 2147483648
    %v10648 = vxor.u32 %v9809, 2147483648
    %v10649 = vxor.u32 %v9811, 2147483648
    %v10650 = vxor.u32 %v10388, 2147483648
    %v10651 = vxor.u32 %v10390, 2147483648
    %v10652 = vxor.u32 %v9813, 2147483648
    %v10653 = vxor.u32 %v9815, 2147483648
    %v10654 = vxor.u32 %v10392, 2147483648
    %v10655 = vxor.u32 %v10394, 2147483648
    %v10656 = vxor.u32 %v9819, 2147483648
    %v10657 = vxor.u32 %v9821, 2147483648
    %v10658 = vxor.u32 %v10398, 2147483648
    %v10659 = vxor.u32 %v10400, 2147483648
    %v10660 = vxor.u32 %v9823, 2147483648
    %v10661 = vxor.u32 %v9825, 2147483648
    %v10662 = vxor.u32 %v10402, 2147483648
    %v10663 = vxor.u32 %v10404, 2147483648
    %v10664 = vxor.u32 %v9829, 2147483648
    %v10665 = vxor.u32 %v9831, 2147483648
    %v10666 = vxor.u32 %v10408, 2147483648
    %v10667 = vxor.u32 %v10410, 2147483648
    %v10668 = vxor.u32 %v9833, 2147483648
    %v10669 = vxor.u32 %v9835, 2147483648
    %v10670 = vxor.u32 %v10412, 2147483648
    %v10671 = vxor.u32 %v10414, 2147483648
    %v10672 = vmul.f32 %v10544, 1.442695
    %v10673 = vpow.pop %v10672
    %v10674 = vmul.f32 %v10545, 1.442695
    %v10675 = vpow.pop %v10674
    %v10676 = vmul.f32 %v10546, 1.442695
    %v10677 = vpow.pop %v10676
    %v10678 = vmul.f32 %v10547, 1.442695
    %v10679 = vpow.pop %v10678
    %v10680 = vmul.f32 %v10548, 1.442695
    %v10681 = vpow.pop %v10680
    %v10682 = vmul.f32 %v10549, 1.442695
    %v10683 = vpow.pop %v10682
    %v10684 = vmul.f32 %v10550, 1.442695
    %v10685 = vpow.pop %v10684
    %v10686 = vmul.f32 %v10551, 1.442695
    %v10687 = vpow.pop %v10686
    %v10688 = vmul.f32 %v10552, 1.442695
    %v10689 = vpow.pop %v10688
    %v10690 = vmul.f32 %v10553, 1.442695
    %v10691 = vpow.pop %v10690
    %v10692 = vmul.f32 %v10554, 1.442695
    %v10693 = vpow.pop %v10692
    %v10694 = vmul.f32 %v10555, 1.442695
    %v10695 = vpow.pop %v10694
    %v10696 = vmul.f32 %v10556, 1.442695
    %v10697 = vpow.pop %v10696
    %v10698 = vmul.f32 %v10557, 1.442695
    %v10699 = vpow.pop %v10698
    %v10700 = vmul.f32 %v10558, 1.442695
    %v10701 = vpow.pop %v10700
    %v10702 = vmul.f32 %v10559, 1.442695
    %v10703 = vpow.pop %v10702
    %v10704 = vmul.f32 %v10560, 1.442695
    %v10705 = vpow.pop %v10704
    %v10706 = vmul.f32 %v10561, 1.442695
    %v10707 = vpow.pop %v10706
    %v10708 = vmul.f32 %v10562, 1.442695
    %v10709 = vpow.pop %v10708
    %v10710 = vmul.f32 %v10563, 1.442695
    %v10711 = vpow.pop %v10710
    %v10712 = vmul.f32 %v10564, 1.442695
    %v10713 = vpow.pop %v10712
    %v10714 = vmul.f32 %v10565, 1.442695
    %v10715 = vpow.pop %v10714
    %v10716 = vmul.f32 %v10566, 1.442695
    %v10717 = vpow.pop %v10716
    %v10718 = vmul.f32 %v10567, 1.442695
    %v10719 = vpow.pop %v10718
    %v10720 = vmul.f32 %v10568, 1.442695
    %v10721 = vpow.pop %v10720
    %v10722 = vmul.f32 %v10569, 1.442695
    %v10723 = vpow.pop %v10722
    %v10724 = vmul.f32 %v10570, 1.442695
    %v10725 = vpow.pop %v10724
    %v10726 = vmul.f32 %v10571, 1.442695
    %v10727 = vpow.pop %v10726
    %v10728 = vmul.f32 %v10572, 1.442695
    %v10729 = vpow.pop %v10728
    %v10730 = vmul.f32 %v10573, 1.442695
    %v10731 = vpow.pop %v10730
    %v10732 = vmul.f32 %v10574, 1.442695
    %v10733 = vpow.pop %v10732
    %v10734 = vmul.f32 %v10575, 1.442695
    %v10735 = vpow.pop %v10734
    %v10736 = vmul.f32 %v10576, 1.442695
    %v10737 = vpow.pop %v10736
    %v10738 = vmul.f32 %v10577, 1.442695
    %v10739 = vpow.pop %v10738
    %v10740 = vmul.f32 %v10578, 1.442695
    %v10741 = vpow.pop %v10740
    %v10742 = vmul.f32 %v10579, 1.442695
    %v10743 = vpow.pop %v10742
    %v10744 = vmul.f32 %v10580, 1.442695
    %v10745 = vpow.pop %v10744
    %v10746 = vmul.f32 %v10581, 1.442695
    %v10747 = vpow.pop %v10746
    %v10748 = vmul.f32 %v10582, 1.442695
    %v10749 = vpow.pop %v10748
    %v10750 = vmul.f32 %v10583, 1.442695
    %v10751 = vpow.pop %v10750
    %v10752 = vmul.f32 %v10584, 1.442695
    %v10753 = vpow.pop %v10752
    %v10754 = vmul.f32 %v10585, 1.442695
    %v10755 = vpow.pop %v10754
    %v10756 = vmul.f32 %v10586, 1.442695
    %v10757 = vpow.pop %v10756
    %v10758 = vmul.f32 %v10587, 1.442695
    %v10759 = vpow.pop %v10758
    %v10760 = vmul.f32 %v10588, 1.442695
    %v10761 = vpow.pop %v10760
    %v10762 = vmul.f32 %v10589, 1.442695
    %v10763 = vpow.pop %v10762
    %v10764 = vmul.f32 %v10590, 1.442695
    %v10765 = vpow.pop %v10764
    %v10766 = vmul.f32 %v10591, 1.442695
    %v10767 = vpow.pop %v10766
    %v10768 = vmul.f32 %v10592, 1.442695
    %v10769 = vpow.pop %v10768
    %v10770 = vmul.f32 %v10593, 1.442695
    %v10771 = vpow.pop %v10770
    %v10772 = vmul.f32 %v10594, 1.442695
    %v10773 = vpow.pop %v10772
    %v10774 = vmul.f32 %v10595, 1.442695
    %v10775 = vpow.pop %v10774
    %v10776 = vmul.f32 %v10596, 1.442695
    %v10777 = vpow.pop %v10776
    %v10778 = vmul.f32 %v10597, 1.442695
    %v10779 = vpow.pop %v10778
    %v10780 = vmul.f32 %v10598, 1.442695
    %v10781 = vpow.pop %v10780
    %v10782 = vmul.f32 %v10599, 1.442695
    %v10783 = vpow.pop %v10782
    %v10784 = vmul.f32 %v10600, 1.442695
    %v10785 = vpow.pop %v10784
    %v10786 = vmul.f32 %v10601, 1.442695
    %v10787 = vpow.pop %v10786
    %v10788 = vmul.f32 %v10602, 1.442695
    %v10789 = vpow.pop %v10788
    %v10790 = vmul.f32 %v10603, 1.442695
    %v10791 = vpow.pop %v10790
    %v10792 = vmul.f32 %v10604, 1.442695
    %v10793 = vpow.pop %v10792
    %v10794 = vmul.f32 %v10605, 1.442695
    %v10795 = vpow.pop %v10794
    %v10796 = vmul.f32 %v10606, 1.442695
    %v10797 = vpow.pop %v10796
    %v10798 = vmul.f32 %v10607, 1.442695
    %v10799 = vpow.pop %v10798
    %v10800 = vmul.f32 %v10608, 1.442695
    %v10801 = vpow.pop %v10800
    %v10802 = vmul.f32 %v10609, 1.442695
    %v10803 = vpow.pop %v10802
    %v10804 = vmul.f32 %v10610, 1.442695
    %v10805 = vpow.pop %v10804
    %v10806 = vmul.f32 %v10611, 1.442695
    %v10807 = vpow.pop %v10806
    %v10808 = vmul.f32 %v10612, 1.442695
    %v10809 = vpow.pop %v10808
    %v10810 = vmul.f32 %v10613, 1.442695
    %v10811 = vpow.pop %v10810
    %v10812 = vmul.f32 %v10614, 1.442695
    %v10813 = vpow.pop %v10812
    %v10814 = vmul.f32 %v10615, 1.442695
    %v10815 = vpow.pop %v10814
    %v10816 = vmul.f32 %v10616, 1.442695
    %v10817 = vpow.pop %v10816
    %v10818 = vmul.f32 %v10617, 1.442695
    %v10819 = vpow.pop %v10818
    %v10820 = vmul.f32 %v10618, 1.442695
    %v10821 = vpow.pop %v10820
    %v10822 = vmul.f32 %v10619, 1.442695
    %v10823 = vpow.pop %v10822
    %v10824 = vmul.f32 %v10620, 1.442695
    %v10825 = vpow.pop %v10824
    %v10826 = vmul.f32 %v10621, 1.442695
    %v10827 = vpow.pop %v10826
    %v10828 = vmul.f32 %v10622, 1.442695
    %v10829 = vpow.pop %v10828
    %v10830 = vmul.f32 %v10623, 1.442695
    %v10831 = vpow.pop %v10830
    %v10832 = vmul.f32 %v10624, 1.442695
    %v10833 = vpow.pop %v10832
    %v10834 = vmul.f32 %v10625, 1.442695
    %v10835 = vpow.pop %v10834
    %v10836 = vmul.f32 %v10626, 1.442695
    %v10837 = vpow.pop %v10836
    %v10838 = vmul.f32 %v10627, 1.442695
    %v10839 = vpow.pop %v10838
    %v10840 = vmul.f32 %v10628, 1.442695
    %v10841 = vpow.pop %v10840
    %v10842 = vmul.f32 %v10629, 1.442695
    %v10843 = vpow.pop %v10842
    %v10844 = vmul.f32 %v10630, 1.442695
    %v10845 = vpow.pop %v10844
    %v10846 = vmul.f32 %v10631, 1.442695
    %v10847 = vpow.pop %v10846
    %v10848 = vmul.f32 %v10632, 1.442695
    %v10849 = vpow.pop %v10848
    %v10850 = vmul.f32 %v10633, 1.442695
    %v10851 = vpow.pop %v10850
    %v10852 = vmul.f32 %v10634, 1.442695
    %v10853 = vpow.pop %v10852
    %v10854 = vmul.f32 %v10635, 1.442695
    %v10855 = vpow.pop %v10854
    %v10856 = vmul.f32 %v10636, 1.442695
    %v10857 = vpow.pop %v10856
    %v10858 = vmul.f32 %v10637, 1.442695
    %v10859 = vpow.pop %v10858
    %v10860 = vmul.f32 %v10638, 1.442695
    %v10861 = vpow.pop %v10860
    %v10862 = vmul.f32 %v10639, 1.442695
    %v10863 = vpow.pop %v10862
    %v10864 = vmul.f32 %v10640, 1.442695
    %v10865 = vpow.pop %v10864
    %v10866 = vmul.f32 %v10641, 1.442695
    %v10867 = vpow.pop %v10866
    %v10868 = vmul.f32 %v10642, 1.442695
    %v10869 = vpow.pop %v10868
    %v10870 = vmul.f32 %v10643, 1.442695
    %v10871 = vpow.pop %v10870
    %v10872 = vmul.f32 %v10644, 1.442695
    %v10873 = vpow.pop %v10872
    %v10874 = vmul.f32 %v10645, 1.442695
    %v10875 = vpow.pop %v10874
    %v10876 = vmul.f32 %v10646, 1.442695
    %v10877 = vpow.pop %v10876
    %v10878 = vmul.f32 %v10647, 1.442695
    %v10879 = vpow.pop %v10878
    %v10880 = vmul.f32 %v10648, 1.442695
    %v10881 = vpow.pop %v10880
    %v10882 = vmul.f32 %v10649, 1.442695
    %v10883 = vpow.pop %v10882
    %v10884 = vmul.f32 %v10650, 1.442695
    %v10885 = vpow.pop %v10884
    %v10886 = vmul.f32 %v10651, 1.442695
    %v10887 = vpow.pop %v10886
    %v10888 = vmul.f32 %v10652, 1.442695
    %v10889 = vpow.pop %v10888
    %v10890 = vmul.f32 %v10653, 1.442695
    %v10891 = vpow.pop %v10890
    %v10892 = vmul.f32 %v10654, 1.442695
    %v10893 = vpow.pop %v10892
    %v10894 = vmul.f32 %v10655, 1.442695
    %v10895 = vpow.pop %v10894
    %v10896 = vmul.f32 %v10656, 1.442695
    %v10897 = vpow.pop %v10896
    %v10898 = vmul.f32 %v10657, 1.442695
    %v10899 = vpow.pop %v10898
    %v10900 = vmul.f32 %v10658, 1.442695
    %v10901 = vpow.pop %v10900
    %v10902 = vmul.f32 %v10659, 1.442695
    %v10903 = vpow.pop %v10902
    %v10904 = vmul.f32 %v10660, 1.442695
    %v10905 = vpow.pop %v10904
    %v10906 = vmul.f32 %v10661, 1.442695
    %v10907 = vpow.pop %v10906
    %v10908 = vmul.f32 %v10662, 1.442695
    %v10909 = vpow.pop %v10908
    %v10910 = vmul.f32 %v10663, 1.442695
    %v10911 = vpow.pop %v10910
    %v10912 = vmul.f32 %v10664, 1.442695
    %v10913 = vpow.pop %v10912
    %v10914 = vmul.f32 %v10665, 1.442695
    %v10915 = vpow.pop %v10914
    %v10916 = vmul.f32 %v10666, 1.442695
    %v10917 = vpow.pop %v10916
    %v10918 = vmul.f32 %v10667, 1.442695
    %v10919 = vpow.pop %v10918
    %v10920 = vmul.f32 %v10668, 1.442695
    %v10921 = vpow.pop %v10920
    %v10922 = vmul.f32 %v10669, 1.442695
    %v10923 = vpow.pop %v10922
    %v10924 = vmul.f32 %v10670, 1.442695
    %v10925 = vpow.pop %v10924
    %v10926 = vmul.f32 %v10671, 1.442695
    %v10927 = vpow.pop %v10926
    %v10928 = vadd.f32 %v10673, 1.0
    %v10929 = vadd.f32 %v10675, 1.0
    %v10930 = vadd.f32 %v10677, 1.0
    %v10931 = vadd.f32 %v10679, 1.0
    %v10932 = vadd.f32 %v10681, 1.0
    %v10933 = vadd.f32 %v10683, 1.0
    %v10934 = vadd.f32 %v10685, 1.0
    %v10935 = vadd.f32 %v10687, 1.0
    %v10936 = vadd.f32 %v10689, 1.0
    %v10937 = vadd.f32 %v10691, 1.0
    %v10938 = vadd.f32 %v10693, 1.0
    %v10939 = vadd.f32 %v10695, 1.0
    %v10940 = vadd.f32 %v10697, 1.0
    %v10941 = vadd.f32 %v10699, 1.0
    %v10942 = vadd.f32 %v10701, 1.0
    %v10943 = vadd.f32 %v10703, 1.0
    %v10944 = vadd.f32 %v10705, 1.0
    %v10945 = vadd.f32 %v10707, 1.0
    %v10946 = vadd.f32 %v10709, 1.0
    %v10947 = vadd.f32 %v10711, 1.0
    %v10948 = vadd.f32 %v10713, 1.0
    %v10949 = vadd.f32 %v10715, 1.0
    %v10950 = vadd.f32 %v10717, 1.0
    %v10951 = vadd.f32 %v10719, 1.0
    %v10952 = vadd.f32 %v10721, 1.0
    %v10953 = vadd.f32 %v10723, 1.0
    %v10954 = vadd.f32 %v10725, 1.0
    %v10955 = vadd.f32 %v10727, 1.0
    %v10956 = vadd.f32 %v10729, 1.0
    %v10957 = vadd.f32 %v10731, 1.0
    %v10958 = vadd.f32 %v10733, 1.0
    %v10959 = vadd.f32 %v10735, 1.0
    %v10960 = vadd.f32 %v10737, 1.0
    %v10961 = vadd.f32 %v10739, 1.0
    %v10962 = vadd.f32 %v10741, 1.0
    %v10963 = vadd.f32 %v10743, 1.0
    %v10964 = vadd.f32 %v10745, 1.0
    %v10965 = vadd.f32 %v10747, 1.0
    %v10966 = vadd.f32 %v10749, 1.0
    %v10967 = vadd.f32 %v10751, 1.0
    %v10968 = vadd.f32 %v10753, 1.0
    %v10969 = vadd.f32 %v10755, 1.0
    %v10970 = vadd.f32 %v10757, 1.0
    %v10971 = vadd.f32 %v10759, 1.0
    %v10972 = vadd.f32 %v10761, 1.0
    %v10973 = vadd.f32 %v10763, 1.0
    %v10974 = vadd.f32 %v10765, 1.0
    %v10975 = vadd.f32 %v10767, 1.0
    %v10976 = vadd.f32 %v10769, 1.0
    %v10977 = vadd.f32 %v10771, 1.0
    %v10978 = vadd.f32 %v10773, 1.0
    %v10979 = vadd.f32 %v10775, 1.0
    %v10980 = vadd.f32 %v10777, 1.0
    %v10981 = vadd.f32 %v10779, 1.0
    %v10982 = vadd.f32 %v10781, 1.0
    %v10983 = vadd.f32 %v10783, 1.0
    %v10984 = vadd.f32 %v10785, 1.0
    %v10985 = vadd.f32 %v10787, 1.0
    %v10986 = vadd.f32 %v10789, 1.0
    %v10987 = vadd.f32 %v10791, 1.0
    %v10988 = vadd.f32 %v10793, 1.0
    %v10989 = vadd.f32 %v10795, 1.0
    %v10990 = vadd.f32 %v10797, 1.0
    %v10991 = vadd.f32 %v10799, 1.0
    %v10992 = vadd.f32 %v10801, 1.0
    %v10993 = vadd.f32 %v10803, 1.0
    %v10994 = vadd.f32 %v10805, 1.0
    %v10995 = vadd.f32 %v10807, 1.0
    %v10996 = vadd.f32 %v10809, 1.0
    %v10997 = vadd.f32 %v10811, 1.0
    %v10998 = vadd.f32 %v10813, 1.0
    %v10999 = vadd.f32 %v10815, 1.0
    %v11000 = vadd.f32 %v10817, 1.0
    %v11001 = vadd.f32 %v10819, 1.0
    %v11002 = vadd.f32 %v10821, 1.0
    %v11003 = vadd.f32 %v10823, 1.0
    %v11004 = vadd.f32 %v10825, 1.0
    %v11005 = vadd.f32 %v10827, 1.0
    %v11006 = vadd.f32 %v10829, 1.0
    %v11007 = vadd.f32 %v10831, 1.0
    %v11008 = vadd.f32 %v10833, 1.0
    %v11009 = vadd.f32 %v10835, 1.0
    %v11010 = vadd.f32 %v10837, 1.0
    %v11011 = vadd.f32 %v10839, 1.0
    %v11012 = vadd.f32 %v10841, 1.0
    %v11013 = vadd.f32 %v10843, 1.0
    %v11014 = vadd.f32 %v10845, 1.0
    %v11015 = vadd.f32 %v10847, 1.0
    %v11016 = vadd.f32 %v10849, 1.0
    %v11017 = vadd.f32 %v10851, 1.0
    %v11018 = vadd.f32 %v10853, 1.0
    %v11019 = vadd.f32 %v10855, 1.0
    %v11020 = vadd.f32 %v10857, 1.0
    %v11021 = vadd.f32 %v10859, 1.0
    %v11022 = vadd.f32 %v10861, 1.0
    %v11023 = vadd.f32 %v10863, 1.0
    %v11024 = vadd.f32 %v10865, 1.0
    %v11025 = vadd.f32 %v10867, 1.0
    %v11026 = vadd.f32 %v10869, 1.0
    %v11027 = vadd.f32 %v10871, 1.0
    %v11028 = vadd.f32 %v10873, 1.0
    %v11029 = vadd.f32 %v10875, 1.0
    %v11030 = vadd.f32 %v10877, 1.0
    %v11031 = vadd.f32 %v10879, 1.0
    %v11032 = vadd.f32 %v10881, 1.0
    %v11033 = vadd.f32 %v10883, 1.0
    %v11034 = vadd.f32 %v10885, 1.0
    %v11035 = vadd.f32 %v10887, 1.0
    %v11036 = vadd.f32 %v10889, 1.0
    %v11037 = vadd.f32 %v10891, 1.0
    %v11038 = vadd.f32 %v10893, 1.0
    %v11039 = vadd.f32 %v10895, 1.0
    %v11040 = vadd.f32 %v10897, 1.0
    %v11041 = vadd.f32 %v10899, 1.0
    %v11042 = vadd.f32 %v10901, 1.0
    %v11043 = vadd.f32 %v10903, 1.0
    %v11044 = vadd.f32 %v10905, 1.0
    %v11045 = vadd.f32 %v10907, 1.0
    %v11046 = vadd.f32 %v10909, 1.0
    %v11047 = vadd.f32 %v10911, 1.0
    %v11048 = vadd.f32 %v10913, 1.0
    %v11049 = vadd.f32 %v10915, 1.0
    %v11050 = vadd.f32 %v10917, 1.0
    %v11051 = vadd.f32 %v10919, 1.0
    %v11052 = vadd.f32 %v10921, 1.0
    %v11053 = vadd.f32 %v10923, 1.0
    %v11054 = vadd.f32 %v10925, 1.0
    %v11055 = vadd.f32 %v10927, 1.0
    %v11056 = vrcp.pop %v10928
    %v11057 = vmul.f32 1.0, %v11056
    %v11058 = vrcp.pop %v10929
    %v11059 = vmul.f32 1.0, %v11058
    %v11060 = vrcp.pop %v10930
    %v11061 = vmul.f32 1.0, %v11060
    %v11062 = vrcp.pop %v10931
    %v11063 = vmul.f32 1.0, %v11062
    %v11064 = vrcp.pop %v10932
    %v11065 = vmul.f32 1.0, %v11064
    %v11066 = vrcp.pop %v10933
    %v11067 = vmul.f32 1.0, %v11066
    %v11068 = vrcp.pop %v10934
    %v11069 = vmul.f32 1.0, %v11068
    %v11070 = vrcp.pop %v10935
    %v11071 = vmul.f32 1.0, %v11070
    %v11072 = vrcp.pop %v10936
    %v11073 = vmul.f32 1.0, %v11072
    %v11074 = vrcp.pop %v10937
    %v11075 = vmul.f32 1.0, %v11074
    %v11076 = vrcp.pop %v10938
    %v11077 = vmul.f32 1.0, %v11076
    %v11078 = vrcp.pop %v10939
    %v11079 = vmul.f32 1.0, %v11078
    %v11080 = vrcp.pop %v10940
    %v11081 = vmul.f32 1.0, %v11080
    %v11082 = vrcp.pop %v10941
    %v11083 = vmul.f32 1.0, %v11082
    %v11084 = vrcp.pop %v10942
    %v11085 = vmul.f32 1.0, %v11084
    %v11086 = vrcp.pop %v10943
    %v11087 = vmul.f32 1.0, %v11086
    %v11088 = vrcp.pop %v10944
    %v11089 = vmul.f32 1.0, %v11088
    %v11090 = vrcp.pop %v10945
    %v11091 = vmul.f32 1.0, %v11090
    %v11092 = vrcp.pop %v10946
    %v11093 = vmul.f32 1.0, %v11092
    %v11094 = vrcp.pop %v10947
    %v11095 = vmul.f32 1.0, %v11094
    %v11096 = vrcp.pop %v10948
    %v11097 = vmul.f32 1.0, %v11096
    %v11098 = vrcp.pop %v10949
    %v11099 = vmul.f32 1.0, %v11098
    %v11100 = vrcp.pop %v10950
    %v11101 = vmul.f32 1.0, %v11100
    %v11102 = vrcp.pop %v10951
    %v11103 = vmul.f32 1.0, %v11102
    %v11104 = vrcp.pop %v10952
    %v11105 = vmul.f32 1.0, %v11104
    %v11106 = vrcp.pop %v10953
    %v11107 = vmul.f32 1.0, %v11106
    %v11108 = vrcp.pop %v10954
    %v11109 = vmul.f32 1.0, %v11108
    %v11110 = vrcp.pop %v10955
    %v11111 = vmul.f32 1.0, %v11110
    %v11112 = vrcp.pop %v10956
    %v11113 = vmul.f32 1.0, %v11112
    %v11114 = vrcp.pop %v10957
    %v11115 = vmul.f32 1.0, %v11114
    %v11116 = vrcp.pop %v10958
    %v11117 = vmul.f32 1.0, %v11116
    %v11118 = vrcp.pop %v10959
    %v11119 = vmul.f32 1.0, %v11118
    %v11120 = vrcp.pop %v10960
    %v11121 = vmul.f32 1.0, %v11120
    %v11122 = vrcp.pop %v10961
    %v11123 = vmul.f32 1.0, %v11122
    %v11124 = vrcp.pop %v10962
    %v11125 = vmul.f32 1.0, %v11124
    %v11126 = vrcp.pop %v10963
    %v11127 = vmul.f32 1.0, %v11126
    %v11128 = vrcp.pop %v10964
    %v11129 = vmul.f32 1.0, %v11128
    %v11130 = vrcp.pop %v10965
    %v11131 = vmul.f32 1.0, %v11130
    %v11132 = vrcp.pop %v10966
    %v11133 = vmul.f32 1.0, %v11132
    %v11134 = vrcp.pop %v10967
    %v11135 = vmul.f32 1.0, %v11134
    %v11136 = vrcp.pop %v10968
    %v11137 = vmul.f32 1.0, %v11136
    %v11138 = vrcp.pop %v10969
    %v11139 = vmul.f32 1.0, %v11138
    %v11140 = vrcp.pop %v10970
    %v11141 = vmul.f32 1.0, %v11140
    %v11142 = vrcp.pop %v10971
    %v11143 = vmul.f32 1.0, %v11142
    %v11144 = vrcp.pop %v10972
    %v11145 = vmul.f32 1.0, %v11144
    %v11146 = vrcp.pop %v10973
    %v11147 = vmul.f32 1.0, %v11146
    %v11148 = vrcp.pop %v10974
    %v11149 = vmul.f32 1.0, %v11148
    %v11150 = vrcp.pop %v10975
    %v11151 = vmul.f32 1.0, %v11150
    %v11152 = vrcp.pop %v10976
    %v11153 = vmul.f32 1.0, %v11152
    %v11154 = vrcp.pop %v10977
    %v11155 = vmul.f32 1.0, %v11154
    %v11156 = vrcp.pop %v10978
    %v11157 = vmul.f32 1.0, %v11156
    %v11158 = vrcp.pop %v10979
    %v11159 = vmul.f32 1.0, %v11158
    %v11160 = vrcp.pop %v10980
    %v11161 = vmul.f32 1.0, %v11160
    %v11162 = vrcp.pop %v10981
    %v11163 = vmul.f32 1.0, %v11162
    %v11164 = vrcp.pop %v10982
    %v11165 = vmul.f32 1.0, %v11164
    %v11166 = vrcp.pop %v10983
    %v11167 = vmul.f32 1.0, %v11166
    %v11168 = vrcp.pop %v10984
    %v11169 = vmul.f32 1.0, %v11168
    %v11170 = vrcp.pop %v10985
    %v11171 = vmul.f32 1.0, %v11170
    %v11172 = vrcp.pop %v10986
    %v11173 = vmul.f32 1.0, %v11172
    %v11174 = vrcp.pop %v10987
    %v11175 = vmul.f32 1.0, %v11174
    %v11176 = vrcp.pop %v10988
    %v11177 = vmul.f32 1.0, %v11176
    %v11178 = vrcp.pop %v10989
    %v11179 = vmul.f32 1.0, %v11178
    %v11180 = vrcp.pop %v10990
    %v11181 = vmul.f32 1.0, %v11180
    %v11182 = vrcp.pop %v10991
    %v11183 = vmul.f32 1.0, %v11182
    %v11184 = vrcp.pop %v10992
    %v11185 = vmul.f32 1.0, %v11184
    %v11186 = vrcp.pop %v10993
    %v11187 = vmul.f32 1.0, %v11186
    %v11188 = vrcp.pop %v10994
    %v11189 = vmul.f32 1.0, %v11188
    %v11190 = vrcp.pop %v10995
    %v11191 = vmul.f32 1.0, %v11190
    %v11192 = vrcp.pop %v10996
    %v11193 = vmul.f32 1.0, %v11192
    %v11194 = vrcp.pop %v10997
    %v11195 = vmul.f32 1.0, %v11194
    %v11196 = vrcp.pop %v10998
    %v11197 = vmul.f32 1.0, %v11196
    %v11198 = vrcp.pop %v10999
    %v11199 = vmul.f32 1.0, %v11198
    %v11200 = vrcp.pop %v11000
    %v11201 = vmul.f32 1.0, %v11200
    %v11202 = vrcp.pop %v11001
    %v11203 = vmul.f32 1.0, %v11202
    %v11204 = vrcp.pop %v11002
    %v11205 = vmul.f32 1.0, %v11204
    %v11206 = vrcp.pop %v11003
    %v11207 = vmul.f32 1.0, %v11206
    %v11208 = vrcp.pop %v11004
    %v11209 = vmul.f32 1.0, %v11208
    %v11210 = vrcp.pop %v11005
    %v11211 = vmul.f32 1.0, %v11210
    %v11212 = vrcp.pop %v11006
    %v11213 = vmul.f32 1.0, %v11212
    %v11214 = vrcp.pop %v11007
    %v11215 = vmul.f32 1.0, %v11214
    %v11216 = vrcp.pop %v11008
    %v11217 = vmul.f32 1.0, %v11216
    %v11218 = vrcp.pop %v11009
    %v11219 = vmul.f32 1.0, %v11218
    %v11220 = vrcp.pop %v11010
    %v11221 = vmul.f32 1.0, %v11220
    %v11222 = vrcp.pop %v11011
    %v11223 = vmul.f32 1.0, %v11222
    %v11224 = vrcp.pop %v11012
    %v11225 = vmul.f32 1.0, %v11224
    %v11226 = vrcp.pop %v11013
    %v11227 = vmul.f32 1.0, %v11226
    %v11228 = vrcp.pop %v11014
    %v11229 = vmul.f32 1.0, %v11228
    %v11230 = vrcp.pop %v11015
    %v11231 = vmul.f32 1.0, %v11230
    %v11232 = vrcp.pop %v11016
    %v11233 = vmul.f32 1.0, %v11232
    %v11234 = vrcp.pop %v11017
    %v11235 = vmul.f32 1.0, %v11234
    %v11236 = vrcp.pop %v11018
    %v11237 = vmul.f32 1.0, %v11236
    %v11238 = vrcp.pop %v11019
    %v11239 = vmul.f32 1.0, %v11238
    %v11240 = vrcp.pop %v11020
    %v11241 = vmul.f32 1.0, %v11240
    %v11242 = vrcp.pop %v11021
    %v11243 = vmul.f32 1.0, %v11242
    %v11244 = vrcp.pop %v11022
    %v11245 = vmul.f32 1.0, %v11244
    %v11246 = vrcp.pop %v11023
    %v11247 = vmul.f32 1.0, %v11246
    %v11248 = vrcp.pop %v11024
    %v11249 = vmul.f32 1.0, %v11248
    %v11250 = vrcp.pop %v11025
    %v11251 = vmul.f32 1.0, %v11250
    %v11252 = vrcp.pop %v11026
    %v11253 = vmul.f32 1.0, %v11252
    %v11254 = vrcp.pop %v11027
    %v11255 = vmul.f32 1.0, %v11254
    %v11256 = vrcp.pop %v11028
    %v11257 = vmul.f32 1.0, %v11256
    %v11258 = vrcp.pop %v11029
    %v11259 = vmul.f32 1.0, %v11258
    %v11260 = vrcp.pop %v11030
    %v11261 = vmul.f32 1.0, %v11260
    %v11262 = vrcp.pop %v11031
    %v11263 = vmul.f32 1.0, %v11262
    %v11264 = vrcp.pop %v11032
    %v11265 = vmul.f32 1.0, %v11264
    %v11266 = vrcp.pop %v11033
    %v11267 = vmul.f32 1.0, %v11266
    %v11268 = vrcp.pop %v11034
    %v11269 = vmul.f32 1.0, %v11268
    %v11270 = vrcp.pop %v11035
    %v11271 = vmul.f32 1.0, %v11270
    %v11272 = vrcp.pop %v11036
    %v11273 = vmul.f32 1.0, %v11272
    %v11274 = vrcp.pop %v11037
    %v11275 = vmul.f32 1.0, %v11274
    %v11276 = vrcp.pop %v11038
    %v11277 = vmul.f32 1.0, %v11276
    %v11278 = vrcp.pop %v11039
    %v11279 = vmul.f32 1.0, %v11278
    %v11280 = vrcp.pop %v11040
    %v11281 = vmul.f32 1.0, %v11280
    %v11282 = vrcp.pop %v11041
    %v11283 = vmul.f32 1.0, %v11282
    %v11284 = vrcp.pop %v11042
    %v11285 = vmul.f32 1.0, %v11284
    %v11286 = vrcp.pop %v11043
    %v11287 = vmul.f32 1.0, %v11286
    %v11288 = vrcp.pop %v11044
    %v11289 = vmul.f32 1.0, %v11288
    %v11290 = vrcp.pop %v11045
    %v11291 = vmul.f32 1.0, %v11290
    %v11292 = vrcp.pop %v11046
    %v11293 = vmul.f32 1.0, %v11292
    %v11294 = vrcp.pop %v11047
    %v11295 = vmul.f32 1.0, %v11294
    %v11296 = vrcp.pop %v11048
    %v11297 = vmul.f32 1.0, %v11296
    %v11298 = vrcp.pop %v11049
    %v11299 = vmul.f32 1.0, %v11298
    %v11300 = vrcp.pop %v11050
    %v11301 = vmul.f32 1.0, %v11300
    %v11302 = vrcp.pop %v11051
    %v11303 = vmul.f32 1.0, %v11302
    %v11304 = vrcp.pop %v11052
    %v11305 = vmul.f32 1.0, %v11304
    %v11306 = vrcp.pop %v11053
    %v11307 = vmul.f32 1.0, %v11306
    %v11308 = vrcp.pop %v11054
    %v11309 = vmul.f32 1.0, %v11308
    %v11310 = vrcp.pop %v11055
    %v11311 = vmul.f32 1.0, %v11310
    %v11312 = vmul.f32 %v10416, %v11057
    %v11313 = vmul.f32 %v10417, %v11059
    %v11314 = vmul.f32 %v10418, %v11061
    %v11315 = vmul.f32 %v10419, %v11063
    %v11316 = vmul.f32 %v10420, %v11065
    %v11317 = vmul.f32 %v10421, %v11067
    %v11318 = vmul.f32 %v10422, %v11069
    %v11319 = vmul.f32 %v10423, %v11071
    %v11320 = vmul.f32 %v10424, %v11073
    %v11321 = vmul.f32 %v10425, %v11075
    %v11322 = vmul.f32 %v10426, %v11077
    %v11323 = vmul.f32 %v10427, %v11079
    %v11324 = vmul.f32 %v10428, %v11081
    %v11325 = vmul.f32 %v10429, %v11083
    %v11326 = vmul.f32 %v10430, %v11085
    %v11327 = vmul.f32 %v10431, %v11087
    %v11328 = vmul.f32 %v10432, %v11089
    %v11329 = vmul.f32 %v10433, %v11091
    %v11330 = vmul.f32 %v10434, %v11093
    %v11331 = vmul.f32 %v10435, %v11095
    %v11332 = vmul.f32 %v10436, %v11097
    %v11333 = vmul.f32 %v10437, %v11099
    %v11334 = vmul.f32 %v10438, %v11101
    %v11335 = vmul.f32 %v10439, %v11103
    %v11336 = vmul.f32 %v10440, %v11105
    %v11337 = vmul.f32 %v10441, %v11107
    %v11338 = vmul.f32 %v10442, %v11109
    %v11339 = vmul.f32 %v10443, %v11111
    %v11340 = vmul.f32 %v10444, %v11113
    %v11341 = vmul.f32 %v10445, %v11115
    %v11342 = vmul.f32 %v10446, %v11117
    %v11343 = vmul.f32 %v10447, %v11119
    %v11344 = vmul.f32 %v10448, %v11121
    %v11345 = vmul.f32 %v10449, %v11123
    %v11346 = vmul.f32 %v10450, %v11125
    %v11347 = vmul.f32 %v10451, %v11127
    %v11348 = vmul.f32 %v10452, %v11129
    %v11349 = vmul.f32 %v10453, %v11131
    %v11350 = vmul.f32 %v10454, %v11133
    %v11351 = vmul.f32 %v10455, %v11135
    %v11352 = vmul.f32 %v10456, %v11137
    %v11353 = vmul.f32 %v10457, %v11139
    %v11354 = vmul.f32 %v10458, %v11141
    %v11355 = vmul.f32 %v10459, %v11143
    %v11356 = vmul.f32 %v10460, %v11145
    %v11357 = vmul.f32 %v10461, %v11147
    %v11358 = vmul.f32 %v10462, %v11149
    %v11359 = vmul.f32 %v10463, %v11151
    %v11360 = vmul.f32 %v10464, %v11153
    %v11361 = vmul.f32 %v10465, %v11155
    %v11362 = vmul.f32 %v10466, %v11157
    %v11363 = vmul.f32 %v10467, %v11159
    %v11364 = vmul.f32 %v10468, %v11161
    %v11365 = vmul.f32 %v10469, %v11163
    %v11366 = vmul.f32 %v10470, %v11165
    %v11367 = vmul.f32 %v10471, %v11167
    %v11368 = vmul.f32 %v10472, %v11169
    %v11369 = vmul.f32 %v10473, %v11171
    %v11370 = vmul.f32 %v10474, %v11173
    %v11371 = vmul.f32 %v10475, %v11175
    %v11372 = vmul.f32 %v10476, %v11177
    %v11373 = vmul.f32 %v10477, %v11179
    %v11374 = vmul.f32 %v10478, %v11181
    %v11375 = vmul.f32 %v10479, %v11183
    %v11376 = vmul.f32 %v10480, %v11185
    %v11377 = vmul.f32 %v10481, %v11187
    %v11378 = vmul.f32 %v10482, %v11189
    %v11379 = vmul.f32 %v10483, %v11191
    %v11380 = vmul.f32 %v10484, %v11193
    %v11381 = vmul.f32 %v10485, %v11195
    %v11382 = vmul.f32 %v10486, %v11197
    %v11383 = vmul.f32 %v10487, %v11199
    %v11384 = vmul.f32 %v10488, %v11201
    %v11385 = vmul.f32 %v10489, %v11203
    %v11386 = vmul.f32 %v10490, %v11205
    %v11387 = vmul.f32 %v10491, %v11207
    %v11388 = vmul.f32 %v10492, %v11209
    %v11389 = vmul.f32 %v10493, %v11211
    %v11390 = vmul.f32 %v10494, %v11213
    %v11391 = vmul.f32 %v10495, %v11215
    %v11392 = vmul.f32 %v10496, %v11217
    %v11393 = vmul.f32 %v10497, %v11219
    %v11394 = vmul.f32 %v10498, %v11221
    %v11395 = vmul.f32 %v10499, %v11223
    %v11396 = vmul.f32 %v10500, %v11225
    %v11397 = vmul.f32 %v10501, %v11227
    %v11398 = vmul.f32 %v10502, %v11229
    %v11399 = vmul.f32 %v10503, %v11231
    %v11400 = vmul.f32 %v10504, %v11233
    %v11401 = vmul.f32 %v10505, %v11235
    %v11402 = vmul.f32 %v10506, %v11237
    %v11403 = vmul.f32 %v10507, %v11239
    %v11404 = vmul.f32 %v10508, %v11241
    %v11405 = vmul.f32 %v10509, %v11243
    %v11406 = vmul.f32 %v10510, %v11245
    %v11407 = vmul.f32 %v10511, %v11247
    %v11408 = vmul.f32 %v10512, %v11249
    %v11409 = vmul.f32 %v10513, %v11251
    %v11410 = vmul.f32 %v10514, %v11253
    %v11411 = vmul.f32 %v10515, %v11255
    %v11412 = vmul.f32 %v10516, %v11257
    %v11413 = vmul.f32 %v10517, %v11259
    %v11414 = vmul.f32 %v10518, %v11261
    %v11415 = vmul.f32 %v10519, %v11263
    %v11416 = vmul.f32 %v10520, %v11265
    %v11417 = vmul.f32 %v10521, %v11267
    %v11418 = vmul.f32 %v10522, %v11269
    %v11419 = vmul.f32 %v10523, %v11271
    %v11420 = vmul.f32 %v10524, %v11273
    %v11421 = vmul.f32 %v10525, %v11275
    %v11422 = vmul.f32 %v10526, %v11277
    %v11423 = vmul.f32 %v10527, %v11279
    %v11424 = vmul.f32 %v10528, %v11281
    %v11425 = vmul.f32 %v10529, %v11283
    %v11426 = vmul.f32 %v10530, %v11285
    %v11427 = vmul.f32 %v10531, %v11287
    %v11428 = vmul.f32 %v10532, %v11289
    %v11429 = vmul.f32 %v10533, %v11291
    %v11430 = vmul.f32 %v10534, %v11293
    %v11431 = vmul.f32 %v10535, %v11295
    %v11432 = vmul.f32 %v10536, %v11297
    %v11433 = vmul.f32 %v10537, %v11299
    %v11434 = vmul.f32 %v10538, %v11301
    %v11435 = vmul.f32 %v10539, %v11303
    %v11436 = vmul.f32 %v10540, %v11305
    %v11437 = vmul.f32 %v10541, %v11307
    %v11438 = vmul.f32 %v10542, %v11309
    %v11439 = vmul.f32 %v10543, %v11311
    %v11440 = vld [vmem:[%s5] sm:$0xf]
    %v11441 = vld [vmem:[#allocation5] sm:$0x1]
    %11443 = vset.pattern.permute.xlu0 0
    %11444 = vperm.xlu0 %11443, %v11441
    %v11445 = vpop.permute.xlu0 %11444
    %v11447 = vlaneseq
    %v11448 = vshrl.u32 %v11447, 7
    %v11449 = vsub.s32 0, %v11448
    %v11450 = vrot.slane %v11445, %v11449
    %v11452 = vlaneseq
    %v11453 = vshrl.u32 %v11452, 7
    %v11454 = vsub.s32 0, %v11453
    %v11455 = vrot.slane %v11440, %v11454
    %v11456 = vlaneseq
    %v11457 = vshrl.u32 %v11456, 7
    %v11458 = vsub.s32 1, %v11457
    %v11459 = vrot.slane %v11440, %v11458
    %v11460 = vlaneseq
    %v11461 = vshrl.u32 %v11460, 7
    %v11462 = vsub.s32 2, %v11461
    %v11463 = vrot.slane %v11440, %v11462
    %v11464 = vlaneseq
    %v11465 = vshrl.u32 %v11464, 7
    %v11466 = vsub.s32 3, %v11465
    %v11467 = vrot.slane %v11440, %v11466
    %11472 = vmatprep.subr.mxu0 %v11313
    %11473 = vmatpush1.xpose.msra.mxu0 %v11312
    %11474 = vmatprep.subr.mxu0 %v11317
    %11475 = vmatpush1.xpose.msra.mxu0 %v11316
    %11476 = vmatprep.subr.mxu0 %v11321
    %11477 = vmatpush1.xpose.msra.mxu0 %v11320
    %11478 = vmatprep.subr.mxu0 %v11325
    %11479 = vmatpush1.xpose.msra.mxu0 %v11324
    %11480 = vmatprep.subr.mxu0 %v11329
    %11481 = vmatpush1.xpose.msra.mxu0 %v11328
    %11482 = vmatprep.subr.mxu0 %v11333
    %11483 = vmatpush1.xpose.msra.mxu0 %v11332
    %11484 = vmatprep.subr.mxu0 %v11337
    %11485 = vmatpush1.xpose.msra.mxu0 %v11336
    %11486 = vmatprep.subr.mxu0 %v11341
    %11487 = vmatpush1.xpose.msra.mxu0 %v11340
    %11488 = vmatprep.subr.mxu0 %v11345
    %11489 = vmatpush1.xpose.msra.mxu0 %v11344
    %11490 = vmatprep.subr.mxu0 %v11349
    %11491 = vmatpush1.xpose.msra.mxu0 %v11348
    %11492 = vmatprep.subr.mxu0 %v11353
    %11493 = vmatpush1.xpose.msra.mxu0 %v11352
    %11494 = vmatprep.subr.mxu0 %v11357
    %11495 = vmatpush1.xpose.msra.mxu0 %v11356
    %11496 = vmatprep.subr.mxu0 %v11361
    %11497 = vmatpush1.xpose.msra.mxu0 %v11360
    %11498 = vmatprep.subr.mxu0 %v11365
    %11499 = vmatpush1.xpose.msra.mxu0 %v11364
    %11500 = vmatprep.subr.mxu0 %v11369
    %11501 = vmatpush1.xpose.msra.mxu0 %v11368
    %11502 = vmatprep.subr.mxu0 %v11373
    %11503 = vmatpush1.xpose.msra.mxu0 %v11372
    %11504 = vmatprep.subr.mxu0 %v11377
    %11505 = vmatpush1.xpose.msra.mxu0 %v11376
    %11506 = vmatprep.subr.mxu0 %v11381
    %11507 = vmatpush1.xpose.msra.mxu0 %v11380
    %11508 = vmatprep.subr.mxu0 %v11385
    %11509 = vmatpush1.xpose.msra.mxu0 %v11384
    %11510 = vmatprep.subr.mxu0 %v11389
    %11511 = vmatpush1.xpose.msra.mxu0 %v11388
    %11512 = vmatprep.subr.mxu0 %v11393
    %11513 = vmatpush1.xpose.msra.mxu0 %v11392
    %11514 = vmatprep.subr.mxu0 %v11397
    %11515 = vmatpush1.xpose.msra.mxu0 %v11396
    %11516 = vmatprep.subr.mxu0 %v11401
    %11517 = vmatpush1.xpose.msra.mxu0 %v11400
    %11518 = vmatprep.subr.mxu0 %v11405
    %11519 = vmatpush1.xpose.msra.mxu0 %v11404
    %11520 = vmatprep.subr.mxu0 %v11409
    %11521 = vmatpush1.xpose.msra.mxu0 %v11408
    %11522 = vmatprep.subr.mxu0 %v11413
    %11523 = vmatpush1.xpose.msra.mxu0 %v11412
    %11524 = vmatprep.subr.mxu0 %v11417
    %11525 = vmatpush1.xpose.msra.mxu0 %v11416
    %11526 = vmatprep.subr.mxu0 %v11421
    %11527 = vmatpush1.xpose.msra.mxu0 %v11420
    %11528 = vmatprep.subr.mxu0 %v11425
    %11529 = vmatpush1.xpose.msra.mxu0 %v11424
    %11530 = vmatprep.subr.mxu0 %v11429
    %11531 = vmatpush1.xpose.msra.mxu0 %v11428
    %11532 = vmatprep.subr.mxu0 %v11433
    %11533 = vmatpush1.xpose.msra.mxu0 %v11432
    %11534 = vmatprep.subr.mxu0 %v11437
    %11535 = vmatpush1.xpose.msra.mxu0 %v11436
    %11536 = vmatprep.mubr.f32.mxu0 %v11459
    %11537 = vmatmul.mubr.f32.gmra.mrb[0].mxu0 %v11455
    %v11538 = vpop.f32.mrb[0].mxu0
    %v11539 = vadd.f32 %v11450, %v11538
    %v11540 = vpop.f32.mrb[0].mxu0
    %v11541 = vadd.f32 %v11450, %v11540
    %11542 = vdwg.mxu0
    %11543 = vmatprep.subr.mxu0 %v11315
    %11544 = vmatpush1.xpose.msra.mxu0 %v11314
    %11545 = vmatprep.subr.mxu0 %v11319
    %11546 = vmatpush1.xpose.msra.mxu0 %v11318
    %11547 = vmatprep.subr.mxu0 %v11323
    %11548 = vmatpush1.xpose.msra.mxu0 %v11322
    %11549 = vmatprep.subr.mxu0 %v11327
    %11550 = vmatpush1.xpose.msra.mxu0 %v11326
    %11551 = vmatprep.subr.mxu0 %v11331
    %11552 = vmatpush1.xpose.msra.mxu0 %v11330
    %11553 = vmatprep.subr.mxu0 %v11335
    %11554 = vmatpush1.xpose.msra.mxu0 %v11334
    %11555 = vmatprep.subr.mxu0 %v11339
    %11556 = vmatpush1.xpose.msra.mxu0 %v11338
    %11557 = vmatprep.subr.mxu0 %v11343
    %11558 = vmatpush1.xpose.msra.mxu0 %v11342
    %11559 = vmatprep.subr.mxu0 %v11347
    %11560 = vmatpush1.xpose.msra.mxu0 %v11346
    %11561 = vmatprep.subr.mxu0 %v11351
    %11562 = vmatpush1.xpose.msra.mxu0 %v11350
    %11563 = vmatprep.subr.mxu0 %v11355
    %11564 = vmatpush1.xpose.msra.mxu0 %v11354
    %11565 = vmatprep.subr.mxu0 %v11359
    %11566 = vmatpush1.xpose.msra.mxu0 %v11358
    %11567 = vmatprep.subr.mxu0 %v11363
    %11568 = vmatpush1.xpose.msra.mxu0 %v11362
    %11569 = vmatprep.subr.mxu0 %v11367
    %11570 = vmatpush1.xpose.msra.mxu0 %v11366
    %11571 = vmatprep.subr.mxu0 %v11371
    %11572 = vmatpush1.xpose.msra.mxu0 %v11370
    %11573 = vmatprep.subr.mxu0 %v11375
    %11574 = vmatpush1.xpose.msra.mxu0 %v11374
    %11575 = vmatprep.subr.mxu0 %v11379
    %11576 = vmatpush1.xpose.msra.mxu0 %v11378
    %11577 = vmatprep.subr.mxu0 %v11383
    %11578 = vmatpush1.xpose.msra.mxu0 %v11382
    %11579 = vmatprep.subr.mxu0 %v11387
    %11580 = vmatpush1.xpose.msra.mxu0 %v11386
    %11581 = vmatprep.subr.mxu0 %v11391
    %11582 = vmatpush1.xpose.msra.mxu0 %v11390
    %11583 = vmatprep.subr.mxu0 %v11395
    %11584 = vmatpush1.xpose.msra.mxu0 %v11394
    %11585 = vmatprep.subr.mxu0 %v11399
    %11586 = vmatpush1.xpose.msra.mxu0 %v11398
    %11587 = vmatprep.subr.mxu0 %v11403
    %11588 = vmatpush1.xpose.msra.mxu0 %v11402
    %11589 = vmatprep.subr.mxu0 %v11407
    %11590 = vmatpush1.xpose.msra.mxu0 %v11406
    %11591 = vmatprep.subr.mxu0 %v11411
    %11592 = vmatpush1.xpose.msra.mxu0 %v11410
    %11593 = vmatprep.subr.mxu0 %v11415
    %11594 = vmatpush1.xpose.msra.mxu0 %v11414
    %11595 = vmatprep.subr.mxu0 %v11419
    %11596 = vmatpush1.xpose.msra.mxu0 %v11418
    %11597 = vmatprep.subr.mxu0 %v11423
    %11598 = vmatpush1.xpose.msra.mxu0 %v11422
    %11599 = vmatprep.subr.mxu0 %v11427
    %11600 = vmatpush1.xpose.msra.mxu0 %v11426
    %11601 = vmatprep.subr.mxu0 %v11431
    %11602 = vmatpush1.xpose.msra.mxu0 %v11430
    %11603 = vmatprep.subr.mxu0 %v11435
    %11604 = vmatpush1.xpose.msra.mxu0 %v11434
    %11605 = vmatprep.subr.mxu0 %v11439
    %11606 = vmatpush1.xpose.msra.mxu0 %v11438
    %11607 = vmatprep.mubr.f32.mxu0 %v11467
    %11608 = vmatmul.mubr.f32.gmra.mrb[0].mxu0 %v11463
    %v11609 = vpop.f32.mrb[0].mxu0
    %v11610 = vadd.f32 %v11539, %v11609
    %v11611 = vpop.f32.mrb[0].mxu0
    %v11612 = vadd.f32 %v11541, %v11611
    %11613 = vdwg.mxu0
    %11614 = vst [vmem:[%s7] sm:$0xff] %v5466
    %11615 = vst [vmem:[%s7 + $0x8] sm:$0xff] %v5467
    %11616 = vst [vmem:[%s7 + $0x10] sm:$0xff] %v5468
    %11617 = vst [vmem:[%s7 + $0x18] sm:$0xff] %v5469
    %11618 = vst [vmem:[%s7 + $0x20] sm:$0xff] %v5470
    %11619 = vst [vmem:[%s7 + $0x28] sm:$0xff] %v5471
    %11620 = vst [vmem:[%s7 + $0x30] sm:$0xff] %v5472
    %11621 = vst [vmem:[%s7 + $0x38] sm:$0xff] %v5473
    %11622 = vst [vmem:[%s7 + $0x40] sm:$0xff] %v5474
    %11623 = vst [vmem:[%s7 + $0x48] sm:$0xff] %v5475
    %11624 = vst [vmem:[%s7 + $0x50] sm:$0xff] %v5476
    %11625 = vst [vmem:[%s7 + $0x58] sm:$0xff] %v5477
    %11626 = vst [vmem:[%s7 + $0x60] sm:$0xff] %v5478
    %11627 = vst [vmem:[%s7 + $0x68] sm:$0xff] %v5479
    %11628 = vst [vmem:[%s7 + $0x70] sm:$0xff] %v5480
    %11629 = vst [vmem:[%s7 + $0x78] sm:$0xff] %v5481
    %11630 = vst [vmem:[%s7 + $0x80] sm:$0xff] %v5482
    %11631 = vst [vmem:[%s7 + $0x88] sm:$0xff] %v5483
    %11632 = vst [vmem:[%s7 + $0x90] sm:$0xff] %v5484
    %11633 = vst [vmem:[%s7 + $0x98] sm:$0xff] %v5485
    %11634 = vst [vmem:[%s7 + $0xa0] sm:$0xff] %v5486
    %11635 = vst [vmem:[%s7 + $0xa8] sm:$0xff] %v5487
    %11636 = vst [vmem:[%s7 + $0xb0] sm:$0xff] %v5488
    %11637 = vst [vmem:[%s7 + $0xb8] sm:$0xff] %v5489
    %11638 = vst [vmem:[%s7 + $0xc0] sm:$0xff] %v5490
    %11639 = vst [vmem:[%s7 + $0xc8] sm:$0xff] %v5491
    %11640 = vst [vmem:[%s7 + $0xd0] sm:$0xff] %v5492
    %11641 = vst [vmem:[%s7 + $0xd8] sm:$0xff] %v5493
    %11642 = vst [vmem:[%s7 + $0xe0] sm:$0xff] %v5494
    %11643 = vst [vmem:[%s7 + $0xe8] sm:$0xff] %v5495
    %11644 = vst [vmem:[%s7 + $0xf0] sm:$0xff] %v5496
    %11645 = vst [vmem:[%s7 + $0xf8] sm:$0xff] %v5497
    %11646 = vst [vmem:[%s7 + $0x100] sm:$0xff] %v5498
    %11647 = vst [vmem:[%s7 + $0x108] sm:$0xff] %v5499
    %11648 = vst [vmem:[%s7 + $0x110] sm:$0xff] %v5500
    %11649 = vst [vmem:[%s7 + $0x118] sm:$0xff] %v5501
    %11650 = vst [vmem:[%s7 + $0x120] sm:$0xff] %v5502
    %11651 = vst [vmem:[%s7 + $0x128] sm:$0xff] %v5503
    %11652 = vst [vmem:[%s7 + $0x130] sm:$0xff] %v5504
    %11653 = vst [vmem:[%s7 + $0x138] sm:$0xff] %v5505
    %11654 = vst [vmem:[%s7 + $0x140] sm:$0xff] %v5506
    %11655 = vst [vmem:[%s7 + $0x148] sm:$0xff] %v5507
    %11656 = vst [vmem:[%s7 + $0x150] sm:$0xff] %v5508
    %11657 = vst [vmem:[%s7 + $0x158] sm:$0xff] %v5509
    %11658 = vst [vmem:[%s7 + $0x160] sm:$0xff] %v5510
    %11659 = vst [vmem:[%s7 + $0x168] sm:$0xff] %v5511
    %11660 = vst [vmem:[%s7 + $0x170] sm:$0xff] %v5512
    %11661 = vst [vmem:[%s7 + $0x178] sm:$0xff] %v5513
    %11662 = vst [vmem:[%s7 + $0x180] sm:$0xff] %v5514
    %11663 = vst [vmem:[%s7 + $0x188] sm:$0xff] %v5515
    %11664 = vst [vmem:[%s7 + $0x190] sm:$0xff] %v5516
    %11665 = vst [vmem:[%s7 + $0x198] sm:$0xff] %v5517
    %11666 = vst [vmem:[%s7 + $0x1a0] sm:$0xff] %v5518
    %11667 = vst [vmem:[%s7 + $0x1a8] sm:$0xff] %v5519
    %11668 = vst [vmem:[%s7 + $0x1b0] sm:$0xff] %v5520
    %11669 = vst [vmem:[%s7 + $0x1b8] sm:$0xff] %v5521
    %11670 = vst [vmem:[%s7 + $0x1c0] sm:$0xff] %v5522
    %11671 = vst [vmem:[%s7 + $0x1c8] sm:$0xff] %v5523
    %11672 = vst [vmem:[%s7 + $0x1d0] sm:$0xff] %v5524
    %11673 = vst [vmem:[%s7 + $0x1d8] sm:$0xff] %v5525
    %11674 = vst [vmem:[%s7 + $0x1e0] sm:$0xff] %v5526
    %11675 = vst [vmem:[%s7 + $0x1e8] sm:$0xff] %v5527
    %11676 = vst [vmem:[%s7 + $0x1f0] sm:$0xff] %v5528
    %11677 = vst [vmem:[%s7 + $0x1f8] sm:$0xff] %v5529
    %11678 = vst [vmem:[%s7 + $0x200] sm:$0xff] %v5530
    %11679 = vst [vmem:[%s7 + $0x208] sm:$0xff] %v5531
    %11680 = vst [vmem:[%s7 + $0x210] sm:$0xff] %v5532
    %11681 = vst [vmem:[%s7 + $0x218] sm:$0xff] %v5533
    %11682 = vst [vmem:[%s7 + $0x220] sm:$0xff] %v5534
    %11683 = vst [vmem:[%s7 + $0x228] sm:$0xff] %v5535
    %11684 = vst [vmem:[%s7 + $0x230] sm:$0xff] %v5536
    %11685 = vst [vmem:[%s7 + $0x238] sm:$0xff] %v5537
    %11686 = vst [vmem:[%s7 + $0x240] sm:$0xff] %v5538
    %11687 = vst [vmem:[%s7 + $0x248] sm:$0xff] %v5539
    %11688 = vst [vmem:[%s7 + $0x250] sm:$0xff] %v5540
    %11689 = vst [vmem:[%s7 + $0x258] sm:$0xff] %v5541
    %11690 = vst [vmem:[%s7 + $0x260] sm:$0xff] %v5542
    %11691 = vst [vmem:[%s7 + $0x268] sm:$0xff] %v5543
    %11692 = vst [vmem:[%s7 + $0x270] sm:$0xff] %v5544
    %11693 = vst [vmem:[%s7 + $0x278] sm:$0xff] %v5545
    %11694 = vst [vmem:[%s7 + $0x280] sm:$0xff] %v5546
    %11695 = vst [vmem:[%s7 + $0x288] sm:$0xff] %v5547
    %11696 = vst [vmem:[%s7 + $0x290] sm:$0xff] %v5548
    %11697 = vst [vmem:[%s7 + $0x298] sm:$0xff] %v5549
    %11698 = vst [vmem:[%s7 + $0x2a0] sm:$0xff] %v5550
    %11699 = vst [vmem:[%s7 + $0x2a8] sm:$0xff] %v5551
    %11700 = vst [vmem:[%s7 + $0x2b0] sm:$0xff] %v5552
    %11701 = vst [vmem:[%s7 + $0x2b8] sm:$0xff] %v5553
    %11702 = vst [vmem:[%s7 + $0x2c0] sm:$0xff] %v5554
    %11703 = vst [vmem:[%s7 + $0x2c8] sm:$0xff] %v5555
    %11704 = vst [vmem:[%s7 + $0x2d0] sm:$0xff] %v5556
    %11705 = vst [vmem:[%s7 + $0x2d8] sm:$0xff] %v5557
    %11706 = vst [vmem:[%s7 + $0x2e0] sm:$0xff] %v5558
    %11707 = vst [vmem:[%s7 + $0x2e8] sm:$0xff] %v5559
    %11708 = vst [vmem:[%s7 + $0x2f0] sm:$0xff] %v5560
    %11709 = vst [vmem:[%s7 + $0x2f8] sm:$0xff] %v5561
    %11710 = vst [vmem:[%s7 + $0x300] sm:$0xff] %v5562
    %11711 = vst [vmem:[%s7 + $0x308] sm:$0xff] %v5563
    %11712 = vst [vmem:[%s7 + $0x310] sm:$0xff] %v5564
    %11713 = vst [vmem:[%s7 + $0x318] sm:$0xff] %v5565
    %11714 = vst [vmem:[%s7 + $0x320] sm:$0xff] %v5566
    %11715 = vst [vmem:[%s7 + $0x328] sm:$0xff] %v5567
    %11716 = vst [vmem:[%s7 + $0x330] sm:$0xff] %v5568
    %11717 = vst [vmem:[%s7 + $0x338] sm:$0xff] %v5569
    %11718 = vst [vmem:[%s7 + $0x340] sm:$0xff] %v5570
    %11719 = vst [vmem:[%s7 + $0x348] sm:$0xff] %v5571
    %11720 = vst [vmem:[%s7 + $0x350] sm:$0xff] %v5572
    %11721 = vst [vmem:[%s7 + $0x358] sm:$0xff] %v5573
    %11722 = vst [vmem:[%s7 + $0x360] sm:$0xff] %v5574
    %11723 = vst [vmem:[%s7 + $0x368] sm:$0xff] %v5575
    %11724 = vst [vmem:[%s7 + $0x370] sm:$0xff] %v5576
    %11725 = vst [vmem:[%s7 + $0x378] sm:$0xff] %v5577
    %11726 = vst [vmem:[%s7 + $0x380] sm:$0xff] %v5578
    %11727 = vst [vmem:[%s7 + $0x388] sm:$0xff] %v5579
    %11728 = vst [vmem:[%s7 + $0x390] sm:$0xff] %v5580
    %11729 = vst [vmem:[%s7 + $0x398] sm:$0xff] %v5581
    %11730 = vst [vmem:[%s7 + $0x3a0] sm:$0xff] %v5582
    %11731 = vst [vmem:[%s7 + $0x3a8] sm:$0xff] %v5583
    %11732 = vst [vmem:[%s7 + $0x3b0] sm:$0xff] %v5584
    %11733 = vst [vmem:[%s7 + $0x3b8] sm:$0xff] %v5585
    %11734 = vst [vmem:[%s7 + $0x3c0] sm:$0xff] %v5586
    %11735 = vst [vmem:[%s7 + $0x3c8] sm:$0xff] %v5587
    %11736 = vst [vmem:[%s7 + $0x3d0] sm:$0xff] %v5588
    %11737 = vst [vmem:[%s7 + $0x3d8] sm:$0xff] %v5589
    %11738 = vst [vmem:[%s7 + $0x3e0] sm:$0xff] %v5590
    %11739 = vst [vmem:[%s7 + $0x3e8] sm:$0xff] %v5591
    %11740 = vst [vmem:[%s7 + $0x3f0] sm:$0xff] %v5592
    %11741 = vst [vmem:[%s7 + $0x3f8] sm:$0xff] %v5593
    %11742 = vst [vmem:[%s7 + $0x400] sm:$0xff] %v5594
    %11743 = vst [vmem:[%s7 + $0x408] sm:$0xff] %v5595
    %11744 = vst [vmem:[%s7 + $0x410] sm:$0xff] %v5596
    %11745 = vst [vmem:[%s7 + $0x418] sm:$0xff] %v5597
    %11746 = vst [vmem:[%s7 + $0x420] sm:$0xff] %v5598
    %11747 = vst [vmem:[%s7 + $0x428] sm:$0xff] %v5599
    %11748 = vst [vmem:[%s7 + $0x430] sm:$0xff] %v5600
    %11749 = vst [vmem:[%s7 + $0x438] sm:$0xff] %v5601
    %11750 = vst [vmem:[%s7 + $0x440] sm:$0xff] %v5602
    %11751 = vst [vmem:[%s7 + $0x448] sm:$0xff] %v5603
    %11752 = vst [vmem:[%s7 + $0x450] sm:$0xff] %v5604
    %11753 = vst [vmem:[%s7 + $0x458] sm:$0xff] %v5605
    %11754 = vst [vmem:[%s7 + $0x460] sm:$0xff] %v5606
    %11755 = vst [vmem:[%s7 + $0x468] sm:$0xff] %v5607
    %11756 = vst [vmem:[%s7 + $0x470] sm:$0xff] %v5608
    %11757 = vst [vmem:[%s7 + $0x478] sm:$0xff] %v5609
    %11758 = vst [vmem:[%s7 + $0x480] sm:$0xff] %v5610
    %11759 = vst [vmem:[%s7 + $0x488] sm:$0xff] %v5611
    %11760 = vst [vmem:[%s7 + $0x490] sm:$0xff] %v5612
    %11761 = vst [vmem:[%s7 + $0x498] sm:$0xff] %v5613
    %11762 = vst [vmem:[%s7 + $0x4a0] sm:$0xff] %v5614
    %11763 = vst [vmem:[%s7 + $0x4a8] sm:$0xff] %v5615
    %11764 = vst [vmem:[%s7 + $0x4b0] sm:$0xff] %v5616
    %11765 = vst [vmem:[%s7 + $0x4b8] sm:$0xff] %v5617
    %11766 = vst [vmem:[%s7 + $0x4c0] sm:$0xff] %v5618
    %11767 = vst [vmem:[%s7 + $0x4c8] sm:$0xff] %v5619
    %11768 = vst [vmem:[%s7 + $0x4d0] sm:$0xff] %v5620
    %11769 = vst [vmem:[%s7 + $0x4d8] sm:$0xff] %v5621
    %11770 = vst [vmem:[%s7 + $0x4e0] sm:$0xff] %v5622
    %11771 = vst [vmem:[%s7 + $0x4e8] sm:$0xff] %v5623
    %11772 = vst [vmem:[%s7 + $0x4f0] sm:$0xff] %v5624
    %11773 = vst [vmem:[%s7 + $0x4f8] sm:$0xff] %v5625
    %11774 = vst [vmem:[%s7 + $0x500] sm:$0xff] %v5626
    %11775 = vst [vmem:[%s7 + $0x508] sm:$0xff] %v5627
    %11776 = vst [vmem:[%s7 + $0x510] sm:$0xff] %v5628
    %11777 = vst [vmem:[%s7 + $0x518] sm:$0xff] %v5629
    %11778 = vst [vmem:[%s7 + $0x520] sm:$0xff] %v5630
    %11779 = vst [vmem:[%s7 + $0x528] sm:$0xff] %v5631
    %11780 = vst [vmem:[%s7 + $0x530] sm:$0xff] %v5632
    %11781 = vst [vmem:[%s7 + $0x538] sm:$0xff] %v5633
    %11782 = vst [vmem:[%s7 + $0x540] sm:$0xff] %v5634
    %11783 = vst [vmem:[%s7 + $0x548] sm:$0xff] %v5635
    %11784 = vst [vmem:[%s7 + $0x550] sm:$0xff] %v5636
    %11785 = vst [vmem:[%s7 + $0x558] sm:$0xff] %v5637
    %11786 = vst [vmem:[%s7 + $0x560] sm:$0xff] %v5638
    %11787 = vst [vmem:[%s7 + $0x568] sm:$0xff] %v5639
    %11788 = vst [vmem:[%s7 + $0x570] sm:$0xff] %v5640
    %11789 = vst [vmem:[%s7 + $0x578] sm:$0xff] %v5641
    %11790 = vst [vmem:[%s7 + $0x580] sm:$0xff] %v5642
    %11791 = vst [vmem:[%s7 + $0x588] sm:$0xff] %v5643
    %11792 = vst [vmem:[%s7 + $0x590] sm:$0xff] %v5644
    %11793 = vst [vmem:[%s7 + $0x598] sm:$0xff] %v5645
    %11794 = vst [vmem:[%s7 + $0x5a0] sm:$0xff] %v5646
    %11795 = vst [vmem:[%s7 + $0x5a8] sm:$0xff] %v5647
    %11796 = vst [vmem:[%s7 + $0x5b0] sm:$0xff] %v5648
    %11797 = vst [vmem:[%s7 + $0x5b8] sm:$0xff] %v5649
    %11798 = vst [vmem:[%s7 + $0x5c0] sm:$0xff] %v5650
    %11799 = vst [vmem:[%s7 + $0x5c8] sm:$0xff] %v5651
    %11800 = vst [vmem:[%s7 + $0x5d0] sm:$0xff] %v5652
    %11801 = vst [vmem:[%s7 + $0x5d8] sm:$0xff] %v5653
    %11802 = vst [vmem:[%s7 + $0x5e0] sm:$0xff] %v5654
    %11803 = vst [vmem:[%s7 + $0x5e8] sm:$0xff] %v5655
    %11804 = vst [vmem:[%s7 + $0x5f0] sm:$0xff] %v5656
    %11805 = vst [vmem:[%s7 + $0x5f8] sm:$0xff] %v5657
    %v11808 = vcombine.low %v11610, %v11612
    %v11810 = vunpack.c.l.s4 1966171168
    %v11811 = vunpack.c.0.s8 %v11810
    %v11812 = vlaneseq
    %v11813 = vshrl.u32 %v11812, 7
    %v11814 = vsub.s32 %v11811, %v11813
    %v11815 = vrot.slane %v11808, %v11814
    %v11817 = vunpack.c.l.s4 1966171168
    %v11818 = vunpack.c.0.s8 %v11817
    %v11819 = vlaneseq
    %v11820 = vshrl.u32 %v11819, 7
    %v11821 = vsub.s32 %v11818, %v11820
    %v11822 = vrot.slane %v11815, %v11821
    %v11824 = vlaneseq
    %vm11825 = vcmp.ge.s32.totalorder %v11824, 0
    %vm11826 = vcmp.lt.s32.totalorder %v11824, 256
    %vm11827 = vmand %vm11825, %vm11826
    %11828 = vst.msk [vmem:[%s8] sm:$0x3] %vm11827, %v11822
    %p11829 = scmp.eq.s32.totalorder 0, 0
    // Predicated region
    $region34: #{_lambda_.2} parent=1 // pred_check
      %p11830 = pneg %p11829
    $region35: #{_lambda_.2} parent=1 // pred_check_branch
      %11832 = sbr.rel (%p11830) target = $region37
    $region36: #{_lambda_.2} parent=1 // pred_region
      %vm11833 = vcmask 0
      %11834 = vst.msk [vmem:[#allocation2] sm:$0x1] %vm11833, -inf
      %11835 = vst.msk [vmem:[#allocation3] sm:$0x1] %vm11833, 0.0
      %vm11836 = vcmp.lt.s32.totalorder %v11824, 768
      %vm11837 = vmand %vm11825, %vm11836
      %11838 = vst.msk [vmem:[#allocation4] sm:$0x3f] %vm11837, 0.0
    $region37: #{_lambda_.2} parent=1 // pred_fallthru
      _
    %vm11839 = vcmask 1040384
    %v11840 = vsel %vm11839, %v11610, -inf
    %v11841 = vsel %vm11839, %v11612, -inf
    %v11842 = vmax.f32 %v11840, %v11841
    %11843 = vmax.xlane.f32.xlu0 %v11842
    %v11844 = vpop.xlane.xlu0 %11843
    %v11845 = vld [vmem:[#allocation2] sm:$0x1]
    %v11846 = vmax.f32 %v11845, %v11844
    %v11847 = vsub.f32 %v11845, %v11846
    %v11848 = vmul.f32 %v11847, 1.442695
    %v11849 = vpow.pop %v11848
    %11851 = vset.pattern.permute.xlu0 0
    %11852 = vperm.xlu0 %11851, %v11846
    %v11853 = vpop.permute.xlu0 %11852
    %v11855 = vlaneseq
    %v11856 = vshrl.u32 %v11855, 7
    %v11857 = vsub.s32 0, %v11856
    %v11858 = vrot.slane %v11853, %v11857
    %v11859 = vsub.f32 %v11610, %v11858
    %v11860 = vsub.f32 %v11612, %v11858
    %v11861 = vmul.f32 %v11859, 1.442695
    %v11862 = vpow.pop %v11861
    %v11863 = vmul.f32 %v11860, 1.442695
    %v11864 = vpow.pop %v11863
    %v11865 = vld [vmem:[#allocation3] sm:$0x1]
    %v11866 = vmul.f32 %v11849, %v11865
    %v11867 = vsel %vm11839, %v11862, 0.0
    %v11868 = vsel %vm11839, %v11864, 0.0
    %v11869 = vadd.f32 %v11867, %v11868
    %11870 = vadd.xlane.f32.xlu0 %v11869
    %v11871 = vpop.xlane.xlu0 %11870
    %v11872 = vadd.f32 %v11866, %v11871
    %vm11873 = vcmask 0
    %11874 = vst.msk [vmem:[#allocation3] sm:$0x1] %vm11873, %v11872
    %v11875 = vld [vmem:[#allocation4] sm:$0x3f]
    %11877 = vset.pattern.permute.xlu0 0
    %11878 = vperm.xlu0 %11877, %v11849
    %v11879 = vpop.permute.xlu0 %11878
    %v11881 = vlaneseq
    %v11882 = vshrl.u32 %v11881, 7
    %v11883 = vsub.s32 0, %v11882
    %v11884 = vrot.slane %v11879, %v11883
    %v11885 = vmul.f32 %v11884, %v11875
    %11886 = vmatprep.subr.mxu0 %v5467
    %11887 = vmatpush1.msra.mxu0 %v5466
    %11888 = vmatprep.subr.mxu0 %v5473
    %11889 = vmatpush1.msra.mxu0 %v5472
    %11890 = vmatprep.subr.mxu0 %v5479
    %11891 = vmatpush1.msra.mxu0 %v5478
    %11892 = vmatprep.subr.mxu0 %v5485
    %11893 = vmatpush1.msra.mxu0 %v5484
    %11894 = vmatprep.subr.mxu0 %v5491
    %11895 = vmatpush1.msra.mxu0 %v5490
    %11896 = vmatprep.subr.mxu0 %v5497
    %11897 = vmatpush1.msra.mxu0 %v5496
    %11898 = vmatprep.subr.mxu0 %v5503
    %11899 = vmatpush1.msra.mxu0 %v5502
    %11900 = vmatprep.subr.mxu0 %v5509
    %11901 = vmatpush1.msra.mxu0 %v5508
    %11902 = vmatprep.subr.mxu0 %v5515
    %11903 = vmatpush1.msra.mxu0 %v5514
    %11904 = vmatprep.subr.mxu0 %v5521
    %11905 = vmatpush1.msra.mxu0 %v5520
    %11906 = vmatprep.subr.mxu0 %v5527
    %11907 = vmatpush1.msra.mxu0 %v5526
    %11908 = vmatprep.subr.mxu0 %v5533
    %11909 = vmatpush1.msra.mxu0 %v5532
    %11910 = vmatprep.subr.mxu0 %v5539
    %11911 = vmatpush1.msra.mxu0 %v5538
    %11912 = vmatprep.subr.mxu0 %v5545
    %11913 = vmatpush1.msra.mxu0 %v5544
    %11914 = vmatprep.subr.mxu0 %v5551
    %11915 = vmatpush1.msra.mxu0 %v5550
    %11916 = vmatprep.subr.mxu0 %v5557
    %11917 = vmatpush1.msra.mxu0 %v5556
    %11918 = vmatprep.subr.mxu0 %v5563
    %11919 = vmatpush1.msra.mxu0 %v5562
    %11920 = vmatprep.subr.mxu0 %v5569
    %11921 = vmatpush1.msra.mxu0 %v5568
    %11922 = vmatprep.subr.mxu0 %v5575
    %11923 = vmatpush1.msra.mxu0 %v5574
    %11924 = vmatprep.subr.mxu0 %v5581
    %11925 = vmatpush1.msra.mxu0 %v5580
    %11926 = vmatprep.subr.mxu0 %v5587
    %11927 = vmatpush1.msra.mxu0 %v5586
    %11928 = vmatprep.subr.mxu0 %v5593
    %11929 = vmatpush1.msra.mxu0 %v5592
    %11930 = vmatprep.subr.mxu0 %v5599
    %11931 = vmatpush1.msra.mxu0 %v5598
    %11932 = vmatprep.subr.mxu0 %v5605
    %11933 = vmatpush1.msra.mxu0 %v5604
    %11934 = vmatprep.subr.mxu0 %v5611
    %11935 = vmatpush1.msra.mxu0 %v5610
    %11936 = vmatprep.subr.mxu0 %v5617
    %11937 = vmatpush1.msra.mxu0 %v5616
    %11938 = vmatprep.subr.mxu0 %v5623
    %11939 = vmatpush1.msra.mxu0 %v5622
    %11940 = vmatprep.subr.mxu0 %v5629
    %11941 = vmatpush1.msra.mxu0 %v5628
    %11942 = vmatprep.subr.mxu0 %v5635
    %11943 = vmatpush1.msra.mxu0 %v5634
    %11944 = vmatprep.subr.mxu0 %v5641
    %11945 = vmatpush1.msra.mxu0 %v5640
    %11946 = vmatprep.subr.mxu0 %v5647
    %11947 = vmatpush1.msra.mxu0 %v5646
    %11948 = vmatprep.subr.mxu0 %v5653
    %11949 = vmatpush1.msra.mxu0 %v5652
    %11950 = vmatprep.mubr.f32.mxu0 %v11864
    %11951 = vmatmul.mubr.f32.gmra.mrb[0].mxu0 %v11862
    %v11952 = vpop.f32.mrb[0].mxu0
    %v11953 = vadd.f32 0.0, %v11952
    %v11954 = vpop.f32.mrb[0].mxu0
    %v11955 = vadd.f32 0.0, %v11954
    %11956 = vdwg.mxu0
    %11957 = vmatprep.subr.mxu0 %v5469
    %11958 = vmatpush1.msra.mxu0 %v5468
    %11959 = vmatprep.subr.mxu0 %v5475
    %11960 = vmatpush1.msra.mxu0 %v5474
    %11961 = vmatprep.subr.mxu0 %v5481
    %11962 = vmatpush1.msra.mxu0 %v5480
    %11963 = vmatprep.subr.mxu0 %v5487
    %11964 = vmatpush1.msra.mxu0 %v5486
    %11965 = vmatprep.subr.mxu0 %v5493
    %11966 = vmatpush1.msra.mxu0 %v5492
    %11967 = vmatprep.subr.mxu0 %v5499
    %11968 = vmatpush1.msra.mxu0 %v5498
    %11969 = vmatprep.subr.mxu0 %v5505
    %11970 = vmatpush1.msra.mxu0 %v5504
    %11971 = vmatprep.subr.mxu0 %v5511
    %11972 = vmatpush1.msra.mxu0 %v5510
    %11973 = vmatprep.subr.mxu0 %v5517
    %11974 = vmatpush1.msra.mxu0 %v5516
    %11975 = vmatprep.subr.mxu0 %v5523
    %11976 = vmatpush1.msra.mxu0 %v5522
    %11977 = vmatprep.subr.mxu0 %v5529
    %11978 = vmatpush1.msra.mxu0 %v5528
    %11979 = vmatprep.subr.mxu0 %v5535
    %11980 = vmatpush1.msra.mxu0 %v5534
    %11981 = vmatprep.subr.mxu0 %v5541
    %11982 = vmatpush1.msra.mxu0 %v5540
    %11983 = vmatprep.subr.mxu0 %v5547
    %11984 = vmatpush1.msra.mxu0 %v5546
    %11985 = vmatprep.subr.mxu0 %v5553
    %11986 = vmatpush1.msra.mxu0 %v5552
    %11987 = vmatprep.subr.mxu0 %v5559
    %11988 = vmatpush1.msra.mxu0 %v5558
    %11989 = vmatprep.subr.mxu0 %v5565
    %11990 = vmatpush1.msra.mxu0 %v5564
    %11991 = vmatprep.subr.mxu0 %v5571
    %11992 = vmatpush1.msra.mxu0 %v5570
    %11993 = vmatprep.subr.mxu0 %v5577
    %11994 = vmatpush1.msra.mxu0 %v5576
    %11995 = vmatprep.subr.mxu0 %v5583
    %11996 = vmatpush1.msra.mxu0 %v5582
    %11997 = vmatprep.subr.mxu0 %v5589
    %11998 = vmatpush1.msra.mxu0 %v5588
    %11999 = vmatprep.subr.mxu0 %v5595
    %12000 = vmatpush1.msra.mxu0 %v5594
    %12001 = vmatprep.subr.mxu0 %v5601
    %12002 = vmatpush1.msra.mxu0 %v5600
    %12003 = vmatprep.subr.mxu0 %v5607
    %12004 = vmatpush1.msra.mxu0 %v5606
    %12005 = vmatprep.subr.mxu0 %v5613
    %12006 = vmatpush1.msra.mxu0 %v5612
    %12007 = vmatprep.subr.mxu0 %v5619
    %12008 = vmatpush1.msra.mxu0 %v5618
    %12009 = vmatprep.subr.mxu0 %v5625
    %12010 = vmatpush1.msra.mxu0 %v5624
    %12011 = vmatprep.subr.mxu0 %v5631
    %12012 = vmatpush1.msra.mxu0 %v5630
    %12013 = vmatprep.subr.mxu0 %v5637
    %12014 = vmatpush1.msra.mxu0 %v5636
    %12015 = vmatprep.subr.mxu0 %v5643
    %12016 = vmatpush1.msra.mxu0 %v5642
    %12017 = vmatprep.subr.mxu0 %v5649
    %12018 = vmatpush1.msra.mxu0 %v5648
    %12019 = vmatprep.subr.mxu0 %v5655
    %12020 = vmatpush1.msra.mxu0 %v5654
    %12021 = vmatprep.mubr.f32.mxu0 %v11864
    %12022 = vmatmul.mubr.f32.gmra.mrb[0].mxu0 %v11862
    %v12023 = vpop.f32.mrb[0].mxu0
    %v12024 = vadd.f32 0.0, %v12023
    %v12025 = vpop.f32.mrb[0].mxu0
    %v12026 = vadd.f32 0.0, %v12025
    %12027 = vdwg.mxu0
    %12028 = vmatprep.subr.mxu0 %v5471
    %12029 = vmatpush1.msra.mxu0 %v5470
    %12030 = vmatprep.subr.mxu0 %v5477
    %12031 = vmatpush1.msra.mxu0 %v5476
    %12032 = vmatprep.subr.mxu0 %v5483
    %12033 = vmatpush1.msra.mxu0 %v5482
    %12034 = vmatprep.subr.mxu0 %v5489
    %12035 = vmatpush1.msra.mxu0 %v5488
    %12036 = vmatprep.subr.mxu0 %v5495
    %12037 = vmatpush1.msra.mxu0 %v5494
    %12038 = vmatprep.subr.mxu0 %v5501
    %12039 = vmatpush1.msra.mxu0 %v5500
    %12040 = vmatprep.subr.mxu0 %v5507
    %12041 = vmatpush1.msra.mxu0 %v5506
    %12042 = vmatprep.subr.mxu0 %v5513
    %12043 = vmatpush1.msra.mxu0 %v5512
    %12044 = vmatprep.subr.mxu0 %v5519
    %12045 = vmatpush1.msra.mxu0 %v5518
    %12046 = vmatprep.subr.mxu0 %v5525
    %12047 = vmatpush1.msra.mxu0 %v5524
    %12048 = vmatprep.subr.mxu0 %v5531
    %12049 = vmatpush1.msra.mxu0 %v5530
    %12050 = vmatprep.subr.mxu0 %v5537
    %12051 = vmatpush1.msra.mxu0 %v5536
    %12052 = vmatprep.subr.mxu0 %v5543
    %12053 = vmatpush1.msra.mxu0 %v5542
    %12054 = vmatprep.subr.mxu0 %v5549
    %12055 = vmatpush1.msra.mxu0 %v5548
    %12056 = vmatprep.subr.mxu0 %v5555
    %12057 = vmatpush1.msra.mxu0 %v5554
    %12058 = vmatprep.subr.mxu0 %v5561
    %12059 = vmatpush1.msra.mxu0 %v5560
    %12060 = vmatprep.subr.mxu0 %v5567
    %12061 = vmatpush1.msra.mxu0 %v5566
    %12062 = vmatprep.subr.mxu0 %v5573
    %12063 = vmatpush1.msra.mxu0 %v5572
    %12064 = vmatprep.subr.mxu0 %v5579
    %12065 = vmatpush1.msra.mxu0 %v5578
    %12066 = vmatprep.subr.mxu0 %v5585
    %12067 = vmatpush1.msra.mxu0 %v5584
    %12068 = vmatprep.subr.mxu0 %v5591
    %12069 = vmatpush1.msra.mxu0 %v5590
    %12070 = vmatprep.subr.mxu0 %v5597
    %12071 = vmatpush1.msra.mxu0 %v5596
    %12072 = vmatprep.subr.mxu0 %v5603
    %12073 = vmatpush1.msra.mxu0 %v5602
    %12074 = vmatprep.subr.mxu0 %v5609
    %12075 = vmatpush1.msra.mxu0 %v5608
    %12076 = vmatprep.subr.mxu0 %v5615
    %12077 = vmatpush1.msra.mxu0 %v5614
    %12078 = vmatprep.subr.mxu0 %v5621
    %12079 = vmatpush1.msra.mxu0 %v5620
    %12080 = vmatprep.subr.mxu0 %v5627
    %12081 = vmatpush1.msra.mxu0 %v5626
    %12082 = vmatprep.subr.mxu0 %v5633
    %12083 = vmatpush1.msra.mxu0 %v5632
    %12084 = vmatprep.subr.mxu0 %v5639
    %12085 = vmatpush1.msra.mxu0 %v5638
    %12086 = vmatprep.subr.mxu0 %v5645
    %12087 = vmatpush1.msra.mxu0 %v5644
    %12088 = vmatprep.subr.mxu0 %v5651
    %12089 = vmatpush1.msra.mxu0 %v5650
    %12090 = vmatprep.subr.mxu0 %v5657
    %12091 = vmatpush1.msra.mxu0 %v5656
    %12092 = vmatprep.mubr.f32.mxu0 %v11864
    %12093 = vmatmul.mubr.f32.gmra.mrb[0].mxu0 %v11862
    %v12094 = vpop.f32.mrb[0].mxu0
    %v12095 = vadd.f32 0.0, %v12094
    %v12096 = vpop.f32.mrb[0].mxu0
    %v12097 = vadd.f32 0.0, %v12096
    %12098 = vdwg.mxu0
    %v12105 = vcombine.low %v11953, %v11955
    %v12106 = vcombine.low %v12024, %v12026
    %v12107 = vcombine.low %v12095, %v12097
    %v12109 = vunpack.c.l.s4 1966171168
    %v12110 = vunpack.c.0.s8 %v12109
    %v12111 = vlaneseq
    %v12112 = vshrl.u32 %v12111, 7
    %v12113 = vsub.s32 %v12110, %v12112
    %v12114 = vrot.slane %v12105, %v12113
    %v12116 = vunpack.c.l.s4 1966171168
    %v12117 = vunpack.c.0.s8 %v12116
    %v12118 = vlaneseq
    %v12119 = vshrl.u32 %v12118, 7
    %v12120 = vsub.s32 %v12117, %v12119
    %v12121 = vrot.slane %v12106, %v12120
    %v12123 = vunpack.c.l.s4 1966171168
    %v12124 = vunpack.c.0.s8 %v12123
    %v12125 = vlaneseq
    %v12126 = vshrl.u32 %v12125, 7
    %v12127 = vsub.s32 %v12124, %v12126
    %v12128 = vrot.slane %v12107, %v12127
    %v12129 = vcombine.low %v12114, %v12121
    %v12131 = vunpack.c.l.s4 1966171168
    %v12132 = vunpack.c.0.s8 %v12131
    %v12133 = vlaneseq
    %v12134 = vshrl.u32 %v12133, 7
    %v12135 = vsub.s32 %v12132, %v12134
    %v12136 = vrot.slane %v12129, %v12135
    %v12138 = vunpack.c.l.s4 1966171168
    %v12139 = vunpack.c.0.s8 %v12138
    %v12140 = vlaneseq
    %v12141 = vshrl.u32 %v12140, 7
    %v12142 = vsub.s32 %v12139, %v12141
    %v12143 = vrot.slane %v12128, %v12142
    %v12144 = vcombine.low %v12136, %v12143
    %v12146 = vadd.f32 %v11885, %v12144
    %vm12147 = vcmp.lt.s32.totalorder %v11824, 768
    %vm12148 = vmand %vm11825, %vm12147
    %12149 = vst.msk [vmem:[#allocation4] sm:$0x3f] %vm12148, %v12146
    %12150 = vst.msk [vmem:[#allocation2] sm:$0x1] %vm11873, %v11846
    // Predicated region
    $region38: #{_lambda_.2} parent=1 // pred_check
      %p12151 = pneg %p11829
    $region39: #{_lambda_.2} parent=1 // pred_check_branch
      %12153 = sbr.rel (%p12151) target = $region41
    $region40: #{_lambda_.2} parent=1 // pred_region
      %v12154 = vld [vmem:[#allocation4] sm:$0x3f]
      %v12155 = vld [vmem:[#allocation3] sm:$0x1]
      %12157 = vset.pattern.permute.xlu0 0
      %12158 = vperm.xlu0 %12157, %v12155
      %v12159 = vpop.permute.xlu0 %12158
      %v12161 = vlaneseq
      %v12162 = vshrl.u32 %v12161, 7
      %v12163 = vsub.s32 0, %v12162
      %v12164 = vrot.slane %v12159, %v12163
      %v12165 = vrcp.pop %v12164
      %v12166 = vmul.f32 %v12154, %v12165
      %12167 = vst.msk [vmem:[#allocation9] sm:$0x3f] %vm12148, %v12166
    $region41: #{_lambda_.2} parent=1 // pred_fallthru
      _
    // Predicated region
    $region42: #{_lambda_.2} parent=1 // pred_check
      _
    $region43: #{_lambda_.2} parent=1 // pred_check_branch
      %12169 = sbr.rel (0) target = $region45
    $region44: #{_lambda_.2} parent=1 // pred_region
      _
    $region45: #{_lambda_.2} parent=1 // pred_fallthru
      _
    // Predicated region
    $region46: #{_lambda_.2} parent=1 // pred_check
      _
    $region47: #{_lambda_.2} parent=1 // pred_check_branch
      %12171 = sbr.rel (0) target = $region49
    $region48: #{_lambda_.2} parent=1 // pred_region
      _
    $region49: #{_lambda_.2} parent=1 // pred_fallthru
      _
    // Predicated region
    $region50: #{_lambda_.2} parent=1 // pred_check
      _
    $region51: #{_lambda_.2} parent=1 // pred_check_branch
      %12173 = sbr.rel (0) target = $region53
    $region52: #{_lambda_.2} parent=1 // pred_region
      %s12175 = ssub.s32 96, 96
      %12176 = vsyncadd [#allocation8], %s12175
      %s12178 = sshll.u32 [#allocation9], 4
      %s12179 = int_to_ptr.vmem [resolvable:$true] %s12178
      %12181 = dma.vmem_to_hbm [thread:$0]  %s12179, 96, %s9, [#allocation8]
    $region53: #{_lambda_.2} parent=1 // pred_fallthru
      _
    // Predicated region
    $region54: #{_lambda_.2} parent=1 // pred_check
      _
    $region55: #{_lambda_.2} parent=1 // pred_check_branch
      %12183 = sbr.rel (0) target = $region57
    $region56: #{_lambda_.2} parent=1 // pred_region
      _
    $region57: #{_lambda_.2} parent=1 // pred_fallthru
      _
    // Predicated region
    $region58: #{_lambda_.2} parent=1 // pred_check
      _
    $region59: #{_lambda_.2} parent=1 // pred_check_branch
      %12185 = sbr.rel (0) target = $region61
    $region60: #{_lambda_.2} parent=1 // pred_region
      _
    $region61: #{_lambda_.2} parent=1 // pred_fallthru
      _
    // Predicated region
    $region62: #{_lambda_.2} parent=1 // pred_check
      _
    $region63: #{_lambda_.2} parent=1 // pred_check_branch
      %12187 = sbr.rel (0) target = $region65
    $region64: #{_lambda_.2} parent=1 // pred_region
      %12188 = dma.done [#allocation8], 96
    $region65: #{_lambda_.2} parent=1 // pred_fallthru
      _
    %12189 = vsyncpa [#allocation7], 1
    %12190 = vsyncpa [#allocation8], 1

</llo_original>
